<compile_context>
chip_gen: v7x
topology: tpu7x:2x2x1
jax: 0.10.0
libtpu: 0.0.40
codegen_flags: <defaults>
</compile_context>

<pallas_src>
import math

import jax
import jax.numpy as jnp
from jax.experimental import pallas as pl
from jax.experimental.pallas import tpu as pltpu

D = 32            # model size
H = 8             # attention heads
DH = D // H       # head dim
FF = 4 * D        # feed-forward hidden
N_LAYERS = 3
EPS = 1e-5        # nn.LayerNorm default eps
RESCALE = 1.0 / math.sqrt(2)


def _layer_norm(v, g, b):
    mu = jnp.mean(v, axis=-1, keepdims=True)
    var = jnp.mean((v - mu) ** 2, axis=-1, keepdims=True)
    return (v - mu) * jax.lax.rsqrt(var + EPS) * g + b


def make_encoder_call(B, Tx, Ty, L, skip_connect=False, batch_blocks=1):
    """Builds a single pallas_call that runs all L encoder layers."""
    assert B % batch_blocks == 0
    BB = B // batch_blocks        # batch elements per grid block
    N = BB * Tx                   # flattened rows per block

    def kernel(
        x_ref, xm_ref, nf_ref, nl_ref, y_ref, ym_ref,
        ln1g, ln1b, cw, cb, ln2g, ln2b,
        wq, bq, wk, bk, wv, bv, wo, bo,
        ln3g, ln3b, w1, b1, w2, b2,
        o_ref, x_sc, ctx_sc,
    ):
        layer = pl.program_id(1)

        # Initialize the carried activation at the first layer of this block.
        @pl.when(layer == 0)
        def _():
            x_sc[...] = x_ref[...]

        x = x_sc[...]          # (N, D)  activations carried across layers
        xm = xm_ref[...]       # (N, 1)  x_mask
        nf = nf_ref[...]       # (N, 1)  0 on the first timestep of each batch row
        nl = nl_ref[...]       # (N, 1)  0 on the last timestep of each batch row
        yv = y_ref[...]        # (BB*Ty, D)
        ym = ym_ref[...]       # (BB, 1, Ty)

        # ---- conv sub-block: LN1 -> Conv1d(k=3,pad=1) -> ReLU -> (+ x*mask) ----
        h = _layer_norm(x, ln1g[...], ln1b[...])
        h_prev = pltpu.roll(h, 1, axis=0) * nf          # h[t-1] (non-neg shift)
        h_next = pltpu.roll(h, N - 1, axis=0) * nl      # h[t+1] (== shift -1)
        conv = (
            jnp.dot(h_prev, cw[0], preferred_element_type=jnp.float32)
            + jnp.dot(h, cw[1], preferred_element_type=jnp.float32)
            + jnp.dot(h_next, cw[2], preferred_element_type=jnp.float32)
            + cb[...]
        )
        h1 = jnp.maximum(conv, 0.0) + x * xm            # residual_connect(h1, x*mask)

        # ---- cross attention: LN2 -> MHA(q=h2n, k=v=y) -> (+ h1) ----
        h2n = _layer_norm(h1, ln2g[...], ln2b[...])
        q = jnp.dot(h2n, wq[...], preferred_element_type=jnp.float32) + bq[...]
        k = jnp.dot(yv, wk[...], preferred_element_type=jnp.float32) + bk[...]
        v = jnp.dot(yv, wv[...], preferred_element_type=jnp.float32) + bv[...]
        q3 = q.reshape(BB, Tx, D)
        k3 = k.reshape(BB, Ty, D)
        v3 = v.reshape(BB, Ty, D)
        bias = jnp.where(ym > 0.0, 0.0, -1e9)           # (BB, 1, Ty)
        scale = 1.0 / math.sqrt(DH)

        for hh in range(H):
            lo = hh * DH
            qs = q3[:, :, lo:lo + DH]                   # (BB, Tx, DH)
            ks = k3[:, :, lo:lo + DH]                   # (BB, Ty, DH)
            vs = v3[:, :, lo:lo + DH]
            s = jax.lax.dot_general(                    # (BB, Tx, Ty)
                qs, ks, (((2,), (2,)), ((0,), (0,))),
                preferred_element_type=jnp.float32) * scale
            s = s + bias
            s = s - jnp.max(s, axis=-1, keepdims=True)
            p = jnp.exp(s)
            p = p * pl.reciprocal(jnp.sum(p, axis=-1, keepdims=True), approx=True)
            ctx_h = jax.lax.dot_general(                # (BB, Tx, DH)
                p, vs, (((2,), (1,)), ((0,), (0,))),
                preferred_element_type=jnp.float32)
            ctx_sc[:, lo:lo + DH] = ctx_h.reshape(N, DH)

        attn = jnp.dot(ctx_sc[...], wo[...],
                       preferred_element_type=jnp.float32) + bo[...]
        h2 = attn + h1

        # ---- feed forward: LN3 -> Linear -> ReLU -> Linear -> (+ h2) ----
        h3n = _layer_norm(h2, ln3g[...], ln3b[...])
        ff = jnp.maximum(
            jnp.dot(h3n, w1[...], preferred_element_type=jnp.float32) + b1[...],
            0.0)
        ff = jnp.dot(ff, w2[...], preferred_element_type=jnp.float32) + b2[...]
        h3 = ff + h2

        # ---- encoder-level update: x_new = prev_x + x_mask * layer_out ----
        x_new = x + xm * h3
        if skip_connect:   # static flag; x_ref holds the original encoder input
            x_new = RESCALE * (x_ref[...] + x_new)
        x_sc[...] = x_new

        @pl.when(layer == L - 1)
        def _():
            o_ref[...] = x_new

    amap = lambda nb, l: (nb, 0)
    amap3 = lambda nb, l: (nb, 0, 0)

    def wspec(*dims):
        n = len(dims)
        return pl.BlockSpec((None,) + tuple(dims), lambda nb, l: (l,) + (0,) * n)

    in_specs = [
        pl.BlockSpec((N, D), amap),          # x (flattened B*Tx, D)
        pl.BlockSpec((N, 1), amap),          # x_mask
        pl.BlockSpec((N, 1), amap),          # conv not-first-row mask
        pl.BlockSpec((N, 1), amap),          # conv not-last-row mask
        pl.BlockSpec((BB * Ty, D), amap),    # y (flattened B*Ty, D)
        pl.BlockSpec((BB, 1, Ty), amap3),    # y_mask
        wspec(1, D), wspec(1, D),            # ln1 gamma, beta
        wspec(3, D, D), wspec(1, D),         # conv weight [tap,in,out], bias
        wspec(1, D), wspec(1, D),            # ln2 gamma, beta
        wspec(D, D), wspec(1, D),            # wq, bq
        wspec(D, D), wspec(1, D),            # wk, bk
        wspec(D, D), wspec(1, D),            # wv, bv
        wspec(D, D), wspec(1, D),            # wo, bo
        wspec(1, D), wspec(1, D),            # ln3 gamma, beta
        wspec(D, FF), wspec(1, FF),          # ff w1, b1
        wspec(FF, D), wspec(1, D),           # ff w2, b2
    ]

    return pl.pallas_call(
        kernel,
        out_shape=jax.ShapeDtypeStruct((B * Tx, D), jnp.float32),
        grid_spec=pltpu.PrefetchScalarGridSpec(
            num_scalar_prefetch=0,
            grid=(batch_blocks, L),               # layers innermost (carry in VMEM)
            in_specs=in_specs,
            out_specs=pl.BlockSpec((N, D), amap),
            scratch_shapes=[pltpu.VMEM((N, D), jnp.float32),   # carried x
                            pltpu.VMEM((N, D), jnp.float32)]), # attention ctx slab
        compiler_params=pltpu.CompilerParams(
            dimension_semantics=("parallel", "arbitrary")),
    )


def conv_cross_encoder(x, x_mask, y, y_mask, params, skip_connect=False,
                       batch_blocks=1):
    """embed_layer is None -> x is assumed pre-embedded (B, Tx, D) float32.

    batch_blocks=1 folds the whole batch into one grid block (best on single-TC
    v5e/v6e); batch_blocks=2 gives a size-2 'parallel' axis for v7x's two TCs.
    """
    B, Tx, _ = x.shape
    Ty = y.shape[1]
    L = len(params)
    call = make_encoder_call(B, Tx, Ty, L, skip_connect, batch_blocks)

    # Stack per-layer params along a leading (L, ...) axis.
    stacked = tuple(jnp.stack(ws) for ws in zip(*params))

    # Lane-/sublane-friendly flattening done in the wrapper (layout plumbing).
    xf = x.reshape(B * Tx, D)
    xmf = x_mask.astype(jnp.float32).reshape(B * Tx, 1)
    yf = y.reshape(B * Ty, D)
    ym3 = y_mask.astype(jnp.float32)[:, None, :]          # (B, 1, Ty)
    t = jnp.arange(Tx)
    nf = jnp.tile(t > 0, (B,)).astype(jnp.float32).reshape(B * Tx, 1)
    nl = jnp.tile(t < Tx - 1, (B,)).astype(jnp.float32).reshape(B * Tx, 1)

    out = call(xf, xmf, nf, nl, yf, ym3, *stacked)
    return out.reshape(B, Tx, D)


# ---------------------------- parameters -----------------------------------

def init_layer_params(key):
    ks = jax.random.split(key, 8)
    w = lambda k, shape, fan_in: jax.random.normal(k, shape, jnp.float32) / math.sqrt(fan_in)
    ln1g, ln1b = jnp.ones((1, D)), jnp.zeros((1, D))
    cw = w(ks[0], (3, D, D), 3 * D)                       # [tap, in, out]
    cb = 0.01 * jax.random.normal(ks[1], (1, D), jnp.float32)
    ln2g, ln2b = jnp.ones((1, D)), jnp.zeros((1, D))
    wq, bq = w(ks[2], (D, D), D), jnp.zeros((1, D))
    wk, bk = w(ks[3], (D, D), D), jnp.zeros((1, D))
    wv, bv = w(ks[4], (D, D), D), jnp.zeros((1, D))
    wo, bo = w(ks[5], (D, D), D), jnp.zeros((1, D))
    ln3g, ln3b = jnp.ones((1, D)), jnp.zeros((1, D))
    w1, b1 = w(ks[6], (D, FF), D), jnp.zeros((1, FF))
    w2, b2 = w(ks[7], (FF, D), FF), jnp.zeros((1, D))
    return (ln1g, ln1b, cw, cb, ln2g, ln2b,
            wq, bq, wk, bk, wv, bv, wo, bo,
            ln3g, ln3b, w1, b1, w2, b2)


# ---------------------------- pure-JAX reference ----------------------------

def _ref_layer(x, xm, y, ym, p):
    (ln1g, ln1b, cw, cb, ln2g, ln2b, wq, bq, wk, bk, wv, bv, wo, bo,
     ln3g, ln3b, w1, b1, w2, b2) = p
    def ln(v, g, b):
        mu = v.mean(-1, keepdims=True)
        var = ((v - mu) ** 2).mean(-1, keepdims=True)
        return (v - mu) / jnp.sqrt(var + EPS) * g + b
    h = ln(x, ln1g, ln1b)
    hp = jnp.pad(h, ((0, 0), (1, 1), (0, 0)))
    conv = hp[:, :-2] @ cw[0] + hp[:, 1:-1] @ cw[1] + hp[:, 2:] @ cw[2] + cb
    conv = jnp.maximum(conv, 0.0)
    h1 = conv + x * xm[:, :, None]
    h2n = ln(h1, ln2g, ln2b)
    q, k, v = h2n @ wq + bq, y @ wk + bk, y @ wv + bv
    B, Tx, _ = x.shape
    Ty = y.shape[1]
    qh = q.reshape(B, Tx, H, DH)
    kh = k.reshape(B, Ty, H, DH)
    vh = v.reshape(B, Ty, H, DH)
    s = jnp.einsum("bqhd,bkhd->bhqk", qh, kh) / math.sqrt(DH)
    s = s + jnp.where(ym[:, None, None, :] > 0, 0.0, -1e9)
    pa = jax.nn.softmax(s, axis=-1)
    ctx = jnp.einsum("bhqk,bkhd->bqhd", pa, vh).reshape(B, Tx, D)
    h2 = (ctx @ wo + bo) + h1
    h3n = ln(h2, ln3g, ln3b)
    h3 = (jnp.maximum(h3n @ w1 + b1, 0.0) @ w2 + b2) + h2
    return x + xm[:, :, None] * h3


def _ref_encoder(x, xm, y, ym, params, skip_connect=False):
    first_x = x
    for p in params:
        x = _ref_layer(x, xm, y, ym, p)
        if skip_connect:
            x = RESCALE * (first_x + x)
    return x


# --------------------------------- main -------------------------------------

if __name__ == "__main__":
    key = jax.random.PRNGKey(0)
    kx, ky, k0, k1, k2 = jax.random.split(key, 5)
    B, Tx, Ty = 2, 16, 8

    x = jax.random.normal(kx, (B, Tx, D), jnp.float32)
    y = jax.random.normal(ky, (B, Ty, D), jnp.float32)
    x_mask = jnp.ones((B, Tx), jnp.float32).at[1, 12:].set(0.0)
    y_mask = jnp.ones((B, Ty), jnp.float32).at[1, 6:].set(0.0)

    params = [init_layer_params(k) for k in (k0, k1, k2)]

    out = conv_cross_encoder(x, x_mask, y, y_mask, params, skip_connect=False)
    out = jax.block_until_ready(out)

    ref = _ref_encoder(x, x_mask, y, y_mask, params)
    # Tolerance covers MXU default (bf16-pass) matmul precision and the
    # approximate EUP reciprocal in the kernel vs. the plain-XLA f32 reference.
    if not bool(jnp.allclose(out, ref, rtol=2e-2, atol=2e-2)):
        raise RuntimeError(
            f"Pallas/JAX mismatch, max abs diff = {float(jnp.max(jnp.abs(out - ref)))}")

    print("KERNEL_OK")
</pallas_src>

<mosaic_0001>
module attributes {stable_mosaic.version = 11 : i64} {
  func.func @kernel(%arg0: i32, %arg1: i32, %arg2: memref<32x32xf32, #tpu.memory_space<vmem>>, %arg3: memref<32x1xf32, #tpu.memory_space<vmem>>, %arg4: memref<32x1xf32, #tpu.memory_space<vmem>>, %arg5: memref<32x1xf32, #tpu.memory_space<vmem>>, %arg6: memref<16x32xf32, #tpu.memory_space<vmem>>, %arg7: memref<2x1x8xf32, #tpu.memory_space<vmem>>, %arg8: memref<1x1x32xf32, #tpu.memory_space<vmem>>, %arg9: memref<1x1x32xf32, #tpu.memory_space<vmem>>, %arg10: memref<1x3x32x32xf32, #tpu.memory_space<vmem>>, %arg11: memref<1x1x32xf32, #tpu.memory_space<vmem>>, %arg12: memref<1x1x32xf32, #tpu.memory_space<vmem>>, %arg13: memref<1x1x32xf32, #tpu.memory_space<vmem>>, %arg14: memref<1x32x32xf32, #tpu.memory_space<vmem>>, %arg15: memref<1x1x32xf32, #tpu.memory_space<vmem>>, %arg16: memref<1x32x32xf32, #tpu.memory_space<vmem>>, %arg17: memref<1x1x32xf32, #tpu.memory_space<vmem>>, %arg18: memref<1x32x32xf32, #tpu.memory_space<vmem>>, %arg19: memref<1x1x32xf32, #tpu.memory_space<vmem>>, %arg20: memref<1x32x32xf32, #tpu.memory_space<vmem>>, %arg21: memref<1x1x32xf32, #tpu.memory_space<vmem>>, %arg22: memref<1x1x32xf32, #tpu.memory_space<vmem>>, %arg23: memref<1x1x32xf32, #tpu.memory_space<vmem>>, %arg24: memref<1x32x128xf32, #tpu.memory_space<vmem>>, %arg25: memref<1x1x128xf32, #tpu.memory_space<vmem>>, %arg26: memref<1x128x32xf32, #tpu.memory_space<vmem>>, %arg27: memref<1x1x32xf32, #tpu.memory_space<vmem>>, %arg28: memref<32x32xf32, #tpu.memory_space<vmem>>, %arg29: memref<32x32xf32, #tpu.memory_space<vmem>>, %arg30: memref<32x32xf32, #tpu.memory_space<vmem>>) attributes {dimension_semantics = [#tpu.dimension_semantics<parallel>, #tpu.dimension_semantics<arbitrary>], iteration_bounds = array<i64: 1, 3>, scalar_prefetch = 0 : i64, scratch_operands = 2 : i64, tpu.core_type = #tpu.core_type<tc>, window_params = [{transform_indices = @transform_0, window_bounds = array<i64: 32, 32>}, {transform_indices = @transform_1, window_bounds = array<i64: 32, 1>}, {transform_indices = @transform_2, window_bounds = array<i64: 32, 1>}, {transform_indices = @transform_3, window_bounds = array<i64: 32, 1>}, {transform_indices = @transform_4, window_bounds = array<i64: 16, 32>}, {transform_indices = @transform_5, window_bounds = array<i64: 2, 1, 8>}, {transform_indices = @transform_6, window_bounds = array<i64: 1, 1, 32>}, {transform_indices = @transform_7, window_bounds = array<i64: 1, 1, 32>}, {transform_indices = @transform_8, window_bounds = array<i64: 1, 3, 32, 32>}, {transform_indices = @transform_9, window_bounds = array<i64: 1, 1, 32>}, {transform_indices = @transform_10, window_bounds = array<i64: 1, 1, 32>}, {transform_indices = @transform_11, window_bounds = array<i64: 1, 1, 32>}, {transform_indices = @transform_12, window_bounds = array<i64: 1, 32, 32>}, {transform_indices = @transform_13, window_bounds = array<i64: 1, 1, 32>}, {transform_indices = @transform_14, window_bounds = array<i64: 1, 32, 32>}, {transform_indices = @transform_15, window_bounds = array<i64: 1, 1, 32>}, {transform_indices = @transform_16, window_bounds = array<i64: 1, 32, 32>}, {transform_indices = @transform_17, window_bounds = array<i64: 1, 1, 32>}, {transform_indices = @transform_18, window_bounds = array<i64: 1, 32, 32>}, {transform_indices = @transform_19, window_bounds = array<i64: 1, 1, 32>}, {transform_indices = @transform_20, window_bounds = array<i64: 1, 1, 32>}, {transform_indices = @transform_21, window_bounds = array<i64: 1, 1, 32>}, {transform_indices = @transform_22, window_bounds = array<i64: 1, 32, 128>}, {transform_indices = @transform_23, window_bounds = array<i64: 1, 1, 128>}, {transform_indices = @transform_24, window_bounds = array<i64: 1, 128, 32>}, {transform_indices = @transform_25, window_bounds = array<i64: 1, 1, 32>}, {transform_indices = @transform_26, window_bounds = array<i64: 32, 32>}]} {
    %c0_i32 = arith.constant 0 : i32
    %0 = arith.cmpi eq, %arg1, %c0_i32 : i32
    %1 = arith.extui %0 : i1 to i32
    %c0_i32_0 = arith.constant 0 : i32
    %2 = arith.cmpi ne, %1, %c0_i32_0 : i32
    scf.if %2 {
      %c0_162 = arith.constant 0 : index
      %c0_163 = arith.constant 0 : index
      %343 = vector.load %arg2[%c0_162, %c0_163] : memref<32x32xf32, #tpu.memory_space<vmem>>, vector<32x32xf32>
      %c0_164 = arith.constant 0 : index
      %c0_165 = arith.constant 0 : index
      %344 = vector.load %arg29[%c0_164, %c0_165] : memref<32x32xf32, #tpu.memory_space<vmem>>, vector<32x32xf32>
      tpu.vector_store %arg29[%c0_164, %c0_165], %343 {strides = array<i32>} : memref<32x32xf32, #tpu.memory_space<vmem>>, vector<32x32xf32>,
    } else {
    }
    %c0 = arith.constant 0 : index
    %c0_1 = arith.constant 0 : index
    %3 = vector.load %arg29[%c0, %c0_1] : memref<32x32xf32, #tpu.memory_space<vmem>>, vector<32x32xf32>
    %c0_2 = arith.constant 0 : index
    %c0_3 = arith.constant 0 : index
    %4 = vector.load %arg3[%c0_2, %c0_3] : memref<32x1xf32, #tpu.memory_space<vmem>>, vector<32x1xf32>
    %c0_4 = arith.constant 0 : index
    %c0_5 = arith.constant 0 : index
    %5 = vector.load %arg4[%c0_4, %c0_5] : memref<32x1xf32, #tpu.memory_space<vmem>>, vector<32x1xf32>
    %c0_6 = arith.constant 0 : index
    %c0_7 = arith.constant 0 : index
    %6 = vector.load %arg5[%c0_6, %c0_7] : memref<32x1xf32, #tpu.memory_space<vmem>>, vector<32x1xf32>
    %c0_8 = arith.constant 0 : index
    %c0_9 = arith.constant 0 : index
    %7 = vector.load %arg6[%c0_8, %c0_9] : memref<16x32xf32, #tpu.memory_space<vmem>>, vector<16x32xf32>
    %c0_10 = arith.constant 0 : index
    %c0_11 = arith.constant 0 : index
    %c0_12 = arith.constant 0 : index
    %8 = vector.load %arg7[%c0_10, %c0_11, %c0_12] : memref<2x1x8xf32, #tpu.memory_space<vmem>>, vector<2x1x8xf32>
    %c0_13 = arith.constant 0 : index
    %c0_14 = arith.constant 0 : index
    %c0_15 = arith.constant 0 : index
    %9 = vector.load %arg8[%c0_13, %c0_14, %c0_15] : memref<1x1x32xf32, #tpu.memory_space<vmem>>, vector<1x1x32xf32>
    %10 = vector.shape_cast %9 : vector<1x1x32xf32> to vector<1x32xf32>
    %c0_16 = arith.constant 0 : index
    %c0_17 = arith.constant 0 : index
    %c0_18 = arith.constant 0 : index
    %11 = vector.load %arg9[%c0_16, %c0_17, %c0_18] : memref<1x1x32xf32, #tpu.memory_space<vmem>>, vector<1x1x32xf32>
    %12 = vector.shape_cast %11 : vector<1x1x32xf32> to vector<1x32xf32>
    %cst = arith.constant dense<0.000000e+00> : vector<32xf32>
    %13 = vector.multi_reduction <add>, %3, %cst [1] : vector<32x32xf32> to vector<32xf32>
    %14 = vector.shape_cast %13 : vector<32xf32> to vector<32x1xf32>
    %cst_19 = arith.constant 3.200000e+01 : f32
    %15 = vector.broadcast %cst_19 : f32 to vector<32x1xf32>
    %16 = arith.divf %14, %15 : vector<32x1xf32>
    %17 = vector.broadcast %16 : vector<32x1xf32> to vector<32x32xf32>
    %18 = arith.subf %3, %17 : vector<32x32xf32>
    %19 = arith.mulf %18, %18 : vector<32x32xf32>
    %cst_20 = arith.constant dense<0.000000e+00> : vector<32xf32>
    %20 = vector.multi_reduction <add>, %19, %cst_20 [1] : vector<32x32xf32> to vector<32xf32>
    %21 = vector.shape_cast %20 : vector<32xf32> to vector<32x1xf32>
    %cst_21 = arith.constant 3.200000e+01 : f32
    %22 = vector.broadcast %cst_21 : f32 to vector<32x1xf32>
    %23 = arith.divf %21, %22 : vector<32x1xf32>
    %24 = vector.broadcast %16 : vector<32x1xf32> to vector<32x32xf32>
    %25 = arith.subf %3, %24 : vector<32x32xf32>
    %cst_22 = arith.constant 9.99999974E-6 : f32
    %26 = vector.broadcast %cst_22 : f32 to vector<32x1xf32>
    %27 = arith.addf %23, %26 : vector<32x1xf32>
    %28 = math.rsqrt %27 : vector<32x1xf32>
    %29 = vector.broadcast %28 : vector<32x1xf32> to vector<32x32xf32>
    %30 = arith.mulf %25, %29 : vector<32x32xf32>
    %31 = vector.broadcast %10 : vector<1x32xf32> to vector<32x32xf32>
    %32 = arith.mulf %30, %31 : vector<32x32xf32>
    %33 = vector.broadcast %12 : vector<1x32xf32> to vector<32x32xf32>
    %34 = arith.addf %32, %33 : vector<32x32xf32>
    %c1_i32 = arith.constant 1 : i32
    %35 = tpu.dynamic_rotate %34 by %c1_i32 dim 0 : vector<32x32xf32>, i32 -> vector<32x32xf32>
    %36 = vector.broadcast %5 : vector<32x1xf32> to vector<32x32xf32>
    %37 = arith.mulf %35, %36 : vector<32x32xf32>
    %c31_i32 = arith.constant 31 : i32
    %38 = tpu.dynamic_rotate %34 by %c31_i32 dim 0 : vector<32x32xf32>, i32 -> vector<32x32xf32>
    %39 = vector.broadcast %6 : vector<32x1xf32> to vector<32x32xf32>
    %40 = arith.mulf %38, %39 : vector<32x32xf32>
    %c0_23 = arith.constant 0 : index
    %c0_24 = arith.constant 0 : index
    %c0_25 = arith.constant 0 : index
    %c0_26 = arith.constant 0 : index
    %41 = vector.load %arg10[%c0_23, %c0_24, %c0_25, %c0_26] : memref<1x3x32x32xf32, #tpu.memory_space<vmem>>, vector<1x1x32x32xf32>
    %42 = vector.shape_cast %41 : vector<1x1x32x32xf32> to vector<32x32xf32>
    %cst_27 = arith.constant dense<0.000000e+00> : vector<32x32xf32>
    %43 = tpu.matmul %37, %42, %cst_27 {dimension_numbers = #tpu.dot_dimension_numbers<[1], [0], [0], [1], [0, 0, 1, 1], [], []>} : vector<32x32xf32>, vector<32x32xf32>, vector<32x32xf32> -> vector<32x32xf32>
    %c0_28 = arith.constant 0 : index
    %c1 = arith.constant 1 : index
    %c0_29 = arith.constant 0 : index
    %c0_30 = arith.constant 0 : index
    %44 = vector.load %arg10[%c0_28, %c1, %c0_29, %c0_30] : memref<1x3x32x32xf32, #tpu.memory_space<vmem>>, vector<1x1x32x32xf32>
    %45 = vector.shape_cast %44 : vector<1x1x32x32xf32> to vector<32x32xf32>
    %cst_31 = arith.constant dense<0.000000e+00> : vector<32x32xf32>
    %46 = tpu.matmul %34, %45, %cst_31 {dimension_numbers = #tpu.dot_dimension_numbers<[1], [0], [0], [1], [0, 0, 1, 1], [], []>} : vector<32x32xf32>, vector<32x32xf32>, vector<32x32xf32> -> vector<32x32xf32>
    %47 = arith.addf %43, %46 : vector<32x32xf32>
    %c0_32 = arith.constant 0 : index
    %c2 = arith.constant 2 : index
    %c0_33 = arith.constant 0 : index
    %c0_34 = arith.constant 0 : index
    %48 = vector.load %arg10[%c0_32, %c2, %c0_33, %c0_34] : memref<1x3x32x32xf32, #tpu.memory_space<vmem>>, vector<1x1x32x32xf32>
    %49 = vector.shape_cast %48 : vector<1x1x32x32xf32> to vector<32x32xf32>
    %cst_35 = arith.constant dense<0.000000e+00> : vector<32x32xf32>
    %50 = tpu.matmul %40, %49, %cst_35 {dimension_numbers = #tpu.dot_dimension_numbers<[1], [0], [0], [1], [0, 0, 1, 1], [], []>} : vector<32x32xf32>, vector<32x32xf32>, vector<32x32xf32> -> vector<32x32xf32>
    %51 = arith.addf %47, %50 : vector<32x32xf32>
    %c0_36 = arith.constant 0 : index
    %c0_37 = arith.constant 0 : index
    %c0_38 = arith.constant 0 : index
    %52 = vector.load %arg11[%c0_36, %c0_37, %c0_38] : memref<1x1x32xf32, #tpu.memory_space<vmem>>, vector<1x1x32xf32>
    %53 = vector.shape_cast %52 : vector<1x1x32xf32> to vector<1x32xf32>
    %54 = vector.broadcast %53 : vector<1x32xf32> to vector<32x32xf32>
    %55 = arith.addf %51, %54 : vector<32x32xf32>
    %cst_39 = arith.constant 0.000000e+00 : f32
    %56 = vector.broadcast %cst_39 : f32 to vector<32x32xf32>
    %57 = arith.maximumf %55, %56 : vector<32x32xf32>
    %58 = vector.broadcast %4 : vector<32x1xf32> to vector<32x32xf32>
    %59 = arith.mulf %3, %58 : vector<32x32xf32>
    %60 = arith.addf %57, %59 : vector<32x32xf32>
    %c0_40 = arith.constant 0 : index
    %c0_41 = arith.constant 0 : index
    %c0_42 = arith.constant 0 : index
    %61 = vector.load %arg12[%c0_40, %c0_41, %c0_42] : memref<1x1x32xf32, #tpu.memory_space<vmem>>, vector<1x1x32xf32>
    %62 = vector.shape_cast %61 : vector<1x1x32xf32> to vector<1x32xf32>
    %c0_43 = arith.constant 0 : index
    %c0_44 = arith.constant 0 : index
    %c0_45 = arith.constant 0 : index
    %63 = vector.load %arg13[%c0_43, %c0_44, %c0_45] : memref<1x1x32xf32, #tpu.memory_space<vmem>>, vector<1x1x32xf32>
    %64 = vector.shape_cast %63 : vector<1x1x32xf32> to vector<1x32xf32>
    %cst_46 = arith.constant dense<0.000000e+00> : vector<32xf32>
    %65 = vector.multi_reduction <add>, %60, %cst_46 [1] : vector<32x32xf32> to vector<32xf32>
    %66 = vector.shape_cast %65 : vector<32xf32> to vector<32x1xf32>
    %cst_47 = arith.constant 3.200000e+01 : f32
    %67 = vector.broadcast %cst_47 : f32 to vector<32x1xf32>
    %68 = arith.divf %66, %67 : vector<32x1xf32>
    %69 = vector.broadcast %68 : vector<32x1xf32> to vector<32x32xf32>
    %70 = arith.subf %60, %69 : vector<32x32xf32>
    %71 = arith.mulf %70, %70 : vector<32x32xf32>
    %cst_48 = arith.constant dense<0.000000e+00> : vector<32xf32>
    %72 = vector.multi_reduction <add>, %71, %cst_48 [1] : vector<32x32xf32> to vector<32xf32>
    %73 = vector.shape_cast %72 : vector<32xf32> to vector<32x1xf32>
    %cst_49 = arith.constant 3.200000e+01 : f32
    %74 = vector.broadcast %cst_49 : f32 to vector<32x1xf32>
    %75 = arith.divf %73, %74 : vector<32x1xf32>
    %76 = vector.broadcast %68 : vector<32x1xf32> to vector<32x32xf32>
    %77 = arith.subf %60, %76 : vector<32x32xf32>
    %cst_50 = arith.constant 9.99999974E-6 : f32
    %78 = vector.broadcast %cst_50 : f32 to vector<32x1xf32>
    %79 = arith.addf %75, %78 : vector<32x1xf32>
    %80 = math.rsqrt %79 : vector<32x1xf32>
    %81 = vector.broadcast %80 : vector<32x1xf32> to vector<32x32xf32>
    %82 = arith.mulf %77, %81 : vector<32x32xf32>
    %83 = vector.broadcast %62 : vector<1x32xf32> to vector<32x32xf32>
    %84 = arith.mulf %82, %83 : vector<32x32xf32>
    %85 = vector.broadcast %64 : vector<1x32xf32> to vector<32x32xf32>
    %86 = arith.addf %84, %85 : vector<32x32xf32>
    %c0_51 = arith.constant 0 : index
    %c0_52 = arith.constant 0 : index
    %c0_53 = arith.constant 0 : index
    %87 = vector.load %arg14[%c0_51, %c0_52, %c0_53] : memref<1x32x32xf32, #tpu.memory_space<vmem>>, vector<1x32x32xf32>
    %88 = vector.shape_cast %87 : vector<1x32x32xf32> to vector<32x32xf32>
    %cst_54 = arith.constant dense<0.000000e+00> : vector<32x32xf32>
    %89 = tpu.matmul %86, %88, %cst_54 {dimension_numbers = #tpu.dot_dimension_numbers<[1], [0], [0], [1], [0, 0, 1, 1], [], []>} : vector<32x32xf32>, vector<32x32xf32>, vector<32x32xf32> -> vector<32x32xf32>
    %c0_55 = arith.constant 0 : index
    %c0_56 = arith.constant 0 : index
    %c0_57 = arith.constant 0 : index
    %90 = vector.load %arg15[%c0_55, %c0_56, %c0_57] : memref<1x1x32xf32, #tpu.memory_space<vmem>>, vector<1x1x32xf32>
    %91 = vector.shape_cast %90 : vector<1x1x32xf32> to vector<1x32xf32>
    %92 = vector.broadcast %91 : vector<1x32xf32> to vector<32x32xf32>
    %93 = arith.addf %89, %92 : vector<32x32xf32>
    %c0_58 = arith.constant 0 : index
    %c0_59 = arith.constant 0 : index
    %c0_60 = arith.constant 0 : index
    %94 = vector.load %arg16[%c0_58, %c0_59, %c0_60] : memref<1x32x32xf32, #tpu.memory_space<vmem>>, vector<1x32x32xf32>
    %95 = vector.shape_cast %94 : vector<1x32x32xf32> to vector<32x32xf32>
    %cst_61 = arith.constant dense<0.000000e+00> : vector<16x32xf32>
    %96 = tpu.matmul %7, %95, %cst_61 {dimension_numbers = #tpu.dot_dimension_numbers<[1], [0], [0], [1], [0, 0, 1, 1], [], []>} : vector<16x32xf32>, vector<32x32xf32>, vector<16x32xf32> -> vector<16x32xf32>
    %c0_62 = arith.constant 0 : index
    %c0_63 = arith.constant 0 : index
    %c0_64 = arith.constant 0 : index
    %97 = vector.load %arg17[%c0_62, %c0_63, %c0_64] : memref<1x1x32xf32, #tpu.memory_space<vmem>>, vector<1x1x32xf32>
    %98 = vector.shape_cast %97 : vector<1x1x32xf32> to vector<1x32xf32>
    %99 = vector.broadcast %98 : vector<1x32xf32> to vector<16x32xf32>
    %100 = arith.addf %96, %99 : vector<16x32xf32>
    %c0_65 = arith.constant 0 : index
    %c0_66 = arith.constant 0 : index
    %c0_67 = arith.constant 0 : index
    %101 = vector.load %arg18[%c0_65, %c0_66, %c0_67] : memref<1x32x32xf32, #tpu.memory_space<vmem>>, vector<1x32x32xf32>
    %102 = vector.shape_cast %101 : vector<1x32x32xf32> to vector<32x32xf32>
    %cst_68 = arith.constant dense<0.000000e+00> : vector<16x32xf32>
    %103 = tpu.matmul %7, %102, %cst_68 {dimension_numbers = #tpu.dot_dimension_numbers<[1], [0], [0], [1], [0, 0, 1, 1], [], []>} : vector<16x32xf32>, vector<32x32xf32>, vector<16x32xf32> -> vector<16x32xf32>
    %c0_69 = arith.constant 0 : index
    %c0_70 = arith.constant 0 : index
    %c0_71 = arith.constant 0 : index
    %104 = vector.load %arg19[%c0_69, %c0_70, %c0_71] : memref<1x1x32xf32, #tpu.memory_space<vmem>>, vector<1x1x32xf32>
    %105 = vector.shape_cast %104 : vector<1x1x32xf32> to vector<1x32xf32>
    %106 = vector.broadcast %105 : vector<1x32xf32> to vector<16x32xf32>
    %107 = arith.addf %103, %106 : vector<16x32xf32>
    %108 = vector.shape_cast %93 : vector<32x32xf32> to vector<2x16x32xf32>
    %109 = vector.shape_cast %100 : vector<16x32xf32> to vector<2x8x32xf32>
    %110 = vector.shape_cast %107 : vector<16x32xf32> to vector<2x8x32xf32>
    %cst_72 = arith.constant 0.000000e+00 : f32
    %111 = vector.broadcast %cst_72 : f32 to vector<2x1x8xf32>
    %112 = arith.cmpf ogt, %8, %111 : vector<2x1x8xf32>
    %cst_73 = arith.constant 0.000000e+00 : f32
    %cst_74 = arith.constant -1.000000e+09 : f32
    %113 = vector.broadcast %cst_73 : f32 to vector<2x1x8xf32>
    %114 = vector.broadcast %cst_74 : f32 to vector<2x1x8xf32>
    %115 = arith.select %112, %113, %114 : vector<2x1x8xi1>, vector<2x1x8xf32>
    %116 = vector.extract_strided_slice %108 {offsets = [0, 0, 0], sizes = [2, 16, 4], strides = [1, 1, 1]} : vector<2x16x32xf32> to vector<2x16x4xf32>
    %117 = vector.extract_strided_slice %109 {offsets = [0, 0, 0], sizes = [2, 8, 4], strides = [1, 1, 1]} : vector<2x8x32xf32> to vector<2x8x4xf32>
    %118 = vector.extract_strided_slice %110 {offsets = [0, 0, 0], sizes = [2, 8, 4], strides = [1, 1, 1]} : vector<2x8x32xf32> to vector<2x8x4xf32>
    %cst_75 = arith.constant dense<0.000000e+00> : vector<2x16x8xf32>
    %119 = tpu.matmul %116, %117, %cst_75 {dimension_numbers = #tpu.dot_dimension_numbers<[2], [2], [1], [1], [0, 0, 0, 1, 1, 1], [0], [0]>} : vector<2x16x4xf32>, vector<2x8x4xf32>, vector<2x16x8xf32> -> vector<2x16x8xf32>
    %cst_76 = arith.constant 5.000000e-01 : f32
    %120 = vector.broadcast %cst_76 : f32 to vector<2x16x8xf32>
    %121 = arith.mulf %119, %120 : vector<2x16x8xf32>
    %122 = vector.broadcast %115 : vector<2x1x8xf32> to vector<2x16x8xf32>
    %123 = arith.addf %121, %122 : vector<2x16x8xf32>
    %cst_77 = arith.constant dense<0xFF800000> : vector<2x16xf32>
    %124 = vector.multi_reduction <maximumf>, %123, %cst_77 [2] : vector<2x16x8xf32> to vector<2x16xf32>
    %125 = vector.shape_cast %124 : vector<2x16xf32> to vector<2x16x1xf32>
    %126 = vector.broadcast %125 : vector<2x16x1xf32> to vector<2x16x8xf32>
    %127 = arith.subf %123, %126 : vector<2x16x8xf32>
    %128 = math.exp %127 : vector<2x16x8xf32>
    %cst_78 = arith.constant dense<0.000000e+00> : vector<2x16xf32>
    %129 = vector.multi_reduction <add>, %128, %cst_78 [2] : vector<2x16x8xf32> to vector<2x16xf32>
    %130 = vector.shape_cast %129 : vector<2x16xf32> to vector<2x16x1xf32>
    %131 = tpu.reciprocal %130 {approx = true} : vector<2x16x1xf32> -> vector<2x16x1xf32>
    %132 = vector.broadcast %131 : vector<2x16x1xf32> to vector<2x16x8xf32>
    %133 = arith.mulf %128, %132 : vector<2x16x8xf32>
    %cst_79 = arith.constant dense<0.000000e+00> : vector<2x16x4xf32>
    %134 = tpu.matmul %133, %118, %cst_79 {dimension_numbers = #tpu.dot_dimension_numbers<[2], [1], [1], [2], [0, 0, 0, 1, 1, 2], [0], [0]>} : vector<2x16x8xf32>, vector<2x8x4xf32>, vector<2x16x4xf32> -> vector<2x16x4xf32>
    %135 = vector.shape_cast %134 : vector<2x16x4xf32> to vector<32x4xf32>
    %c0_80 = arith.constant 0 : index
    %c0_81 = arith.constant 0 : index
    %136 = vector.load %arg30[%c0_80, %c0_81] : memref<32x32xf32, #tpu.memory_space<vmem>>, vector<32x4xf32>
    tpu.vector_store %arg30[%c0_80, %c0_81], %135 {strides = array<i32>} : memref<32x32xf32, #tpu.memory_space<vmem>>, vector<32x4xf32>,
    %137 = vector.extract_strided_slice %108 {offsets = [0, 0, 4], sizes = [2, 16, 4], strides = [1, 1, 1]} : vector<2x16x32xf32> to vector<2x16x4xf32>
    %138 = vector.extract_strided_slice %109 {offsets = [0, 0, 4], sizes = [2, 8, 4], strides = [1, 1, 1]} : vector<2x8x32xf32> to vector<2x8x4xf32>
    %139 = vector.extract_strided_slice %110 {offsets = [0, 0, 4], sizes = [2, 8, 4], strides = [1, 1, 1]} : vector<2x8x32xf32> to vector<2x8x4xf32>
    %cst_82 = arith.constant dense<0.000000e+00> : vector<2x16x8xf32>
    %140 = tpu.matmul %137, %138, %cst_82 {dimension_numbers = #tpu.dot_dimension_numbers<[2], [2], [1], [1], [0, 0, 0, 1, 1, 1], [0], [0]>} : vector<2x16x4xf32>, vector<2x8x4xf32>, vector<2x16x8xf32> -> vector<2x16x8xf32>
    %cst_83 = arith.constant 5.000000e-01 : f32
    %141 = vector.broadcast %cst_83 : f32 to vector<2x16x8xf32>
    %142 = arith.mulf %140, %141 : vector<2x16x8xf32>
    %143 = vector.broadcast %115 : vector<2x1x8xf32> to vector<2x16x8xf32>
    %144 = arith.addf %142, %143 : vector<2x16x8xf32>
    %cst_84 = arith.constant dense<0xFF800000> : vector<2x16xf32>
    %145 = vector.multi_reduction <maximumf>, %144, %cst_84 [2] : vector<2x16x8xf32> to vector<2x16xf32>
    %146 = vector.shape_cast %145 : vector<2x16xf32> to vector<2x16x1xf32>
    %147 = vector.broadcast %146 : vector<2x16x1xf32> to vector<2x16x8xf32>
    %148 = arith.subf %144, %147 : vector<2x16x8xf32>
    %149 = math.exp %148 : vector<2x16x8xf32>
    %cst_85 = arith.constant dense<0.000000e+00> : vector<2x16xf32>
    %150 = vector.multi_reduction <add>, %149, %cst_85 [2] : vector<2x16x8xf32> to vector<2x16xf32>
    %151 = vector.shape_cast %150 : vector<2x16xf32> to vector<2x16x1xf32>
    %152 = tpu.reciprocal %151 {approx = true} : vector<2x16x1xf32> -> vector<2x16x1xf32>
    %153 = vector.broadcast %152 : vector<2x16x1xf32> to vector<2x16x8xf32>
    %154 = arith.mulf %149, %153 : vector<2x16x8xf32>
    %cst_86 = arith.constant dense<0.000000e+00> : vector<2x16x4xf32>
    %155 = tpu.matmul %154, %139, %cst_86 {dimension_numbers = #tpu.dot_dimension_numbers<[2], [1], [1], [2], [0, 0, 0, 1, 1, 2], [0], [0]>} : vector<2x16x8xf32>, vector<2x8x4xf32>, vector<2x16x4xf32> -> vector<2x16x4xf32>
    %156 = vector.shape_cast %155 : vector<2x16x4xf32> to vector<32x4xf32>
    %c0_87 = arith.constant 0 : index
    %c4 = arith.constant 4 : index
    %157 = vector.load %arg30[%c0_87, %c4] : memref<32x32xf32, #tpu.memory_space<vmem>>, vector<32x4xf32>
    tpu.vector_store %arg30[%c0_87, %c4], %156 {strides = array<i32>} : memref<32x32xf32, #tpu.memory_space<vmem>>, vector<32x4xf32>,
    %158 = vector.extract_strided_slice %108 {offsets = [0, 0, 8], sizes = [2, 16, 4], strides = [1, 1, 1]} : vector<2x16x32xf32> to vector<2x16x4xf32>
    %159 = vector.extract_strided_slice %109 {offsets = [0, 0, 8], sizes = [2, 8, 4], strides = [1, 1, 1]} : vector<2x8x32xf32> to vector<2x8x4xf32>
    %160 = vector.extract_strided_slice %110 {offsets = [0, 0, 8], sizes = [2, 8, 4], strides = [1, 1, 1]} : vector<2x8x32xf32> to vector<2x8x4xf32>
    %cst_88 = arith.constant dense<0.000000e+00> : vector<2x16x8xf32>
    %161 = tpu.matmul %158, %159, %cst_88 {dimension_numbers = #tpu.dot_dimension_numbers<[2], [2], [1], [1], [0, 0, 0, 1, 1, 1], [0], [0]>} : vector<2x16x4xf32>, vector<2x8x4xf32>, vector<2x16x8xf32> -> vector<2x16x8xf32>
    %cst_89 = arith.constant 5.000000e-01 : f32
    %162 = vector.broadcast %cst_89 : f32 to vector<2x16x8xf32>
    %163 = arith.mulf %161, %162 : vector<2x16x8xf32>
    %164 = vector.broadcast %115 : vector<2x1x8xf32> to vector<2x16x8xf32>
    %165 = arith.addf %163, %164 : vector<2x16x8xf32>
    %cst_90 = arith.constant dense<0xFF800000> : vector<2x16xf32>
    %166 = vector.multi_reduction <maximumf>, %165, %cst_90 [2] : vector<2x16x8xf32> to vector<2x16xf32>
    %167 = vector.shape_cast %166 : vector<2x16xf32> to vector<2x16x1xf32>
    %168 = vector.broadcast %167 : vector<2x16x1xf32> to vector<2x16x8xf32>
    %169 = arith.subf %165, %168 : vector<2x16x8xf32>
    %170 = math.exp %169 : vector<2x16x8xf32>
    %cst_91 = arith.constant dense<0.000000e+00> : vector<2x16xf32>
    %171 = vector.multi_reduction <add>, %170, %cst_91 [2] : vector<2x16x8xf32> to vector<2x16xf32>
    %172 = vector.shape_cast %171 : vector<2x16xf32> to vector<2x16x1xf32>
    %173 = tpu.reciprocal %172 {approx = true} : vector<2x16x1xf32> -> vector<2x16x1xf32>
    %174 = vector.broadcast %173 : vector<2x16x1xf32> to vector<2x16x8xf32>
    %175 = arith.mulf %170, %174 : vector<2x16x8xf32>
    %cst_92 = arith.constant dense<0.000000e+00> : vector<2x16x4xf32>
    %176 = tpu.matmul %175, %160, %cst_92 {dimension_numbers = #tpu.dot_dimension_numbers<[2], [1], [1], [2], [0, 0, 0, 1, 1, 2], [0], [0]>} : vector<2x16x8xf32>, vector<2x8x4xf32>, vector<2x16x4xf32> -> vector<2x16x4xf32>
    %177 = vector.shape_cast %176 : vector<2x16x4xf32> to vector<32x4xf32>
    %c0_93 = arith.constant 0 : index
    %c8 = arith.constant 8 : index
    %178 = vector.load %arg30[%c0_93, %c8] : memref<32x32xf32, #tpu.memory_space<vmem>>, vector<32x4xf32>
    tpu.vector_store %arg30[%c0_93, %c8], %177 {strides = array<i32>} : memref<32x32xf32, #tpu.memory_space<vmem>>, vector<32x4xf32>,
    %179 = vector.extract_strided_slice %108 {offsets = [0, 0, 12], sizes = [2, 16, 4], strides = [1, 1, 1]} : vector<2x16x32xf32> to vector<2x16x4xf32>
    %180 = vector.extract_strided_slice %109 {offsets = [0, 0, 12], sizes = [2, 8, 4], strides = [1, 1, 1]} : vector<2x8x32xf32> to vector<2x8x4xf32>
    %181 = vector.extract_strided_slice %110 {offsets = [0, 0, 12], sizes = [2, 8, 4], strides = [1, 1, 1]} : vector<2x8x32xf32> to vector<2x8x4xf32>
    %cst_94 = arith.constant dense<0.000000e+00> : vector<2x16x8xf32>
    %182 = tpu.matmul %179, %180, %cst_94 {dimension_numbers = #tpu.dot_dimension_numbers<[2], [2], [1], [1], [0, 0, 0, 1, 1, 1], [0], [0]>} : vector<2x16x4xf32>, vector<2x8x4xf32>, vector<2x16x8xf32> -> vector<2x16x8xf32>
    %cst_95 = arith.constant 5.000000e-01 : f32
    %183 = vector.broadcast %cst_95 : f32 to vector<2x16x8xf32>
    %184 = arith.mulf %182, %183 : vector<2x16x8xf32>
    %185 = vector.broadcast %115 : vector<2x1x8xf32> to vector<2x16x8xf32>
    %186 = arith.addf %184, %185 : vector<2x16x8xf32>
    %cst_96 = arith.constant dense<0xFF800000> : vector<2x16xf32>
    %187 = vector.multi_reduction <maximumf>, %186, %cst_96 [2] : vector<2x16x8xf32> to vector<2x16xf32>
    %188 = vector.shape_cast %187 : vector<2x16xf32> to vector<2x16x1xf32>
    %189 = vector.broadcast %188 : vector<2x16x1xf32> to vector<2x16x8xf32>
    %190 = arith.subf %186, %189 : vector<2x16x8xf32>
    %191 = math.exp %190 : vector<2x16x8xf32>
    %cst_97 = arith.constant dense<0.000000e+00> : vector<2x16xf32>
    %192 = vector.multi_reduction <add>, %191, %cst_97 [2] : vector<2x16x8xf32> to vector<2x16xf32>
    %193 = vector.shape_cast %192 : vector<2x16xf32> to vector<2x16x1xf32>
    %194 = tpu.reciprocal %193 {approx = true} : vector<2x16x1xf32> -> vector<2x16x1xf32>
    %195 = vector.broadcast %194 : vector<2x16x1xf32> to vector<2x16x8xf32>
    %196 = arith.mulf %191, %195 : vector<2x16x8xf32>
    %cst_98 = arith.constant dense<0.000000e+00> : vector<2x16x4xf32>
    %197 = tpu.matmul %196, %181, %cst_98 {dimension_numbers = #tpu.dot_dimension_numbers<[2], [1], [1], [2], [0, 0, 0, 1, 1, 2], [0], [0]>} : vector<2x16x8xf32>, vector<2x8x4xf32>, vector<2x16x4xf32> -> vector<2x16x4xf32>
    %198 = vector.shape_cast %197 : vector<2x16x4xf32> to vector<32x4xf32>
    %c0_99 = arith.constant 0 : index
    %c12 = arith.constant 12 : index
    %199 = vector.load %arg30[%c0_99, %c12] : memref<32x32xf32, #tpu.memory_space<vmem>>, vector<32x4xf32>
    tpu.vector_store %arg30[%c0_99, %c12], %198 {strides = array<i32>} : memref<32x32xf32, #tpu.memory_space<vmem>>, vector<32x4xf32>,
    %200 = vector.extract_strided_slice %108 {offsets = [0, 0, 16], sizes = [2, 16, 4], strides = [1, 1, 1]} : vector<2x16x32xf32> to vector<2x16x4xf32>
    %201 = vector.extract_strided_slice %109 {offsets = [0, 0, 16], sizes = [2, 8, 4], strides = [1, 1, 1]} : vector<2x8x32xf32> to vector<2x8x4xf32>
    %202 = vector.extract_strided_slice %110 {offsets = [0, 0, 16], sizes = [2, 8, 4], strides = [1, 1, 1]} : vector<2x8x32xf32> to vector<2x8x4xf32>
    %cst_100 = arith.constant dense<0.000000e+00> : vector<2x16x8xf32>
    %203 = tpu.matmul %200, %201, %cst_100 {dimension_numbers = #tpu.dot_dimension_numbers<[2], [2], [1], [1], [0, 0, 0, 1, 1, 1], [0], [0]>} : vector<2x16x4xf32>, vector<2x8x4xf32>, vector<2x16x8xf32> -> vector<2x16x8xf32>
    %cst_101 = arith.constant 5.000000e-01 : f32
    %204 = vector.broadcast %cst_101 : f32 to vector<2x16x8xf32>
    %205 = arith.mulf %203, %204 : vector<2x16x8xf32>
    %206 = vector.broadcast %115 : vector<2x1x8xf32> to vector<2x16x8xf32>
    %207 = arith.addf %205, %206 : vector<2x16x8xf32>
    %cst_102 = arith.constant dense<0xFF800000> : vector<2x16xf32>
    %208 = vector.multi_reduction <maximumf>, %207, %cst_102 [2] : vector<2x16x8xf32> to vector<2x16xf32>
    %209 = vector.shape_cast %208 : vector<2x16xf32> to vector<2x16x1xf32>
    %210 = vector.broadcast %209 : vector<2x16x1xf32> to vector<2x16x8xf32>
    %211 = arith.subf %207, %210 : vector<2x16x8xf32>
    %212 = math.exp %211 : vector<2x16x8xf32>
    %cst_103 = arith.constant dense<0.000000e+00> : vector<2x16xf32>
    %213 = vector.multi_reduction <add>, %212, %cst_103 [2] : vector<2x16x8xf32> to vector<2x16xf32>
    %214 = vector.shape_cast %213 : vector<2x16xf32> to vector<2x16x1xf32>
    %215 = tpu.reciprocal %214 {approx = true} : vector<2x16x1xf32> -> vector<2x16x1xf32>
    %216 = vector.broadcast %215 : vector<2x16x1xf32> to vector<2x16x8xf32>
    %217 = arith.mulf %212, %216 : vector<2x16x8xf32>
    %cst_104 = arith.constant dense<0.000000e+00> : vector<2x16x4xf32>
    %218 = tpu.matmul %217, %202, %cst_104 {dimension_numbers = #tpu.dot_dimension_numbers<[2], [1], [1], [2], [0, 0, 0, 1, 1, 2], [0], [0]>} : vector<2x16x8xf32>, vector<2x8x4xf32>, vector<2x16x4xf32> -> vector<2x16x4xf32>
    %219 = vector.shape_cast %218 : vector<2x16x4xf32> to vector<32x4xf32>
    %c0_105 = arith.constant 0 : index
    %c16 = arith.constant 16 : index
    %220 = vector.load %arg30[%c0_105, %c16] : memref<32x32xf32, #tpu.memory_space<vmem>>, vector<32x4xf32>
    tpu.vector_store %arg30[%c0_105, %c16], %219 {strides = array<i32>} : memref<32x32xf32, #tpu.memory_space<vmem>>, vector<32x4xf32>,
    %221 = vector.extract_strided_slice %108 {offsets = [0, 0, 20], sizes = [2, 16, 4], strides = [1, 1, 1]} : vector<2x16x32xf32> to vector<2x16x4xf32>
    %222 = vector.extract_strided_slice %109 {offsets = [0, 0, 20], sizes = [2, 8, 4], strides = [1, 1, 1]} : vector<2x8x32xf32> to vector<2x8x4xf32>
    %223 = vector.extract_strided_slice %110 {offsets = [0, 0, 20], sizes = [2, 8, 4], strides = [1, 1, 1]} : vector<2x8x32xf32> to vector<2x8x4xf32>
    %cst_106 = arith.constant dense<0.000000e+00> : vector<2x16x8xf32>
    %224 = tpu.matmul %221, %222, %cst_106 {dimension_numbers = #tpu.dot_dimension_numbers<[2], [2], [1], [1], [0, 0, 0, 1, 1, 1], [0], [0]>} : vector<2x16x4xf32>, vector<2x8x4xf32>, vector<2x16x8xf32> -> vector<2x16x8xf32>
    %cst_107 = arith.constant 5.000000e-01 : f32
    %225 = vector.broadcast %cst_107 : f32 to vector<2x16x8xf32>
    %226 = arith.mulf %224, %225 : vector<2x16x8xf32>
    %227 = vector.broadcast %115 : vector<2x1x8xf32> to vector<2x16x8xf32>
    %228 = arith.addf %226, %227 : vector<2x16x8xf32>
    %cst_108 = arith.constant dense<0xFF800000> : vector<2x16xf32>
    %229 = vector.multi_reduction <maximumf>, %228, %cst_108 [2] : vector<2x16x8xf32> to vector<2x16xf32>
    %230 = vector.shape_cast %229 : vector<2x16xf32> to vector<2x16x1xf32>
    %231 = vector.broadcast %230 : vector<2x16x1xf32> to vector<2x16x8xf32>
    %232 = arith.subf %228, %231 : vector<2x16x8xf32>
    %233 = math.exp %232 : vector<2x16x8xf32>
    %cst_109 = arith.constant dense<0.000000e+00> : vector<2x16xf32>
    %234 = vector.multi_reduction <add>, %233, %cst_109 [2] : vector<2x16x8xf32> to vector<2x16xf32>
    %235 = vector.shape_cast %234 : vector<2x16xf32> to vector<2x16x1xf32>
    %236 = tpu.reciprocal %235 {approx = true} : vector<2x16x1xf32> -> vector<2x16x1xf32>
    %237 = vector.broadcast %236 : vector<2x16x1xf32> to vector<2x16x8xf32>
    %238 = arith.mulf %233, %237 : vector<2x16x8xf32>
    %cst_110 = arith.constant dense<0.000000e+00> : vector<2x16x4xf32>
    %239 = tpu.matmul %238, %223, %cst_110 {dimension_numbers = #tpu.dot_dimension_numbers<[2], [1], [1], [2], [0, 0, 0, 1, 1, 2], [0], [0]>} : vector<2x16x8xf32>, vector<2x8x4xf32>, vector<2x16x4xf32> -> vector<2x16x4xf32>
    %240 = vector.shape_cast %239 : vector<2x16x4xf32> to vector<32x4xf32>
    %c0_111 = arith.constant 0 : index
    %c20 = arith.constant 20 : index
    %241 = vector.load %arg30[%c0_111, %c20] : memref<32x32xf32, #tpu.memory_space<vmem>>, vector<32x4xf32>
    tpu.vector_store %arg30[%c0_111, %c20], %240 {strides = array<i32>} : memref<32x32xf32, #tpu.memory_space<vmem>>, vector<32x4xf32>,
    %242 = vector.extract_strided_slice %108 {offsets = [0, 0, 24], sizes = [2, 16, 4], strides = [1, 1, 1]} : vector<2x16x32xf32> to vector<2x16x4xf32>
    %243 = vector.extract_strided_slice %109 {offsets = [0, 0, 24], sizes = [2, 8, 4], strides = [1, 1, 1]} : vector<2x8x32xf32> to vector<2x8x4xf32>
    %244 = vector.extract_strided_slice %110 {offsets = [0, 0, 24], sizes = [2, 8, 4], strides = [1, 1, 1]} : vector<2x8x32xf32> to vector<2x8x4xf32>
    %cst_112 = arith.constant dense<0.000000e+00> : vector<2x16x8xf32>
    %245 = tpu.matmul %242, %243, %cst_112 {dimension_numbers = #tpu.dot_dimension_numbers<[2], [2], [1], [1], [0, 0, 0, 1, 1, 1], [0], [0]>} : vector<2x16x4xf32>, vector<2x8x4xf32>, vector<2x16x8xf32> -> vector<2x16x8xf32>
    %cst_113 = arith.constant 5.000000e-01 : f32
    %246 = vector.broadcast %cst_113 : f32 to vector<2x16x8xf32>
    %247 = arith.mulf %245, %246 : vector<2x16x8xf32>
    %248 = vector.broadcast %115 : vector<2x1x8xf32> to vector<2x16x8xf32>
    %249 = arith.addf %247, %248 : vector<2x16x8xf32>
    %cst_114 = arith.constant dense<0xFF800000> : vector<2x16xf32>
    %250 = vector.multi_reduction <maximumf>, %249, %cst_114 [2] : vector<2x16x8xf32> to vector<2x16xf32>
    %251 = vector.shape_cast %250 : vector<2x16xf32> to vector<2x16x1xf32>
    %252 = vector.broadcast %251 : vector<2x16x1xf32> to vector<2x16x8xf32>
    %253 = arith.subf %249, %252 : vector<2x16x8xf32>
    %254 = math.exp %253 : vector<2x16x8xf32>
    %cst_115 = arith.constant dense<0.000000e+00> : vector<2x16xf32>
    %255 = vector.multi_reduction <add>, %254, %cst_115 [2] : vector<2x16x8xf32> to vector<2x16xf32>
    %256 = vector.shape_cast %255 : vector<2x16xf32> to vector<2x16x1xf32>
    %257 = tpu.reciprocal %256 {approx = true} : vector<2x16x1xf32> -> vector<2x16x1xf32>
    %258 = vector.broadcast %257 : vector<2x16x1xf32> to vector<2x16x8xf32>
    %259 = arith.mulf %254, %258 : vector<2x16x8xf32>
    %cst_116 = arith.constant dense<0.000000e+00> : vector<2x16x4xf32>
    %260 = tpu.matmul %259, %244, %cst_116 {dimension_numbers = #tpu.dot_dimension_numbers<[2], [1], [1], [2], [0, 0, 0, 1, 1, 2], [0], [0]>} : vector<2x16x8xf32>, vector<2x8x4xf32>, vector<2x16x4xf32> -> vector<2x16x4xf32>
    %261 = vector.shape_cast %260 : vector<2x16x4xf32> to vector<32x4xf32>
    %c0_117 = arith.constant 0 : index
    %c24 = arith.constant 24 : index
    %262 = vector.load %arg30[%c0_117, %c24] : memref<32x32xf32, #tpu.memory_space<vmem>>, vector<32x4xf32>
    tpu.vector_store %arg30[%c0_117, %c24], %261 {strides = array<i32>} : memref<32x32xf32, #tpu.memory_space<vmem>>, vector<32x4xf32>,
    %263 = vector.extract_strided_slice %108 {offsets = [0, 0, 28], sizes = [2, 16, 4], strides = [1, 1, 1]} : vector<2x16x32xf32> to vector<2x16x4xf32>
    %264 = vector.extract_strided_slice %109 {offsets = [0, 0, 28], sizes = [2, 8, 4], strides = [1, 1, 1]} : vector<2x8x32xf32> to vector<2x8x4xf32>
    %265 = vector.extract_strided_slice %110 {offsets = [0, 0, 28], sizes = [2, 8, 4], strides = [1, 1, 1]} : vector<2x8x32xf32> to vector<2x8x4xf32>
    %cst_118 = arith.constant dense<0.000000e+00> : vector<2x16x8xf32>
    %266 = tpu.matmul %263, %264, %cst_118 {dimension_numbers = #tpu.dot_dimension_numbers<[2], [2], [1], [1], [0, 0, 0, 1, 1, 1], [0], [0]>} : vector<2x16x4xf32>, vector<2x8x4xf32>, vector<2x16x8xf32> -> vector<2x16x8xf32>
    %cst_119 = arith.constant 5.000000e-01 : f32
    %267 = vector.broadcast %cst_119 : f32 to vector<2x16x8xf32>
    %268 = arith.mulf %266, %267 : vector<2x16x8xf32>
    %269 = vector.broadcast %115 : vector<2x1x8xf32> to vector<2x16x8xf32>
    %270 = arith.addf %268, %269 : vector<2x16x8xf32>
    %cst_120 = arith.constant dense<0xFF800000> : vector<2x16xf32>
    %271 = vector.multi_reduction <maximumf>, %270, %cst_120 [2] : vector<2x16x8xf32> to vector<2x16xf32>
    %272 = vector.shape_cast %271 : vector<2x16xf32> to vector<2x16x1xf32>
    %273 = vector.broadcast %272 : vector<2x16x1xf32> to vector<2x16x8xf32>
    %274 = arith.subf %270, %273 : vector<2x16x8xf32>
    %275 = math.exp %274 : vector<2x16x8xf32>
    %cst_121 = arith.constant dense<0.000000e+00> : vector<2x16xf32>
    %276 = vector.multi_reduction <add>, %275, %cst_121 [2] : vector<2x16x8xf32> to vector<2x16xf32>
    %277 = vector.shape_cast %276 : vector<2x16xf32> to vector<2x16x1xf32>
    %278 = tpu.reciprocal %277 {approx = true} : vector<2x16x1xf32> -> vector<2x16x1xf32>
    %279 = vector.broadcast %278 : vector<2x16x1xf32> to vector<2x16x8xf32>
    %280 = arith.mulf %275, %279 : vector<2x16x8xf32>
    %cst_122 = arith.constant dense<0.000000e+00> : vector<2x16x4xf32>
    %281 = tpu.matmul %280, %265, %cst_122 {dimension_numbers = #tpu.dot_dimension_numbers<[2], [1], [1], [2], [0, 0, 0, 1, 1, 2], [0], [0]>} : vector<2x16x8xf32>, vector<2x8x4xf32>, vector<2x16x4xf32> -> vector<2x16x4xf32>
    %282 = vector.shape_cast %281 : vector<2x16x4xf32> to vector<32x4xf32>
    %c0_123 = arith.constant 0 : index
    %c28 = arith.constant 28 : index
    %283 = vector.load %arg30[%c0_123, %c28] : memref<32x32xf32, #tpu.memory_space<vmem>>, vector<32x4xf32>
    tpu.vector_store %arg30[%c0_123, %c28], %282 {strides = array<i32>} : memref<32x32xf32, #tpu.memory_space<vmem>>, vector<32x4xf32>,
    %c0_124 = arith.constant 0 : index
    %c0_125 = arith.constant 0 : index
    %284 = vector.load %arg30[%c0_124, %c0_125] : memref<32x32xf32, #tpu.memory_space<vmem>>, vector<32x32xf32>
    %c0_126 = arith.constant 0 : index
    %c0_127 = arith.constant 0 : index
    %c0_128 = arith.constant 0 : index
    %285 = vector.load %arg20[%c0_126, %c0_127, %c0_128] : memref<1x32x32xf32, #tpu.memory_space<vmem>>, vector<1x32x32xf32>
    %286 = vector.shape_cast %285 : vector<1x32x32xf32> to vector<32x32xf32>
    %cst_129 = arith.constant dense<0.000000e+00> : vector<32x32xf32>
    %287 = tpu.matmul %284, %286, %cst_129 {dimension_numbers = #tpu.dot_dimension_numbers<[1], [0], [0], [1], [0, 0, 1, 1], [], []>} : vector<32x32xf32>, vector<32x32xf32>, vector<32x32xf32> -> vector<32x32xf32>
    %c0_130 = arith.constant 0 : index
    %c0_131 = arith.constant 0 : index
    %c0_132 = arith.constant 0 : index
    %288 = vector.load %arg21[%c0_130, %c0_131, %c0_132] : memref<1x1x32xf32, #tpu.memory_space<vmem>>, vector<1x1x32xf32>
    %289 = vector.shape_cast %288 : vector<1x1x32xf32> to vector<1x32xf32>
    %290 = vector.broadcast %289 : vector<1x32xf32> to vector<32x32xf32>
    %291 = arith.addf %287, %290 : vector<32x32xf32>
    %292 = arith.addf %291, %60 : vector<32x32xf32>
    %c0_133 = arith.constant 0 : index
    %c0_134 = arith.constant 0 : index
    %c0_135 = arith.constant 0 : index
    %293 = vector.load %arg22[%c0_133, %c0_134, %c0_135] : memref<1x1x32xf32, #tpu.memory_space<vmem>>, vector<1x1x32xf32>
    %294 = vector.shape_cast %293 : vector<1x1x32xf32> to vector<1x32xf32>
    %c0_136 = arith.constant 0 : index
    %c0_137 = arith.constant 0 : index
    %c0_138 = arith.constant 0 : index
    %295 = vector.load %arg23[%c0_136, %c0_137, %c0_138] : memref<1x1x32xf32, #tpu.memory_space<vmem>>, vector<1x1x32xf32>
    %296 = vector.shape_cast %295 : vector<1x1x32xf32> to vector<1x32xf32>
    %cst_139 = arith.constant dense<0.000000e+00> : vector<32xf32>
    %297 = vector.multi_reduction <add>, %292, %cst_139 [1] : vector<32x32xf32> to vector<32xf32>
    %298 = vector.shape_cast %297 : vector<32xf32> to vector<32x1xf32>
    %cst_140 = arith.constant 3.200000e+01 : f32
    %299 = vector.broadcast %cst_140 : f32 to vector<32x1xf32>
    %300 = arith.divf %298, %299 : vector<32x1xf32>
    %301 = vector.broadcast %300 : vector<32x1xf32> to vector<32x32xf32>
    %302 = arith.subf %292, %301 : vector<32x32xf32>
    %303 = arith.mulf %302, %302 : vector<32x32xf32>
    %cst_141 = arith.constant dense<0.000000e+00> : vector<32xf32>
    %304 = vector.multi_reduction <add>, %303, %cst_141 [1] : vector<32x32xf32> to vector<32xf32>
    %305 = vector.shape_cast %304 : vector<32xf32> to vector<32x1xf32>
    %cst_142 = arith.constant 3.200000e+01 : f32
    %306 = vector.broadcast %cst_142 : f32 to vector<32x1xf32>
    %307 = arith.divf %305, %306 : vector<32x1xf32>
    %308 = vector.broadcast %300 : vector<32x1xf32> to vector<32x32xf32>
    %309 = arith.subf %292, %308 : vector<32x32xf32>
    %cst_143 = arith.constant 9.99999974E-6 : f32
    %310 = vector.broadcast %cst_143 : f32 to vector<32x1xf32>
    %311 = arith.addf %307, %310 : vector<32x1xf32>
    %312 = math.rsqrt %311 : vector<32x1xf32>
    %313 = vector.broadcast %312 : vector<32x1xf32> to vector<32x32xf32>
    %314 = arith.mulf %309, %313 : vector<32x32xf32>
    %315 = vector.broadcast %294 : vector<1x32xf32> to vector<32x32xf32>
    %316 = arith.mulf %314, %315 : vector<32x32xf32>
    %317 = vector.broadcast %296 : vector<1x32xf32> to vector<32x32xf32>
    %318 = arith.addf %316, %317 : vector<32x32xf32>
    %c0_144 = arith.constant 0 : index
    %c0_145 = arith.constant 0 : index
    %c0_146 = arith.constant 0 : index
    %319 = vector.load %arg24[%c0_144, %c0_145, %c0_146] : memref<1x32x128xf32, #tpu.memory_space<vmem>>, vector<1x32x128xf32>
    %320 = vector.shape_cast %319 : vector<1x32x128xf32> to vector<32x128xf32>
    %cst_147 = arith.constant dense<0.000000e+00> : vector<32x128xf32>
    %321 = tpu.matmul %318, %320, %cst_147 {dimension_numbers = #tpu.dot_dimension_numbers<[1], [0], [0], [1], [0, 0, 1, 1], [], []>} : vector<32x32xf32>, vector<32x128xf32>, vector<32x128xf32> -> vector<32x128xf32>
    %c0_148 = arith.constant 0 : index
    %c0_149 = arith.constant 0 : index
    %c0_150 = arith.constant 0 : index
    %322 = vector.load %arg25[%c0_148, %c0_149, %c0_150] : memref<1x1x128xf32, #tpu.memory_space<vmem>>, vector<1x1x128xf32>
    %323 = vector.shape_cast %322 : vector<1x1x128xf32> to vector<1x128xf32>
    %324 = vector.broadcast %323 : vector<1x128xf32> to vector<32x128xf32>
    %325 = arith.addf %321, %324 : vector<32x128xf32>
    %cst_151 = arith.constant 0.000000e+00 : f32
    %326 = vector.broadcast %cst_151 : f32 to vector<32x128xf32>
    %327 = arith.maximumf %325, %326 : vector<32x128xf32>
    %c0_152 = arith.constant 0 : index
    %c0_153 = arith.constant 0 : index
    %c0_154 = arith.constant 0 : index
    %328 = vector.load %arg26[%c0_152, %c0_153, %c0_154] : memref<1x128x32xf32, #tpu.memory_space<vmem>>, vector<1x128x32xf32>
    %329 = vector.shape_cast %328 : vector<1x128x32xf32> to vector<128x32xf32>
    %cst_155 = arith.constant dense<0.000000e+00> : vector<32x32xf32>
    %330 = tpu.matmul %327, %329, %cst_155 {dimension_numbers = #tpu.dot_dimension_numbers<[1], [0], [0], [1], [0, 0, 1, 1], [], []>} : vector<32x128xf32>, vector<128x32xf32>, vector<32x32xf32> -> vector<32x32xf32>
    %c0_156 = arith.constant 0 : index
    %c0_157 = arith.constant 0 : index
    %c0_158 = arith.constant 0 : index
    %331 = vector.load %arg27[%c0_156, %c0_157, %c0_158] : memref<1x1x32xf32, #tpu.memory_space<vmem>>, vector<1x1x32xf32>
    %332 = vector.shape_cast %331 : vector<1x1x32xf32> to vector<1x32xf32>
    %333 = vector.broadcast %332 : vector<1x32xf32> to vector<32x32xf32>
    %334 = arith.addf %330, %333 : vector<32x32xf32>
    %335 = arith.addf %334, %292 : vector<32x32xf32>
    %336 = vector.broadcast %4 : vector<32x1xf32> to vector<32x32xf32>
    %337 = arith.mulf %336, %335 : vector<32x32xf32>
    %338 = arith.addf %3, %337 : vector<32x32xf32>
    %c0_159 = arith.constant 0 : index
    %c0_160 = arith.constant 0 : index
    %339 = vector.load %arg29[%c0_159, %c0_160] : memref<32x32xf32, #tpu.memory_space<vmem>>, vector<32x32xf32>
    tpu.vector_store %arg29[%c0_159, %c0_160], %338 {strides = array<i32>} : memref<32x32xf32, #tpu.memory_space<vmem>>, vector<32x32xf32>,
    %c2_i32 = arith.constant 2 : i32
    %340 = arith.cmpi eq, %arg1, %c2_i32 : i32
    %341 = arith.extui %340 : i1 to i32
    %c0_i32_161 = arith.constant 0 : i32
    %342 = arith.cmpi ne, %341, %c0_i32_161 : i32
    scf.if %342 {
      %c0_162 = arith.constant 0 : index
      %c0_163 = arith.constant 0 : index
      %343 = vector.load %arg28[%c0_162, %c0_163] : memref<32x32xf32, #tpu.memory_space<vmem>>, vector<32x32xf32>
      tpu.vector_store %arg28[%c0_162, %c0_163], %338 {strides = array<i32>} : memref<32x32xf32, #tpu.memory_space<vmem>>, vector<32x32xf32>,
    } else {
    }
    return
  }
  func.func @transform_0(%arg0: i32, %arg1: i32) -> (i32, i32) {
    %c0_i32 = arith.constant 0 : i32
    %c0_i32_0 = arith.constant 0 : i32
    return %arg0, %c0_i32 : i32, i32
  }
  func.func @transform_1(%arg0: i32, %arg1: i32) -> (i32, i32) {
    %c0_i32 = arith.constant 0 : i32
    %c0_i32_0 = arith.constant 0 : i32
    return %arg0, %c0_i32 : i32, i32
  }
  func.func @transform_2(%arg0: i32, %arg1: i32) -> (i32, i32) {
    %c0_i32 = arith.constant 0 : i32
    %c0_i32_0 = arith.constant 0 : i32
    return %arg0, %c0_i32 : i32, i32
  }
  func.func @transform_3(%arg0: i32, %arg1: i32) -> (i32, i32) {
    %c0_i32 = arith.constant 0 : i32
    %c0_i32_0 = arith.constant 0 : i32
    return %arg0, %c0_i32 : i32, i32
  }
  func.func @transform_4(%arg0: i32, %arg1: i32) -> (i32, i32) {
    %c0_i32 = arith.constant 0 : i32
    %c0_i32_0 = arith.constant 0 : i32
    return %arg0, %c0_i32 : i32, i32
  }
  func.func @transform_5(%arg0: i32, %arg1: i32) -> (i32, i32, i32) {
    %c0_i32 = arith.constant 0 : i32
    %c0_i32_0 = arith.constant 0 : i32
    %c0_i32_1 = arith.constant 0 : i32
    return %arg0, %c0_i32, %c0_i32_0 : i32, i32, i32
  }
  func.func @transform_6(%arg0: i32, %arg1: i32) -> (i32, i32, i32) {
    %c0_i32 = arith.constant 0 : i32
    %c0_i32_0 = arith.constant 0 : i32
    %c0_i32_1 = arith.constant 0 : i32
    return %arg1, %c0_i32, %c0_i32_0 : i32, i32, i32
  }
  func.func @transform_7(%arg0: i32, %arg1: i32) -> (i32, i32, i32) {
    %c0_i32 = arith.constant 0 : i32
    %c0_i32_0 = arith.constant 0 : i32
    %c0_i32_1 = arith.constant 0 : i32
    return %arg1, %c0_i32, %c0_i32_0 : i32, i32, i32
  }
  func.func @transform_8(%arg0: i32, %arg1: i32) -> (i32, i32, i32, i32) {
    %c0_i32 = arith.constant 0 : i32
    %c0_i32_0 = arith.constant 0 : i32
    %c0_i32_1 = arith.constant 0 : i32
    %c0_i32_2 = arith.constant 0 : i32
    return %arg1, %c0_i32, %c0_i32_0, %c0_i32_1 : i32, i32, i32, i32
  }
  func.func @transform_9(%arg0: i32, %arg1: i32) -> (i32, i32, i32) {
    %c0_i32 = arith.constant 0 : i32
    %c0_i32_0 = arith.constant 0 : i32
    %c0_i32_1 = arith.constant 0 : i32
    return %arg1, %c0_i32, %c0_i32_0 : i32, i32, i32
  }
  func.func @transform_10(%arg0: i32, %arg1: i32) -> (i32, i32, i32) {
    %c0_i32 = arith.constant 0 : i32
    %c0_i32_0 = arith.constant 0 : i32
    %c0_i32_1 = arith.constant 0 : i32
    return %arg1, %c0_i32, %c0_i32_0 : i32, i32, i32
  }
  func.func @transform_11(%arg0: i32, %arg1: i32) -> (i32, i32, i32) {
    %c0_i32 = arith.constant 0 : i32
    %c0_i32_0 = arith.constant 0 : i32
    %c0_i32_1 = arith.constant 0 : i32
    return %arg1, %c0_i32, %c0_i32_0 : i32, i32, i32
  }
  func.func @transform_12(%arg0: i32, %arg1: i32) -> (i32, i32, i32) {
    %c0_i32 = arith.constant 0 : i32
    %c0_i32_0 = arith.constant 0 : i32
    %c0_i32_1 = arith.constant 0 : i32
    return %arg1, %c0_i32, %c0_i32_0 : i32, i32, i32
  }
  func.func @transform_13(%arg0: i32, %arg1: i32) -> (i32, i32, i32) {
    %c0_i32 = arith.constant 0 : i32
    %c0_i32_0 = arith.constant 0 : i32
    %c0_i32_1 = arith.constant 0 : i32
    return %arg1, %c0_i32, %c0_i32_0 : i32, i32, i32
  }
  func.func @transform_14(%arg0: i32, %arg1: i32) -> (i32, i32, i32) {
    %c0_i32 = arith.constant 0 : i32
    %c0_i32_0 = arith.constant 0 : i32
    %c0_i32_1 = arith.constant 0 : i32
    return %arg1, %c0_i32, %c0_i32_0 : i32, i32, i32
  }
  func.func @transform_15(%arg0: i32, %arg1: i32) -> (i32, i32, i32) {
    %c0_i32 = arith.constant 0 : i32
    %c0_i32_0 = arith.constant 0 : i32
    %c0_i32_1 = arith.constant 0 : i32
    return %arg1, %c0_i32, %c0_i32_0 : i32, i32, i32
  }
  func.func @transform_16(%arg0: i32, %arg1: i32) -> (i32, i32, i32) {
    %c0_i32 = arith.constant 0 : i32
    %c0_i32_0 = arith.constant 0 : i32
    %c0_i32_1 = arith.constant 0 : i32
    return %arg1, %c0_i32, %c0_i32_0 : i32, i32, i32
  }
  func.func @transform_17(%arg0: i32, %arg1: i32) -> (i32, i32, i32) {
    %c0_i32 = arith.constant 0 : i32
    %c0_i32_0 = arith.constant 0 : i32
    %c0_i32_1 = arith.constant 0 : i32
    return %arg1, %c0_i32, %c0_i32_0 : i32, i32, i32
  }
  func.func @transform_18(%arg0: i32, %arg1: i32) -> (i32, i32, i32) {
    %c0_i32 = arith.constant 0 : i32
    %c0_i32_0 = arith.constant 0 : i32
    %c0_i32_1 = arith.constant 0 : i32
    return %arg1, %c0_i32, %c0_i32_0 : i32, i32, i32
  }
  func.func @transform_19(%arg0: i32, %arg1: i32) -> (i32, i32, i32) {
    %c0_i32 = arith.constant 0 : i32
    %c0_i32_0 = arith.constant 0 : i32
    %c0_i32_1 = arith.constant 0 : i32
    return %arg1, %c0_i32, %c0_i32_0 : i32, i32, i32
  }
  func.func @transform_20(%arg0: i32, %arg1: i32) -> (i32, i32, i32) {
    %c0_i32 = arith.constant 0 : i32
    %c0_i32_0 = arith.constant 0 : i32
    %c0_i32_1 = arith.constant 0 : i32
    return %arg1, %c0_i32, %c0_i32_0 : i32, i32, i32
  }
  func.func @transform_21(%arg0: i32, %arg1: i32) -> (i32, i32, i32) {
    %c0_i32 = arith.constant 0 : i32
    %c0_i32_0 = arith.constant 0 : i32
    %c0_i32_1 = arith.constant 0 : i32
    return %arg1, %c0_i32, %c0_i32_0 : i32, i32, i32
  }
  func.func @transform_22(%arg0: i32, %arg1: i32) -> (i32, i32, i32) {
    %c0_i32 = arith.constant 0 : i32
    %c0_i32_0 = arith.constant 0 : i32
    %c0_i32_1 = arith.constant 0 : i32
    return %arg1, %c0_i32, %c0_i32_0 : i32, i32, i32
  }
  func.func @transform_23(%arg0: i32, %arg1: i32) -> (i32, i32, i32) {
    %c0_i32 = arith.constant 0 : i32
    %c0_i32_0 = arith.constant 0 : i32
    %c0_i32_1 = arith.constant 0 : i32
    return %arg1, %c0_i32, %c0_i32_0 : i32, i32, i32
  }
  func.func @transform_24(%arg0: i32, %arg1: i32) -> (i32, i32, i32) {
    %c0_i32 = arith.constant 0 : i32
    %c0_i32_0 = arith.constant 0 : i32
    %c0_i32_1 = arith.constant 0 : i32
    return %arg1, %c0_i32, %c0_i32_0 : i32, i32, i32
  }
  func.func @transform_25(%arg0: i32, %arg1: i32) -> (i32, i32, i32) {
    %c0_i32 = arith.constant 0 : i32
    %c0_i32_0 = arith.constant 0 : i32
    %c0_i32_1 = arith.constant 0 : i32
    return %arg1, %c0_i32, %c0_i32_0 : i32, i32, i32
  }
  func.func @transform_26(%arg0: i32, %arg1: i32) -> (i32, i32) {
    %c0_i32 = arith.constant 0 : i32
    %c0_i32_0 = arith.constant 0 : i32
    return %arg0, %c0_i32 : i32, i32
  }
}

</mosaic_0001>

<llo_original>
// kernel: tpu_custom_call.1
$region0: #{tpu_custom_call.1}
  #allocation0 [shape = 'u32[]', space=smem, size = 0x4, offset = 0x4, fixed_abs, tag = 'smem constant byte address 0x4 - core index']
  #allocation1 [shape = 'u32[144,128]{1,0:T(1,128)}', space=vmem, size = 0x12000, scoped, tag = 'internal scratch']
  #allocation2 [shape = 'f32[32,32]{1,0:T(8,128)}', space=vmem, size = 0x4000, scoped, tag = 'scratch operand']
  #allocation3 [shape = 'f32[32,32]{1,0:T(8,128)}', space=vmem, size = 0x4000, scoped, tag = 'scratch operand']
  %s0 = inlined_call_operand.hbm [shape: f32[32,32], index: 0, kind: input, shape index: {}]
  %s1 = inlined_call_operand.vmem [shape: f32[32,1], index: 1, kind: input, shape index: {}]
  %s2 = inlined_call_operand.vmem [shape: f32[32,1], index: 2, kind: input, shape index: {}]
  %s3 = inlined_call_operand.vmem [shape: f32[32,1], index: 3, kind: input, shape index: {}]
  %s4 = inlined_call_operand.vmem [shape: f32[16,32], index: 4, kind: input, shape index: {}]
  %s5 = inlined_call_operand.hbm [shape: f32[2,1,8], index: 5, kind: input, shape index: {}]
  %s6 = inlined_call_operand.vmem [shape: f32[3,1,32], index: 6, kind: input, shape index: {}]
  %s7 = inlined_call_operand.vmem [shape: f32[3,1,32], index: 7, kind: input, shape index: {}]
  %s8 = inlined_call_operand.vmem [shape: f32[3,3,32,32], index: 8, kind: input, shape index: {}]
  %s9 = inlined_call_operand.vmem [shape: f32[3,1,32], index: 9, kind: input, shape index: {}]
  %s10 = inlined_call_operand.vmem [shape: f32[3,1,32], index: 10, kind: input, shape index: {}]
  %s11 = inlined_call_operand.vmem [shape: f32[3,1,32], index: 11, kind: input, shape index: {}]
  %s12 = inlined_call_operand.vmem [shape: f32[3,32,32], index: 12, kind: input, shape index: {}]
  %s13 = inlined_call_operand.vmem [shape: f32[3,1,32], index: 13, kind: input, shape index: {}]
  %s14 = inlined_call_operand.vmem [shape: f32[3,32,32], index: 14, kind: input, shape index: {}]
  %s15 = inlined_call_operand.vmem [shape: f32[3,1,32], index: 15, kind: input, shape index: {}]
  %s16 = inlined_call_operand.vmem [shape: f32[3,32,32], index: 16, kind: input, shape index: {}]
  %s17 = inlined_call_operand.vmem [shape: f32[3,1,32], index: 17, kind: input, shape index: {}]
  %s18 = inlined_call_operand.hbm [shape: f32[3,32,32], index: 18, kind: input, shape index: {}]
  %s19 = inlined_call_operand.vmem [shape: f32[3,1,32], index: 19, kind: input, shape index: {}]
  %s20 = inlined_call_operand.vmem [shape: f32[3,1,32], index: 20, kind: input, shape index: {}]
  %s21 = inlined_call_operand.vmem [shape: f32[3,1,32], index: 21, kind: input, shape index: {}]
  %s22 = inlined_call_operand.hbm [shape: f32[3,32,128], index: 22, kind: input, shape index: {}]
  %s23 = inlined_call_operand.vmem [shape: f32[3,1,128], index: 23, kind: input, shape index: {}]
  %s24 = inlined_call_operand.vmem [shape: f32[3,128,32], index: 24, kind: input, shape index: {}]
  %s25 = inlined_call_operand.vmem [shape: f32[3,1,32], index: 25, kind: input, shape index: {}]
  %s26 = inlined_call_operand.hbm [shape: f32[32,32], index: 26, kind: output, shape index: {}]
  %s27 = sld [smem:[#allocation0]]
  $region161: #{tpu_custom_call.1} parent=0
    _
  %s29 = ssub.s32 1, %s27
  %s30 = scalar_select 0, %s29, %s27
  $region1: #{tpu_custom_call.1} parent=0
    #allocation4 [shape = 'u8[16384]{0}', space=vmem, size = 0x4000, scoped, tag = 'input window, operand 0, single buffered']
    #allocation5 [shape = 's32[2]{0}', space=sflag, size = 0x8, scoped, tag = 'scoped memory for tpu_custom_call.1']
    #allocation6 [shape = 's32[2]{0}', space=sflag, size = 0x8, scoped, tag = 'scoped memory for tpu_custom_call.1']
    #allocation7 [shape = 'u8[1024]{0}', space=vmem, size = 0x400, scoped, tag = 'input window, operand 5, single buffered']
    #allocation8 [shape = 's32[1]{0}', space=sflag, size = 0x4, scoped, tag = 'scoped memory for tpu_custom_call.1']
    #allocation9 [shape = 'u8[32768]{0}', space=vmem, size = 0x8000, scoped, tag = 'input window, operand 18']
    #allocation10 [shape = 'u8[32768]{0}', space=vmem, size = 0x8000, scoped, tag = 'input window, operand 22']
    #allocation11 [shape = 'u8[16384]{0}', space=vmem, size = 0x4000, scoped, tag = 'output window, operand 0, single buffered']
    %31 = vsyncpa [#allocation5], 0
    %32 = vsyncpa [#allocation8], 0
    %33 = vsyncpa [#allocation6], 0
    loop: start=0, step=1, limit=5
    $region2: #{tpu_custom_call.1} parent=1 // loop_pre_header
      _
    $region3: #{tpu_custom_call.1} parent=1 // loop_header
      %s35 = sphi 0, %s39
      %p36 = scmp.ge.s32.totalorder %s35, 5
      %s42 = sphi 0, %s54
      %s43 = sphi 0, %s50
      %s44 = sphi 0, %s42
      %s45 = sphi 0, %s43
      %s46 = sphi 0, %s44
      %s47 = sphi 0, %s45
      %s57 = sphi 0, %s59
      %s60 = sphi 0, %s57
      %s61 = sphi 0, %s60
      %s77 = sphi 0, %s61
      %s83 = sphi 0, %s85
      %s86 = sphi 0, %s83
      %s87 = sphi 0, %s86
      %s103 = sphi 0, %s87
      %s109 = sphi 0, %s111
      %s112 = sphi 0, %s109
      %s113 = sphi 0, %s112
      %s129 = sphi 0, %s113
      %s135 = sphi 0, %s137
      %s138 = sphi 0, %s135
      %s139 = sphi 0, %s138
      %s155 = sphi 0, %s139
      %s161 = sphi 0, %s163
      %s164 = sphi 0, %s161
      %s165 = sphi 0, %s164
      %s181 = sphi 0, %s165
      %s187 = sphi 0, %s189
      %s190 = sphi 0, %s187
      %s191 = sphi 0, %s190
      %s207 = sphi 0, %s191
      %s213 = sphi 0, %s215
      %s216 = sphi 0, %s213
      %s217 = sphi 0, %s216
      %s233 = sphi 0, %s217
      %s239 = sphi 0, %s241
      %s242 = sphi 0, %s239
      %s243 = sphi 0, %s242
      %s259 = sphi 0, %s243
      %s265 = sphi 0, %s267
      %s268 = sphi 0, %s265
      %s269 = sphi 0, %s268
      %s285 = sphi 0, %s269
      %s291 = sphi 0, %s293
      %s294 = sphi 0, %s291
      %s295 = sphi 0, %s294
      %s311 = sphi 0, %s295
      %s317 = sphi 0, %s319
      %s320 = sphi 0, %s317
      %s321 = sphi 0, %s320
      %s337 = sphi 0, %s321
      %s343 = sphi 0, %s345
      %s346 = sphi 0, %s343
      %s347 = sphi 0, %s346
      %s363 = sphi 0, %s347
      %s369 = sphi 0, %s371
      %s372 = sphi 0, %s369
      %s373 = sphi 0, %s372
      %s389 = sphi 0, %s373
      %s395 = sphi 0, %s397
      %s398 = sphi 0, %s395
      %s399 = sphi 0, %s398
      %s415 = sphi 0, %s399
      %s421 = sphi 0, %s423
      %s424 = sphi 0, %s421
      %s425 = sphi 0, %s424
      %s441 = sphi 0, %s425
      %s447 = sphi 0, %s449
      %s450 = sphi 0, %s447
      %s451 = sphi 0, %s450
      %s467 = sphi 0, %s451
      %s473 = sphi 0, %s475
      %s476 = sphi 0, %s473
      %s477 = sphi 0, %s476
      %s493 = sphi 0, %s477
      %s499 = sphi 0, %s501
      %s502 = sphi 0, %s499
      %s503 = sphi 0, %s502
      %s519 = sphi 0, %s503
      %s525 = sphi 0, %s527
      %s528 = sphi 0, %s525
      %s529 = sphi 0, %s528
      %s545 = sphi 0, %s529
      %s551 = sphi 0, %s553
      %s554 = sphi 0, %s551
      %s555 = sphi 0, %s554
      %s571 = sphi 0, %s555
      %s577 = sphi 0, %s579
      %s580 = sphi 0, %s577
      %s581 = sphi 0, %s580
      %s597 = sphi 0, %s581
      %s603 = sphi 0, %s605
      %s606 = sphi 0, %s603
      %s607 = sphi 0, %s606
      %s623 = sphi 0, %s607
      %s629 = sphi 0, %s631
      %s632 = sphi 0, %s629
      %s633 = sphi 0, %s632
      %s649 = sphi 0, %s633
      %s655 = sphi 0, %s657
      %s658 = sphi 0, %s655
      %s659 = sphi 0, %s658
      %s675 = sphi 0, %s659
      %s681 = sphi 0, %s683
      %s684 = sphi 0, %s681
      %s685 = sphi 0, %s684
      %s701 = sphi 0, %s685
      %s707 = sphi 0, %s709
      %s710 = sphi 0, %s707
      %s711 = sphi 0, %s710
      %s727 = sphi 0, %s711
      %s733 = sphi 0, %s735
      %s736 = sphi 0, %s733
      %s737 = sphi 0, %s736
      %s753 = sphi 0, %s737
    $region4: #{tpu_custom_call.1} parent=1 // loop_header_branch
      %38 = sbr.rel (%p36) target = $region8
    $region5: #{tpu_custom_call.1} parent=1 // loop_body
      %s40 = ssub.s32 %s35, 1
      %s41 = ssub.s32 %s35, 2
      %s48 = sadd.s32 1, %s43
      %p49 = scmp.ge.s32.totalorder %s48, 3
      %s50 = scalar_select %p49, 0, %s48
      %s51 = sadd.s32 1, %s42
      %s52 = scalar_select %p49, %s51, %s42
      %p53 = scmp.ge.s32.totalorder %s52, 1
      %s54 = scalar_select %p53, 0, %s52
      %s55 = ssub.s32 %s42, %s54
      %p56 = scmp.eq.s32.totalorder %s55, 0
      %s58 = sadd.s32 %s57, 1
      %s59 = scalar_select %p56, %s57, %s58
      %p62 = pneg %p56
      %p63 = scmp.eq.s32.totalorder %s35, 2
      %p64 = por %p62, %p63
      %p65 = scmp.ne.s32.totalorder %s57, %s60
      %p66 = scmp.eq.s32.totalorder %s35, 0
      %p67 = por %p65, %p66
      %p68 = scmp.ne.s32.totalorder %s57, %s60
      %p69 = scmp.eq.s32.totalorder %s40, 2
      %p70 = por %p68, %p69
      %p71 = scmp.ne.s32.totalorder %s60, %s61
      %p72 = scmp.eq.s32.totalorder %s40, 0
      %p73 = por %p71, %p72
      %p74 = scmp.ne.s32.totalorder %s60, %s61
      %p75 = scmp.eq.s32.totalorder %s41, 2
      %p76 = por %p74, %p75
      %p78 = scmp.ne.s32.totalorder %s61, %s77
      %p79 = scmp.eq.s32.totalorder %s41, 0
      %p80 = por %p78, %p79
      %s81 = ssub.s32 %s42, %s54
      %p82 = scmp.eq.s32.totalorder %s81, 0
      %s84 = sadd.s32 %s83, 1
      %s85 = scalar_select %p82, %s83, %s84
      %p88 = pneg %p82
      %p89 = scmp.eq.s32.totalorder %s35, 2
      %p90 = por %p88, %p89
      %p91 = scmp.ne.s32.totalorder %s83, %s86
      %p92 = scmp.eq.s32.totalorder %s35, 0
      %p93 = por %p91, %p92
      %p94 = scmp.ne.s32.totalorder %s83, %s86
      %p95 = scmp.eq.s32.totalorder %s40, 2
      %p96 = por %p94, %p95
      %p97 = scmp.ne.s32.totalorder %s86, %s87
      %p98 = scmp.eq.s32.totalorder %s40, 0
      %p99 = por %p97, %p98
      %p100 = scmp.ne.s32.totalorder %s86, %s87
      %p101 = scmp.eq.s32.totalorder %s41, 2
      %p102 = por %p100, %p101
      %p104 = scmp.ne.s32.totalorder %s87, %s103
      %p105 = scmp.eq.s32.totalorder %s41, 0
      %p106 = por %p104, %p105
      %s107 = ssub.s32 %s42, %s54
      %p108 = scmp.eq.s32.totalorder %s107, 0
      %s110 = sadd.s32 %s109, 1
      %s111 = scalar_select %p108, %s109, %s110
      %p114 = pneg %p108
      %p115 = scmp.eq.s32.totalorder %s35, 2
      %p116 = por %p114, %p115
      %p117 = scmp.ne.s32.totalorder %s109, %s112
      %p118 = scmp.eq.s32.totalorder %s35, 0
      %p119 = por %p117, %p118
      %p120 = scmp.ne.s32.totalorder %s109, %s112
      %p121 = scmp.eq.s32.totalorder %s40, 2
      %p122 = por %p120, %p121
      %p123 = scmp.ne.s32.totalorder %s112, %s113
      %p124 = scmp.eq.s32.totalorder %s40, 0
      %p125 = por %p123, %p124
      %p126 = scmp.ne.s32.totalorder %s112, %s113
      %p127 = scmp.eq.s32.totalorder %s41, 2
      %p128 = por %p126, %p127
      %p130 = scmp.ne.s32.totalorder %s113, %s129
      %p131 = scmp.eq.s32.totalorder %s41, 0
      %p132 = por %p130, %p131
      %s133 = ssub.s32 %s42, %s54
      %p134 = scmp.eq.s32.totalorder %s133, 0
      %s136 = sadd.s32 %s135, 1
      %s137 = scalar_select %p134, %s135, %s136
      %p140 = pneg %p134
      %p141 = scmp.eq.s32.totalorder %s35, 2
      %p142 = por %p140, %p141
      %p143 = scmp.ne.s32.totalorder %s135, %s138
      %p144 = scmp.eq.s32.totalorder %s35, 0
      %p145 = por %p143, %p144
      %p146 = scmp.ne.s32.totalorder %s135, %s138
      %p147 = scmp.eq.s32.totalorder %s40, 2
      %p148 = por %p146, %p147
      %p149 = scmp.ne.s32.totalorder %s138, %s139
      %p150 = scmp.eq.s32.totalorder %s40, 0
      %p151 = por %p149, %p150
      %p152 = scmp.ne.s32.totalorder %s138, %s139
      %p153 = scmp.eq.s32.totalorder %s41, 2
      %p154 = por %p152, %p153
      %p156 = scmp.ne.s32.totalorder %s139, %s155
      %p157 = scmp.eq.s32.totalorder %s41, 0
      %p158 = por %p156, %p157
      %s159 = ssub.s32 %s42, %s54
      %p160 = scmp.eq.s32.totalorder %s159, 0
      %s162 = sadd.s32 %s161, 1
      %s163 = scalar_select %p160, %s161, %s162
      %p166 = pneg %p160
      %p167 = scmp.eq.s32.totalorder %s35, 2
      %p168 = por %p166, %p167
      %p169 = scmp.ne.s32.totalorder %s161, %s164
      %p170 = scmp.eq.s32.totalorder %s35, 0
      %p171 = por %p169, %p170
      %p172 = scmp.ne.s32.totalorder %s161, %s164
      %p173 = scmp.eq.s32.totalorder %s40, 2
      %p174 = por %p172, %p173
      %p175 = scmp.ne.s32.totalorder %s164, %s165
      %p176 = scmp.eq.s32.totalorder %s40, 0
      %p177 = por %p175, %p176
      %p178 = scmp.ne.s32.totalorder %s164, %s165
      %p179 = scmp.eq.s32.totalorder %s41, 2
      %p180 = por %p178, %p179
      %p182 = scmp.ne.s32.totalorder %s165, %s181
      %p183 = scmp.eq.s32.totalorder %s41, 0
      %p184 = por %p182, %p183
      %s185 = ssub.s32 %s42, %s54
      %p186 = scmp.eq.s32.totalorder %s185, 0
      %s188 = sadd.s32 %s187, 1
      %s189 = scalar_select %p186, %s187, %s188
      %p192 = pneg %p186
      %p193 = scmp.eq.s32.totalorder %s35, 2
      %p194 = por %p192, %p193
      %p195 = scmp.ne.s32.totalorder %s187, %s190
      %p196 = scmp.eq.s32.totalorder %s35, 0
      %p197 = por %p195, %p196
      %p198 = scmp.ne.s32.totalorder %s187, %s190
      %p199 = scmp.eq.s32.totalorder %s40, 2
      %p200 = por %p198, %p199
      %p201 = scmp.ne.s32.totalorder %s190, %s191
      %p202 = scmp.eq.s32.totalorder %s40, 0
      %p203 = por %p201, %p202
      %p204 = scmp.ne.s32.totalorder %s190, %s191
      %p205 = scmp.eq.s32.totalorder %s41, 2
      %p206 = por %p204, %p205
      %p208 = scmp.ne.s32.totalorder %s191, %s207
      %p209 = scmp.eq.s32.totalorder %s41, 0
      %p210 = por %p208, %p209
      %s211 = ssub.s32 %s43, %s50
      %p212 = scmp.eq.s32.totalorder %s211, 0
      %s214 = sadd.s32 %s213, 1
      %s215 = scalar_select %p212, %s213, %s214
      %p218 = pneg %p212
      %p219 = scmp.eq.s32.totalorder %s35, 2
      %p220 = por %p218, %p219
      %p221 = scmp.ne.s32.totalorder %s213, %s216
      %p222 = scmp.eq.s32.totalorder %s35, 0
      %p223 = por %p221, %p222
      %p224 = scmp.ne.s32.totalorder %s213, %s216
      %p225 = scmp.eq.s32.totalorder %s40, 2
      %p226 = por %p224, %p225
      %p227 = scmp.ne.s32.totalorder %s216, %s217
      %p228 = scmp.eq.s32.totalorder %s40, 0
      %p229 = por %p227, %p228
      %p230 = scmp.ne.s32.totalorder %s216, %s217
      %p231 = scmp.eq.s32.totalorder %s41, 2
      %p232 = por %p230, %p231
      %p234 = scmp.ne.s32.totalorder %s217, %s233
      %p235 = scmp.eq.s32.totalorder %s41, 0
      %p236 = por %p234, %p235
      %s237 = ssub.s32 %s43, %s50
      %p238 = scmp.eq.s32.totalorder %s237, 0
      %s240 = sadd.s32 %s239, 1
      %s241 = scalar_select %p238, %s239, %s240
      %p244 = pneg %p238
      %p245 = scmp.eq.s32.totalorder %s35, 2
      %p246 = por %p244, %p245
      %p247 = scmp.ne.s32.totalorder %s239, %s242
      %p248 = scmp.eq.s32.totalorder %s35, 0
      %p249 = por %p247, %p248
      %p250 = scmp.ne.s32.totalorder %s239, %s242
      %p251 = scmp.eq.s32.totalorder %s40, 2
      %p252 = por %p250, %p251
      %p253 = scmp.ne.s32.totalorder %s242, %s243
      %p254 = scmp.eq.s32.totalorder %s40, 0
      %p255 = por %p253, %p254
      %p256 = scmp.ne.s32.totalorder %s242, %s243
      %p257 = scmp.eq.s32.totalorder %s41, 2
      %p258 = por %p256, %p257
      %p260 = scmp.ne.s32.totalorder %s243, %s259
      %p261 = scmp.eq.s32.totalorder %s41, 0
      %p262 = por %p260, %p261
      %s263 = ssub.s32 %s43, %s50
      %p264 = scmp.eq.s32.totalorder %s263, 0
      %s266 = sadd.s32 %s265, 1
      %s267 = scalar_select %p264, %s265, %s266
      %p270 = pneg %p264
      %p271 = scmp.eq.s32.totalorder %s35, 2
      %p272 = por %p270, %p271
      %p273 = scmp.ne.s32.totalorder %s265, %s268
      %p274 = scmp.eq.s32.totalorder %s35, 0
      %p275 = por %p273, %p274
      %p276 = scmp.ne.s32.totalorder %s265, %s268
      %p277 = scmp.eq.s32.totalorder %s40, 2
      %p278 = por %p276, %p277
      %p279 = scmp.ne.s32.totalorder %s268, %s269
      %p280 = scmp.eq.s32.totalorder %s40, 0
      %p281 = por %p279, %p280
      %p282 = scmp.ne.s32.totalorder %s268, %s269
      %p283 = scmp.eq.s32.totalorder %s41, 2
      %p284 = por %p282, %p283
      %p286 = scmp.ne.s32.totalorder %s269, %s285
      %p287 = scmp.eq.s32.totalorder %s41, 0
      %p288 = por %p286, %p287
      %s289 = ssub.s32 %s43, %s50
      %p290 = scmp.eq.s32.totalorder %s289, 0
      %s292 = sadd.s32 %s291, 1
      %s293 = scalar_select %p290, %s291, %s292
      %p296 = pneg %p290
      %p297 = scmp.eq.s32.totalorder %s35, 2
      %p298 = por %p296, %p297
      %p299 = scmp.ne.s32.totalorder %s291, %s294
      %p300 = scmp.eq.s32.totalorder %s35, 0
      %p301 = por %p299, %p300
      %p302 = scmp.ne.s32.totalorder %s291, %s294
      %p303 = scmp.eq.s32.totalorder %s40, 2
      %p304 = por %p302, %p303
      %p305 = scmp.ne.s32.totalorder %s294, %s295
      %p306 = scmp.eq.s32.totalorder %s40, 0
      %p307 = por %p305, %p306
      %p308 = scmp.ne.s32.totalorder %s294, %s295
      %p309 = scmp.eq.s32.totalorder %s41, 2
      %p310 = por %p308, %p309
      %p312 = scmp.ne.s32.totalorder %s295, %s311
      %p313 = scmp.eq.s32.totalorder %s41, 0
      %p314 = por %p312, %p313
      %s315 = ssub.s32 %s43, %s50
      %p316 = scmp.eq.s32.totalorder %s315, 0
      %s318 = sadd.s32 %s317, 1
      %s319 = scalar_select %p316, %s317, %s318
      %p322 = pneg %p316
      %p323 = scmp.eq.s32.totalorder %s35, 2
      %p324 = por %p322, %p323
      %p325 = scmp.ne.s32.totalorder %s317, %s320
      %p326 = scmp.eq.s32.totalorder %s35, 0
      %p327 = por %p325, %p326
      %p328 = scmp.ne.s32.totalorder %s317, %s320
      %p329 = scmp.eq.s32.totalorder %s40, 2
      %p330 = por %p328, %p329
      %p331 = scmp.ne.s32.totalorder %s320, %s321
      %p332 = scmp.eq.s32.totalorder %s40, 0
      %p333 = por %p331, %p332
      %p334 = scmp.ne.s32.totalorder %s320, %s321
      %p335 = scmp.eq.s32.totalorder %s41, 2
      %p336 = por %p334, %p335
      %p338 = scmp.ne.s32.totalorder %s321, %s337
      %p339 = scmp.eq.s32.totalorder %s41, 0
      %p340 = por %p338, %p339
      %s341 = ssub.s32 %s43, %s50
      %p342 = scmp.eq.s32.totalorder %s341, 0
      %s344 = sadd.s32 %s343, 1
      %s345 = scalar_select %p342, %s343, %s344
      %p348 = pneg %p342
      %p349 = scmp.eq.s32.totalorder %s35, 2
      %p350 = por %p348, %p349
      %p351 = scmp.ne.s32.totalorder %s343, %s346
      %p352 = scmp.eq.s32.totalorder %s35, 0
      %p353 = por %p351, %p352
      %p354 = scmp.ne.s32.totalorder %s343, %s346
      %p355 = scmp.eq.s32.totalorder %s40, 2
      %p356 = por %p354, %p355
      %p357 = scmp.ne.s32.totalorder %s346, %s347
      %p358 = scmp.eq.s32.totalorder %s40, 0
      %p359 = por %p357, %p358
      %p360 = scmp.ne.s32.totalorder %s346, %s347
      %p361 = scmp.eq.s32.totalorder %s41, 2
      %p362 = por %p360, %p361
      %p364 = scmp.ne.s32.totalorder %s347, %s363
      %p365 = scmp.eq.s32.totalorder %s41, 0
      %p366 = por %p364, %p365
      %s367 = ssub.s32 %s43, %s50
      %p368 = scmp.eq.s32.totalorder %s367, 0
      %s370 = sadd.s32 %s369, 1
      %s371 = scalar_select %p368, %s369, %s370
      %p374 = pneg %p368
      %p375 = scmp.eq.s32.totalorder %s35, 2
      %p376 = por %p374, %p375
      %p377 = scmp.ne.s32.totalorder %s369, %s372
      %p378 = scmp.eq.s32.totalorder %s35, 0
      %p379 = por %p377, %p378
      %p380 = scmp.ne.s32.totalorder %s369, %s372
      %p381 = scmp.eq.s32.totalorder %s40, 2
      %p382 = por %p380, %p381
      %p383 = scmp.ne.s32.totalorder %s372, %s373
      %p384 = scmp.eq.s32.totalorder %s40, 0
      %p385 = por %p383, %p384
      %p386 = scmp.ne.s32.totalorder %s372, %s373
      %p387 = scmp.eq.s32.totalorder %s41, 2
      %p388 = por %p386, %p387
      %p390 = scmp.ne.s32.totalorder %s373, %s389
      %p391 = scmp.eq.s32.totalorder %s41, 0
      %p392 = por %p390, %p391
      %s393 = ssub.s32 %s43, %s50
      %p394 = scmp.eq.s32.totalorder %s393, 0
      %s396 = sadd.s32 %s395, 1
      %s397 = scalar_select %p394, %s395, %s396
      %p400 = pneg %p394
      %p401 = scmp.eq.s32.totalorder %s35, 2
      %p402 = por %p400, %p401
      %p403 = scmp.ne.s32.totalorder %s395, %s398
      %p404 = scmp.eq.s32.totalorder %s35, 0
      %p405 = por %p403, %p404
      %p406 = scmp.ne.s32.totalorder %s395, %s398
      %p407 = scmp.eq.s32.totalorder %s40, 2
      %p408 = por %p406, %p407
      %p409 = scmp.ne.s32.totalorder %s398, %s399
      %p410 = scmp.eq.s32.totalorder %s40, 0
      %p411 = por %p409, %p410
      %p412 = scmp.ne.s32.totalorder %s398, %s399
      %p413 = scmp.eq.s32.totalorder %s41, 2
      %p414 = por %p412, %p413
      %p416 = scmp.ne.s32.totalorder %s399, %s415
      %p417 = scmp.eq.s32.totalorder %s41, 0
      %p418 = por %p416, %p417
      %s419 = ssub.s32 %s43, %s50
      %p420 = scmp.eq.s32.totalorder %s419, 0
      %s422 = sadd.s32 %s421, 1
      %s423 = scalar_select %p420, %s421, %s422
      %p426 = pneg %p420
      %p427 = scmp.eq.s32.totalorder %s35, 2
      %p428 = por %p426, %p427
      %p429 = scmp.ne.s32.totalorder %s421, %s424
      %p430 = scmp.eq.s32.totalorder %s35, 0
      %p431 = por %p429, %p430
      %p432 = scmp.ne.s32.totalorder %s421, %s424
      %p433 = scmp.eq.s32.totalorder %s40, 2
      %p434 = por %p432, %p433
      %p435 = scmp.ne.s32.totalorder %s424, %s425
      %p436 = scmp.eq.s32.totalorder %s40, 0
      %p437 = por %p435, %p436
      %p438 = scmp.ne.s32.totalorder %s424, %s425
      %p439 = scmp.eq.s32.totalorder %s41, 2
      %p440 = por %p438, %p439
      %p442 = scmp.ne.s32.totalorder %s425, %s441
      %p443 = scmp.eq.s32.totalorder %s41, 0
      %p444 = por %p442, %p443
      %s445 = ssub.s32 %s43, %s50
      %p446 = scmp.eq.s32.totalorder %s445, 0
      %s448 = sadd.s32 %s447, 1
      %s449 = scalar_select %p446, %s447, %s448
      %p452 = pneg %p446
      %p453 = scmp.eq.s32.totalorder %s35, 2
      %p454 = por %p452, %p453
      %p455 = scmp.ne.s32.totalorder %s447, %s450
      %p456 = scmp.eq.s32.totalorder %s35, 0
      %p457 = por %p455, %p456
      %p458 = scmp.ne.s32.totalorder %s447, %s450
      %p459 = scmp.eq.s32.totalorder %s40, 2
      %p460 = por %p458, %p459
      %p461 = scmp.ne.s32.totalorder %s450, %s451
      %p462 = scmp.eq.s32.totalorder %s40, 0
      %p463 = por %p461, %p462
      %p464 = scmp.ne.s32.totalorder %s450, %s451
      %p465 = scmp.eq.s32.totalorder %s41, 2
      %p466 = por %p464, %p465
      %p468 = scmp.ne.s32.totalorder %s451, %s467
      %p469 = scmp.eq.s32.totalorder %s41, 0
      %p470 = por %p468, %p469
      %s471 = ssub.s32 %s43, %s50
      %p472 = scmp.eq.s32.totalorder %s471, 0
      %s474 = sadd.s32 %s473, 1
      %s475 = scalar_select %p472, %s473, %s474
      %p478 = pneg %p472
      %p479 = scmp.eq.s32.totalorder %s35, 2
      %p480 = por %p478, %p479
      %p481 = scmp.ne.s32.totalorder %s473, %s476
      %p482 = scmp.eq.s32.totalorder %s35, 0
      %p483 = por %p481, %p482
      %p484 = scmp.ne.s32.totalorder %s473, %s476
      %p485 = scmp.eq.s32.totalorder %s40, 2
      %p486 = por %p484, %p485
      %p487 = scmp.ne.s32.totalorder %s476, %s477
      %p488 = scmp.eq.s32.totalorder %s40, 0
      %p489 = por %p487, %p488
      %p490 = scmp.ne.s32.totalorder %s476, %s477
      %p491 = scmp.eq.s32.totalorder %s41, 2
      %p492 = por %p490, %p491
      %p494 = scmp.ne.s32.totalorder %s477, %s493
      %p495 = scmp.eq.s32.totalorder %s41, 0
      %p496 = por %p494, %p495
      %s497 = ssub.s32 %s43, %s50
      %p498 = scmp.eq.s32.totalorder %s497, 0
      %s500 = sadd.s32 %s499, 1
      %s501 = scalar_select %p498, %s499, %s500
      %p504 = pneg %p498
      %p505 = scmp.eq.s32.totalorder %s35, 2
      %p506 = por %p504, %p505
      %p507 = scmp.ne.s32.totalorder %s499, %s502
      %p508 = scmp.eq.s32.totalorder %s35, 0
      %p509 = por %p507, %p508
      %p510 = scmp.ne.s32.totalorder %s499, %s502
      %p511 = scmp.eq.s32.totalorder %s40, 2
      %p512 = por %p510, %p511
      %p513 = scmp.ne.s32.totalorder %s502, %s503
      %p514 = scmp.eq.s32.totalorder %s40, 0
      %p515 = por %p513, %p514
      %p516 = scmp.ne.s32.totalorder %s502, %s503
      %p517 = scmp.eq.s32.totalorder %s41, 2
      %p518 = por %p516, %p517
      %p520 = scmp.ne.s32.totalorder %s503, %s519
      %p521 = scmp.eq.s32.totalorder %s41, 0
      %p522 = por %p520, %p521
      %s523 = ssub.s32 %s43, %s50
      %p524 = scmp.eq.s32.totalorder %s523, 0
      %s526 = sadd.s32 %s525, 1
      %s527 = scalar_select %p524, %s525, %s526
      %p530 = pneg %p524
      %p531 = scmp.eq.s32.totalorder %s35, 2
      %p532 = por %p530, %p531
      %p533 = scmp.ne.s32.totalorder %s525, %s528
      %p534 = scmp.eq.s32.totalorder %s35, 0
      %p535 = por %p533, %p534
      %p536 = scmp.ne.s32.totalorder %s525, %s528
      %p537 = scmp.eq.s32.totalorder %s40, 2
      %p538 = por %p536, %p537
      %p539 = scmp.ne.s32.totalorder %s528, %s529
      %p540 = scmp.eq.s32.totalorder %s40, 0
      %p541 = por %p539, %p540
      %p542 = scmp.ne.s32.totalorder %s528, %s529
      %p543 = scmp.eq.s32.totalorder %s41, 2
      %p544 = por %p542, %p543
      %p546 = scmp.ne.s32.totalorder %s529, %s545
      %p547 = scmp.eq.s32.totalorder %s41, 0
      %p548 = por %p546, %p547
      %s549 = ssub.s32 %s43, %s50
      %p550 = scmp.eq.s32.totalorder %s549, 0
      %s552 = sadd.s32 %s551, 1
      %s553 = scalar_select %p550, %s551, %s552
      %p556 = pneg %p550
      %p557 = scmp.eq.s32.totalorder %s35, 2
      %p558 = por %p556, %p557
      %p559 = scmp.ne.s32.totalorder %s551, %s554
      %p560 = scmp.eq.s32.totalorder %s35, 0
      %p561 = por %p559, %p560
      %p562 = scmp.ne.s32.totalorder %s551, %s554
      %p563 = scmp.eq.s32.totalorder %s40, 2
      %p564 = por %p562, %p563
      %p565 = scmp.ne.s32.totalorder %s554, %s555
      %p566 = scmp.eq.s32.totalorder %s40, 0
      %p567 = por %p565, %p566
      %p568 = scmp.ne.s32.totalorder %s554, %s555
      %p569 = scmp.eq.s32.totalorder %s41, 2
      %p570 = por %p568, %p569
      %p572 = scmp.ne.s32.totalorder %s555, %s571
      %p573 = scmp.eq.s32.totalorder %s41, 0
      %p574 = por %p572, %p573
      %s575 = ssub.s32 %s43, %s50
      %p576 = scmp.eq.s32.totalorder %s575, 0
      %s578 = sadd.s32 %s577, 1
      %s579 = scalar_select %p576, %s577, %s578
      %p582 = pneg %p576
      %p583 = scmp.eq.s32.totalorder %s35, 2
      %p584 = por %p582, %p583
      %p585 = scmp.ne.s32.totalorder %s577, %s580
      %p586 = scmp.eq.s32.totalorder %s35, 0
      %p587 = por %p585, %p586
      %p588 = scmp.ne.s32.totalorder %s577, %s580
      %p589 = scmp.eq.s32.totalorder %s40, 2
      %p590 = por %p588, %p589
      %p591 = scmp.ne.s32.totalorder %s580, %s581
      %p592 = scmp.eq.s32.totalorder %s40, 0
      %p593 = por %p591, %p592
      %p594 = scmp.ne.s32.totalorder %s580, %s581
      %p595 = scmp.eq.s32.totalorder %s41, 2
      %p596 = por %p594, %p595
      %p598 = scmp.ne.s32.totalorder %s581, %s597
      %p599 = scmp.eq.s32.totalorder %s41, 0
      %p600 = por %p598, %p599
      %s601 = ssub.s32 %s43, %s50
      %p602 = scmp.eq.s32.totalorder %s601, 0
      %s604 = sadd.s32 %s603, 1
      %s605 = scalar_select %p602, %s603, %s604
      %p608 = pneg %p602
      %p609 = scmp.eq.s32.totalorder %s35, 2
      %p610 = por %p608, %p609
      %p611 = scmp.ne.s32.totalorder %s603, %s606
      %p612 = scmp.eq.s32.totalorder %s35, 0
      %p613 = por %p611, %p612
      %p614 = scmp.ne.s32.totalorder %s603, %s606
      %p615 = scmp.eq.s32.totalorder %s40, 2
      %p616 = por %p614, %p615
      %p617 = scmp.ne.s32.totalorder %s606, %s607
      %p618 = scmp.eq.s32.totalorder %s40, 0
      %p619 = por %p617, %p618
      %p620 = scmp.ne.s32.totalorder %s606, %s607
      %p621 = scmp.eq.s32.totalorder %s41, 2
      %p622 = por %p620, %p621
      %p624 = scmp.ne.s32.totalorder %s607, %s623
      %p625 = scmp.eq.s32.totalorder %s41, 0
      %p626 = por %p624, %p625
      %s627 = ssub.s32 %s43, %s50
      %p628 = scmp.eq.s32.totalorder %s627, 0
      %s630 = sadd.s32 %s629, 1
      %s631 = scalar_select %p628, %s629, %s630
      %p634 = pneg %p628
      %p635 = scmp.eq.s32.totalorder %s35, 2
      %p636 = por %p634, %p635
      %p637 = scmp.ne.s32.totalorder %s629, %s632
      %p638 = scmp.eq.s32.totalorder %s35, 0
      %p639 = por %p637, %p638
      %p640 = scmp.ne.s32.totalorder %s629, %s632
      %p641 = scmp.eq.s32.totalorder %s40, 2
      %p642 = por %p640, %p641
      %p643 = scmp.ne.s32.totalorder %s632, %s633
      %p644 = scmp.eq.s32.totalorder %s40, 0
      %p645 = por %p643, %p644
      %p646 = scmp.ne.s32.totalorder %s632, %s633
      %p647 = scmp.eq.s32.totalorder %s41, 2
      %p648 = por %p646, %p647
      %p650 = scmp.ne.s32.totalorder %s633, %s649
      %p651 = scmp.eq.s32.totalorder %s41, 0
      %p652 = por %p650, %p651
      %s653 = ssub.s32 %s43, %s50
      %p654 = scmp.eq.s32.totalorder %s653, 0
      %s656 = sadd.s32 %s655, 1
      %s657 = scalar_select %p654, %s655, %s656
      %p660 = pneg %p654
      %p661 = scmp.eq.s32.totalorder %s35, 2
      %p662 = por %p660, %p661
      %p663 = scmp.ne.s32.totalorder %s655, %s658
      %p664 = scmp.eq.s32.totalorder %s35, 0
      %p665 = por %p663, %p664
      %p666 = scmp.ne.s32.totalorder %s655, %s658
      %p667 = scmp.eq.s32.totalorder %s40, 2
      %p668 = por %p666, %p667
      %p669 = scmp.ne.s32.totalorder %s658, %s659
      %p670 = scmp.eq.s32.totalorder %s40, 0
      %p671 = por %p669, %p670
      %p672 = scmp.ne.s32.totalorder %s658, %s659
      %p673 = scmp.eq.s32.totalorder %s41, 2
      %p674 = por %p672, %p673
      %p676 = scmp.ne.s32.totalorder %s659, %s675
      %p677 = scmp.eq.s32.totalorder %s41, 0
      %p678 = por %p676, %p677
      %s679 = ssub.s32 %s43, %s50
      %p680 = scmp.eq.s32.totalorder %s679, 0
      %s682 = sadd.s32 %s681, 1
      %s683 = scalar_select %p680, %s681, %s682
      %p686 = pneg %p680
      %p687 = scmp.eq.s32.totalorder %s35, 2
      %p688 = por %p686, %p687
      %p689 = scmp.ne.s32.totalorder %s681, %s684
      %p690 = scmp.eq.s32.totalorder %s35, 0
      %p691 = por %p689, %p690
      %p692 = scmp.ne.s32.totalorder %s681, %s684
      %p693 = scmp.eq.s32.totalorder %s40, 2
      %p694 = por %p692, %p693
      %p695 = scmp.ne.s32.totalorder %s684, %s685
      %p696 = scmp.eq.s32.totalorder %s40, 0
      %p697 = por %p695, %p696
      %p698 = scmp.ne.s32.totalorder %s684, %s685
      %p699 = scmp.eq.s32.totalorder %s41, 2
      %p700 = por %p698, %p699
      %p702 = scmp.ne.s32.totalorder %s685, %s701
      %p703 = scmp.eq.s32.totalorder %s41, 0
      %p704 = por %p702, %p703
      %s705 = ssub.s32 %s43, %s50
      %p706 = scmp.eq.s32.totalorder %s705, 0
      %s708 = sadd.s32 %s707, 1
      %s709 = scalar_select %p706, %s707, %s708
      %p712 = pneg %p706
      %p713 = scmp.eq.s32.totalorder %s35, 2
      %p714 = por %p712, %p713
      %p715 = scmp.ne.s32.totalorder %s707, %s710
      %p716 = scmp.eq.s32.totalorder %s35, 0
      %p717 = por %p715, %p716
      %p718 = scmp.ne.s32.totalorder %s707, %s710
      %p719 = scmp.eq.s32.totalorder %s40, 2
      %p720 = por %p718, %p719
      %p721 = scmp.ne.s32.totalorder %s710, %s711
      %p722 = scmp.eq.s32.totalorder %s40, 0
      %p723 = por %p721, %p722
      %p724 = scmp.ne.s32.totalorder %s710, %s711
      %p725 = scmp.eq.s32.totalorder %s41, 2
      %p726 = por %p724, %p725
      %p728 = scmp.ne.s32.totalorder %s711, %s727
      %p729 = scmp.eq.s32.totalorder %s41, 0
      %p730 = por %p728, %p729
      %s731 = ssub.s32 %s42, %s54
      %p732 = scmp.eq.s32.totalorder %s731, 0
      %s734 = sadd.s32 %s733, 1
      %s735 = scalar_select %p732, %s733, %s734
      %p738 = pneg %p732
      %p739 = scmp.eq.s32.totalorder %s35, 2
      %p740 = por %p738, %p739
      %p741 = scmp.ne.s32.totalorder %s733, %s736
      %p742 = scmp.eq.s32.totalorder %s35, 0
      %p743 = por %p741, %p742
      %p744 = scmp.ne.s32.totalorder %s733, %s736
      %p745 = scmp.eq.s32.totalorder %s40, 2
      %p746 = por %p744, %p745
      %p747 = scmp.ne.s32.totalorder %s736, %s737
      %p748 = scmp.eq.s32.totalorder %s40, 0
      %p749 = por %p747, %p748
      %p750 = scmp.ne.s32.totalorder %s736, %s737
      %p751 = scmp.eq.s32.totalorder %s41, 2
      %p752 = por %p750, %p751
      %p754 = scmp.ne.s32.totalorder %s737, %s753
      %p755 = scmp.eq.s32.totalorder %s41, 0
      %p756 = por %p754, %p755
      %p757 = scmp.le.s32.totalorder 1, %s35
      %p758 = scmp.lt.s32.totalorder %s35, 4
      %p759 = pnand %p757, %p758
      %p760 = pneg %p759
      // Predicated region
      $region9: #{tpu_custom_call.1} parent=5 // pred_check
        _
      $region10: #{tpu_custom_call.1} parent=5 // pred_check_branch
        %762 = sbr.rel (%p759) target = $region12
      $region11: #{tpu_custom_call.1} parent=5 // pred_region
        %s763 = ssub.s32 %s35, 1
        // Predicated region
        $region13: #{tpu_custom_call.1} parent=11 // pred_check
          %p764 = pneg %p73
        $region14: #{tpu_custom_call.1} parent=11 // pred_check_branch
          %766 = sbr.rel (%p764) target = $region16
        $region15: #{tpu_custom_call.1} parent=11 // pred_region
          %s767 = smul.u32 4, %s44
          %s769 = ssub.s32 512, 512
          %770 = vsyncadd [#allocation5], %s769
          %s771 = smul.addr %s767, 128
          %s772 = scalar_lea.hbm %s0, %s771
          %s773 = sshll.u32 [#allocation4], 4
          %s774 = int_to_ptr.vmem [resolvable:$true] %s773
          %779 = dma.hbm_to_vmem [thread:$0]  %s772, 512, %s774, [#allocation5], 128, 128, 8
        $region16: #{tpu_custom_call.1} parent=11 // pred_fallthru
          _
        // Predicated region
        $region17: #{tpu_custom_call.1} parent=11 // pred_check
          %p780 = pneg %p99
        $region18: #{tpu_custom_call.1} parent=11 // pred_check_branch
          %782 = sbr.rel (%p780) target = $region20
        $region19: #{tpu_custom_call.1} parent=11 // pred_region
          %s783 = smul.u32 4, %s44
          %p784 = scmp.lt.s32.totalorder %s783, 3
          %s785 = scalar_select %p784, %s783, 3
          %s786 = smul.addr %s785, 8
          %s787 = scalar_lea.vmem %s1, %s786
          %s788 = smul.u32 4, %s44
        $region20: #{tpu_custom_call.1} parent=11 // pred_fallthru
          _
        // Predicated region
        $region21: #{tpu_custom_call.1} parent=11 // pred_check
          %p789 = pneg %p125
        $region22: #{tpu_custom_call.1} parent=11 // pred_check_branch
          %791 = sbr.rel (%p789) target = $region24
        $region23: #{tpu_custom_call.1} parent=11 // pred_region
          %s792 = smul.u32 4, %s44
          %p793 = scmp.lt.s32.totalorder %s792, 3
          %s794 = scalar_select %p793, %s792, 3
          %s795 = smul.addr %s794, 8
          %s796 = scalar_lea.vmem %s2, %s795
          %s797 = smul.u32 4, %s44
        $region24: #{tpu_custom_call.1} parent=11 // pred_fallthru
          _
        // Predicated region
        $region25: #{tpu_custom_call.1} parent=11 // pred_check
          %p798 = pneg %p151
        $region26: #{tpu_custom_call.1} parent=11 // pred_check_branch
          %800 = sbr.rel (%p798) target = $region28
        $region27: #{tpu_custom_call.1} parent=11 // pred_region
          %s801 = smul.u32 4, %s44
          %p802 = scmp.lt.s32.totalorder %s801, 3
          %s803 = scalar_select %p802, %s801, 3
          %s804 = smul.addr %s803, 8
          %s805 = scalar_lea.vmem %s3, %s804
          %s806 = smul.u32 4, %s44
        $region28: #{tpu_custom_call.1} parent=11 // pred_fallthru
          _
        // Predicated region
        $region29: #{tpu_custom_call.1} parent=11 // pred_check
          %p807 = pneg %p177
        $region30: #{tpu_custom_call.1} parent=11 // pred_check_branch
          %809 = sbr.rel (%p807) target = $region32
        $region31: #{tpu_custom_call.1} parent=11 // pred_region
          %s810 = smul.u32 2, %s44
          %p811 = scmp.lt.s32.totalorder %s810, 1
          %s812 = scalar_select %p811, %s810, 1
          %s813 = smul.addr %s812, 8
          %s814 = scalar_lea.vmem %s4, %s813
          %s815 = smul.u32 2, %s44
        $region32: #{tpu_custom_call.1} parent=11 // pred_fallthru
          _
        // Predicated region
        $region33: #{tpu_custom_call.1} parent=11 // pred_check
          %p816 = pneg %p203
        $region34: #{tpu_custom_call.1} parent=11 // pred_check_branch
          %818 = sbr.rel (%p816) target = $region36
        $region35: #{tpu_custom_call.1} parent=11 // pred_region
          %s819 = smul.u32 2, %s44
          %s821 = ssub.s32 32, 32
          %822 = vsyncadd [#allocation8], %s821
          %s823 = smul.addr %s819, 16
          %s824 = scalar_lea.hbm %s5, %s823
          %s825 = sshll.u32 [#allocation7], 4
          %s826 = int_to_ptr.vmem [resolvable:$true] %s825
          %831 = dma.hbm_to_vmem [thread:$0]  %s824, 32, %s826, [#allocation8], 16, 16, 1
        $region36: #{tpu_custom_call.1} parent=11 // pred_fallthru
          _
      $region12: #{tpu_custom_call.1} parent=5 // pred_fallthru
        _
      %p832 = scmp.lt.s32.totalorder %s35, 3
      // Predicated region
      $region37: #{tpu_custom_call.1} parent=5 // pred_check
        %p833 = pneg %p832
      $region38: #{tpu_custom_call.1} parent=5 // pred_check_branch
        %835 = sbr.rel (%p833) target = $region40
      $region39: #{tpu_custom_call.1} parent=5 // pred_region
        // Predicated region
        $region41: #{tpu_custom_call.1} parent=39 // pred_check
          %p836 = pneg %p223
        $region42: #{tpu_custom_call.1} parent=39 // pred_check_branch
          %838 = sbr.rel (%p836) target = $region44
        $region43: #{tpu_custom_call.1} parent=39 // pred_region
          %p839 = scmp.lt.s32.totalorder %s43, 2
          %s840 = scalar_select %p839, %s43, 2
          %s841 = scalar_lea.vmem %s6, %s840
        $region44: #{tpu_custom_call.1} parent=39 // pred_fallthru
          _
        // Predicated region
        $region45: #{tpu_custom_call.1} parent=39 // pred_check
          %p842 = pneg %p249
        $region46: #{tpu_custom_call.1} parent=39 // pred_check_branch
          %844 = sbr.rel (%p842) target = $region48
        $region47: #{tpu_custom_call.1} parent=39 // pred_region
          %p845 = scmp.lt.s32.totalorder %s43, 2
          %s846 = scalar_select %p845, %s43, 2
          %s847 = scalar_lea.vmem %s7, %s846
        $region48: #{tpu_custom_call.1} parent=39 // pred_fallthru
          _
        // Predicated region
        $region49: #{tpu_custom_call.1} parent=39 // pred_check
          %p848 = pneg %p275
        $region50: #{tpu_custom_call.1} parent=39 // pred_check_branch
          %850 = sbr.rel (%p848) target = $region52
        $region51: #{tpu_custom_call.1} parent=39 // pred_region
          %p851 = scmp.lt.s32.totalorder %s43, 2
          %s852 = scalar_select %p851, %s43, 2
          %s853 = smul.addr %s852, 12
          %s854 = smul.addr %s853, 8
          %s855 = scalar_lea.vmem %s8, %s854
        $region52: #{tpu_custom_call.1} parent=39 // pred_fallthru
          _
        // Predicated region
        $region53: #{tpu_custom_call.1} parent=39 // pred_check
          %p856 = pneg %p301
        $region54: #{tpu_custom_call.1} parent=39 // pred_check_branch
          %858 = sbr.rel (%p856) target = $region56
        $region55: #{tpu_custom_call.1} parent=39 // pred_region
          %p859 = scmp.lt.s32.totalorder %s43, 2
          %s860 = scalar_select %p859, %s43, 2
          %s861 = scalar_lea.vmem %s9, %s860
        $region56: #{tpu_custom_call.1} parent=39 // pred_fallthru
          _
        // Predicated region
        $region57: #{tpu_custom_call.1} parent=39 // pred_check
          %p862 = pneg %p327
        $region58: #{tpu_custom_call.1} parent=39 // pred_check_branch
          %864 = sbr.rel (%p862) target = $region60
        $region59: #{tpu_custom_call.1} parent=39 // pred_region
          %p865 = scmp.lt.s32.totalorder %s43, 2
          %s866 = scalar_select %p865, %s43, 2
          %s867 = scalar_lea.vmem %s10, %s866
        $region60: #{tpu_custom_call.1} parent=39 // pred_fallthru
          _
        // Predicated region
        $region61: #{tpu_custom_call.1} parent=39 // pred_check
          %p868 = pneg %p353
        $region62: #{tpu_custom_call.1} parent=39 // pred_check_branch
          %870 = sbr.rel (%p868) target = $region64
        $region63: #{tpu_custom_call.1} parent=39 // pred_region
          %p871 = scmp.lt.s32.totalorder %s43, 2
          %s872 = scalar_select %p871, %s43, 2
          %s873 = scalar_lea.vmem %s11, %s872
        $region64: #{tpu_custom_call.1} parent=39 // pred_fallthru
          _
        // Predicated region
        $region65: #{tpu_custom_call.1} parent=39 // pred_check
          %p874 = pneg %p379
        $region66: #{tpu_custom_call.1} parent=39 // pred_check_branch
          %876 = sbr.rel (%p874) target = $region68
        $region67: #{tpu_custom_call.1} parent=39 // pred_region
          %p877 = scmp.lt.s32.totalorder %s43, 2
          %s878 = scalar_select %p877, %s43, 2
          %s879 = smul.addr %s878, 4
          %s880 = smul.addr %s879, 8
          %s881 = scalar_lea.vmem %s12, %s880
        $region68: #{tpu_custom_call.1} parent=39 // pred_fallthru
          _
        // Predicated region
        $region69: #{tpu_custom_call.1} parent=39 // pred_check
          %p882 = pneg %p405
        $region70: #{tpu_custom_call.1} parent=39 // pred_check_branch
          %884 = sbr.rel (%p882) target = $region72
        $region71: #{tpu_custom_call.1} parent=39 // pred_region
          %p885 = scmp.lt.s32.totalorder %s43, 2
          %s886 = scalar_select %p885, %s43, 2
          %s887 = scalar_lea.vmem %s13, %s886
        $region72: #{tpu_custom_call.1} parent=39 // pred_fallthru
          _
        // Predicated region
        $region73: #{tpu_custom_call.1} parent=39 // pred_check
          %p888 = pneg %p431
        $region74: #{tpu_custom_call.1} parent=39 // pred_check_branch
          %890 = sbr.rel (%p888) target = $region76
        $region75: #{tpu_custom_call.1} parent=39 // pred_region
          %p891 = scmp.lt.s32.totalorder %s43, 2
          %s892 = scalar_select %p891, %s43, 2
          %s893 = smul.addr %s892, 4
          %s894 = smul.addr %s893, 8
          %s895 = scalar_lea.vmem %s14, %s894
        $region76: #{tpu_custom_call.1} parent=39 // pred_fallthru
          _
        // Predicated region
        $region77: #{tpu_custom_call.1} parent=39 // pred_check
          %p896 = pneg %p457
        $region78: #{tpu_custom_call.1} parent=39 // pred_check_branch
          %898 = sbr.rel (%p896) target = $region80
        $region79: #{tpu_custom_call.1} parent=39 // pred_region
          %p899 = scmp.lt.s32.totalorder %s43, 2
          %s900 = scalar_select %p899, %s43, 2
          %s901 = scalar_lea.vmem %s15, %s900
        $region80: #{tpu_custom_call.1} parent=39 // pred_fallthru
          _
        // Predicated region
        $region81: #{tpu_custom_call.1} parent=39 // pred_check
          %p902 = pneg %p483
        $region82: #{tpu_custom_call.1} parent=39 // pred_check_branch
          %904 = sbr.rel (%p902) target = $region84
        $region83: #{tpu_custom_call.1} parent=39 // pred_region
          %p905 = scmp.lt.s32.totalorder %s43, 2
          %s906 = scalar_select %p905, %s43, 2
          %s907 = smul.addr %s906, 4
          %s908 = smul.addr %s907, 8
          %s909 = scalar_lea.vmem %s16, %s908
        $region84: #{tpu_custom_call.1} parent=39 // pred_fallthru
          _
        // Predicated region
        $region85: #{tpu_custom_call.1} parent=39 // pred_check
          %p910 = pneg %p509
        $region86: #{tpu_custom_call.1} parent=39 // pred_check_branch
          %912 = sbr.rel (%p910) target = $region88
        $region87: #{tpu_custom_call.1} parent=39 // pred_region
          %p913 = scmp.lt.s32.totalorder %s43, 2
          %s914 = scalar_select %p913, %s43, 2
          %s915 = scalar_lea.vmem %s17, %s914
        $region88: #{tpu_custom_call.1} parent=39 // pred_fallthru
          _
        // Predicated region
        $region89: #{tpu_custom_call.1} parent=39 // pred_check
          %p916 = pneg %p535
        $region90: #{tpu_custom_call.1} parent=39 // pred_check_branch
          %918 = sbr.rel (%p916) target = $region92
        $region91: #{tpu_custom_call.1} parent=39 // pred_region
          %s919 = sand.u32 %s35, 1
          %s920 = scalar_lea.sflag [#allocation5], %s919
          %s921 = sand.u32 %s525, 1
          %s922 = smul.addr %s921, 32
          %s923 = scalar_lea.vmem [#allocation9], %s922
          %s925 = ssub.s32 512, 512
          %926 = vsyncadd %s920, %s925
          %s927 = smul.addr %s43, 4
          %s928 = smul.addr %s927, 128
          %s929 = scalar_lea.hbm %s18, %s928
          %s930 = sshll.u32 %s923, 4
          %s931 = int_to_ptr.vmem [resolvable:$true] %s930
          %936 = dma.hbm_to_vmem [thread:$0]  %s929, 512, %s931, %s920, 128, 128, 8
        $region92: #{tpu_custom_call.1} parent=39 // pred_fallthru
          _
        // Predicated region
        $region93: #{tpu_custom_call.1} parent=39 // pred_check
          %p937 = pneg %p561
        $region94: #{tpu_custom_call.1} parent=39 // pred_check_branch
          %939 = sbr.rel (%p937) target = $region96
        $region95: #{tpu_custom_call.1} parent=39 // pred_region
          %p940 = scmp.lt.s32.totalorder %s43, 2
          %s941 = scalar_select %p940, %s43, 2
          %s942 = scalar_lea.vmem %s19, %s941
        $region96: #{tpu_custom_call.1} parent=39 // pred_fallthru
          _
        // Predicated region
        $region97: #{tpu_custom_call.1} parent=39 // pred_check
          %p943 = pneg %p587
        $region98: #{tpu_custom_call.1} parent=39 // pred_check_branch
          %945 = sbr.rel (%p943) target = $region100
        $region99: #{tpu_custom_call.1} parent=39 // pred_region
          %p946 = scmp.lt.s32.totalorder %s43, 2
          %s947 = scalar_select %p946, %s43, 2
          %s948 = scalar_lea.vmem %s20, %s947
        $region100: #{tpu_custom_call.1} parent=39 // pred_fallthru
          _
        // Predicated region
        $region101: #{tpu_custom_call.1} parent=39 // pred_check
          %p949 = pneg %p613
        $region102: #{tpu_custom_call.1} parent=39 // pred_check_branch
          %951 = sbr.rel (%p949) target = $region104
        $region103: #{tpu_custom_call.1} parent=39 // pred_region
          %p952 = scmp.lt.s32.totalorder %s43, 2
          %s953 = scalar_select %p952, %s43, 2
          %s954 = scalar_lea.vmem %s21, %s953
        $region104: #{tpu_custom_call.1} parent=39 // pred_fallthru
          _
        // Predicated region
        $region105: #{tpu_custom_call.1} parent=39 // pred_check
          %p955 = pneg %p639
        $region106: #{tpu_custom_call.1} parent=39 // pred_check_branch
          %957 = sbr.rel (%p955) target = $region108
        $region107: #{tpu_custom_call.1} parent=39 // pred_region
          %s958 = sand.u32 %s35, 1
          %s959 = scalar_lea.sflag [#allocation5], %s958
          %s960 = sand.u32 %s629, 1
          %s961 = smul.addr %s960, 32
          %s962 = scalar_lea.vmem [#allocation10], %s961
          %s964 = ssub.s32 512, 512
          %965 = vsyncadd %s959, %s964
          %s966 = smul.addr %s43, 4
          %s967 = smul.addr %s966, 128
          %s968 = scalar_lea.hbm %s22, %s967
          %s969 = sshll.u32 %s962, 4
          %s970 = int_to_ptr.vmem [resolvable:$true] %s969
          %975 = dma.hbm_to_vmem [thread:$0]  %s968, 512, %s970, %s959, 128, 128, 8
        $region108: #{tpu_custom_call.1} parent=39 // pred_fallthru
          _
        // Predicated region
        $region109: #{tpu_custom_call.1} parent=39 // pred_check
          %p976 = pneg %p665
        $region110: #{tpu_custom_call.1} parent=39 // pred_check_branch
          %978 = sbr.rel (%p976) target = $region112
        $region111: #{tpu_custom_call.1} parent=39 // pred_region
          %p979 = scmp.lt.s32.totalorder %s43, 2
          %s980 = scalar_select %p979, %s43, 2
          %s981 = scalar_lea.vmem %s23, %s980
        $region112: #{tpu_custom_call.1} parent=39 // pred_fallthru
          _
        // Predicated region
        $region113: #{tpu_custom_call.1} parent=39 // pred_check
          %p982 = pneg %p691
        $region114: #{tpu_custom_call.1} parent=39 // pred_check_branch
          %984 = sbr.rel (%p982) target = $region116
        $region115: #{tpu_custom_call.1} parent=39 // pred_region
          %p985 = scmp.lt.s32.totalorder %s43, 2
          %s986 = scalar_select %p985, %s43, 2
          %s987 = smul.addr %s986, 16
          %s988 = smul.addr %s987, 8
          %s989 = scalar_lea.vmem %s24, %s988
        $region116: #{tpu_custom_call.1} parent=39 // pred_fallthru
          _
        // Predicated region
        $region117: #{tpu_custom_call.1} parent=39 // pred_check
          %p990 = pneg %p717
        $region118: #{tpu_custom_call.1} parent=39 // pred_check_branch
          %992 = sbr.rel (%p990) target = $region120
        $region119: #{tpu_custom_call.1} parent=39 // pred_region
          %p993 = scmp.lt.s32.totalorder %s43, 2
          %s994 = scalar_select %p993, %s43, 2
          %s995 = scalar_lea.vmem %s25, %s994
        $region120: #{tpu_custom_call.1} parent=39 // pred_fallthru
          _
      $region40: #{tpu_custom_call.1} parent=5 // pred_fallthru
        _
      %p996 = scmp.le.s32.totalorder 1, %s35
      %p997 = scmp.lt.s32.totalorder %s35, 4
      %p998 = pnand %p996, %p997
      %p999 = pneg %p998
      // Predicated region
      $region121: #{tpu_custom_call.1} parent=5 // pred_check
        _
      $region122: #{tpu_custom_call.1} parent=5 // pred_check_branch
        %1001 = sbr.rel (%p998) target = $region124
      $region123: #{tpu_custom_call.1} parent=5 // pred_region
        %s1002 = ssub.s32 %s35, 1
        // Predicated region
        $region125: #{tpu_custom_call.1} parent=123 // pred_check
          %p1003 = pneg %p73
        $region126: #{tpu_custom_call.1} parent=123 // pred_check_branch
          %1005 = sbr.rel (%p1003) target = $region128
        $region127: #{tpu_custom_call.1} parent=123 // pred_region
          %1006 = dma.done [#allocation5], 512
        $region128: #{tpu_custom_call.1} parent=123 // pred_fallthru
          _
        // Predicated region
        $region129: #{tpu_custom_call.1} parent=123 // pred_check
          %p1007 = pneg %p203
        $region130: #{tpu_custom_call.1} parent=123 // pred_check_branch
          %1009 = sbr.rel (%p1007) target = $region132
        $region131: #{tpu_custom_call.1} parent=123 // pred_region
          %1010 = dma.done [#allocation8], 32
        $region132: #{tpu_custom_call.1} parent=123 // pred_fallthru
          _
        %s1011 = sand.u32 %s40, 1
        %s1012 = scalar_lea.sflag [#allocation5], %s1011
        %s1013 = sand.u32 %s528, 1
        %s1014 = smul.addr %s1013, 32
        %s1015 = scalar_lea.vmem [#allocation9], %s1014
        // Predicated region
        $region133: #{tpu_custom_call.1} parent=123 // pred_check
          %p1016 = pneg %p541
        $region134: #{tpu_custom_call.1} parent=123 // pred_check_branch
          %1018 = sbr.rel (%p1016) target = $region136
        $region135: #{tpu_custom_call.1} parent=123 // pred_region
          %1019 = dma.done %s1012, 512
        $region136: #{tpu_custom_call.1} parent=123 // pred_fallthru
          _
        %s1020 = sand.u32 %s40, 1
        %s1021 = scalar_lea.sflag [#allocation5], %s1020
        %s1022 = sand.u32 %s632, 1
        %s1023 = smul.addr %s1022, 32
        %s1024 = scalar_lea.vmem [#allocation10], %s1023
        // Predicated region
        $region137: #{tpu_custom_call.1} parent=123 // pred_check
          %p1025 = pneg %p645
        $region138: #{tpu_custom_call.1} parent=123 // pred_check_branch
          %1027 = sbr.rel (%p1025) target = $region140
        $region139: #{tpu_custom_call.1} parent=123 // pred_region
          %1028 = dma.done %s1021, 512
        $region140: #{tpu_custom_call.1} parent=123 // pred_fallthru
          _
        %p1029 = pneg %p73
        %p1030 = pneg %p70
        %s1031 = smul.u32 4, %s44
        %p1032 = scmp.lt.s32.totalorder %s1031, 3
        %s1033 = scalar_select %p1032, %s1031, 3
        %s1034 = smul.addr %s1033, 8
        %s1035 = scalar_lea.vmem %s1, %s1034
        %p1036 = pneg %p99
        %p1037 = pneg %p96
        %s1038 = smul.u32 4, %s44
        %p1039 = scmp.lt.s32.totalorder %s1038, 3
        %s1040 = scalar_select %p1039, %s1038, 3
        %s1041 = smul.addr %s1040, 8
        %s1042 = scalar_lea.vmem %s2, %s1041
        %p1043 = pneg %p125
        %p1044 = pneg %p122
        %s1045 = smul.u32 4, %s44
        %p1046 = scmp.lt.s32.totalorder %s1045, 3
        %s1047 = scalar_select %p1046, %s1045, 3
        %s1048 = smul.addr %s1047, 8
        %s1049 = scalar_lea.vmem %s3, %s1048
        %p1050 = pneg %p151
        %p1051 = pneg %p148
        %s1052 = smul.u32 2, %s44
        %p1053 = scmp.lt.s32.totalorder %s1052, 1
        %s1054 = scalar_select %p1053, %s1052, 1
        %s1055 = smul.addr %s1054, 8
        %s1056 = scalar_lea.vmem %s4, %s1055
        %p1057 = pneg %p177
        %p1058 = pneg %p174
        %p1059 = pneg %p203
        %p1060 = pneg %p200
        %p1061 = scmp.lt.s32.totalorder %s45, 2
        %s1062 = scalar_select %p1061, %s45, 2
        %s1063 = scalar_lea.vmem %s6, %s1062
        %p1064 = pneg %p229
        %p1065 = pneg %p226
        %p1066 = scmp.lt.s32.totalorder %s45, 2
        %s1067 = scalar_select %p1066, %s45, 2
        %s1068 = scalar_lea.vmem %s7, %s1067
        %p1069 = pneg %p255
        %p1070 = pneg %p252
        %p1071 = scmp.lt.s32.totalorder %s45, 2
        %s1072 = scalar_select %p1071, %s45, 2
        %s1073 = smul.addr %s1072, 12
        %s1074 = smul.addr %s1073, 8
        %s1075 = scalar_lea.vmem %s8, %s1074
        %p1076 = pneg %p281
        %p1077 = pneg %p278
        %p1078 = scmp.lt.s32.totalorder %s45, 2
        %s1079 = scalar_select %p1078, %s45, 2
        %s1080 = scalar_lea.vmem %s9, %s1079
        %p1081 = pneg %p307
        %p1082 = pneg %p304
        %p1083 = scmp.lt.s32.totalorder %s45, 2
        %s1084 = scalar_select %p1083, %s45, 2
        %s1085 = scalar_lea.vmem %s10, %s1084
        %p1086 = pneg %p333
        %p1087 = pneg %p330
        %p1088 = scmp.lt.s32.totalorder %s45, 2
        %s1089 = scalar_select %p1088, %s45, 2
        %s1090 = scalar_lea.vmem %s11, %s1089
        %p1091 = pneg %p359
        %p1092 = pneg %p356
        %p1093 = scmp.lt.s32.totalorder %s45, 2
        %s1094 = scalar_select %p1093, %s45, 2
        %s1095 = smul.addr %s1094, 4
        %s1096 = smul.addr %s1095, 8
        %s1097 = scalar_lea.vmem %s12, %s1096
        %p1098 = pneg %p385
        %p1099 = pneg %p382
        %p1100 = scmp.lt.s32.totalorder %s45, 2
        %s1101 = scalar_select %p1100, %s45, 2
        %s1102 = scalar_lea.vmem %s13, %s1101
        %p1103 = pneg %p411
        %p1104 = pneg %p408
        %p1105 = scmp.lt.s32.totalorder %s45, 2
        %s1106 = scalar_select %p1105, %s45, 2
        %s1107 = smul.addr %s1106, 4
        %s1108 = smul.addr %s1107, 8
        %s1109 = scalar_lea.vmem %s14, %s1108
        %p1110 = pneg %p437
        %p1111 = pneg %p434
        %p1112 = scmp.lt.s32.totalorder %s45, 2
        %s1113 = scalar_select %p1112, %s45, 2
        %s1114 = scalar_lea.vmem %s15, %s1113
        %p1115 = pneg %p463
        %p1116 = pneg %p460
        %p1117 = scmp.lt.s32.totalorder %s45, 2
        %s1118 = scalar_select %p1117, %s45, 2
        %s1119 = smul.addr %s1118, 4
        %s1120 = smul.addr %s1119, 8
        %s1121 = scalar_lea.vmem %s16, %s1120
        %p1122 = pneg %p489
        %p1123 = pneg %p486
        %p1124 = scmp.lt.s32.totalorder %s45, 2
        %s1125 = scalar_select %p1124, %s45, 2
        %s1126 = scalar_lea.vmem %s17, %s1125
        %p1127 = pneg %p515
        %p1128 = pneg %p512
        %s1129 = sand.u32 %s40, 1
        %s1130 = scalar_lea.sflag [#allocation5], %s1129
        %s1131 = sand.u32 %s528, 1
        %s1132 = smul.addr %s1131, 32
        %s1133 = scalar_lea.vmem [#allocation9], %s1132
        %p1134 = pneg %p541
        %p1135 = pneg %p538
        %p1136 = scmp.lt.s32.totalorder %s45, 2
        %s1137 = scalar_select %p1136, %s45, 2
        %s1138 = scalar_lea.vmem %s19, %s1137
        %p1139 = pneg %p567
        %p1140 = pneg %p564
        %p1141 = scmp.lt.s32.totalorder %s45, 2
        %s1142 = scalar_select %p1141, %s45, 2
        %s1143 = scalar_lea.vmem %s20, %s1142
        %p1144 = pneg %p593
        %p1145 = pneg %p590
        %p1146 = scmp.lt.s32.totalorder %s45, 2
        %s1147 = scalar_select %p1146, %s45, 2
        %s1148 = scalar_lea.vmem %s21, %s1147
        %p1149 = pneg %p619
        %p1150 = pneg %p616
        %s1151 = sand.u32 %s40, 1
        %s1152 = scalar_lea.sflag [#allocation5], %s1151
        %s1153 = sand.u32 %s632, 1
        %s1154 = smul.addr %s1153, 32
        %s1155 = scalar_lea.vmem [#allocation10], %s1154
        %p1156 = pneg %p645
        %p1157 = pneg %p642
        %p1158 = scmp.lt.s32.totalorder %s45, 2
        %s1159 = scalar_select %p1158, %s45, 2
        %s1160 = scalar_lea.vmem %s23, %s1159
        %p1161 = pneg %p671
        %p1162 = pneg %p668
        %p1163 = scmp.lt.s32.totalorder %s45, 2
        %s1164 = scalar_select %p1163, %s45, 2
        %s1165 = smul.addr %s1164, 16
        %s1166 = smul.addr %s1165, 8
        %s1167 = scalar_lea.vmem %s24, %s1166
        %p1168 = pneg %p697
        %p1169 = pneg %p694
        %p1170 = scmp.lt.s32.totalorder %s45, 2
        %s1171 = scalar_select %p1170, %s45, 2
        %s1172 = scalar_lea.vmem %s25, %s1171
        %p1173 = pneg %p723
        %p1174 = pneg %p720
        %p1175 = pneg %p749
        %p1176 = pneg %p746
        %s1177 = smul.u32 4, %s44
        %s1178 = smul.u32 4, %s44
        %p1179 = scmp.lt.s32.totalorder %s1178, 3
        %s1180 = scalar_select %p1179, %s1178, 3
        %s1181 = smul.addr %s1180, 8
        %s1182 = scalar_lea.vmem %s1, %s1181
        %s1183 = smul.u32 4, %s44
        %s1184 = smul.u32 4, %s44
        %p1185 = scmp.lt.s32.totalorder %s1184, 3
        %s1186 = scalar_select %p1185, %s1184, 3
        %s1187 = smul.addr %s1186, 8
        %s1188 = scalar_lea.vmem %s2, %s1187
        %s1189 = smul.u32 4, %s44
        %s1190 = smul.u32 4, %s44
        %p1191 = scmp.lt.s32.totalorder %s1190, 3
        %s1192 = scalar_select %p1191, %s1190, 3
        %s1193 = smul.addr %s1192, 8
        %s1194 = scalar_lea.vmem %s3, %s1193
        %s1195 = smul.u32 4, %s44
        %s1196 = smul.u32 2, %s44
        %p1197 = scmp.lt.s32.totalorder %s1196, 1
        %s1198 = scalar_select %p1197, %s1196, 1
        %s1199 = smul.addr %s1198, 8
        %s1200 = scalar_lea.vmem %s4, %s1199
        %s1201 = smul.u32 2, %s44
        %s1202 = smul.u32 2, %s44
        %p1203 = scmp.lt.s32.totalorder %s45, 2
        %s1204 = scalar_select %p1203, %s45, 2
        %s1205 = scalar_lea.vmem %s6, %s1204
        %p1206 = scmp.lt.s32.totalorder %s45, 2
        %s1207 = scalar_select %p1206, %s45, 2
        %s1208 = scalar_lea.vmem %s7, %s1207
        %p1209 = scmp.lt.s32.totalorder %s45, 2
        %s1210 = scalar_select %p1209, %s45, 2
        %s1211 = smul.addr %s1210, 12
        %s1212 = smul.addr %s1211, 8
        %s1213 = scalar_lea.vmem %s8, %s1212
        %p1214 = scmp.lt.s32.totalorder %s45, 2
        %s1215 = scalar_select %p1214, %s45, 2
        %s1216 = scalar_lea.vmem %s9, %s1215
        %p1217 = scmp.lt.s32.totalorder %s45, 2
        %s1218 = scalar_select %p1217, %s45, 2
        %s1219 = scalar_lea.vmem %s10, %s1218
        %p1220 = scmp.lt.s32.totalorder %s45, 2
        %s1221 = scalar_select %p1220, %s45, 2
        %s1222 = scalar_lea.vmem %s11, %s1221
        %p1223 = scmp.lt.s32.totalorder %s45, 2
        %s1224 = scalar_select %p1223, %s45, 2
        %s1225 = smul.addr %s1224, 4
        %s1226 = smul.addr %s1225, 8
        %s1227 = scalar_lea.vmem %s12, %s1226
        %p1228 = scmp.lt.s32.totalorder %s45, 2
        %s1229 = scalar_select %p1228, %s45, 2
        %s1230 = scalar_lea.vmem %s13, %s1229
        %p1231 = scmp.lt.s32.totalorder %s45, 2
        %s1232 = scalar_select %p1231, %s45, 2
        %s1233 = smul.addr %s1232, 4
        %s1234 = smul.addr %s1233, 8
        %s1235 = scalar_lea.vmem %s14, %s1234
        %p1236 = scmp.lt.s32.totalorder %s45, 2
        %s1237 = scalar_select %p1236, %s45, 2
        %s1238 = scalar_lea.vmem %s15, %s1237
        %p1239 = scmp.lt.s32.totalorder %s45, 2
        %s1240 = scalar_select %p1239, %s45, 2
        %s1241 = smul.addr %s1240, 4
        %s1242 = smul.addr %s1241, 8
        %s1243 = scalar_lea.vmem %s16, %s1242
        %p1244 = scmp.lt.s32.totalorder %s45, 2
        %s1245 = scalar_select %p1244, %s45, 2
        %s1246 = scalar_lea.vmem %s17, %s1245
        %p1247 = scmp.lt.s32.totalorder %s45, 2
        %s1248 = scalar_select %p1247, %s45, 2
        %s1249 = scalar_lea.vmem %s19, %s1248
        %p1250 = scmp.lt.s32.totalorder %s45, 2
        %s1251 = scalar_select %p1250, %s45, 2
        %s1252 = scalar_lea.vmem %s20, %s1251
        %p1253 = scmp.lt.s32.totalorder %s45, 2
        %s1254 = scalar_select %p1253, %s45, 2
        %s1255 = scalar_lea.vmem %s21, %s1254
        %p1256 = scmp.lt.s32.totalorder %s45, 2
        %s1257 = scalar_select %p1256, %s45, 2
        %s1258 = scalar_lea.vmem %s23, %s1257
        %p1259 = scmp.lt.s32.totalorder %s45, 2
        %s1260 = scalar_select %p1259, %s45, 2
        %s1261 = smul.addr %s1260, 16
        %s1262 = smul.addr %s1261, 8
        %s1263 = scalar_lea.vmem %s24, %s1262
        %p1264 = scmp.lt.s32.totalorder %s45, 2
        %s1265 = scalar_select %p1264, %s45, 2
        %s1266 = scalar_lea.vmem %s25, %s1265
        %s1267 = smul.u32 4, %s44
        %p1268 = scmp.eq.s32.totalorder %s45, 0
        // Predicated region
        $region141: #{tpu_custom_call.1} parent=123 // pred_check
          %p1269 = pneg %p1268
        $region142: #{tpu_custom_call.1} parent=123 // pred_check_branch
          %1271 = sbr.rel (%p1269) target = $region144
        $region143: #{tpu_custom_call.1} parent=123 // pred_region
          %v1272 = vld [vmem:[#allocation4] sm:$0xff]
          %v1273 = vld [vmem:[#allocation4 + $0x8] sm:$0xff]
          %v1274 = vld [vmem:[#allocation4 + $0x10] sm:$0xff]
          %v1275 = vld [vmem:[#allocation4 + $0x18] sm:$0xff]
          %vm1276 = vcmask 261120
          %1277 = vst.msk [vmem:[#allocation2] sm:$0xff] %vm1276, %v1272
          %1278 = vst.msk [vmem:[#allocation2 + $0x8] sm:$0xff] %vm1276, %v1273
          %1279 = vst.msk [vmem:[#allocation2 + $0x10] sm:$0xff] %vm1276, %v1274
          %1280 = vst.msk [vmem:[#allocation2 + $0x18] sm:$0xff] %vm1276, %v1275
        $region144: #{tpu_custom_call.1} parent=123 // pred_fallthru
          _
        %v1281 = vld [vmem:[#allocation2] sm:$0xff]
        %v1282 = vld [vmem:[#allocation2 + $0x8] sm:$0xff]
        %v1283 = vld [vmem:[#allocation2 + $0x10] sm:$0xff]
        %v1284 = vld [vmem:[#allocation2 + $0x18] sm:$0xff]
        %v1285 = vld [vmem:[%s1182] sm:$0xff]
        %v1286 = vld [vmem:[%s1182 + $0x8] sm:$0xff]
        %v1287 = vld [vmem:[%s1182 + $0x10] sm:$0xff]
        %v1288 = vld [vmem:[%s1182 + $0x18] sm:$0xff]
        %v1289 = vld [vmem:[%s1188] sm:$0xff]
        %v1290 = vld [vmem:[%s1188 + $0x8] sm:$0xff]
        %v1291 = vld [vmem:[%s1188 + $0x10] sm:$0xff]
        %v1292 = vld [vmem:[%s1188 + $0x18] sm:$0xff]
        %v1293 = vld [vmem:[%s1194] sm:$0xff]
        %v1294 = vld [vmem:[%s1194 + $0x8] sm:$0xff]
        %v1295 = vld [vmem:[%s1194 + $0x10] sm:$0xff]
        %v1296 = vld [vmem:[%s1194 + $0x18] sm:$0xff]
        %v1297 = vld [vmem:[%s1200] sm:$0xff]
        %v1298 = vld [vmem:[%s1200 + $0x8] sm:$0xff]
        %v1299 = vld [vmem:[#allocation7] sm:$0x1]
        %v1300 = vld [vmem:[#allocation7 + $0x1] sm:$0x1]
        %v1301 = vld [vmem:[%s1205] sm:$0x1]
        %v1302 = vld [vmem:[%s1208] sm:$0x1]
        %vm1303 = vcmask 261120
        %v1304 = vsel %vm1303, %v1281, 0.0
        %1305 = vadd.xlane.f32.xlu0 %v1304
        %v1306 = vpop.xlane.xlu0 %1305
        %v1307 = vsel %vm1303, %v1282, 0.0
        %1308 = vadd.xlane.f32.xlu0 %v1307
        %v1309 = vpop.xlane.xlu0 %1308
        %v1310 = vsel %vm1303, %v1283, 0.0
        %1311 = vadd.xlane.f32.xlu0 %v1310
        %v1312 = vpop.xlane.xlu0 %1311
        %v1313 = vsel %vm1303, %v1284, 0.0
        %1314 = vadd.xlane.f32.xlu0 %v1313
        %v1315 = vpop.xlane.xlu0 %1314
        %v1316 = vrcp.pop 32.0
        %v1317 = vmul.f32 %v1306, %v1316
        %v1318 = vmul.f32 %v1309, %v1316
        %v1319 = vmul.f32 %v1312, %v1316
        %v1320 = vmul.f32 %v1315, %v1316
        %v1321 = vsub.f32 %v1281, %v1317
        %v1322 = vsub.f32 %v1282, %v1318
        %v1323 = vsub.f32 %v1283, %v1319
        %v1324 = vsub.f32 %v1284, %v1320
        %v1325 = vmul.f32 %v1321, %v1321
        %v1326 = vmul.f32 %v1322, %v1322
        %v1327 = vmul.f32 %v1323, %v1323
        %v1328 = vmul.f32 %v1324, %v1324
        %v1329 = vsel %vm1303, %v1325, 0.0
        %1330 = vadd.xlane.f32.xlu0 %v1329
        %v1331 = vpop.xlane.xlu0 %1330
        %v1332 = vsel %vm1303, %v1326, 0.0
        %1333 = vadd.xlane.f32.xlu0 %v1332
        %v1334 = vpop.xlane.xlu0 %1333
        %v1335 = vsel %vm1303, %v1327, 0.0
        %1336 = vadd.xlane.f32.xlu0 %v1335
        %v1337 = vpop.xlane.xlu0 %1336
        %v1338 = vsel %vm1303, %v1328, 0.0
        %1339 = vadd.xlane.f32.xlu0 %v1338
        %v1340 = vpop.xlane.xlu0 %1339
        %v1341 = vmul.f32 %v1331, %v1316
        %v1342 = vmul.f32 %v1334, %v1316
        %v1343 = vmul.f32 %v1337, %v1316
        %v1344 = vmul.f32 %v1340, %v1316
        %v1345 = vadd.f32 %v1341, 1e-05
        %v1346 = vadd.f32 %v1342, 1e-05
        %v1347 = vadd.f32 %v1343, 1e-05
        %v1348 = vadd.f32 %v1344, 1e-05
        %v1349 = vrsqrt.pop %v1345
        %v1350 = vrsqrt.pop %v1346
        %v1351 = vrsqrt.pop %v1347
        %v1352 = vrsqrt.pop %v1348
        %v1353 = vmul.f32 %v1321, %v1349
        %v1354 = vmul.f32 %v1322, %v1350
        %v1355 = vmul.f32 %v1323, %v1351
        %v1356 = vmul.f32 %v1324, %v1352
        %v1358 = vlaneseq
        %v1359 = vshrl.u32 %v1358, 7
        %v1360 = vsub.s32 0, %v1359
        %v1361 = vrot.slane %v1301, %v1360
        %v1363 = vmul.f32 %v1353, %v1361
        %v1364 = vmul.f32 %v1354, %v1361
        %v1365 = vmul.f32 %v1355, %v1361
        %v1366 = vmul.f32 %v1356, %v1361
        %v1368 = vlaneseq
        %v1369 = vshrl.u32 %v1368, 7
        %v1370 = vsub.s32 0, %v1369
        %v1371 = vrot.slane %v1302, %v1370
        %v1373 = vadd.f32 %v1363, %v1371
        %v1374 = vadd.f32 %v1364, %v1371
        %v1375 = vadd.f32 %v1365, %v1371
        %v1376 = vadd.f32 %v1366, %v1371
        %v1377 = vrot.slane %v1373, 7
        %v1378 = vrot.slane %v1374, 7
        %v1379 = vrot.slane %v1375, 7
        %v1380 = vrot.slane %v1376, 7
        %v1381 = vlaneseq
        %v1382 = vshrl.u32 %v1381, 7
        %vm1383 = vcmp.lt.s32.totalorder %v1382, 1
        %v1384 = vsel %vm1383, %v1379, %v1380
        %v1385 = vsel %vm1383, %v1378, %v1379
        %v1386 = vsel %vm1383, %v1377, %v1378
        %v1387 = vsel %vm1383, %v1380, %v1377
        %1389 = vset.pattern.permute.xlu0 0
        %1390 = vperm.xlu0 %1389, %v1289
        %v1391 = vpop.permute.xlu0 %1390
        %1394 = vset.pattern.permute.xlu0 0
        %1395 = vperm.xlu0 %1394, %v1290
        %v1396 = vpop.permute.xlu0 %1395
        %1399 = vset.pattern.permute.xlu0 0
        %1400 = vperm.xlu0 %1399, %v1291
        %v1401 = vpop.permute.xlu0 %1400
        %1404 = vset.pattern.permute.xlu0 0
        %1405 = vperm.xlu0 %1404, %v1292
        %v1406 = vpop.permute.xlu0 %1405
        %v1408 = vmul.f32 %v1387, %v1391
        %v1409 = vmul.f32 %v1386, %v1396
        %v1410 = vmul.f32 %v1385, %v1401
        %v1411 = vmul.f32 %v1384, %v1406
        %v1412 = vrot.slane %v1373, 1
        %v1413 = vrot.slane %v1374, 1
        %v1414 = vrot.slane %v1375, 1
        %v1415 = vrot.slane %v1376, 1
        %vm1416 = vcmp.lt.s32.totalorder %v1382, 7
        %v1417 = vsel %vm1416, %v1414, %v1415
        %v1418 = vsel %vm1416, %v1413, %v1414
        %v1419 = vsel %vm1416, %v1412, %v1413
        %v1420 = vsel %vm1416, %v1415, %v1412
        %1422 = vset.pattern.permute.xlu0 0
        %1423 = vperm.xlu0 %1422, %v1293
        %v1424 = vpop.permute.xlu0 %1423
        %1427 = vset.pattern.permute.xlu0 0
        %1428 = vperm.xlu0 %1427, %v1294
        %v1429 = vpop.permute.xlu0 %1428
        %1432 = vset.pattern.permute.xlu0 0
        %1433 = vperm.xlu0 %1432, %v1295
        %v1434 = vpop.permute.xlu0 %1433
        %1437 = vset.pattern.permute.xlu0 0
        %1438 = vperm.xlu0 %1437, %v1296
        %v1439 = vpop.permute.xlu0 %1438
        %v1441 = vmul.f32 %v1419, %v1424
        %v1442 = vmul.f32 %v1418, %v1429
        %v1443 = vmul.f32 %v1417, %v1434
        %v1444 = vmul.f32 %v1420, %v1439
        %v1445 = vld [vmem:[%s1213] sm:$0xff]
        %v1446 = vld [vmem:[%s1213 + $0x8] sm:$0xff]
        %v1447 = vld [vmem:[%s1213 + $0x10] sm:$0xff]
        %v1448 = vld [vmem:[%s1213 + $0x18] sm:$0xff]
        %s1449 = scalar_lea.vmem %s1213, 32
        %v1450 = vld [vmem:[%s1449] sm:$0xff]
        %v1451 = vld [vmem:[%s1449 + $0x8] sm:$0xff]
        %v1452 = vld [vmem:[%s1449 + $0x10] sm:$0xff]
        %v1453 = vld [vmem:[%s1449 + $0x18] sm:$0xff]
        %v1455 = vsel %vm1303, %v1373, 0
        %v1458 = vsel %vm1303, %v1374, 0
        %v1461 = vsel %vm1303, %v1375, 0
        %v1464 = vsel %vm1303, %v1376, 0
        %1466 = vmatprep.subr.mxu0 0.0
        %1467 = vmatpush1.msra.mxu0 %v1450
        %1468 = vmatprep.subr.mxu0 0.0
        %1469 = vmatpush1.msra.mxu0 %v1451
        %1470 = vmatprep.subr.mxu0 0.0
        %1471 = vmatpush1.msra.mxu0 %v1452
        %1472 = vmatprep.subr.mxu0 0.0
        %1473 = vmatpush1.msra.mxu0 %v1453
        %1474 = vmatprep.subr.mxu0 0.0
        %1475 = vmatpush1.msra.mxu0 0.0
        %1476 = vmatprep.subr.mxu0 0.0
        %1477 = vmatpush1.msra.mxu0 0.0
        %1478 = vmatprep.subr.mxu0 0.0
        %1479 = vmatpush1.msra.mxu0 0.0
        %1480 = vmatprep.subr.mxu0 0.0
        %1481 = vmatpush1.msra.mxu0 0.0
        %1482 = vmatprep.subr.mxu0 0.0
        %1483 = vmatpush1.msra.mxu0 0.0
        %1484 = vmatprep.subr.mxu0 0.0
        %1485 = vmatpush1.msra.mxu0 0.0
        %1486 = vmatprep.subr.mxu0 0.0
        %1487 = vmatpush1.msra.mxu0 0.0
        %1488 = vmatprep.subr.mxu0 0.0
        %1489 = vmatpush1.msra.mxu0 0.0
        %1490 = vmatprep.subr.mxu0 0.0
        %1491 = vmatpush1.msra.mxu0 0.0
        %1492 = vmatprep.subr.mxu0 0.0
        %1493 = vmatpush1.msra.mxu0 0.0
        %1494 = vmatprep.subr.mxu0 0.0
        %1495 = vmatpush1.msra.mxu0 0.0
        %1496 = vmatprep.subr.mxu0 0.0
        %1497 = vmatpush1.msra.mxu0 0.0
        %1498 = vmatprep.subr.mxu0 0.0
        %1499 = vmatpush1.msra.mxu0 0.0
        %1500 = vmatprep.subr.mxu0 0.0
        %1501 = vmatpush1.msra.mxu0 0.0
        %1502 = vmatprep.subr.mxu0 0.0
        %1503 = vmatpush1.msra.mxu0 0.0
        %1504 = vmatprep.subr.mxu0 0.0
        %1505 = vmatpush1.msra.mxu0 0.0
        %1506 = vmatprep.subr.mxu0 0.0
        %1507 = vmatpush1.msra.mxu0 0.0
        %1508 = vmatprep.subr.mxu0 0.0
        %1509 = vmatpush1.msra.mxu0 0.0
        %1510 = vmatprep.subr.mxu0 0.0
        %1511 = vmatpush1.msra.mxu0 0.0
        %1512 = vmatprep.subr.mxu0 0.0
        %1513 = vmatpush1.msra.mxu0 0.0
        %1514 = vmatprep.subr.mxu0 0.0
        %1515 = vmatpush1.msra.mxu0 0.0
        %1516 = vmatprep.subr.mxu0 0.0
        %1517 = vmatpush1.msra.mxu0 0.0
        %1518 = vmatprep.subr.mxu0 0.0
        %1519 = vmatpush1.msra.mxu0 0.0
        %1520 = vmatprep.subr.mxu0 0.0
        %1521 = vmatpush1.msra.mxu0 0.0
        %1522 = vmatprep.subr.mxu0 0.0
        %1523 = vmatpush1.msra.mxu0 0.0
        %1524 = vmatprep.subr.mxu0 0.0
        %1525 = vmatpush1.msra.mxu0 0.0
        %1526 = vmatprep.subr.mxu0 0.0
        %1527 = vmatpush1.msra.mxu0 0.0
        %1528 = vmatprep.subr.mxu0 0.0
        %1529 = vmatpush1.msra.mxu0 0.0
        %1530 = vmatprep.mubr.f32.mxu0 0.0
        %1531 = vmatmul.mubr.f32.gmra.mrb[0].mxu0 %v1455
        %v1532 = vpop.f32.mrb[0].mxu0
        %v1533 = vadd.f32 0.0, %v1532
        %v1534 = vpop.f32.mrb[0].mxu0
        %1535 = vmatprep.mubr.f32.mxu0 0.0
        %1536 = vmatmul.mubr.f32.gmra.mrb[0].mxu0 %v1458
        %v1537 = vpop.f32.mrb[0].mxu0
        %v1538 = vadd.f32 0.0, %v1537
        %v1539 = vpop.f32.mrb[0].mxu0
        %1540 = vmatprep.mubr.f32.mxu0 0.0
        %1541 = vmatmul.mubr.f32.gmra.mrb[0].mxu0 %v1461
        %v1542 = vpop.f32.mrb[0].mxu0
        %v1543 = vadd.f32 0.0, %v1542
        %v1544 = vpop.f32.mrb[0].mxu0
        %1545 = vmatprep.mubr.f32.mxu0 0.0
        %1546 = vmatmul.mubr.f32.gmra.mrb[0].mxu0 %v1464
        %v1547 = vpop.f32.mrb[0].mxu0
        %v1548 = vadd.f32 0.0, %v1547
        %v1549 = vpop.f32.mrb[0].mxu0
        %1550 = vdwg.mxu0
        %v1552 = vsel %vm1303, %v1408, 0
        %v1555 = vsel %vm1303, %v1409, 0
        %v1558 = vsel %vm1303, %v1410, 0
        %v1561 = vsel %vm1303, %v1411, 0
        %1563 = vmatprep.subr.mxu0 0.0
        %1564 = vmatpush1.msra.mxu0 %v1445
        %1565 = vmatprep.subr.mxu0 0.0
        %1566 = vmatpush1.msra.mxu0 %v1446
        %1567 = vmatprep.subr.mxu0 0.0
        %1568 = vmatpush1.msra.mxu0 %v1447
        %1569 = vmatprep.subr.mxu0 0.0
        %1570 = vmatpush1.msra.mxu0 %v1448
        %1571 = vmatprep.subr.mxu0 0.0
        %1572 = vmatpush1.msra.mxu0 0.0
        %1573 = vmatprep.subr.mxu0 0.0
        %1574 = vmatpush1.msra.mxu0 0.0
        %1575 = vmatprep.subr.mxu0 0.0
        %1576 = vmatpush1.msra.mxu0 0.0
        %1577 = vmatprep.subr.mxu0 0.0
        %1578 = vmatpush1.msra.mxu0 0.0
        %1579 = vmatprep.subr.mxu0 0.0
        %1580 = vmatpush1.msra.mxu0 0.0
        %1581 = vmatprep.subr.mxu0 0.0
        %1582 = vmatpush1.msra.mxu0 0.0
        %1583 = vmatprep.subr.mxu0 0.0
        %1584 = vmatpush1.msra.mxu0 0.0
        %1585 = vmatprep.subr.mxu0 0.0
        %1586 = vmatpush1.msra.mxu0 0.0
        %1587 = vmatprep.subr.mxu0 0.0
        %1588 = vmatpush1.msra.mxu0 0.0
        %1589 = vmatprep.subr.mxu0 0.0
        %1590 = vmatpush1.msra.mxu0 0.0
        %1591 = vmatprep.subr.mxu0 0.0
        %1592 = vmatpush1.msra.mxu0 0.0
        %1593 = vmatprep.subr.mxu0 0.0
        %1594 = vmatpush1.msra.mxu0 0.0
        %1595 = vmatprep.subr.mxu0 0.0
        %1596 = vmatpush1.msra.mxu0 0.0
        %1597 = vmatprep.subr.mxu0 0.0
        %1598 = vmatpush1.msra.mxu0 0.0
        %1599 = vmatprep.subr.mxu0 0.0
        %1600 = vmatpush1.msra.mxu0 0.0
        %1601 = vmatprep.subr.mxu0 0.0
        %1602 = vmatpush1.msra.mxu0 0.0
        %1603 = vmatprep.subr.mxu0 0.0
        %1604 = vmatpush1.msra.mxu0 0.0
        %1605 = vmatprep.subr.mxu0 0.0
        %1606 = vmatpush1.msra.mxu0 0.0
        %1607 = vmatprep.subr.mxu0 0.0
        %1608 = vmatpush1.msra.mxu0 0.0
        %1609 = vmatprep.subr.mxu0 0.0
        %1610 = vmatpush1.msra.mxu0 0.0
        %1611 = vmatprep.subr.mxu0 0.0
        %1612 = vmatpush1.msra.mxu0 0.0
        %1613 = vmatprep.subr.mxu0 0.0
        %1614 = vmatpush1.msra.mxu0 0.0
        %1615 = vmatprep.subr.mxu0 0.0
        %1616 = vmatpush1.msra.mxu0 0.0
        %1617 = vmatprep.subr.mxu0 0.0
        %1618 = vmatpush1.msra.mxu0 0.0
        %1619 = vmatprep.subr.mxu0 0.0
        %1620 = vmatpush1.msra.mxu0 0.0
        %1621 = vmatprep.subr.mxu0 0.0
        %1622 = vmatpush1.msra.mxu0 0.0
        %1623 = vmatprep.subr.mxu0 0.0
        %1624 = vmatpush1.msra.mxu0 0.0
        %1625 = vmatprep.subr.mxu0 0.0
        %1626 = vmatpush1.msra.mxu0 0.0
        %1627 = vmatprep.mubr.f32.mxu0 0.0
        %1628 = vmatmul.mubr.f32.gmra.mrb[0].mxu0 %v1552
        %v1629 = vpop.f32.mrb[0].mxu0
        %v1630 = vadd.f32 %v1533, %v1629
        %v1631 = vpop.f32.mrb[0].mxu0
        %1632 = vmatprep.mubr.f32.mxu0 0.0
        %1633 = vmatmul.mubr.f32.gmra.mrb[0].mxu0 %v1555
        %v1634 = vpop.f32.mrb[0].mxu0
        %v1635 = vadd.f32 %v1538, %v1634
        %v1636 = vpop.f32.mrb[0].mxu0
        %1637 = vmatprep.mubr.f32.mxu0 0.0
        %1638 = vmatmul.mubr.f32.gmra.mrb[0].mxu0 %v1558
        %v1639 = vpop.f32.mrb[0].mxu0
        %v1640 = vadd.f32 %v1543, %v1639
        %v1641 = vpop.f32.mrb[0].mxu0
        %1642 = vmatprep.mubr.f32.mxu0 0.0
        %1643 = vmatmul.mubr.f32.gmra.mrb[0].mxu0 %v1561
        %v1644 = vpop.f32.mrb[0].mxu0
        %v1645 = vadd.f32 %v1548, %v1644
        %v1646 = vpop.f32.mrb[0].mxu0
        %1647 = vdwg.mxu0
        %s1648 = scalar_lea.vmem %s1213, 64
        %v1649 = vld [vmem:[%s1648] sm:$0xff]
        %v1650 = vld [vmem:[%s1648 + $0x8] sm:$0xff]
        %v1651 = vld [vmem:[%s1648 + $0x10] sm:$0xff]
        %v1652 = vld [vmem:[%s1648 + $0x18] sm:$0xff]
        %v1654 = vsel %vm1303, %v1441, 0
        %v1657 = vsel %vm1303, %v1442, 0
        %v1660 = vsel %vm1303, %v1443, 0
        %v1663 = vsel %vm1303, %v1444, 0
        %1665 = vmatprep.subr.mxu0 0.0
        %1666 = vmatpush1.msra.mxu0 %v1649
        %1667 = vmatprep.subr.mxu0 0.0
        %1668 = vmatpush1.msra.mxu0 %v1650
        %1669 = vmatprep.subr.mxu0 0.0
        %1670 = vmatpush1.msra.mxu0 %v1651
        %1671 = vmatprep.subr.mxu0 0.0
        %1672 = vmatpush1.msra.mxu0 %v1652
        %1673 = vmatprep.subr.mxu0 0.0
        %1674 = vmatpush1.msra.mxu0 0.0
        %1675 = vmatprep.subr.mxu0 0.0
        %1676 = vmatpush1.msra.mxu0 0.0
        %1677 = vmatprep.subr.mxu0 0.0
        %1678 = vmatpush1.msra.mxu0 0.0
        %1679 = vmatprep.subr.mxu0 0.0
        %1680 = vmatpush1.msra.mxu0 0.0
        %1681 = vmatprep.subr.mxu0 0.0
        %1682 = vmatpush1.msra.mxu0 0.0
        %1683 = vmatprep.subr.mxu0 0.0
        %1684 = vmatpush1.msra.mxu0 0.0
        %1685 = vmatprep.subr.mxu0 0.0
        %1686 = vmatpush1.msra.mxu0 0.0
        %1687 = vmatprep.subr.mxu0 0.0
        %1688 = vmatpush1.msra.mxu0 0.0
        %1689 = vmatprep.subr.mxu0 0.0
        %1690 = vmatpush1.msra.mxu0 0.0
        %1691 = vmatprep.subr.mxu0 0.0
        %1692 = vmatpush1.msra.mxu0 0.0
        %1693 = vmatprep.subr.mxu0 0.0
        %1694 = vmatpush1.msra.mxu0 0.0
        %1695 = vmatprep.subr.mxu0 0.0
        %1696 = vmatpush1.msra.mxu0 0.0
        %1697 = vmatprep.subr.mxu0 0.0
        %1698 = vmatpush1.msra.mxu0 0.0
        %1699 = vmatprep.subr.mxu0 0.0
        %1700 = vmatpush1.msra.mxu0 0.0
        %1701 = vmatprep.subr.mxu0 0.0
        %1702 = vmatpush1.msra.mxu0 0.0
        %1703 = vmatprep.subr.mxu0 0.0
        %1704 = vmatpush1.msra.mxu0 0.0
        %1705 = vmatprep.subr.mxu0 0.0
        %1706 = vmatpush1.msra.mxu0 0.0
        %1707 = vmatprep.subr.mxu0 0.0
        %1708 = vmatpush1.msra.mxu0 0.0
        %1709 = vmatprep.subr.mxu0 0.0
        %1710 = vmatpush1.msra.mxu0 0.0
        %1711 = vmatprep.subr.mxu0 0.0
        %1712 = vmatpush1.msra.mxu0 0.0
        %1713 = vmatprep.subr.mxu0 0.0
        %1714 = vmatpush1.msra.mxu0 0.0
        %1715 = vmatprep.subr.mxu0 0.0
        %1716 = vmatpush1.msra.mxu0 0.0
        %1717 = vmatprep.subr.mxu0 0.0
        %1718 = vmatpush1.msra.mxu0 0.0
        %1719 = vmatprep.subr.mxu0 0.0
        %1720 = vmatpush1.msra.mxu0 0.0
        %1721 = vmatprep.subr.mxu0 0.0
        %1722 = vmatpush1.msra.mxu0 0.0
        %1723 = vmatprep.subr.mxu0 0.0
        %1724 = vmatpush1.msra.mxu0 0.0
        %1725 = vmatprep.subr.mxu0 0.0
        %1726 = vmatpush1.msra.mxu0 0.0
        %1727 = vmatprep.subr.mxu0 0.0
        %1728 = vmatpush1.msra.mxu0 0.0
        %1729 = vmatprep.mubr.f32.mxu0 0.0
        %1730 = vmatmul.mubr.f32.gmra.mrb[0].mxu0 %v1654
        %v1731 = vpop.f32.mrb[0].mxu0
        %v1732 = vadd.f32 0.0, %v1731
        %v1733 = vpop.f32.mrb[0].mxu0
        %1734 = vmatprep.mubr.f32.mxu0 0.0
        %1735 = vmatmul.mubr.f32.gmra.mrb[0].mxu0 %v1657
        %v1736 = vpop.f32.mrb[0].mxu0
        %v1737 = vadd.f32 0.0, %v1736
        %v1738 = vpop.f32.mrb[0].mxu0
        %1739 = vmatprep.mubr.f32.mxu0 0.0
        %1740 = vmatmul.mubr.f32.gmra.mrb[0].mxu0 %v1660
        %v1741 = vpop.f32.mrb[0].mxu0
        %v1742 = vadd.f32 0.0, %v1741
        %v1743 = vpop.f32.mrb[0].mxu0
        %1744 = vmatprep.mubr.f32.mxu0 0.0
        %1745 = vmatmul.mubr.f32.gmra.mrb[0].mxu0 %v1663
        %v1746 = vpop.f32.mrb[0].mxu0
        %v1747 = vadd.f32 0.0, %v1746
        %v1748 = vpop.f32.mrb[0].mxu0
        %1749 = vdwg.mxu0
        %v1750 = vadd.f32 %v1630, %v1732
        %v1751 = vadd.f32 %v1635, %v1737
        %v1752 = vadd.f32 %v1640, %v1742
        %v1753 = vadd.f32 %v1645, %v1747
        %v1754 = vld [vmem:[%s1216] sm:$0x1]
        %v1756 = vlaneseq
        %v1757 = vshrl.u32 %v1756, 7
        %v1758 = vsub.s32 0, %v1757
        %v1759 = vrot.slane %v1754, %v1758
        %v1761 = vadd.f32 %v1750, %v1759
        %v1762 = vadd.f32 %v1751, %v1759
        %v1763 = vadd.f32 %v1752, %v1759
        %v1764 = vadd.f32 %v1753, %v1759
        %v1765 = vmax.f32 %v1761, 0.0
        %v1766 = vmax.f32 %v1762, 0.0
        %v1767 = vmax.f32 %v1763, 0.0
        %v1768 = vmax.f32 %v1764, 0.0
        %1770 = vset.pattern.permute.xlu0 0
        %1771 = vperm.xlu0 %1770, %v1285
        %v1772 = vpop.permute.xlu0 %1771
        %1775 = vset.pattern.permute.xlu0 0
        %1776 = vperm.xlu0 %1775, %v1286
        %v1777 = vpop.permute.xlu0 %1776
        %1780 = vset.pattern.permute.xlu0 0
        %1781 = vperm.xlu0 %1780, %v1287
        %v1782 = vpop.permute.xlu0 %1781
        %1785 = vset.pattern.permute.xlu0 0
        %1786 = vperm.xlu0 %1785, %v1288
        %v1787 = vpop.permute.xlu0 %1786
        %v1789 = vmul.f32 %v1281, %v1772
        %v1790 = vmul.f32 %v1282, %v1777
        %v1791 = vmul.f32 %v1283, %v1782
        %v1792 = vmul.f32 %v1284, %v1787
        %v1793 = vadd.f32 %v1765, %v1789
        %v1794 = vadd.f32 %v1766, %v1790
        %v1795 = vadd.f32 %v1767, %v1791
        %v1796 = vadd.f32 %v1768, %v1792
        %v1797 = vld [vmem:[%s1219] sm:$0x1]
        %v1798 = vld [vmem:[%s1222] sm:$0x1]
        %v1799 = vsel %vm1303, %v1793, 0.0
        %1800 = vadd.xlane.f32.xlu0 %v1799
        %v1801 = vpop.xlane.xlu0 %1800
        %v1802 = vsel %vm1303, %v1794, 0.0
        %1803 = vadd.xlane.f32.xlu0 %v1802
        %v1804 = vpop.xlane.xlu0 %1803
        %v1805 = vsel %vm1303, %v1795, 0.0
        %1806 = vadd.xlane.f32.xlu0 %v1805
        %v1807 = vpop.xlane.xlu0 %1806
        %v1808 = vsel %vm1303, %v1796, 0.0
        %1809 = vadd.xlane.f32.xlu0 %v1808
        %v1810 = vpop.xlane.xlu0 %1809
        %v1811 = vmul.f32 %v1801, %v1316
        %v1812 = vmul.f32 %v1804, %v1316
        %v1813 = vmul.f32 %v1807, %v1316
        %v1814 = vmul.f32 %v1810, %v1316
        %v1815 = vsub.f32 %v1793, %v1811
        %v1816 = vsub.f32 %v1794, %v1812
        %v1817 = vsub.f32 %v1795, %v1813
        %v1818 = vsub.f32 %v1796, %v1814
        %v1819 = vmul.f32 %v1815, %v1815
        %v1820 = vmul.f32 %v1816, %v1816
        %v1821 = vmul.f32 %v1817, %v1817
        %v1822 = vmul.f32 %v1818, %v1818
        %v1823 = vsel %vm1303, %v1819, 0.0
        %1824 = vadd.xlane.f32.xlu0 %v1823
        %v1825 = vpop.xlane.xlu0 %1824
        %v1826 = vsel %vm1303, %v1820, 0.0
        %1827 = vadd.xlane.f32.xlu0 %v1826
        %v1828 = vpop.xlane.xlu0 %1827
        %v1829 = vsel %vm1303, %v1821, 0.0
        %1830 = vadd.xlane.f32.xlu0 %v1829
        %v1831 = vpop.xlane.xlu0 %1830
        %v1832 = vsel %vm1303, %v1822, 0.0
        %1833 = vadd.xlane.f32.xlu0 %v1832
        %v1834 = vpop.xlane.xlu0 %1833
        %v1835 = vmul.f32 %v1825, %v1316
        %v1836 = vmul.f32 %v1828, %v1316
        %v1837 = vmul.f32 %v1831, %v1316
        %v1838 = vmul.f32 %v1834, %v1316
        %v1839 = vadd.f32 %v1835, 1e-05
        %v1840 = vadd.f32 %v1836, 1e-05
        %v1841 = vadd.f32 %v1837, 1e-05
        %v1842 = vadd.f32 %v1838, 1e-05
        %v1843 = vrsqrt.pop %v1839
        %v1844 = vrsqrt.pop %v1840
        %v1845 = vrsqrt.pop %v1841
        %v1846 = vrsqrt.pop %v1842
        %v1847 = vmul.f32 %v1815, %v1843
        %v1848 = vmul.f32 %v1816, %v1844
        %v1849 = vmul.f32 %v1817, %v1845
        %v1850 = vmul.f32 %v1818, %v1846
        %v1852 = vlaneseq
        %v1853 = vshrl.u32 %v1852, 7
        %v1854 = vsub.s32 0, %v1853
        %v1855 = vrot.slane %v1797, %v1854
        %v1857 = vmul.f32 %v1847, %v1855
        %v1858 = vmul.f32 %v1848, %v1855
        %v1859 = vmul.f32 %v1849, %v1855
        %v1860 = vmul.f32 %v1850, %v1855
        %v1862 = vlaneseq
        %v1863 = vshrl.u32 %v1862, 7
        %v1864 = vsub.s32 0, %v1863
        %v1865 = vrot.slane %v1798, %v1864
        %v1867 = vadd.f32 %v1857, %v1865
        %v1868 = vadd.f32 %v1858, %v1865
        %v1869 = vadd.f32 %v1859, %v1865
        %v1870 = vadd.f32 %v1860, %v1865
        %v1871 = vld [vmem:[%s1227] sm:$0xff]
        %v1872 = vld [vmem:[%s1227 + $0x8] sm:$0xff]
        %v1873 = vld [vmem:[%s1227 + $0x10] sm:$0xff]
        %v1874 = vld [vmem:[%s1227 + $0x18] sm:$0xff]
        %v1875 = vld [vmem:[%s1230] sm:$0x1]
        %v1877 = vlaneseq
        %v1878 = vshrl.u32 %v1877, 7
        %v1879 = vsub.s32 0, %v1878
        %v1880 = vrot.slane %v1875, %v1879
        %v1883 = vsel %vm1303, %v1867, 0
        %v1886 = vsel %vm1303, %v1868, 0
        %v1889 = vsel %vm1303, %v1869, 0
        %v1892 = vsel %vm1303, %v1870, 0
        %1894 = vmatprep.subr.mxu0 0.0
        %1895 = vmatpush1.msra.mxu0 %v1871
        %1896 = vmatprep.subr.mxu0 0.0
        %1897 = vmatpush1.msra.mxu0 %v1872
        %1898 = vmatprep.subr.mxu0 0.0
        %1899 = vmatpush1.msra.mxu0 %v1873
        %1900 = vmatprep.subr.mxu0 0.0
        %1901 = vmatpush1.msra.mxu0 %v1874
        %1902 = vmatprep.subr.mxu0 0.0
        %1903 = vmatpush1.msra.mxu0 0.0
        %1904 = vmatprep.subr.mxu0 0.0
        %1905 = vmatpush1.msra.mxu0 0.0
        %1906 = vmatprep.subr.mxu0 0.0
        %1907 = vmatpush1.msra.mxu0 0.0
        %1908 = vmatprep.subr.mxu0 0.0
        %1909 = vmatpush1.msra.mxu0 0.0
        %1910 = vmatprep.subr.mxu0 0.0
        %1911 = vmatpush1.msra.mxu0 0.0
        %1912 = vmatprep.subr.mxu0 0.0
        %1913 = vmatpush1.msra.mxu0 0.0
        %1914 = vmatprep.subr.mxu0 0.0
        %1915 = vmatpush1.msra.mxu0 0.0
        %1916 = vmatprep.subr.mxu0 0.0
        %1917 = vmatpush1.msra.mxu0 0.0
        %1918 = vmatprep.subr.mxu0 0.0
        %1919 = vmatpush1.msra.mxu0 0.0
        %1920 = vmatprep.subr.mxu0 0.0
        %1921 = vmatpush1.msra.mxu0 0.0
        %1922 = vmatprep.subr.mxu0 0.0
        %1923 = vmatpush1.msra.mxu0 0.0
        %1924 = vmatprep.subr.mxu0 0.0
        %1925 = vmatpush1.msra.mxu0 0.0
        %1926 = vmatprep.subr.mxu0 0.0
        %1927 = vmatpush1.msra.mxu0 0.0
        %1928 = vmatprep.subr.mxu0 0.0
        %1929 = vmatpush1.msra.mxu0 0.0
        %1930 = vmatprep.subr.mxu0 0.0
        %1931 = vmatpush1.msra.mxu0 0.0
        %1932 = vmatprep.subr.mxu0 0.0
        %1933 = vmatpush1.msra.mxu0 0.0
        %1934 = vmatprep.subr.mxu0 0.0
        %1935 = vmatpush1.msra.mxu0 0.0
        %1936 = vmatprep.subr.mxu0 0.0
        %1937 = vmatpush1.msra.mxu0 0.0
        %1938 = vmatprep.subr.mxu0 0.0
        %1939 = vmatpush1.msra.mxu0 0.0
        %1940 = vmatprep.subr.mxu0 0.0
        %1941 = vmatpush1.msra.mxu0 0.0
        %1942 = vmatprep.subr.mxu0 0.0
        %1943 = vmatpush1.msra.mxu0 0.0
        %1944 = vmatprep.subr.mxu0 0.0
        %1945 = vmatpush1.msra.mxu0 0.0
        %1946 = vmatprep.subr.mxu0 0.0
        %1947 = vmatpush1.msra.mxu0 0.0
        %1948 = vmatprep.subr.mxu0 0.0
        %1949 = vmatpush1.msra.mxu0 0.0
        %1950 = vmatprep.subr.mxu0 0.0
        %1951 = vmatpush1.msra.mxu0 0.0
        %1952 = vmatprep.subr.mxu0 0.0
        %1953 = vmatpush1.msra.mxu0 0.0
        %1954 = vmatprep.subr.mxu0 0.0
        %1955 = vmatpush1.msra.mxu0 0.0
        %1956 = vmatprep.subr.mxu0 0.0
        %1957 = vmatpush1.msra.mxu0 0.0
        %1958 = vmatprep.mubr.f32.mxu0 0.0
        %1959 = vmatmul.mubr.f32.gmra.mrb[0].mxu0 %v1883
        %v1960 = vpop.f32.mrb[0].mxu0
        %v1961 = vadd.f32 %v1880, %v1960
        %v1962 = vpop.f32.mrb[0].mxu0
        %1963 = vmatprep.mubr.f32.mxu0 0.0
        %1964 = vmatmul.mubr.f32.gmra.mrb[0].mxu0 %v1886
        %v1965 = vpop.f32.mrb[0].mxu0
        %v1966 = vadd.f32 %v1880, %v1965
        %v1967 = vpop.f32.mrb[0].mxu0
        %1968 = vmatprep.mubr.f32.mxu0 0.0
        %1969 = vmatmul.mubr.f32.gmra.mrb[0].mxu0 %v1889
        %v1970 = vpop.f32.mrb[0].mxu0
        %v1971 = vadd.f32 %v1880, %v1970
        %v1972 = vpop.f32.mrb[0].mxu0
        %1973 = vmatprep.mubr.f32.mxu0 0.0
        %1974 = vmatmul.mubr.f32.gmra.mrb[0].mxu0 %v1892
        %v1975 = vpop.f32.mrb[0].mxu0
        %v1976 = vadd.f32 %v1880, %v1975
        %v1977 = vpop.f32.mrb[0].mxu0
        %1978 = vdwg.mxu0
        %v1979 = vld [vmem:[%s1235] sm:$0xff]
        %v1980 = vld [vmem:[%s1235 + $0x8] sm:$0xff]
        %v1981 = vld [vmem:[%s1235 + $0x10] sm:$0xff]
        %v1982 = vld [vmem:[%s1235 + $0x18] sm:$0xff]
        %v1983 = vld [vmem:[%s1238] sm:$0x1]
        %v1985 = vlaneseq
        %v1986 = vshrl.u32 %v1985, 7
        %v1987 = vsub.s32 0, %v1986
        %v1988 = vrot.slane %v1983, %v1987
        %v1991 = vsel %vm1303, %v1297, 0
        %v1994 = vsel %vm1303, %v1298, 0
        %1996 = vmatprep.subr.mxu0 0.0
        %1997 = vmatpush1.msra.mxu0 %v1979
        %1998 = vmatprep.subr.mxu0 0.0
        %1999 = vmatpush1.msra.mxu0 %v1980
        %2000 = vmatprep.subr.mxu0 0.0
        %2001 = vmatpush1.msra.mxu0 %v1981
        %2002 = vmatprep.subr.mxu0 0.0
        %2003 = vmatpush1.msra.mxu0 %v1982
        %2004 = vmatprep.subr.mxu0 0.0
        %2005 = vmatpush1.msra.mxu0 0.0
        %2006 = vmatprep.subr.mxu0 0.0
        %2007 = vmatpush1.msra.mxu0 0.0
        %2008 = vmatprep.subr.mxu0 0.0
        %2009 = vmatpush1.msra.mxu0 0.0
        %2010 = vmatprep.subr.mxu0 0.0
        %2011 = vmatpush1.msra.mxu0 0.0
        %2012 = vmatprep.subr.mxu0 0.0
        %2013 = vmatpush1.msra.mxu0 0.0
        %2014 = vmatprep.subr.mxu0 0.0
        %2015 = vmatpush1.msra.mxu0 0.0
        %2016 = vmatprep.subr.mxu0 0.0
        %2017 = vmatpush1.msra.mxu0 0.0
        %2018 = vmatprep.subr.mxu0 0.0
        %2019 = vmatpush1.msra.mxu0 0.0
        %2020 = vmatprep.subr.mxu0 0.0
        %2021 = vmatpush1.msra.mxu0 0.0
        %2022 = vmatprep.subr.mxu0 0.0
        %2023 = vmatpush1.msra.mxu0 0.0
        %2024 = vmatprep.subr.mxu0 0.0
        %2025 = vmatpush1.msra.mxu0 0.0
        %2026 = vmatprep.subr.mxu0 0.0
        %2027 = vmatpush1.msra.mxu0 0.0
        %2028 = vmatprep.subr.mxu0 0.0
        %2029 = vmatpush1.msra.mxu0 0.0
        %2030 = vmatprep.subr.mxu0 0.0
        %2031 = vmatpush1.msra.mxu0 0.0
        %2032 = vmatprep.subr.mxu0 0.0
        %2033 = vmatpush1.msra.mxu0 0.0
        %2034 = vmatprep.subr.mxu0 0.0
        %2035 = vmatpush1.msra.mxu0 0.0
        %2036 = vmatprep.subr.mxu0 0.0
        %2037 = vmatpush1.msra.mxu0 0.0
        %2038 = vmatprep.subr.mxu0 0.0
        %2039 = vmatpush1.msra.mxu0 0.0
        %2040 = vmatprep.subr.mxu0 0.0
        %2041 = vmatpush1.msra.mxu0 0.0
        %2042 = vmatprep.subr.mxu0 0.0
        %2043 = vmatpush1.msra.mxu0 0.0
        %2044 = vmatprep.subr.mxu0 0.0
        %2045 = vmatpush1.msra.mxu0 0.0
        %2046 = vmatprep.subr.mxu0 0.0
        %2047 = vmatpush1.msra.mxu0 0.0
        %2048 = vmatprep.subr.mxu0 0.0
        %2049 = vmatpush1.msra.mxu0 0.0
        %2050 = vmatprep.subr.mxu0 0.0
        %2051 = vmatpush1.msra.mxu0 0.0
        %2052 = vmatprep.subr.mxu0 0.0
        %2053 = vmatpush1.msra.mxu0 0.0
        %2054 = vmatprep.subr.mxu0 0.0
        %2055 = vmatpush1.msra.mxu0 0.0
        %2056 = vmatprep.subr.mxu0 0.0
        %2057 = vmatpush1.msra.mxu0 0.0
        %2058 = vmatprep.subr.mxu0 0.0
        %2059 = vmatpush1.msra.mxu0 0.0
        %2060 = vmatprep.mubr.f32.mxu0 0.0
        %2061 = vmatmul.mubr.f32.gmra.mrb[0].mxu0 %v1991
        %v2062 = vpop.f32.mrb[0].mxu0
        %v2063 = vadd.f32 %v1988, %v2062
        %v2064 = vpop.f32.mrb[0].mxu0
        %2065 = vmatprep.mubr.f32.mxu0 0.0
        %2066 = vmatmul.mubr.f32.gmra.mrb[0].mxu0 %v1994
        %v2067 = vpop.f32.mrb[0].mxu0
        %v2068 = vadd.f32 %v1988, %v2067
        %v2069 = vpop.f32.mrb[0].mxu0
        %2070 = vdwg.mxu0
        %v2071 = vld [vmem:[%s1243] sm:$0xff]
        %v2072 = vld [vmem:[%s1243 + $0x8] sm:$0xff]
        %v2073 = vld [vmem:[%s1243 + $0x10] sm:$0xff]
        %v2074 = vld [vmem:[%s1243 + $0x18] sm:$0xff]
        %v2075 = vld [vmem:[%s1246] sm:$0x1]
        %v2077 = vlaneseq
        %v2078 = vshrl.u32 %v2077, 7
        %v2079 = vsub.s32 0, %v2078
        %v2080 = vrot.slane %v2075, %v2079
        %2082 = vmatprep.subr.mxu0 0.0
        %2083 = vmatpush1.msra.mxu0 %v2071
        %2084 = vmatprep.subr.mxu0 0.0
        %2085 = vmatpush1.msra.mxu0 %v2072
        %2086 = vmatprep.subr.mxu0 0.0
        %2087 = vmatpush1.msra.mxu0 %v2073
        %2088 = vmatprep.subr.mxu0 0.0
        %2089 = vmatpush1.msra.mxu0 %v2074
        %2090 = vmatprep.subr.mxu0 0.0
        %2091 = vmatpush1.msra.mxu0 0.0
        %2092 = vmatprep.subr.mxu0 0.0
        %2093 = vmatpush1.msra.mxu0 0.0
        %2094 = vmatprep.subr.mxu0 0.0
        %2095 = vmatpush1.msra.mxu0 0.0
        %2096 = vmatprep.subr.mxu0 0.0
        %2097 = vmatpush1.msra.mxu0 0.0
        %2098 = vmatprep.subr.mxu0 0.0
        %2099 = vmatpush1.msra.mxu0 0.0
        %2100 = vmatprep.subr.mxu0 0.0
        %2101 = vmatpush1.msra.mxu0 0.0
        %2102 = vmatprep.subr.mxu0 0.0
        %2103 = vmatpush1.msra.mxu0 0.0
        %2104 = vmatprep.subr.mxu0 0.0
        %2105 = vmatpush1.msra.mxu0 0.0
        %2106 = vmatprep.subr.mxu0 0.0
        %2107 = vmatpush1.msra.mxu0 0.0
        %2108 = vmatprep.subr.mxu0 0.0
        %2109 = vmatpush1.msra.mxu0 0.0
        %2110 = vmatprep.subr.mxu0 0.0
        %2111 = vmatpush1.msra.mxu0 0.0
        %2112 = vmatprep.subr.mxu0 0.0
        %2113 = vmatpush1.msra.mxu0 0.0
        %2114 = vmatprep.subr.mxu0 0.0
        %2115 = vmatpush1.msra.mxu0 0.0
        %2116 = vmatprep.subr.mxu0 0.0
        %2117 = vmatpush1.msra.mxu0 0.0
        %2118 = vmatprep.subr.mxu0 0.0
        %2119 = vmatpush1.msra.mxu0 0.0
        %2120 = vmatprep.subr.mxu0 0.0
        %2121 = vmatpush1.msra.mxu0 0.0
        %2122 = vmatprep.subr.mxu0 0.0
        %2123 = vmatpush1.msra.mxu0 0.0
        %2124 = vmatprep.subr.mxu0 0.0
        %2125 = vmatpush1.msra.mxu0 0.0
        %2126 = vmatprep.subr.mxu0 0.0
        %2127 = vmatpush1.msra.mxu0 0.0
        %2128 = vmatprep.subr.mxu0 0.0
        %2129 = vmatpush1.msra.mxu0 0.0
        %2130 = vmatprep.subr.mxu0 0.0
        %2131 = vmatpush1.msra.mxu0 0.0
        %2132 = vmatprep.subr.mxu0 0.0
        %2133 = vmatpush1.msra.mxu0 0.0
        %2134 = vmatprep.subr.mxu0 0.0
        %2135 = vmatpush1.msra.mxu0 0.0
        %2136 = vmatprep.subr.mxu0 0.0
        %2137 = vmatpush1.msra.mxu0 0.0
        %2138 = vmatprep.subr.mxu0 0.0
        %2139 = vmatpush1.msra.mxu0 0.0
        %2140 = vmatprep.subr.mxu0 0.0
        %2141 = vmatpush1.msra.mxu0 0.0
        %2142 = vmatprep.subr.mxu0 0.0
        %2143 = vmatpush1.msra.mxu0 0.0
        %2144 = vmatprep.subr.mxu0 0.0
        %2145 = vmatpush1.msra.mxu0 0.0
        %2146 = vmatprep.mubr.f32.mxu0 0.0
        %2147 = vmatmul.mubr.f32.gmra.mrb[0].mxu0 %v1991
        %v2148 = vpop.f32.mrb[0].mxu0
        %v2149 = vadd.f32 %v2080, %v2148
        %v2150 = vpop.f32.mrb[0].mxu0
        %2151 = vmatprep.mubr.f32.mxu0 0.0
        %2152 = vmatmul.mubr.f32.gmra.mrb[0].mxu0 %v1994
        %v2153 = vpop.f32.mrb[0].mxu0
        %v2154 = vadd.f32 %v2080, %v2153
        %v2155 = vpop.f32.mrb[0].mxu0
        %2156 = vdwg.mxu0
        %vm2157 = vcmp.gt.f32.partialorder %v1299, 0.0
        %vm2158 = vcmp.gt.f32.partialorder %v1300, 0.0
        %v2159 = vsel %vm2157, 0.0, -1e+09
        %v2160 = vsel %vm2158, 0.0, -1e+09
        %vm2161 = vcmask 31744
        %v2163 = vsel %vm2161, %v1961, 0
        %v2166 = vsel %vm2161, %v1966, 0
        %v2169 = vsel %vm2161, %v2063, 0
        %2171 = vmatprep.subr.mxu0 0.0
        %2172 = vmatpush1.xpose.msra.mxu0 %v2169
        %2173 = vmatprep.subr.mxu0 0.0
        %2174 = vmatpush1.xpose.msra.mxu0 0.0
        %2175 = vmatprep.subr.mxu0 0.0
        %2176 = vmatpush1.xpose.msra.mxu0 0.0
        %2177 = vmatprep.subr.mxu0 0.0
        %2178 = vmatpush1.xpose.msra.mxu0 0.0
        %2179 = vmatprep.subr.mxu0 0.0
        %2180 = vmatpush1.xpose.msra.mxu0 0.0
        %2181 = vmatprep.subr.mxu0 0.0
        %2182 = vmatpush1.xpose.msra.mxu0 0.0
        %2183 = vmatprep.subr.mxu0 0.0
        %2184 = vmatpush1.xpose.msra.mxu0 0.0
        %2185 = vmatprep.subr.mxu0 0.0
        %2186 = vmatpush1.xpose.msra.mxu0 0.0
        %2187 = vmatprep.subr.mxu0 0.0
        %2188 = vmatpush1.xpose.msra.mxu0 0.0
        %2189 = vmatprep.subr.mxu0 0.0
        %2190 = vmatpush1.xpose.msra.mxu0 0.0
        %2191 = vmatprep.subr.mxu0 0.0
        %2192 = vmatpush1.xpose.msra.mxu0 0.0
        %2193 = vmatprep.subr.mxu0 0.0
        %2194 = vmatpush1.xpose.msra.mxu0 0.0
        %2195 = vmatprep.subr.mxu0 0.0
        %2196 = vmatpush1.xpose.msra.mxu0 0.0
        %2197 = vmatprep.subr.mxu0 0.0
        %2198 = vmatpush1.xpose.msra.mxu0 0.0
        %2199 = vmatprep.subr.mxu0 0.0
        %2200 = vmatpush1.xpose.msra.mxu0 0.0
        %2201 = vmatprep.subr.mxu0 0.0
        %2202 = vmatpush1.xpose.msra.mxu0 0.0
        %2203 = vmatprep.subr.mxu0 0.0
        %2204 = vmatpush1.xpose.msra.mxu0 0.0
        %2205 = vmatprep.subr.mxu0 0.0
        %2206 = vmatpush1.xpose.msra.mxu0 0.0
        %2207 = vmatprep.subr.mxu0 0.0
        %2208 = vmatpush1.xpose.msra.mxu0 0.0
        %2209 = vmatprep.subr.mxu0 0.0
        %2210 = vmatpush1.xpose.msra.mxu0 0.0
        %2211 = vmatprep.subr.mxu0 0.0
        %2212 = vmatpush1.xpose.msra.mxu0 0.0
        %2213 = vmatprep.subr.mxu0 0.0
        %2214 = vmatpush1.xpose.msra.mxu0 0.0
        %2215 = vmatprep.subr.mxu0 0.0
        %2216 = vmatpush1.xpose.msra.mxu0 0.0
        %2217 = vmatprep.subr.mxu0 0.0
        %2218 = vmatpush1.xpose.msra.mxu0 0.0
        %2219 = vmatprep.subr.mxu0 0.0
        %2220 = vmatpush1.xpose.msra.mxu0 0.0
        %2221 = vmatprep.subr.mxu0 0.0
        %2222 = vmatpush1.xpose.msra.mxu0 0.0
        %2223 = vmatprep.subr.mxu0 0.0
        %2224 = vmatpush1.xpose.msra.mxu0 0.0
        %2225 = vmatprep.subr.mxu0 0.0
        %2226 = vmatpush1.xpose.msra.mxu0 0.0
        %2227 = vmatprep.subr.mxu0 0.0
        %2228 = vmatpush1.xpose.msra.mxu0 0.0
        %2229 = vmatprep.subr.mxu0 0.0
        %2230 = vmatpush1.xpose.msra.mxu0 0.0
        %2231 = vmatprep.subr.mxu0 0.0
        %2232 = vmatpush1.xpose.msra.mxu0 0.0
        %2233 = vmatprep.subr.mxu0 0.0
        %2234 = vmatpush1.xpose.msra.mxu0 0.0
        %2235 = vmatprep.mubr.f32.mxu0 0.0
        %2236 = vmatmul.mubr.f32.gmra.mrb[0].mxu0 %v2163
        %v2237 = vpop.f32.mrb[0].mxu0
        %v2238 = vadd.f32 0.0, %v2237
        %v2239 = vpop.f32.mrb[0].mxu0
        %2240 = vmatprep.mubr.f32.mxu0 0.0
        %2241 = vmatmul.mubr.f32.gmra.mrb[0].mxu0 %v2166
        %v2242 = vpop.f32.mrb[0].mxu0
        %v2243 = vadd.f32 0.0, %v2242
        %v2244 = vpop.f32.mrb[0].mxu0
        %2245 = vdwg.mxu0
        %v2247 = vsel %vm2161, %v1971, 0
        %v2250 = vsel %vm2161, %v1976, 0
        %v2253 = vsel %vm2161, %v2068, 0
        %2255 = vmatprep.subr.mxu0 0.0
        %2256 = vmatpush1.xpose.msra.mxu0 %v2253
        %2257 = vmatprep.subr.mxu0 0.0
        %2258 = vmatpush1.xpose.msra.mxu0 0.0
        %2259 = vmatprep.subr.mxu0 0.0
        %2260 = vmatpush1.xpose.msra.mxu0 0.0
        %2261 = vmatprep.subr.mxu0 0.0
        %2262 = vmatpush1.xpose.msra.mxu0 0.0
        %2263 = vmatprep.subr.mxu0 0.0
        %2264 = vmatpush1.xpose.msra.mxu0 0.0
        %2265 = vmatprep.subr.mxu0 0.0
        %2266 = vmatpush1.xpose.msra.mxu0 0.0
        %2267 = vmatprep.subr.mxu0 0.0
        %2268 = vmatpush1.xpose.msra.mxu0 0.0
        %2269 = vmatprep.subr.mxu0 0.0
        %2270 = vmatpush1.xpose.msra.mxu0 0.0
        %2271 = vmatprep.subr.mxu0 0.0
        %2272 = vmatpush1.xpose.msra.mxu0 0.0
        %2273 = vmatprep.subr.mxu0 0.0
        %2274 = vmatpush1.xpose.msra.mxu0 0.0
        %2275 = vmatprep.subr.mxu0 0.0
        %2276 = vmatpush1.xpose.msra.mxu0 0.0
        %2277 = vmatprep.subr.mxu0 0.0
        %2278 = vmatpush1.xpose.msra.mxu0 0.0
        %2279 = vmatprep.subr.mxu0 0.0
        %2280 = vmatpush1.xpose.msra.mxu0 0.0
        %2281 = vmatprep.subr.mxu0 0.0
        %2282 = vmatpush1.xpose.msra.mxu0 0.0
        %2283 = vmatprep.subr.mxu0 0.0
        %2284 = vmatpush1.xpose.msra.mxu0 0.0
        %2285 = vmatprep.subr.mxu0 0.0
        %2286 = vmatpush1.xpose.msra.mxu0 0.0
        %2287 = vmatprep.subr.mxu0 0.0
        %2288 = vmatpush1.xpose.msra.mxu0 0.0
        %2289 = vmatprep.subr.mxu0 0.0
        %2290 = vmatpush1.xpose.msra.mxu0 0.0
        %2291 = vmatprep.subr.mxu0 0.0
        %2292 = vmatpush1.xpose.msra.mxu0 0.0
        %2293 = vmatprep.subr.mxu0 0.0
        %2294 = vmatpush1.xpose.msra.mxu0 0.0
        %2295 = vmatprep.subr.mxu0 0.0
        %2296 = vmatpush1.xpose.msra.mxu0 0.0
        %2297 = vmatprep.subr.mxu0 0.0
        %2298 = vmatpush1.xpose.msra.mxu0 0.0
        %2299 = vmatprep.subr.mxu0 0.0
        %2300 = vmatpush1.xpose.msra.mxu0 0.0
        %2301 = vmatprep.subr.mxu0 0.0
        %2302 = vmatpush1.xpose.msra.mxu0 0.0
        %2303 = vmatprep.subr.mxu0 0.0
        %2304 = vmatpush1.xpose.msra.mxu0 0.0
        %2305 = vmatprep.subr.mxu0 0.0
        %2306 = vmatpush1.xpose.msra.mxu0 0.0
        %2307 = vmatprep.subr.mxu0 0.0
        %2308 = vmatpush1.xpose.msra.mxu0 0.0
        %2309 = vmatprep.subr.mxu0 0.0
        %2310 = vmatpush1.xpose.msra.mxu0 0.0
        %2311 = vmatprep.subr.mxu0 0.0
        %2312 = vmatpush1.xpose.msra.mxu0 0.0
        %2313 = vmatprep.subr.mxu0 0.0
        %2314 = vmatpush1.xpose.msra.mxu0 0.0
        %2315 = vmatprep.subr.mxu0 0.0
        %2316 = vmatpush1.xpose.msra.mxu0 0.0
        %2317 = vmatprep.subr.mxu0 0.0
        %2318 = vmatpush1.xpose.msra.mxu0 0.0
        %2319 = vmatprep.mubr.f32.mxu0 0.0
        %2320 = vmatmul.mubr.f32.gmra.mrb[0].mxu0 %v2247
        %v2321 = vpop.f32.mrb[0].mxu0
        %v2322 = vadd.f32 0.0, %v2321
        %v2323 = vpop.f32.mrb[0].mxu0
        %2324 = vmatprep.mubr.f32.mxu0 0.0
        %2325 = vmatmul.mubr.f32.gmra.mrb[0].mxu0 %v2250
        %v2326 = vpop.f32.mrb[0].mxu0
        %v2327 = vadd.f32 0.0, %v2326
        %v2328 = vpop.f32.mrb[0].mxu0
        %2329 = vdwg.mxu0
        %v2330 = vmul.f32 %v2238, 0.5
        %v2331 = vmul.f32 %v2243, 0.5
        %v2332 = vmul.f32 %v2322, 0.5
        %v2333 = vmul.f32 %v2327, 0.5
        %v2336 = vlaneseq
        %v2337 = vshrl.u32 %v2336, 7
        %v2338 = vsub.s32 0, %v2337
        %v2339 = vrot.slane %v2159, %v2338
        %v2340 = vlaneseq
        %v2341 = vshrl.u32 %v2340, 7
        %v2342 = vsub.s32 0, %v2341
        %v2343 = vrot.slane %v2160, %v2342
        %v2346 = vadd.f32 %v2330, %v2339
        %v2347 = vadd.f32 %v2331, %v2339
        %v2348 = vadd.f32 %v2332, %v2343
        %v2349 = vadd.f32 %v2333, %v2343
        %vm2350 = vcmask 64512
        %v2351 = vsel %vm2350, %v2346, -inf
        %2352 = vmax.xlane.f32.xlu0 %v2351
        %v2353 = vpop.xlane.xlu0 %2352
        %v2354 = vsel %vm2350, %v2347, -inf
        %2355 = vmax.xlane.f32.xlu0 %v2354
        %v2356 = vpop.xlane.xlu0 %2355
        %v2357 = vsel %vm2350, %v2348, -inf
        %2358 = vmax.xlane.f32.xlu0 %v2357
        %v2359 = vpop.xlane.xlu0 %2358
        %v2360 = vsel %vm2350, %v2349, -inf
        %2361 = vmax.xlane.f32.xlu0 %v2360
        %v2362 = vpop.xlane.xlu0 %2361
        %v2363 = vsub.f32 %v2346, %v2353
        %v2364 = vsub.f32 %v2347, %v2356
        %v2365 = vsub.f32 %v2348, %v2359
        %v2366 = vsub.f32 %v2349, %v2362
        %v2367 = vmul.f32 %v2363, 1.442695
        %v2368 = vpow.pop %v2367
        %v2369 = vmul.f32 %v2364, 1.442695
        %v2370 = vpow.pop %v2369
        %v2371 = vmul.f32 %v2365, 1.442695
        %v2372 = vpow.pop %v2371
        %v2373 = vmul.f32 %v2366, 1.442695
        %v2374 = vpow.pop %v2373
        %v2375 = vsel %vm2350, %v2368, 0.0
        %2376 = vadd.xlane.f32.xlu0 %v2375
        %v2377 = vpop.xlane.xlu0 %2376
        %v2378 = vsel %vm2350, %v2370, 0.0
        %2379 = vadd.xlane.f32.xlu0 %v2378
        %v2380 = vpop.xlane.xlu0 %2379
        %v2381 = vsel %vm2350, %v2372, 0.0
        %2382 = vadd.xlane.f32.xlu0 %v2381
        %v2383 = vpop.xlane.xlu0 %2382
        %v2384 = vsel %vm2350, %v2374, 0.0
        %2385 = vadd.xlane.f32.xlu0 %v2384
        %v2386 = vpop.xlane.xlu0 %2385
        %v2387 = vrcp.pop %v2377
        %v2388 = vrcp.pop %v2380
        %v2389 = vrcp.pop %v2383
        %v2390 = vrcp.pop %v2386
        %v2391 = vmul.f32 %v2368, %v2387
        %v2392 = vmul.f32 %v2370, %v2388
        %v2393 = vmul.f32 %v2372, %v2389
        %v2394 = vmul.f32 %v2374, %v2390
        %v2396 = vsel %vm2350, %v2391, 0
        %v2399 = vsel %vm2350, %v2392, 0
        %2401 = vmatprep.subr.mxu0 0.0
        %2402 = vmatpush1.msra.mxu0 %v2149
        %2403 = vmatprep.subr.mxu0 0.0
        %2404 = vmatpush1.msra.mxu0 0.0
        %2405 = vmatprep.subr.mxu0 0.0
        %2406 = vmatpush1.msra.mxu0 0.0
        %2407 = vmatprep.subr.mxu0 0.0
        %2408 = vmatpush1.msra.mxu0 0.0
        %2409 = vmatprep.subr.mxu0 0.0
        %2410 = vmatpush1.msra.mxu0 0.0
        %2411 = vmatprep.subr.mxu0 0.0
        %2412 = vmatpush1.msra.mxu0 0.0
        %2413 = vmatprep.subr.mxu0 0.0
        %2414 = vmatpush1.msra.mxu0 0.0
        %2415 = vmatprep.subr.mxu0 0.0
        %2416 = vmatpush1.msra.mxu0 0.0
        %2417 = vmatprep.subr.mxu0 0.0
        %2418 = vmatpush1.msra.mxu0 0.0
        %2419 = vmatprep.subr.mxu0 0.0
        %2420 = vmatpush1.msra.mxu0 0.0
        %2421 = vmatprep.subr.mxu0 0.0
        %2422 = vmatpush1.msra.mxu0 0.0
        %2423 = vmatprep.subr.mxu0 0.0
        %2424 = vmatpush1.msra.mxu0 0.0
        %2425 = vmatprep.subr.mxu0 0.0
        %2426 = vmatpush1.msra.mxu0 0.0
        %2427 = vmatprep.subr.mxu0 0.0
        %2428 = vmatpush1.msra.mxu0 0.0
        %2429 = vmatprep.subr.mxu0 0.0
        %2430 = vmatpush1.msra.mxu0 0.0
        %2431 = vmatprep.subr.mxu0 0.0
        %2432 = vmatpush1.msra.mxu0 0.0
        %2433 = vmatprep.subr.mxu0 0.0
        %2434 = vmatpush1.msra.mxu0 0.0
        %2435 = vmatprep.subr.mxu0 0.0
        %2436 = vmatpush1.msra.mxu0 0.0
        %2437 = vmatprep.subr.mxu0 0.0
        %2438 = vmatpush1.msra.mxu0 0.0
        %2439 = vmatprep.subr.mxu0 0.0
        %2440 = vmatpush1.msra.mxu0 0.0
        %2441 = vmatprep.subr.mxu0 0.0
        %2442 = vmatpush1.msra.mxu0 0.0
        %2443 = vmatprep.subr.mxu0 0.0
        %2444 = vmatpush1.msra.mxu0 0.0
        %2445 = vmatprep.subr.mxu0 0.0
        %2446 = vmatpush1.msra.mxu0 0.0
        %2447 = vmatprep.subr.mxu0 0.0
        %2448 = vmatpush1.msra.mxu0 0.0
        %2449 = vmatprep.subr.mxu0 0.0
        %2450 = vmatpush1.msra.mxu0 0.0
        %2451 = vmatprep.subr.mxu0 0.0
        %2452 = vmatpush1.msra.mxu0 0.0
        %2453 = vmatprep.subr.mxu0 0.0
        %2454 = vmatpush1.msra.mxu0 0.0
        %2455 = vmatprep.subr.mxu0 0.0
        %2456 = vmatpush1.msra.mxu0 0.0
        %2457 = vmatprep.subr.mxu0 0.0
        %2458 = vmatpush1.msra.mxu0 0.0
        %2459 = vmatprep.subr.mxu0 0.0
        %2460 = vmatpush1.msra.mxu0 0.0
        %2461 = vmatprep.subr.mxu0 0.0
        %2462 = vmatpush1.msra.mxu0 0.0
        %2463 = vmatprep.subr.mxu0 0.0
        %2464 = vmatpush1.msra.mxu0 0.0
        %2465 = vmatprep.mubr.f32.mxu0 0.0
        %2466 = vmatmul.mubr.f32.gmra.mrb[0].mxu0 %v2396
        %v2467 = vpop.f32.mrb[0].mxu0
        %v2468 = vadd.f32 0.0, %v2467
        %v2469 = vpop.f32.mrb[0].mxu0
        %2470 = vmatprep.mubr.f32.mxu0 0.0
        %2471 = vmatmul.mubr.f32.gmra.mrb[0].mxu0 %v2399
        %v2472 = vpop.f32.mrb[0].mxu0
        %v2473 = vadd.f32 0.0, %v2472
        %v2474 = vpop.f32.mrb[0].mxu0
        %2475 = vdwg.mxu0
        %v2477 = vsel %vm2350, %v2393, 0
        %v2480 = vsel %vm2350, %v2394, 0
        %2482 = vmatprep.subr.mxu0 0.0
        %2483 = vmatpush1.msra.mxu0 %v2154
        %2484 = vmatprep.subr.mxu0 0.0
        %2485 = vmatpush1.msra.mxu0 0.0
        %2486 = vmatprep.subr.mxu0 0.0
        %2487 = vmatpush1.msra.mxu0 0.0
        %2488 = vmatprep.subr.mxu0 0.0
        %2489 = vmatpush1.msra.mxu0 0.0
        %2490 = vmatprep.subr.mxu0 0.0
        %2491 = vmatpush1.msra.mxu0 0.0
        %2492 = vmatprep.subr.mxu0 0.0
        %2493 = vmatpush1.msra.mxu0 0.0
        %2494 = vmatprep.subr.mxu0 0.0
        %2495 = vmatpush1.msra.mxu0 0.0
        %2496 = vmatprep.subr.mxu0 0.0
        %2497 = vmatpush1.msra.mxu0 0.0
        %2498 = vmatprep.subr.mxu0 0.0
        %2499 = vmatpush1.msra.mxu0 0.0
        %2500 = vmatprep.subr.mxu0 0.0
        %2501 = vmatpush1.msra.mxu0 0.0
        %2502 = vmatprep.subr.mxu0 0.0
        %2503 = vmatpush1.msra.mxu0 0.0
        %2504 = vmatprep.subr.mxu0 0.0
        %2505 = vmatpush1.msra.mxu0 0.0
        %2506 = vmatprep.subr.mxu0 0.0
        %2507 = vmatpush1.msra.mxu0 0.0
        %2508 = vmatprep.subr.mxu0 0.0
        %2509 = vmatpush1.msra.mxu0 0.0
        %2510 = vmatprep.subr.mxu0 0.0
        %2511 = vmatpush1.msra.mxu0 0.0
        %2512 = vmatprep.subr.mxu0 0.0
        %2513 = vmatpush1.msra.mxu0 0.0
        %2514 = vmatprep.subr.mxu0 0.0
        %2515 = vmatpush1.msra.mxu0 0.0
        %2516 = vmatprep.subr.mxu0 0.0
        %2517 = vmatpush1.msra.mxu0 0.0
        %2518 = vmatprep.subr.mxu0 0.0
        %2519 = vmatpush1.msra.mxu0 0.0
        %2520 = vmatprep.subr.mxu0 0.0
        %2521 = vmatpush1.msra.mxu0 0.0
        %2522 = vmatprep.subr.mxu0 0.0
        %2523 = vmatpush1.msra.mxu0 0.0
        %2524 = vmatprep.subr.mxu0 0.0
        %2525 = vmatpush1.msra.mxu0 0.0
        %2526 = vmatprep.subr.mxu0 0.0
        %2527 = vmatpush1.msra.mxu0 0.0
        %2528 = vmatprep.subr.mxu0 0.0
        %2529 = vmatpush1.msra.mxu0 0.0
        %2530 = vmatprep.subr.mxu0 0.0
        %2531 = vmatpush1.msra.mxu0 0.0
        %2532 = vmatprep.subr.mxu0 0.0
        %2533 = vmatpush1.msra.mxu0 0.0
        %2534 = vmatprep.subr.mxu0 0.0
        %2535 = vmatpush1.msra.mxu0 0.0
        %2536 = vmatprep.subr.mxu0 0.0
        %2537 = vmatpush1.msra.mxu0 0.0
        %2538 = vmatprep.subr.mxu0 0.0
        %2539 = vmatpush1.msra.mxu0 0.0
        %2540 = vmatprep.subr.mxu0 0.0
        %2541 = vmatpush1.msra.mxu0 0.0
        %2542 = vmatprep.subr.mxu0 0.0
        %2543 = vmatpush1.msra.mxu0 0.0
        %2544 = vmatprep.subr.mxu0 0.0
        %2545 = vmatpush1.msra.mxu0 0.0
        %2546 = vmatprep.mubr.f32.mxu0 0.0
        %2547 = vmatmul.mubr.f32.gmra.mrb[0].mxu0 %v2477
        %v2548 = vpop.f32.mrb[0].mxu0
        %v2549 = vadd.f32 0.0, %v2548
        %v2550 = vpop.f32.mrb[0].mxu0
        %2551 = vmatprep.mubr.f32.mxu0 0.0
        %2552 = vmatmul.mubr.f32.gmra.mrb[0].mxu0 %v2480
        %v2553 = vpop.f32.mrb[0].mxu0
        %v2554 = vadd.f32 0.0, %v2553
        %v2555 = vpop.f32.mrb[0].mxu0
        %2556 = vdwg.mxu0
        %2557 = vst.msk [vmem:[#allocation3] sm:$0xff] %vm2161, %v2468
        %2558 = vst.msk [vmem:[#allocation3 + $0x8] sm:$0xff] %vm2161, %v2473
        %2559 = vst.msk [vmem:[#allocation3 + $0x10] sm:$0xff] %vm2161, %v2549
        %2560 = vst.msk [vmem:[#allocation3 + $0x18] sm:$0xff] %vm2161, %v2554
        %2561 = vrot.lane.b32.xlu0 %v1961, 124
        %v2562 = vpop.permute.xlu0 %2561
        %2563 = vrot.lane.b32.xlu0 %v1966, 124
        %v2564 = vpop.permute.xlu0 %2563
        %2565 = vrot.lane.b32.xlu0 %v2063, 124
        %v2566 = vpop.permute.xlu0 %2565
        %v2567 = vsel %vm2161, %v2562, 0
        %v2569 = vsel %vm2161, %v2564, 0
        %v2571 = vsel %vm2161, %v2566, 0
        %2573 = vmatprep.subr.mxu0 0.0
        %2574 = vmatpush1.xpose.msra.mxu0 %v2571
        %2575 = vmatprep.subr.mxu0 0.0
        %2576 = vmatpush1.xpose.msra.mxu0 0.0
        %2577 = vmatprep.subr.mxu0 0.0
        %2578 = vmatpush1.xpose.msra.mxu0 0.0
        %2579 = vmatprep.subr.mxu0 0.0
        %2580 = vmatpush1.xpose.msra.mxu0 0.0
        %2581 = vmatprep.subr.mxu0 0.0
        %2582 = vmatpush1.xpose.msra.mxu0 0.0
        %2583 = vmatprep.subr.mxu0 0.0
        %2584 = vmatpush1.xpose.msra.mxu0 0.0
        %2585 = vmatprep.subr.mxu0 0.0
        %2586 = vmatpush1.xpose.msra.mxu0 0.0
        %2587 = vmatprep.subr.mxu0 0.0
        %2588 = vmatpush1.xpose.msra.mxu0 0.0
        %2589 = vmatprep.subr.mxu0 0.0
        %2590 = vmatpush1.xpose.msra.mxu0 0.0
        %2591 = vmatprep.subr.mxu0 0.0
        %2592 = vmatpush1.xpose.msra.mxu0 0.0
        %2593 = vmatprep.subr.mxu0 0.0
        %2594 = vmatpush1.xpose.msra.mxu0 0.0
        %2595 = vmatprep.subr.mxu0 0.0
        %2596 = vmatpush1.xpose.msra.mxu0 0.0
        %2597 = vmatprep.subr.mxu0 0.0
        %2598 = vmatpush1.xpose.msra.mxu0 0.0
        %2599 = vmatprep.subr.mxu0 0.0
        %2600 = vmatpush1.xpose.msra.mxu0 0.0
        %2601 = vmatprep.subr.mxu0 0.0
        %2602 = vmatpush1.xpose.msra.mxu0 0.0
        %2603 = vmatprep.subr.mxu0 0.0
        %2604 = vmatpush1.xpose.msra.mxu0 0.0
        %2605 = vmatprep.subr.mxu0 0.0
        %2606 = vmatpush1.xpose.msra.mxu0 0.0
        %2607 = vmatprep.subr.mxu0 0.0
        %2608 = vmatpush1.xpose.msra.mxu0 0.0
        %2609 = vmatprep.subr.mxu0 0.0
        %2610 = vmatpush1.xpose.msra.mxu0 0.0
        %2611 = vmatprep.subr.mxu0 0.0
        %2612 = vmatpush1.xpose.msra.mxu0 0.0
        %2613 = vmatprep.subr.mxu0 0.0
        %2614 = vmatpush1.xpose.msra.mxu0 0.0
        %2615 = vmatprep.subr.mxu0 0.0
        %2616 = vmatpush1.xpose.msra.mxu0 0.0
        %2617 = vmatprep.subr.mxu0 0.0
        %2618 = vmatpush1.xpose.msra.mxu0 0.0
        %2619 = vmatprep.subr.mxu0 0.0
        %2620 = vmatpush1.xpose.msra.mxu0 0.0
        %2621 = vmatprep.subr.mxu0 0.0
        %2622 = vmatpush1.xpose.msra.mxu0 0.0
        %2623 = vmatprep.subr.mxu0 0.0
        %2624 = vmatpush1.xpose.msra.mxu0 0.0
        %2625 = vmatprep.subr.mxu0 0.0
        %2626 = vmatpush1.xpose.msra.mxu0 0.0
        %2627 = vmatprep.subr.mxu0 0.0
        %2628 = vmatpush1.xpose.msra.mxu0 0.0
        %2629 = vmatprep.subr.mxu0 0.0
        %2630 = vmatpush1.xpose.msra.mxu0 0.0
        %2631 = vmatprep.subr.mxu0 0.0
        %2632 = vmatpush1.xpose.msra.mxu0 0.0
        %2633 = vmatprep.subr.mxu0 0.0
        %2634 = vmatpush1.xpose.msra.mxu0 0.0
        %2635 = vmatprep.subr.mxu0 0.0
        %2636 = vmatpush1.xpose.msra.mxu0 0.0
        %2637 = vmatprep.mubr.f32.mxu0 0.0
        %2638 = vmatmul.mubr.f32.gmra.mrb[0].mxu0 %v2567
        %v2639 = vpop.f32.mrb[0].mxu0
        %v2640 = vadd.f32 0.0, %v2639
        %v2641 = vpop.f32.mrb[0].mxu0
        %2642 = vmatprep.mubr.f32.mxu0 0.0
        %2643 = vmatmul.mubr.f32.gmra.mrb[0].mxu0 %v2569
        %v2644 = vpop.f32.mrb[0].mxu0
        %v2645 = vadd.f32 0.0, %v2644
        %v2646 = vpop.f32.mrb[0].mxu0
        %2647 = vdwg.mxu0
        %2648 = vrot.lane.b32.xlu0 %v1971, 124
        %v2649 = vpop.permute.xlu0 %2648
        %2650 = vrot.lane.b32.xlu0 %v1976, 124
        %v2651 = vpop.permute.xlu0 %2650
        %2652 = vrot.lane.b32.xlu0 %v2068, 124
        %v2653 = vpop.permute.xlu0 %2652
        %v2654 = vsel %vm2161, %v2649, 0
        %v2656 = vsel %vm2161, %v2651, 0
        %v2658 = vsel %vm2161, %v2653, 0
        %2660 = vmatprep.subr.mxu0 0.0
        %2661 = vmatpush1.xpose.msra.mxu0 %v2658
        %2662 = vmatprep.subr.mxu0 0.0
        %2663 = vmatpush1.xpose.msra.mxu0 0.0
        %2664 = vmatprep.subr.mxu0 0.0
        %2665 = vmatpush1.xpose.msra.mxu0 0.0
        %2666 = vmatprep.subr.mxu0 0.0
        %2667 = vmatpush1.xpose.msra.mxu0 0.0
        %2668 = vmatprep.subr.mxu0 0.0
        %2669 = vmatpush1.xpose.msra.mxu0 0.0
        %2670 = vmatprep.subr.mxu0 0.0
        %2671 = vmatpush1.xpose.msra.mxu0 0.0
        %2672 = vmatprep.subr.mxu0 0.0
        %2673 = vmatpush1.xpose.msra.mxu0 0.0
        %2674 = vmatprep.subr.mxu0 0.0
        %2675 = vmatpush1.xpose.msra.mxu0 0.0
        %2676 = vmatprep.subr.mxu0 0.0
        %2677 = vmatpush1.xpose.msra.mxu0 0.0
        %2678 = vmatprep.subr.mxu0 0.0
        %2679 = vmatpush1.xpose.msra.mxu0 0.0
        %2680 = vmatprep.subr.mxu0 0.0
        %2681 = vmatpush1.xpose.msra.mxu0 0.0
        %2682 = vmatprep.subr.mxu0 0.0
        %2683 = vmatpush1.xpose.msra.mxu0 0.0
        %2684 = vmatprep.subr.mxu0 0.0
        %2685 = vmatpush1.xpose.msra.mxu0 0.0
        %2686 = vmatprep.subr.mxu0 0.0
        %2687 = vmatpush1.xpose.msra.mxu0 0.0
        %2688 = vmatprep.subr.mxu0 0.0
        %2689 = vmatpush1.xpose.msra.mxu0 0.0
        %2690 = vmatprep.subr.mxu0 0.0
        %2691 = vmatpush1.xpose.msra.mxu0 0.0
        %2692 = vmatprep.subr.mxu0 0.0
        %2693 = vmatpush1.xpose.msra.mxu0 0.0
        %2694 = vmatprep.subr.mxu0 0.0
        %2695 = vmatpush1.xpose.msra.mxu0 0.0
        %2696 = vmatprep.subr.mxu0 0.0
        %2697 = vmatpush1.xpose.msra.mxu0 0.0
        %2698 = vmatprep.subr.mxu0 0.0
        %2699 = vmatpush1.xpose.msra.mxu0 0.0
        %2700 = vmatprep.subr.mxu0 0.0
        %2701 = vmatpush1.xpose.msra.mxu0 0.0
        %2702 = vmatprep.subr.mxu0 0.0
        %2703 = vmatpush1.xpose.msra.mxu0 0.0
        %2704 = vmatprep.subr.mxu0 0.0
        %2705 = vmatpush1.xpose.msra.mxu0 0.0
        %2706 = vmatprep.subr.mxu0 0.0
        %2707 = vmatpush1.xpose.msra.mxu0 0.0
        %2708 = vmatprep.subr.mxu0 0.0
        %2709 = vmatpush1.xpose.msra.mxu0 0.0
        %2710 = vmatprep.subr.mxu0 0.0
        %2711 = vmatpush1.xpose.msra.mxu0 0.0
        %2712 = vmatprep.subr.mxu0 0.0
        %2713 = vmatpush1.xpose.msra.mxu0 0.0
        %2714 = vmatprep.subr.mxu0 0.0
        %2715 = vmatpush1.xpose.msra.mxu0 0.0
        %2716 = vmatprep.subr.mxu0 0.0
        %2717 = vmatpush1.xpose.msra.mxu0 0.0
        %2718 = vmatprep.subr.mxu0 0.0
        %2719 = vmatpush1.xpose.msra.mxu0 0.0
        %2720 = vmatprep.subr.mxu0 0.0
        %2721 = vmatpush1.xpose.msra.mxu0 0.0
        %2722 = vmatprep.subr.mxu0 0.0
        %2723 = vmatpush1.xpose.msra.mxu0 0.0
        %2724 = vmatprep.mubr.f32.mxu0 0.0
        %2725 = vmatmul.mubr.f32.gmra.mrb[0].mxu0 %v2654
        %v2726 = vpop.f32.mrb[0].mxu0
        %v2727 = vadd.f32 0.0, %v2726
        %v2728 = vpop.f32.mrb[0].mxu0
        %2729 = vmatprep.mubr.f32.mxu0 0.0
        %2730 = vmatmul.mubr.f32.gmra.mrb[0].mxu0 %v2656
        %v2731 = vpop.f32.mrb[0].mxu0
        %v2732 = vadd.f32 0.0, %v2731
        %v2733 = vpop.f32.mrb[0].mxu0
        %2734 = vdwg.mxu0
        %v2735 = vmul.f32 %v2640, 0.5
        %v2736 = vmul.f32 %v2645, 0.5
        %v2737 = vmul.f32 %v2727, 0.5
        %v2738 = vmul.f32 %v2732, 0.5
        %v2739 = vadd.f32 %v2735, %v2339
        %v2740 = vadd.f32 %v2736, %v2339
        %v2741 = vadd.f32 %v2737, %v2343
        %v2742 = vadd.f32 %v2738, %v2343
        %v2743 = vsel %vm2350, %v2739, -inf
        %2744 = vmax.xlane.f32.xlu0 %v2743
        %v2745 = vpop.xlane.xlu0 %2744
        %v2746 = vsel %vm2350, %v2740, -inf
        %2747 = vmax.xlane.f32.xlu0 %v2746
        %v2748 = vpop.xlane.xlu0 %2747
        %v2749 = vsel %vm2350, %v2741, -inf
        %2750 = vmax.xlane.f32.xlu0 %v2749
        %v2751 = vpop.xlane.xlu0 %2750
        %v2752 = vsel %vm2350, %v2742, -inf
        %2753 = vmax.xlane.f32.xlu0 %v2752
        %v2754 = vpop.xlane.xlu0 %2753
        %v2755 = vsub.f32 %v2739, %v2745
        %v2756 = vsub.f32 %v2740, %v2748
        %v2757 = vsub.f32 %v2741, %v2751
        %v2758 = vsub.f32 %v2742, %v2754
        %v2759 = vmul.f32 %v2755, 1.442695
        %v2760 = vpow.pop %v2759
        %v2761 = vmul.f32 %v2756, 1.442695
        %v2762 = vpow.pop %v2761
        %v2763 = vmul.f32 %v2757, 1.442695
        %v2764 = vpow.pop %v2763
        %v2765 = vmul.f32 %v2758, 1.442695
        %v2766 = vpow.pop %v2765
        %v2767 = vsel %vm2350, %v2760, 0.0
        %2768 = vadd.xlane.f32.xlu0 %v2767
        %v2769 = vpop.xlane.xlu0 %2768
        %v2770 = vsel %vm2350, %v2762, 0.0
        %2771 = vadd.xlane.f32.xlu0 %v2770
        %v2772 = vpop.xlane.xlu0 %2771
        %v2773 = vsel %vm2350, %v2764, 0.0
        %2774 = vadd.xlane.f32.xlu0 %v2773
        %v2775 = vpop.xlane.xlu0 %2774
        %v2776 = vsel %vm2350, %v2766, 0.0
        %2777 = vadd.xlane.f32.xlu0 %v2776
        %v2778 = vpop.xlane.xlu0 %2777
        %v2779 = vrcp.pop %v2769
        %v2780 = vrcp.pop %v2772
        %v2781 = vrcp.pop %v2775
        %v2782 = vrcp.pop %v2778
        %v2783 = vmul.f32 %v2760, %v2779
        %v2784 = vmul.f32 %v2762, %v2780
        %v2785 = vmul.f32 %v2764, %v2781
        %v2786 = vmul.f32 %v2766, %v2782
        %2788 = vrot.lane.b32.xlu0 %v2149, 124
        %v2789 = vpop.permute.xlu0 %2788
        %v2792 = vsel %vm2350, %v2783, 0
        %v2795 = vsel %vm2350, %v2784, 0
        %2797 = vmatprep.subr.mxu0 0.0
        %2798 = vmatpush1.msra.mxu0 %v2789
        %2799 = vmatprep.subr.mxu0 0.0
        %2800 = vmatpush1.msra.mxu0 0.0
        %2801 = vmatprep.subr.mxu0 0.0
        %2802 = vmatpush1.msra.mxu0 0.0
        %2803 = vmatprep.subr.mxu0 0.0
        %2804 = vmatpush1.msra.mxu0 0.0
        %2805 = vmatprep.subr.mxu0 0.0
        %2806 = vmatpush1.msra.mxu0 0.0
        %2807 = vmatprep.subr.mxu0 0.0
        %2808 = vmatpush1.msra.mxu0 0.0
        %2809 = vmatprep.subr.mxu0 0.0
        %2810 = vmatpush1.msra.mxu0 0.0
        %2811 = vmatprep.subr.mxu0 0.0
        %2812 = vmatpush1.msra.mxu0 0.0
        %2813 = vmatprep.subr.mxu0 0.0
        %2814 = vmatpush1.msra.mxu0 0.0
        %2815 = vmatprep.subr.mxu0 0.0
        %2816 = vmatpush1.msra.mxu0 0.0
        %2817 = vmatprep.subr.mxu0 0.0
        %2818 = vmatpush1.msra.mxu0 0.0
        %2819 = vmatprep.subr.mxu0 0.0
        %2820 = vmatpush1.msra.mxu0 0.0
        %2821 = vmatprep.subr.mxu0 0.0
        %2822 = vmatpush1.msra.mxu0 0.0
        %2823 = vmatprep.subr.mxu0 0.0
        %2824 = vmatpush1.msra.mxu0 0.0
        %2825 = vmatprep.subr.mxu0 0.0
        %2826 = vmatpush1.msra.mxu0 0.0
        %2827 = vmatprep.subr.mxu0 0.0
        %2828 = vmatpush1.msra.mxu0 0.0
        %2829 = vmatprep.subr.mxu0 0.0
        %2830 = vmatpush1.msra.mxu0 0.0
        %2831 = vmatprep.subr.mxu0 0.0
        %2832 = vmatpush1.msra.mxu0 0.0
        %2833 = vmatprep.subr.mxu0 0.0
        %2834 = vmatpush1.msra.mxu0 0.0
        %2835 = vmatprep.subr.mxu0 0.0
        %2836 = vmatpush1.msra.mxu0 0.0
        %2837 = vmatprep.subr.mxu0 0.0
        %2838 = vmatpush1.msra.mxu0 0.0
        %2839 = vmatprep.subr.mxu0 0.0
        %2840 = vmatpush1.msra.mxu0 0.0
        %2841 = vmatprep.subr.mxu0 0.0
        %2842 = vmatpush1.msra.mxu0 0.0
        %2843 = vmatprep.subr.mxu0 0.0
        %2844 = vmatpush1.msra.mxu0 0.0
        %2845 = vmatprep.subr.mxu0 0.0
        %2846 = vmatpush1.msra.mxu0 0.0
        %2847 = vmatprep.subr.mxu0 0.0
        %2848 = vmatpush1.msra.mxu0 0.0
        %2849 = vmatprep.subr.mxu0 0.0
        %2850 = vmatpush1.msra.mxu0 0.0
        %2851 = vmatprep.subr.mxu0 0.0
        %2852 = vmatpush1.msra.mxu0 0.0
        %2853 = vmatprep.subr.mxu0 0.0
        %2854 = vmatpush1.msra.mxu0 0.0
        %2855 = vmatprep.subr.mxu0 0.0
        %2856 = vmatpush1.msra.mxu0 0.0
        %2857 = vmatprep.subr.mxu0 0.0
        %2858 = vmatpush1.msra.mxu0 0.0
        %2859 = vmatprep.subr.mxu0 0.0
        %2860 = vmatpush1.msra.mxu0 0.0
        %2861 = vmatprep.mubr.f32.mxu0 0.0
        %2862 = vmatmul.mubr.f32.gmra.mrb[0].mxu0 %v2792
        %v2863 = vpop.f32.mrb[0].mxu0
        %v2864 = vadd.f32 0.0, %v2863
        %v2865 = vpop.f32.mrb[0].mxu0
        %2866 = vmatprep.mubr.f32.mxu0 0.0
        %2867 = vmatmul.mubr.f32.gmra.mrb[0].mxu0 %v2795
        %v2868 = vpop.f32.mrb[0].mxu0
        %v2869 = vadd.f32 0.0, %v2868
        %v2870 = vpop.f32.mrb[0].mxu0
        %2871 = vdwg.mxu0
        %2873 = vrot.lane.b32.xlu0 %v2154, 124
        %v2874 = vpop.permute.xlu0 %2873
        %v2877 = vsel %vm2350, %v2785, 0
        %v2880 = vsel %vm2350, %v2786, 0
        %2882 = vmatprep.subr.mxu0 0.0
        %2883 = vmatpush1.msra.mxu0 %v2874
        %2884 = vmatprep.subr.mxu0 0.0
        %2885 = vmatpush1.msra.mxu0 0.0
        %2886 = vmatprep.subr.mxu0 0.0
        %2887 = vmatpush1.msra.mxu0 0.0
        %2888 = vmatprep.subr.mxu0 0.0
        %2889 = vmatpush1.msra.mxu0 0.0
        %2890 = vmatprep.subr.mxu0 0.0
        %2891 = vmatpush1.msra.mxu0 0.0
        %2892 = vmatprep.subr.mxu0 0.0
        %2893 = vmatpush1.msra.mxu0 0.0
        %2894 = vmatprep.subr.mxu0 0.0
        %2895 = vmatpush1.msra.mxu0 0.0
        %2896 = vmatprep.subr.mxu0 0.0
        %2897 = vmatpush1.msra.mxu0 0.0
        %2898 = vmatprep.subr.mxu0 0.0
        %2899 = vmatpush1.msra.mxu0 0.0
        %2900 = vmatprep.subr.mxu0 0.0
        %2901 = vmatpush1.msra.mxu0 0.0
        %2902 = vmatprep.subr.mxu0 0.0
        %2903 = vmatpush1.msra.mxu0 0.0
        %2904 = vmatprep.subr.mxu0 0.0
        %2905 = vmatpush1.msra.mxu0 0.0
        %2906 = vmatprep.subr.mxu0 0.0
        %2907 = vmatpush1.msra.mxu0 0.0
        %2908 = vmatprep.subr.mxu0 0.0
        %2909 = vmatpush1.msra.mxu0 0.0
        %2910 = vmatprep.subr.mxu0 0.0
        %2911 = vmatpush1.msra.mxu0 0.0
        %2912 = vmatprep.subr.mxu0 0.0
        %2913 = vmatpush1.msra.mxu0 0.0
        %2914 = vmatprep.subr.mxu0 0.0
        %2915 = vmatpush1.msra.mxu0 0.0
        %2916 = vmatprep.subr.mxu0 0.0
        %2917 = vmatpush1.msra.mxu0 0.0
        %2918 = vmatprep.subr.mxu0 0.0
        %2919 = vmatpush1.msra.mxu0 0.0
        %2920 = vmatprep.subr.mxu0 0.0
        %2921 = vmatpush1.msra.mxu0 0.0
        %2922 = vmatprep.subr.mxu0 0.0
        %2923 = vmatpush1.msra.mxu0 0.0
        %2924 = vmatprep.subr.mxu0 0.0
        %2925 = vmatpush1.msra.mxu0 0.0
        %2926 = vmatprep.subr.mxu0 0.0
        %2927 = vmatpush1.msra.mxu0 0.0
        %2928 = vmatprep.subr.mxu0 0.0
        %2929 = vmatpush1.msra.mxu0 0.0
        %2930 = vmatprep.subr.mxu0 0.0
        %2931 = vmatpush1.msra.mxu0 0.0
        %2932 = vmatprep.subr.mxu0 0.0
        %2933 = vmatpush1.msra.mxu0 0.0
        %2934 = vmatprep.subr.mxu0 0.0
        %2935 = vmatpush1.msra.mxu0 0.0
        %2936 = vmatprep.subr.mxu0 0.0
        %2937 = vmatpush1.msra.mxu0 0.0
        %2938 = vmatprep.subr.mxu0 0.0
        %2939 = vmatpush1.msra.mxu0 0.0
        %2940 = vmatprep.subr.mxu0 0.0
        %2941 = vmatpush1.msra.mxu0 0.0
        %2942 = vmatprep.subr.mxu0 0.0
        %2943 = vmatpush1.msra.mxu0 0.0
        %2944 = vmatprep.subr.mxu0 0.0
        %2945 = vmatpush1.msra.mxu0 0.0
        %2946 = vmatprep.mubr.f32.mxu0 0.0
        %2947 = vmatmul.mubr.f32.gmra.mrb[0].mxu0 %v2877
        %v2948 = vpop.f32.mrb[0].mxu0
        %v2949 = vadd.f32 0.0, %v2948
        %v2950 = vpop.f32.mrb[0].mxu0
        %2951 = vmatprep.mubr.f32.mxu0 0.0
        %2952 = vmatmul.mubr.f32.gmra.mrb[0].mxu0 %v2880
        %v2953 = vpop.f32.mrb[0].mxu0
        %v2954 = vadd.f32 0.0, %v2953
        %v2955 = vpop.f32.mrb[0].mxu0
        %2956 = vdwg.mxu0
        %2961 = vrot.lane.b32.xlu0 %v2864, 4
        %v2962 = vpop.permute.xlu0 %2961
        %2963 = vrot.lane.b32.xlu0 %v2869, 4
        %v2964 = vpop.permute.xlu0 %2963
        %2965 = vrot.lane.b32.xlu0 %v2949, 4
        %v2966 = vpop.permute.xlu0 %2965
        %2967 = vrot.lane.b32.xlu0 %v2954, 4
        %v2968 = vpop.permute.xlu0 %2967
        %vm2973 = vcmask 64544
        %2974 = vst.msk [vmem:[#allocation3] sm:$0xff] %vm2973, %v2962
        %2975 = vst.msk [vmem:[#allocation3 + $0x8] sm:$0xff] %vm2973, %v2964
        %2976 = vst.msk [vmem:[#allocation3 + $0x10] sm:$0xff] %vm2973, %v2966
        %2977 = vst.msk [vmem:[#allocation3 + $0x18] sm:$0xff] %vm2973, %v2968
        %2978 = vrot.lane.b32.xlu0 %v1961, 120
        %v2979 = vpop.permute.xlu0 %2978
        %2980 = vrot.lane.b32.xlu0 %v1966, 120
        %v2981 = vpop.permute.xlu0 %2980
        %2982 = vrot.lane.b32.xlu0 %v2063, 120
        %v2983 = vpop.permute.xlu0 %2982
        %v2984 = vsel %vm2161, %v2979, 0
        %v2986 = vsel %vm2161, %v2981, 0
        %v2988 = vsel %vm2161, %v2983, 0
        %2990 = vmatprep.subr.mxu0 0.0
        %2991 = vmatpush1.xpose.msra.mxu0 %v2988
        %2992 = vmatprep.subr.mxu0 0.0
        %2993 = vmatpush1.xpose.msra.mxu0 0.0
        %2994 = vmatprep.subr.mxu0 0.0
        %2995 = vmatpush1.xpose.msra.mxu0 0.0
        %2996 = vmatprep.subr.mxu0 0.0
        %2997 = vmatpush1.xpose.msra.mxu0 0.0
        %2998 = vmatprep.subr.mxu0 0.0
        %2999 = vmatpush1.xpose.msra.mxu0 0.0
        %3000 = vmatprep.subr.mxu0 0.0
        %3001 = vmatpush1.xpose.msra.mxu0 0.0
        %3002 = vmatprep.subr.mxu0 0.0
        %3003 = vmatpush1.xpose.msra.mxu0 0.0
        %3004 = vmatprep.subr.mxu0 0.0
        %3005 = vmatpush1.xpose.msra.mxu0 0.0
        %3006 = vmatprep.subr.mxu0 0.0
        %3007 = vmatpush1.xpose.msra.mxu0 0.0
        %3008 = vmatprep.subr.mxu0 0.0
        %3009 = vmatpush1.xpose.msra.mxu0 0.0
        %3010 = vmatprep.subr.mxu0 0.0
        %3011 = vmatpush1.xpose.msra.mxu0 0.0
        %3012 = vmatprep.subr.mxu0 0.0
        %3013 = vmatpush1.xpose.msra.mxu0 0.0
        %3014 = vmatprep.subr.mxu0 0.0
        %3015 = vmatpush1.xpose.msra.mxu0 0.0
        %3016 = vmatprep.subr.mxu0 0.0
        %3017 = vmatpush1.xpose.msra.mxu0 0.0
        %3018 = vmatprep.subr.mxu0 0.0
        %3019 = vmatpush1.xpose.msra.mxu0 0.0
        %3020 = vmatprep.subr.mxu0 0.0
        %3021 = vmatpush1.xpose.msra.mxu0 0.0
        %3022 = vmatprep.subr.mxu0 0.0
        %3023 = vmatpush1.xpose.msra.mxu0 0.0
        %3024 = vmatprep.subr.mxu0 0.0
        %3025 = vmatpush1.xpose.msra.mxu0 0.0
        %3026 = vmatprep.subr.mxu0 0.0
        %3027 = vmatpush1.xpose.msra.mxu0 0.0
        %3028 = vmatprep.subr.mxu0 0.0
        %3029 = vmatpush1.xpose.msra.mxu0 0.0
        %3030 = vmatprep.subr.mxu0 0.0
        %3031 = vmatpush1.xpose.msra.mxu0 0.0
        %3032 = vmatprep.subr.mxu0 0.0
        %3033 = vmatpush1.xpose.msra.mxu0 0.0
        %3034 = vmatprep.subr.mxu0 0.0
        %3035 = vmatpush1.xpose.msra.mxu0 0.0
        %3036 = vmatprep.subr.mxu0 0.0
        %3037 = vmatpush1.xpose.msra.mxu0 0.0
        %3038 = vmatprep.subr.mxu0 0.0
        %3039 = vmatpush1.xpose.msra.mxu0 0.0
        %3040 = vmatprep.subr.mxu0 0.0
        %3041 = vmatpush1.xpose.msra.mxu0 0.0
        %3042 = vmatprep.subr.mxu0 0.0
        %3043 = vmatpush1.xpose.msra.mxu0 0.0
        %3044 = vmatprep.subr.mxu0 0.0
        %3045 = vmatpush1.xpose.msra.mxu0 0.0
        %3046 = vmatprep.subr.mxu0 0.0
        %3047 = vmatpush1.xpose.msra.mxu0 0.0
        %3048 = vmatprep.subr.mxu0 0.0
        %3049 = vmatpush1.xpose.msra.mxu0 0.0
        %3050 = vmatprep.subr.mxu0 0.0
        %3051 = vmatpush1.xpose.msra.mxu0 0.0
        %3052 = vmatprep.subr.mxu0 0.0
        %3053 = vmatpush1.xpose.msra.mxu0 0.0
        %3054 = vmatprep.mubr.f32.mxu0 0.0
        %3055 = vmatmul.mubr.f32.gmra.mrb[0].mxu0 %v2984
        %v3056 = vpop.f32.mrb[0].mxu0
        %v3057 = vadd.f32 0.0, %v3056
        %v3058 = vpop.f32.mrb[0].mxu0
        %3059 = vmatprep.mubr.f32.mxu0 0.0
        %3060 = vmatmul.mubr.f32.gmra.mrb[0].mxu0 %v2986
        %v3061 = vpop.f32.mrb[0].mxu0
        %v3062 = vadd.f32 0.0, %v3061
        %v3063 = vpop.f32.mrb[0].mxu0
        %3064 = vdwg.mxu0
        %3065 = vrot.lane.b32.xlu0 %v1971, 120
        %v3066 = vpop.permute.xlu0 %3065
        %3067 = vrot.lane.b32.xlu0 %v1976, 120
        %v3068 = vpop.permute.xlu0 %3067
        %3069 = vrot.lane.b32.xlu0 %v2068, 120
        %v3070 = vpop.permute.xlu0 %3069
        %v3071 = vsel %vm2161, %v3066, 0
        %v3073 = vsel %vm2161, %v3068, 0
        %v3075 = vsel %vm2161, %v3070, 0
        %3077 = vmatprep.subr.mxu0 0.0
        %3078 = vmatpush1.xpose.msra.mxu0 %v3075
        %3079 = vmatprep.subr.mxu0 0.0
        %3080 = vmatpush1.xpose.msra.mxu0 0.0
        %3081 = vmatprep.subr.mxu0 0.0
        %3082 = vmatpush1.xpose.msra.mxu0 0.0
        %3083 = vmatprep.subr.mxu0 0.0
        %3084 = vmatpush1.xpose.msra.mxu0 0.0
        %3085 = vmatprep.subr.mxu0 0.0
        %3086 = vmatpush1.xpose.msra.mxu0 0.0
        %3087 = vmatprep.subr.mxu0 0.0
        %3088 = vmatpush1.xpose.msra.mxu0 0.0
        %3089 = vmatprep.subr.mxu0 0.0
        %3090 = vmatpush1.xpose.msra.mxu0 0.0
        %3091 = vmatprep.subr.mxu0 0.0
        %3092 = vmatpush1.xpose.msra.mxu0 0.0
        %3093 = vmatprep.subr.mxu0 0.0
        %3094 = vmatpush1.xpose.msra.mxu0 0.0
        %3095 = vmatprep.subr.mxu0 0.0
        %3096 = vmatpush1.xpose.msra.mxu0 0.0
        %3097 = vmatprep.subr.mxu0 0.0
        %3098 = vmatpush1.xpose.msra.mxu0 0.0
        %3099 = vmatprep.subr.mxu0 0.0
        %3100 = vmatpush1.xpose.msra.mxu0 0.0
        %3101 = vmatprep.subr.mxu0 0.0
        %3102 = vmatpush1.xpose.msra.mxu0 0.0
        %3103 = vmatprep.subr.mxu0 0.0
        %3104 = vmatpush1.xpose.msra.mxu0 0.0
        %3105 = vmatprep.subr.mxu0 0.0
        %3106 = vmatpush1.xpose.msra.mxu0 0.0
        %3107 = vmatprep.subr.mxu0 0.0
        %3108 = vmatpush1.xpose.msra.mxu0 0.0
        %3109 = vmatprep.subr.mxu0 0.0
        %3110 = vmatpush1.xpose.msra.mxu0 0.0
        %3111 = vmatprep.subr.mxu0 0.0
        %3112 = vmatpush1.xpose.msra.mxu0 0.0
        %3113 = vmatprep.subr.mxu0 0.0
        %3114 = vmatpush1.xpose.msra.mxu0 0.0
        %3115 = vmatprep.subr.mxu0 0.0
        %3116 = vmatpush1.xpose.msra.mxu0 0.0
        %3117 = vmatprep.subr.mxu0 0.0
        %3118 = vmatpush1.xpose.msra.mxu0 0.0
        %3119 = vmatprep.subr.mxu0 0.0
        %3120 = vmatpush1.xpose.msra.mxu0 0.0
        %3121 = vmatprep.subr.mxu0 0.0
        %3122 = vmatpush1.xpose.msra.mxu0 0.0
        %3123 = vmatprep.subr.mxu0 0.0
        %3124 = vmatpush1.xpose.msra.mxu0 0.0
        %3125 = vmatprep.subr.mxu0 0.0
        %3126 = vmatpush1.xpose.msra.mxu0 0.0
        %3127 = vmatprep.subr.mxu0 0.0
        %3128 = vmatpush1.xpose.msra.mxu0 0.0
        %3129 = vmatprep.subr.mxu0 0.0
        %3130 = vmatpush1.xpose.msra.mxu0 0.0
        %3131 = vmatprep.subr.mxu0 0.0
        %3132 = vmatpush1.xpose.msra.mxu0 0.0
        %3133 = vmatprep.subr.mxu0 0.0
        %3134 = vmatpush1.xpose.msra.mxu0 0.0
        %3135 = vmatprep.subr.mxu0 0.0
        %3136 = vmatpush1.xpose.msra.mxu0 0.0
        %3137 = vmatprep.subr.mxu0 0.0
        %3138 = vmatpush1.xpose.msra.mxu0 0.0
        %3139 = vmatprep.subr.mxu0 0.0
        %3140 = vmatpush1.xpose.msra.mxu0 0.0
        %3141 = vmatprep.mubr.f32.mxu0 0.0
        %3142 = vmatmul.mubr.f32.gmra.mrb[0].mxu0 %v3071
        %v3143 = vpop.f32.mrb[0].mxu0
        %v3144 = vadd.f32 0.0, %v3143
        %v3145 = vpop.f32.mrb[0].mxu0
        %3146 = vmatprep.mubr.f32.mxu0 0.0
        %3147 = vmatmul.mubr.f32.gmra.mrb[0].mxu0 %v3073
        %v3148 = vpop.f32.mrb[0].mxu0
        %v3149 = vadd.f32 0.0, %v3148
        %v3150 = vpop.f32.mrb[0].mxu0
        %3151 = vdwg.mxu0
        %v3152 = vmul.f32 %v3057, 0.5
        %v3153 = vmul.f32 %v3062, 0.5
        %v3154 = vmul.f32 %v3144, 0.5
        %v3155 = vmul.f32 %v3149, 0.5
        %v3156 = vadd.f32 %v3152, %v2339
        %v3157 = vadd.f32 %v3153, %v2339
        %v3158 = vadd.f32 %v3154, %v2343
        %v3159 = vadd.f32 %v3155, %v2343
        %v3160 = vsel %vm2350, %v3156, -inf
        %3161 = vmax.xlane.f32.xlu0 %v3160
        %v3162 = vpop.xlane.xlu0 %3161
        %v3163 = vsel %vm2350, %v3157, -inf
        %3164 = vmax.xlane.f32.xlu0 %v3163
        %v3165 = vpop.xlane.xlu0 %3164
        %v3166 = vsel %vm2350, %v3158, -inf
        %3167 = vmax.xlane.f32.xlu0 %v3166
        %v3168 = vpop.xlane.xlu0 %3167
        %v3169 = vsel %vm2350, %v3159, -inf
        %3170 = vmax.xlane.f32.xlu0 %v3169
        %v3171 = vpop.xlane.xlu0 %3170
        %v3172 = vsub.f32 %v3156, %v3162
        %v3173 = vsub.f32 %v3157, %v3165
        %v3174 = vsub.f32 %v3158, %v3168
        %v3175 = vsub.f32 %v3159, %v3171
        %v3176 = vmul.f32 %v3172, 1.442695
        %v3177 = vpow.pop %v3176
        %v3178 = vmul.f32 %v3173, 1.442695
        %v3179 = vpow.pop %v3178
        %v3180 = vmul.f32 %v3174, 1.442695
        %v3181 = vpow.pop %v3180
        %v3182 = vmul.f32 %v3175, 1.442695
        %v3183 = vpow.pop %v3182
        %v3184 = vsel %vm2350, %v3177, 0.0
        %3185 = vadd.xlane.f32.xlu0 %v3184
        %v3186 = vpop.xlane.xlu0 %3185
        %v3187 = vsel %vm2350, %v3179, 0.0
        %3188 = vadd.xlane.f32.xlu0 %v3187
        %v3189 = vpop.xlane.xlu0 %3188
        %v3190 = vsel %vm2350, %v3181, 0.0
        %3191 = vadd.xlane.f32.xlu0 %v3190
        %v3192 = vpop.xlane.xlu0 %3191
        %v3193 = vsel %vm2350, %v3183, 0.0
        %3194 = vadd.xlane.f32.xlu0 %v3193
        %v3195 = vpop.xlane.xlu0 %3194
        %v3196 = vrcp.pop %v3186
        %v3197 = vrcp.pop %v3189
        %v3198 = vrcp.pop %v3192
        %v3199 = vrcp.pop %v3195
        %v3200 = vmul.f32 %v3177, %v3196
        %v3201 = vmul.f32 %v3179, %v3197
        %v3202 = vmul.f32 %v3181, %v3198
        %v3203 = vmul.f32 %v3183, %v3199
        %3204 = vrot.lane.b32.xlu0 %v2149, 120
        %v3205 = vpop.permute.xlu0 %3204
        %v3208 = vsel %vm2350, %v3200, 0
        %v3211 = vsel %vm2350, %v3201, 0
        %3213 = vmatprep.subr.mxu0 0.0
        %3214 = vmatpush1.msra.mxu0 %v3205
        %3215 = vmatprep.subr.mxu0 0.0
        %3216 = vmatpush1.msra.mxu0 0.0
        %3217 = vmatprep.subr.mxu0 0.0
        %3218 = vmatpush1.msra.mxu0 0.0
        %3219 = vmatprep.subr.mxu0 0.0
        %3220 = vmatpush1.msra.mxu0 0.0
        %3221 = vmatprep.subr.mxu0 0.0
        %3222 = vmatpush1.msra.mxu0 0.0
        %3223 = vmatprep.subr.mxu0 0.0
        %3224 = vmatpush1.msra.mxu0 0.0
        %3225 = vmatprep.subr.mxu0 0.0
        %3226 = vmatpush1.msra.mxu0 0.0
        %3227 = vmatprep.subr.mxu0 0.0
        %3228 = vmatpush1.msra.mxu0 0.0
        %3229 = vmatprep.subr.mxu0 0.0
        %3230 = vmatpush1.msra.mxu0 0.0
        %3231 = vmatprep.subr.mxu0 0.0
        %3232 = vmatpush1.msra.mxu0 0.0
        %3233 = vmatprep.subr.mxu0 0.0
        %3234 = vmatpush1.msra.mxu0 0.0
        %3235 = vmatprep.subr.mxu0 0.0
        %3236 = vmatpush1.msra.mxu0 0.0
        %3237 = vmatprep.subr.mxu0 0.0
        %3238 = vmatpush1.msra.mxu0 0.0
        %3239 = vmatprep.subr.mxu0 0.0
        %3240 = vmatpush1.msra.mxu0 0.0
        %3241 = vmatprep.subr.mxu0 0.0
        %3242 = vmatpush1.msra.mxu0 0.0
        %3243 = vmatprep.subr.mxu0 0.0
        %3244 = vmatpush1.msra.mxu0 0.0
        %3245 = vmatprep.subr.mxu0 0.0
        %3246 = vmatpush1.msra.mxu0 0.0
        %3247 = vmatprep.subr.mxu0 0.0
        %3248 = vmatpush1.msra.mxu0 0.0
        %3249 = vmatprep.subr.mxu0 0.0
        %3250 = vmatpush1.msra.mxu0 0.0
        %3251 = vmatprep.subr.mxu0 0.0
        %3252 = vmatpush1.msra.mxu0 0.0
        %3253 = vmatprep.subr.mxu0 0.0
        %3254 = vmatpush1.msra.mxu0 0.0
        %3255 = vmatprep.subr.mxu0 0.0
        %3256 = vmatpush1.msra.mxu0 0.0
        %3257 = vmatprep.subr.mxu0 0.0
        %3258 = vmatpush1.msra.mxu0 0.0
        %3259 = vmatprep.subr.mxu0 0.0
        %3260 = vmatpush1.msra.mxu0 0.0
        %3261 = vmatprep.subr.mxu0 0.0
        %3262 = vmatpush1.msra.mxu0 0.0
        %3263 = vmatprep.subr.mxu0 0.0
        %3264 = vmatpush1.msra.mxu0 0.0
        %3265 = vmatprep.subr.mxu0 0.0
        %3266 = vmatpush1.msra.mxu0 0.0
        %3267 = vmatprep.subr.mxu0 0.0
        %3268 = vmatpush1.msra.mxu0 0.0
        %3269 = vmatprep.subr.mxu0 0.0
        %3270 = vmatpush1.msra.mxu0 0.0
        %3271 = vmatprep.subr.mxu0 0.0
        %3272 = vmatpush1.msra.mxu0 0.0
        %3273 = vmatprep.subr.mxu0 0.0
        %3274 = vmatpush1.msra.mxu0 0.0
        %3275 = vmatprep.subr.mxu0 0.0
        %3276 = vmatpush1.msra.mxu0 0.0
        %3277 = vmatprep.mubr.f32.mxu0 0.0
        %3278 = vmatmul.mubr.f32.gmra.mrb[0].mxu0 %v3208
        %v3279 = vpop.f32.mrb[0].mxu0
        %v3280 = vadd.f32 0.0, %v3279
        %v3281 = vpop.f32.mrb[0].mxu0
        %3282 = vmatprep.mubr.f32.mxu0 0.0
        %3283 = vmatmul.mubr.f32.gmra.mrb[0].mxu0 %v3211
        %v3284 = vpop.f32.mrb[0].mxu0
        %v3285 = vadd.f32 0.0, %v3284
        %v3286 = vpop.f32.mrb[0].mxu0
        %3287 = vdwg.mxu0
        %3288 = vrot.lane.b32.xlu0 %v2154, 120
        %v3289 = vpop.permute.xlu0 %3288
        %v3292 = vsel %vm2350, %v3202, 0
        %v3295 = vsel %vm2350, %v3203, 0
        %3297 = vmatprep.subr.mxu0 0.0
        %3298 = vmatpush1.msra.mxu0 %v3289
        %3299 = vmatprep.subr.mxu0 0.0
        %3300 = vmatpush1.msra.mxu0 0.0
        %3301 = vmatprep.subr.mxu0 0.0
        %3302 = vmatpush1.msra.mxu0 0.0
        %3303 = vmatprep.subr.mxu0 0.0
        %3304 = vmatpush1.msra.mxu0 0.0
        %3305 = vmatprep.subr.mxu0 0.0
        %3306 = vmatpush1.msra.mxu0 0.0
        %3307 = vmatprep.subr.mxu0 0.0
        %3308 = vmatpush1.msra.mxu0 0.0
        %3309 = vmatprep.subr.mxu0 0.0
        %3310 = vmatpush1.msra.mxu0 0.0
        %3311 = vmatprep.subr.mxu0 0.0
        %3312 = vmatpush1.msra.mxu0 0.0
        %3313 = vmatprep.subr.mxu0 0.0
        %3314 = vmatpush1.msra.mxu0 0.0
        %3315 = vmatprep.subr.mxu0 0.0
        %3316 = vmatpush1.msra.mxu0 0.0
        %3317 = vmatprep.subr.mxu0 0.0
        %3318 = vmatpush1.msra.mxu0 0.0
        %3319 = vmatprep.subr.mxu0 0.0
        %3320 = vmatpush1.msra.mxu0 0.0
        %3321 = vmatprep.subr.mxu0 0.0
        %3322 = vmatpush1.msra.mxu0 0.0
        %3323 = vmatprep.subr.mxu0 0.0
        %3324 = vmatpush1.msra.mxu0 0.0
        %3325 = vmatprep.subr.mxu0 0.0
        %3326 = vmatpush1.msra.mxu0 0.0
        %3327 = vmatprep.subr.mxu0 0.0
        %3328 = vmatpush1.msra.mxu0 0.0
        %3329 = vmatprep.subr.mxu0 0.0
        %3330 = vmatpush1.msra.mxu0 0.0
        %3331 = vmatprep.subr.mxu0 0.0
        %3332 = vmatpush1.msra.mxu0 0.0
        %3333 = vmatprep.subr.mxu0 0.0
        %3334 = vmatpush1.msra.mxu0 0.0
        %3335 = vmatprep.subr.mxu0 0.0
        %3336 = vmatpush1.msra.mxu0 0.0
        %3337 = vmatprep.subr.mxu0 0.0
        %3338 = vmatpush1.msra.mxu0 0.0
        %3339 = vmatprep.subr.mxu0 0.0
        %3340 = vmatpush1.msra.mxu0 0.0
        %3341 = vmatprep.subr.mxu0 0.0
        %3342 = vmatpush1.msra.mxu0 0.0
        %3343 = vmatprep.subr.mxu0 0.0
        %3344 = vmatpush1.msra.mxu0 0.0
        %3345 = vmatprep.subr.mxu0 0.0
        %3346 = vmatpush1.msra.mxu0 0.0
        %3347 = vmatprep.subr.mxu0 0.0
        %3348 = vmatpush1.msra.mxu0 0.0
        %3349 = vmatprep.subr.mxu0 0.0
        %3350 = vmatpush1.msra.mxu0 0.0
        %3351 = vmatprep.subr.mxu0 0.0
        %3352 = vmatpush1.msra.mxu0 0.0
        %3353 = vmatprep.subr.mxu0 0.0
        %3354 = vmatpush1.msra.mxu0 0.0
        %3355 = vmatprep.subr.mxu0 0.0
        %3356 = vmatpush1.msra.mxu0 0.0
        %3357 = vmatprep.subr.mxu0 0.0
        %3358 = vmatpush1.msra.mxu0 0.0
        %3359 = vmatprep.subr.mxu0 0.0
        %3360 = vmatpush1.msra.mxu0 0.0
        %3361 = vmatprep.mubr.f32.mxu0 0.0
        %3362 = vmatmul.mubr.f32.gmra.mrb[0].mxu0 %v3292
        %v3363 = vpop.f32.mrb[0].mxu0
        %v3364 = vadd.f32 0.0, %v3363
        %v3365 = vpop.f32.mrb[0].mxu0
        %3366 = vmatprep.mubr.f32.mxu0 0.0
        %3367 = vmatmul.mubr.f32.gmra.mrb[0].mxu0 %v3295
        %v3368 = vpop.f32.mrb[0].mxu0
        %v3369 = vadd.f32 0.0, %v3368
        %v3370 = vpop.f32.mrb[0].mxu0
        %3371 = vdwg.mxu0
        %3376 = vrot.lane.b32.xlu0 %v3280, 8
        %v3377 = vpop.permute.xlu0 %3376
        %3378 = vrot.lane.b32.xlu0 %v3285, 8
        %v3379 = vpop.permute.xlu0 %3378
        %3380 = vrot.lane.b32.xlu0 %v3364, 8
        %v3381 = vpop.permute.xlu0 %3380
        %3382 = vrot.lane.b32.xlu0 %v3369, 8
        %v3383 = vpop.permute.xlu0 %3382
        %vm3388 = vcmask 97344
        %3389 = vst.msk [vmem:[#allocation3] sm:$0xff] %vm3388, %v3377
        %3390 = vst.msk [vmem:[#allocation3 + $0x8] sm:$0xff] %vm3388, %v3379
        %3391 = vst.msk [vmem:[#allocation3 + $0x10] sm:$0xff] %vm3388, %v3381
        %3392 = vst.msk [vmem:[#allocation3 + $0x18] sm:$0xff] %vm3388, %v3383
        %3393 = vrot.lane.b32.xlu0 %v1961, 116
        %v3394 = vpop.permute.xlu0 %3393
        %3395 = vrot.lane.b32.xlu0 %v1966, 116
        %v3396 = vpop.permute.xlu0 %3395
        %3397 = vrot.lane.b32.xlu0 %v2063, 116
        %v3398 = vpop.permute.xlu0 %3397
        %v3399 = vsel %vm2161, %v3394, 0
        %v3401 = vsel %vm2161, %v3396, 0
        %v3403 = vsel %vm2161, %v3398, 0
        %3405 = vmatprep.subr.mxu0 0.0
        %3406 = vmatpush1.xpose.msra.mxu0 %v3403
        %3407 = vmatprep.subr.mxu0 0.0
        %3408 = vmatpush1.xpose.msra.mxu0 0.0
        %3409 = vmatprep.subr.mxu0 0.0
        %3410 = vmatpush1.xpose.msra.mxu0 0.0
        %3411 = vmatprep.subr.mxu0 0.0
        %3412 = vmatpush1.xpose.msra.mxu0 0.0
        %3413 = vmatprep.subr.mxu0 0.0
        %3414 = vmatpush1.xpose.msra.mxu0 0.0
        %3415 = vmatprep.subr.mxu0 0.0
        %3416 = vmatpush1.xpose.msra.mxu0 0.0
        %3417 = vmatprep.subr.mxu0 0.0
        %3418 = vmatpush1.xpose.msra.mxu0 0.0
        %3419 = vmatprep.subr.mxu0 0.0
        %3420 = vmatpush1.xpose.msra.mxu0 0.0
        %3421 = vmatprep.subr.mxu0 0.0
        %3422 = vmatpush1.xpose.msra.mxu0 0.0
        %3423 = vmatprep.subr.mxu0 0.0
        %3424 = vmatpush1.xpose.msra.mxu0 0.0
        %3425 = vmatprep.subr.mxu0 0.0
        %3426 = vmatpush1.xpose.msra.mxu0 0.0
        %3427 = vmatprep.subr.mxu0 0.0
        %3428 = vmatpush1.xpose.msra.mxu0 0.0
        %3429 = vmatprep.subr.mxu0 0.0
        %3430 = vmatpush1.xpose.msra.mxu0 0.0
        %3431 = vmatprep.subr.mxu0 0.0
        %3432 = vmatpush1.xpose.msra.mxu0 0.0
        %3433 = vmatprep.subr.mxu0 0.0
        %3434 = vmatpush1.xpose.msra.mxu0 0.0
        %3435 = vmatprep.subr.mxu0 0.0
        %3436 = vmatpush1.xpose.msra.mxu0 0.0
        %3437 = vmatprep.subr.mxu0 0.0
        %3438 = vmatpush1.xpose.msra.mxu0 0.0
        %3439 = vmatprep.subr.mxu0 0.0
        %3440 = vmatpush1.xpose.msra.mxu0 0.0
        %3441 = vmatprep.subr.mxu0 0.0
        %3442 = vmatpush1.xpose.msra.mxu0 0.0
        %3443 = vmatprep.subr.mxu0 0.0
        %3444 = vmatpush1.xpose.msra.mxu0 0.0
        %3445 = vmatprep.subr.mxu0 0.0
        %3446 = vmatpush1.xpose.msra.mxu0 0.0
        %3447 = vmatprep.subr.mxu0 0.0
        %3448 = vmatpush1.xpose.msra.mxu0 0.0
        %3449 = vmatprep.subr.mxu0 0.0
        %3450 = vmatpush1.xpose.msra.mxu0 0.0
        %3451 = vmatprep.subr.mxu0 0.0
        %3452 = vmatpush1.xpose.msra.mxu0 0.0
        %3453 = vmatprep.subr.mxu0 0.0
        %3454 = vmatpush1.xpose.msra.mxu0 0.0
        %3455 = vmatprep.subr.mxu0 0.0
        %3456 = vmatpush1.xpose.msra.mxu0 0.0
        %3457 = vmatprep.subr.mxu0 0.0
        %3458 = vmatpush1.xpose.msra.mxu0 0.0
        %3459 = vmatprep.subr.mxu0 0.0
        %3460 = vmatpush1.xpose.msra.mxu0 0.0
        %3461 = vmatprep.subr.mxu0 0.0
        %3462 = vmatpush1.xpose.msra.mxu0 0.0
        %3463 = vmatprep.subr.mxu0 0.0
        %3464 = vmatpush1.xpose.msra.mxu0 0.0
        %3465 = vmatprep.subr.mxu0 0.0
        %3466 = vmatpush1.xpose.msra.mxu0 0.0
        %3467 = vmatprep.subr.mxu0 0.0
        %3468 = vmatpush1.xpose.msra.mxu0 0.0
        %3469 = vmatprep.mubr.f32.mxu0 0.0
        %3470 = vmatmul.mubr.f32.gmra.mrb[0].mxu0 %v3399
        %v3471 = vpop.f32.mrb[0].mxu0
        %v3472 = vadd.f32 0.0, %v3471
        %v3473 = vpop.f32.mrb[0].mxu0
        %3474 = vmatprep.mubr.f32.mxu0 0.0
        %3475 = vmatmul.mubr.f32.gmra.mrb[0].mxu0 %v3401
        %v3476 = vpop.f32.mrb[0].mxu0
        %v3477 = vadd.f32 0.0, %v3476
        %v3478 = vpop.f32.mrb[0].mxu0
        %3479 = vdwg.mxu0
        %3480 = vrot.lane.b32.xlu0 %v1971, 116
        %v3481 = vpop.permute.xlu0 %3480
        %3482 = vrot.lane.b32.xlu0 %v1976, 116
        %v3483 = vpop.permute.xlu0 %3482
        %3484 = vrot.lane.b32.xlu0 %v2068, 116
        %v3485 = vpop.permute.xlu0 %3484
        %v3486 = vsel %vm2161, %v3481, 0
        %v3488 = vsel %vm2161, %v3483, 0
        %v3490 = vsel %vm2161, %v3485, 0
        %3492 = vmatprep.subr.mxu0 0.0
        %3493 = vmatpush1.xpose.msra.mxu0 %v3490
        %3494 = vmatprep.subr.mxu0 0.0
        %3495 = vmatpush1.xpose.msra.mxu0 0.0
        %3496 = vmatprep.subr.mxu0 0.0
        %3497 = vmatpush1.xpose.msra.mxu0 0.0
        %3498 = vmatprep.subr.mxu0 0.0
        %3499 = vmatpush1.xpose.msra.mxu0 0.0
        %3500 = vmatprep.subr.mxu0 0.0
        %3501 = vmatpush1.xpose.msra.mxu0 0.0
        %3502 = vmatprep.subr.mxu0 0.0
        %3503 = vmatpush1.xpose.msra.mxu0 0.0
        %3504 = vmatprep.subr.mxu0 0.0
        %3505 = vmatpush1.xpose.msra.mxu0 0.0
        %3506 = vmatprep.subr.mxu0 0.0
        %3507 = vmatpush1.xpose.msra.mxu0 0.0
        %3508 = vmatprep.subr.mxu0 0.0
        %3509 = vmatpush1.xpose.msra.mxu0 0.0
        %3510 = vmatprep.subr.mxu0 0.0
        %3511 = vmatpush1.xpose.msra.mxu0 0.0
        %3512 = vmatprep.subr.mxu0 0.0
        %3513 = vmatpush1.xpose.msra.mxu0 0.0
        %3514 = vmatprep.subr.mxu0 0.0
        %3515 = vmatpush1.xpose.msra.mxu0 0.0
        %3516 = vmatprep.subr.mxu0 0.0
        %3517 = vmatpush1.xpose.msra.mxu0 0.0
        %3518 = vmatprep.subr.mxu0 0.0
        %3519 = vmatpush1.xpose.msra.mxu0 0.0
        %3520 = vmatprep.subr.mxu0 0.0
        %3521 = vmatpush1.xpose.msra.mxu0 0.0
        %3522 = vmatprep.subr.mxu0 0.0
        %3523 = vmatpush1.xpose.msra.mxu0 0.0
        %3524 = vmatprep.subr.mxu0 0.0
        %3525 = vmatpush1.xpose.msra.mxu0 0.0
        %3526 = vmatprep.subr.mxu0 0.0
        %3527 = vmatpush1.xpose.msra.mxu0 0.0
        %3528 = vmatprep.subr.mxu0 0.0
        %3529 = vmatpush1.xpose.msra.mxu0 0.0
        %3530 = vmatprep.subr.mxu0 0.0
        %3531 = vmatpush1.xpose.msra.mxu0 0.0
        %3532 = vmatprep.subr.mxu0 0.0
        %3533 = vmatpush1.xpose.msra.mxu0 0.0
        %3534 = vmatprep.subr.mxu0 0.0
        %3535 = vmatpush1.xpose.msra.mxu0 0.0
        %3536 = vmatprep.subr.mxu0 0.0
        %3537 = vmatpush1.xpose.msra.mxu0 0.0
        %3538 = vmatprep.subr.mxu0 0.0
        %3539 = vmatpush1.xpose.msra.mxu0 0.0
        %3540 = vmatprep.subr.mxu0 0.0
        %3541 = vmatpush1.xpose.msra.mxu0 0.0
        %3542 = vmatprep.subr.mxu0 0.0
        %3543 = vmatpush1.xpose.msra.mxu0 0.0
        %3544 = vmatprep.subr.mxu0 0.0
        %3545 = vmatpush1.xpose.msra.mxu0 0.0
        %3546 = vmatprep.subr.mxu0 0.0
        %3547 = vmatpush1.xpose.msra.mxu0 0.0
        %3548 = vmatprep.subr.mxu0 0.0
        %3549 = vmatpush1.xpose.msra.mxu0 0.0
        %3550 = vmatprep.subr.mxu0 0.0
        %3551 = vmatpush1.xpose.msra.mxu0 0.0
        %3552 = vmatprep.subr.mxu0 0.0
        %3553 = vmatpush1.xpose.msra.mxu0 0.0
        %3554 = vmatprep.subr.mxu0 0.0
        %3555 = vmatpush1.xpose.msra.mxu0 0.0
        %3556 = vmatprep.mubr.f32.mxu0 0.0
        %3557 = vmatmul.mubr.f32.gmra.mrb[0].mxu0 %v3486
        %v3558 = vpop.f32.mrb[0].mxu0
        %v3559 = vadd.f32 0.0, %v3558
        %v3560 = vpop.f32.mrb[0].mxu0
        %3561 = vmatprep.mubr.f32.mxu0 0.0
        %3562 = vmatmul.mubr.f32.gmra.mrb[0].mxu0 %v3488
        %v3563 = vpop.f32.mrb[0].mxu0
        %v3564 = vadd.f32 0.0, %v3563
        %v3565 = vpop.f32.mrb[0].mxu0
        %3566 = vdwg.mxu0
        %v3567 = vmul.f32 %v3472, 0.5
        %v3568 = vmul.f32 %v3477, 0.5
        %v3569 = vmul.f32 %v3559, 0.5
        %v3570 = vmul.f32 %v3564, 0.5
        %v3571 = vadd.f32 %v3567, %v2339
        %v3572 = vadd.f32 %v3568, %v2339
        %v3573 = vadd.f32 %v3569, %v2343
        %v3574 = vadd.f32 %v3570, %v2343
        %v3575 = vsel %vm2350, %v3571, -inf
        %3576 = vmax.xlane.f32.xlu0 %v3575
        %v3577 = vpop.xlane.xlu0 %3576
        %v3578 = vsel %vm2350, %v3572, -inf
        %3579 = vmax.xlane.f32.xlu0 %v3578
        %v3580 = vpop.xlane.xlu0 %3579
        %v3581 = vsel %vm2350, %v3573, -inf
        %3582 = vmax.xlane.f32.xlu0 %v3581
        %v3583 = vpop.xlane.xlu0 %3582
        %v3584 = vsel %vm2350, %v3574, -inf
        %3585 = vmax.xlane.f32.xlu0 %v3584
        %v3586 = vpop.xlane.xlu0 %3585
        %v3587 = vsub.f32 %v3571, %v3577
        %v3588 = vsub.f32 %v3572, %v3580
        %v3589 = vsub.f32 %v3573, %v3583
        %v3590 = vsub.f32 %v3574, %v3586
        %v3591 = vmul.f32 %v3587, 1.442695
        %v3592 = vpow.pop %v3591
        %v3593 = vmul.f32 %v3588, 1.442695
        %v3594 = vpow.pop %v3593
        %v3595 = vmul.f32 %v3589, 1.442695
        %v3596 = vpow.pop %v3595
        %v3597 = vmul.f32 %v3590, 1.442695
        %v3598 = vpow.pop %v3597
        %v3599 = vsel %vm2350, %v3592, 0.0
        %3600 = vadd.xlane.f32.xlu0 %v3599
        %v3601 = vpop.xlane.xlu0 %3600
        %v3602 = vsel %vm2350, %v3594, 0.0
        %3603 = vadd.xlane.f32.xlu0 %v3602
        %v3604 = vpop.xlane.xlu0 %3603
        %v3605 = vsel %vm2350, %v3596, 0.0
        %3606 = vadd.xlane.f32.xlu0 %v3605
        %v3607 = vpop.xlane.xlu0 %3606
        %v3608 = vsel %vm2350, %v3598, 0.0
        %3609 = vadd.xlane.f32.xlu0 %v3608
        %v3610 = vpop.xlane.xlu0 %3609
        %v3611 = vrcp.pop %v3601
        %v3612 = vrcp.pop %v3604
        %v3613 = vrcp.pop %v3607
        %v3614 = vrcp.pop %v3610
        %v3615 = vmul.f32 %v3592, %v3611
        %v3616 = vmul.f32 %v3594, %v3612
        %v3617 = vmul.f32 %v3596, %v3613
        %v3618 = vmul.f32 %v3598, %v3614
        %3619 = vrot.lane.b32.xlu0 %v2149, 116
        %v3620 = vpop.permute.xlu0 %3619
        %v3623 = vsel %vm2350, %v3615, 0
        %v3626 = vsel %vm2350, %v3616, 0
        %3628 = vmatprep.subr.mxu0 0.0
        %3629 = vmatpush1.msra.mxu0 %v3620
        %3630 = vmatprep.subr.mxu0 0.0
        %3631 = vmatpush1.msra.mxu0 0.0
        %3632 = vmatprep.subr.mxu0 0.0
        %3633 = vmatpush1.msra.mxu0 0.0
        %3634 = vmatprep.subr.mxu0 0.0
        %3635 = vmatpush1.msra.mxu0 0.0
        %3636 = vmatprep.subr.mxu0 0.0
        %3637 = vmatpush1.msra.mxu0 0.0
        %3638 = vmatprep.subr.mxu0 0.0
        %3639 = vmatpush1.msra.mxu0 0.0
        %3640 = vmatprep.subr.mxu0 0.0
        %3641 = vmatpush1.msra.mxu0 0.0
        %3642 = vmatprep.subr.mxu0 0.0
        %3643 = vmatpush1.msra.mxu0 0.0
        %3644 = vmatprep.subr.mxu0 0.0
        %3645 = vmatpush1.msra.mxu0 0.0
        %3646 = vmatprep.subr.mxu0 0.0
        %3647 = vmatpush1.msra.mxu0 0.0
        %3648 = vmatprep.subr.mxu0 0.0
        %3649 = vmatpush1.msra.mxu0 0.0
        %3650 = vmatprep.subr.mxu0 0.0
        %3651 = vmatpush1.msra.mxu0 0.0
        %3652 = vmatprep.subr.mxu0 0.0
        %3653 = vmatpush1.msra.mxu0 0.0
        %3654 = vmatprep.subr.mxu0 0.0
        %3655 = vmatpush1.msra.mxu0 0.0
        %3656 = vmatprep.subr.mxu0 0.0
        %3657 = vmatpush1.msra.mxu0 0.0
        %3658 = vmatprep.subr.mxu0 0.0
        %3659 = vmatpush1.msra.mxu0 0.0
        %3660 = vmatprep.subr.mxu0 0.0
        %3661 = vmatpush1.msra.mxu0 0.0
        %3662 = vmatprep.subr.mxu0 0.0
        %3663 = vmatpush1.msra.mxu0 0.0
        %3664 = vmatprep.subr.mxu0 0.0
        %3665 = vmatpush1.msra.mxu0 0.0
        %3666 = vmatprep.subr.mxu0 0.0
        %3667 = vmatpush1.msra.mxu0 0.0
        %3668 = vmatprep.subr.mxu0 0.0
        %3669 = vmatpush1.msra.mxu0 0.0
        %3670 = vmatprep.subr.mxu0 0.0
        %3671 = vmatpush1.msra.mxu0 0.0
        %3672 = vmatprep.subr.mxu0 0.0
        %3673 = vmatpush1.msra.mxu0 0.0
        %3674 = vmatprep.subr.mxu0 0.0
        %3675 = vmatpush1.msra.mxu0 0.0
        %3676 = vmatprep.subr.mxu0 0.0
        %3677 = vmatpush1.msra.mxu0 0.0
        %3678 = vmatprep.subr.mxu0 0.0
        %3679 = vmatpush1.msra.mxu0 0.0
        %3680 = vmatprep.subr.mxu0 0.0
        %3681 = vmatpush1.msra.mxu0 0.0
        %3682 = vmatprep.subr.mxu0 0.0
        %3683 = vmatpush1.msra.mxu0 0.0
        %3684 = vmatprep.subr.mxu0 0.0
        %3685 = vmatpush1.msra.mxu0 0.0
        %3686 = vmatprep.subr.mxu0 0.0
        %3687 = vmatpush1.msra.mxu0 0.0
        %3688 = vmatprep.subr.mxu0 0.0
        %3689 = vmatpush1.msra.mxu0 0.0
        %3690 = vmatprep.subr.mxu0 0.0
        %3691 = vmatpush1.msra.mxu0 0.0
        %3692 = vmatprep.mubr.f32.mxu0 0.0
        %3693 = vmatmul.mubr.f32.gmra.mrb[0].mxu0 %v3623
        %v3694 = vpop.f32.mrb[0].mxu0
        %v3695 = vadd.f32 0.0, %v3694
        %v3696 = vpop.f32.mrb[0].mxu0
        %3697 = vmatprep.mubr.f32.mxu0 0.0
        %3698 = vmatmul.mubr.f32.gmra.mrb[0].mxu0 %v3626
        %v3699 = vpop.f32.mrb[0].mxu0
        %v3700 = vadd.f32 0.0, %v3699
        %v3701 = vpop.f32.mrb[0].mxu0
        %3702 = vdwg.mxu0
        %3703 = vrot.lane.b32.xlu0 %v2154, 116
        %v3704 = vpop.permute.xlu0 %3703
        %v3707 = vsel %vm2350, %v3617, 0
        %v3710 = vsel %vm2350, %v3618, 0
        %3712 = vmatprep.subr.mxu0 0.0
        %3713 = vmatpush1.msra.mxu0 %v3704
        %3714 = vmatprep.subr.mxu0 0.0
        %3715 = vmatpush1.msra.mxu0 0.0
        %3716 = vmatprep.subr.mxu0 0.0
        %3717 = vmatpush1.msra.mxu0 0.0
        %3718 = vmatprep.subr.mxu0 0.0
        %3719 = vmatpush1.msra.mxu0 0.0
        %3720 = vmatprep.subr.mxu0 0.0
        %3721 = vmatpush1.msra.mxu0 0.0
        %3722 = vmatprep.subr.mxu0 0.0
        %3723 = vmatpush1.msra.mxu0 0.0
        %3724 = vmatprep.subr.mxu0 0.0
        %3725 = vmatpush1.msra.mxu0 0.0
        %3726 = vmatprep.subr.mxu0 0.0
        %3727 = vmatpush1.msra.mxu0 0.0
        %3728 = vmatprep.subr.mxu0 0.0
        %3729 = vmatpush1.msra.mxu0 0.0
        %3730 = vmatprep.subr.mxu0 0.0
        %3731 = vmatpush1.msra.mxu0 0.0
        %3732 = vmatprep.subr.mxu0 0.0
        %3733 = vmatpush1.msra.mxu0 0.0
        %3734 = vmatprep.subr.mxu0 0.0
        %3735 = vmatpush1.msra.mxu0 0.0
        %3736 = vmatprep.subr.mxu0 0.0
        %3737 = vmatpush1.msra.mxu0 0.0
        %3738 = vmatprep.subr.mxu0 0.0
        %3739 = vmatpush1.msra.mxu0 0.0
        %3740 = vmatprep.subr.mxu0 0.0
        %3741 = vmatpush1.msra.mxu0 0.0
        %3742 = vmatprep.subr.mxu0 0.0
        %3743 = vmatpush1.msra.mxu0 0.0
        %3744 = vmatprep.subr.mxu0 0.0
        %3745 = vmatpush1.msra.mxu0 0.0
        %3746 = vmatprep.subr.mxu0 0.0
        %3747 = vmatpush1.msra.mxu0 0.0
        %3748 = vmatprep.subr.mxu0 0.0
        %3749 = vmatpush1.msra.mxu0 0.0
        %3750 = vmatprep.subr.mxu0 0.0
        %3751 = vmatpush1.msra.mxu0 0.0
        %3752 = vmatprep.subr.mxu0 0.0
        %3753 = vmatpush1.msra.mxu0 0.0
        %3754 = vmatprep.subr.mxu0 0.0
        %3755 = vmatpush1.msra.mxu0 0.0
        %3756 = vmatprep.subr.mxu0 0.0
        %3757 = vmatpush1.msra.mxu0 0.0
        %3758 = vmatprep.subr.mxu0 0.0
        %3759 = vmatpush1.msra.mxu0 0.0
        %3760 = vmatprep.subr.mxu0 0.0
        %3761 = vmatpush1.msra.mxu0 0.0
        %3762 = vmatprep.subr.mxu0 0.0
        %3763 = vmatpush1.msra.mxu0 0.0
        %3764 = vmatprep.subr.mxu0 0.0
        %3765 = vmatpush1.msra.mxu0 0.0
        %3766 = vmatprep.subr.mxu0 0.0
        %3767 = vmatpush1.msra.mxu0 0.0
        %3768 = vmatprep.subr.mxu0 0.0
        %3769 = vmatpush1.msra.mxu0 0.0
        %3770 = vmatprep.subr.mxu0 0.0
        %3771 = vmatpush1.msra.mxu0 0.0
        %3772 = vmatprep.subr.mxu0 0.0
        %3773 = vmatpush1.msra.mxu0 0.0
        %3774 = vmatprep.subr.mxu0 0.0
        %3775 = vmatpush1.msra.mxu0 0.0
        %3776 = vmatprep.mubr.f32.mxu0 0.0
        %3777 = vmatmul.mubr.f32.gmra.mrb[0].mxu0 %v3707
        %v3778 = vpop.f32.mrb[0].mxu0
        %v3779 = vadd.f32 0.0, %v3778
        %v3780 = vpop.f32.mrb[0].mxu0
        %3781 = vmatprep.mubr.f32.mxu0 0.0
        %3782 = vmatmul.mubr.f32.gmra.mrb[0].mxu0 %v3710
        %v3783 = vpop.f32.mrb[0].mxu0
        %v3784 = vadd.f32 0.0, %v3783
        %v3785 = vpop.f32.mrb[0].mxu0
        %3786 = vdwg.mxu0
        %3791 = vrot.lane.b32.xlu0 %v3695, 12
        %v3792 = vpop.permute.xlu0 %3791
        %3793 = vrot.lane.b32.xlu0 %v3700, 12
        %v3794 = vpop.permute.xlu0 %3793
        %3795 = vrot.lane.b32.xlu0 %v3779, 12
        %v3796 = vpop.permute.xlu0 %3795
        %3797 = vrot.lane.b32.xlu0 %v3784, 12
        %v3798 = vpop.permute.xlu0 %3797
        %vm3803 = vcmask 130144
        %3804 = vst.msk [vmem:[#allocation3] sm:$0xff] %vm3803, %v3792
        %3805 = vst.msk [vmem:[#allocation3 + $0x8] sm:$0xff] %vm3803, %v3794
        %3806 = vst.msk [vmem:[#allocation3 + $0x10] sm:$0xff] %vm3803, %v3796
        %3807 = vst.msk [vmem:[#allocation3 + $0x18] sm:$0xff] %vm3803, %v3798
        %3808 = vrot.lane.b32.xlu0 %v1961, 112
        %v3809 = vpop.permute.xlu0 %3808
        %3810 = vrot.lane.b32.xlu0 %v1966, 112
        %v3811 = vpop.permute.xlu0 %3810
        %3812 = vrot.lane.b32.xlu0 %v2063, 112
        %v3813 = vpop.permute.xlu0 %3812
        %v3814 = vsel %vm2161, %v3809, 0
        %v3816 = vsel %vm2161, %v3811, 0
        %v3818 = vsel %vm2161, %v3813, 0
        %3820 = vmatprep.subr.mxu0 0.0
        %3821 = vmatpush1.xpose.msra.mxu0 %v3818
        %3822 = vmatprep.subr.mxu0 0.0
        %3823 = vmatpush1.xpose.msra.mxu0 0.0
        %3824 = vmatprep.subr.mxu0 0.0
        %3825 = vmatpush1.xpose.msra.mxu0 0.0
        %3826 = vmatprep.subr.mxu0 0.0
        %3827 = vmatpush1.xpose.msra.mxu0 0.0
        %3828 = vmatprep.subr.mxu0 0.0
        %3829 = vmatpush1.xpose.msra.mxu0 0.0
        %3830 = vmatprep.subr.mxu0 0.0
        %3831 = vmatpush1.xpose.msra.mxu0 0.0
        %3832 = vmatprep.subr.mxu0 0.0
        %3833 = vmatpush1.xpose.msra.mxu0 0.0
        %3834 = vmatprep.subr.mxu0 0.0
        %3835 = vmatpush1.xpose.msra.mxu0 0.0
        %3836 = vmatprep.subr.mxu0 0.0
        %3837 = vmatpush1.xpose.msra.mxu0 0.0
        %3838 = vmatprep.subr.mxu0 0.0
        %3839 = vmatpush1.xpose.msra.mxu0 0.0
        %3840 = vmatprep.subr.mxu0 0.0
        %3841 = vmatpush1.xpose.msra.mxu0 0.0
        %3842 = vmatprep.subr.mxu0 0.0
        %3843 = vmatpush1.xpose.msra.mxu0 0.0
        %3844 = vmatprep.subr.mxu0 0.0
        %3845 = vmatpush1.xpose.msra.mxu0 0.0
        %3846 = vmatprep.subr.mxu0 0.0
        %3847 = vmatpush1.xpose.msra.mxu0 0.0
        %3848 = vmatprep.subr.mxu0 0.0
        %3849 = vmatpush1.xpose.msra.mxu0 0.0
        %3850 = vmatprep.subr.mxu0 0.0
        %3851 = vmatpush1.xpose.msra.mxu0 0.0
        %3852 = vmatprep.subr.mxu0 0.0
        %3853 = vmatpush1.xpose.msra.mxu0 0.0
        %3854 = vmatprep.subr.mxu0 0.0
        %3855 = vmatpush1.xpose.msra.mxu0 0.0
        %3856 = vmatprep.subr.mxu0 0.0
        %3857 = vmatpush1.xpose.msra.mxu0 0.0
        %3858 = vmatprep.subr.mxu0 0.0
        %3859 = vmatpush1.xpose.msra.mxu0 0.0
        %3860 = vmatprep.subr.mxu0 0.0
        %3861 = vmatpush1.xpose.msra.mxu0 0.0
        %3862 = vmatprep.subr.mxu0 0.0
        %3863 = vmatpush1.xpose.msra.mxu0 0.0
        %3864 = vmatprep.subr.mxu0 0.0
        %3865 = vmatpush1.xpose.msra.mxu0 0.0
        %3866 = vmatprep.subr.mxu0 0.0
        %3867 = vmatpush1.xpose.msra.mxu0 0.0
        %3868 = vmatprep.subr.mxu0 0.0
        %3869 = vmatpush1.xpose.msra.mxu0 0.0
        %3870 = vmatprep.subr.mxu0 0.0
        %3871 = vmatpush1.xpose.msra.mxu0 0.0
        %3872 = vmatprep.subr.mxu0 0.0
        %3873 = vmatpush1.xpose.msra.mxu0 0.0
        %3874 = vmatprep.subr.mxu0 0.0
        %3875 = vmatpush1.xpose.msra.mxu0 0.0
        %3876 = vmatprep.subr.mxu0 0.0
        %3877 = vmatpush1.xpose.msra.mxu0 0.0
        %3878 = vmatprep.subr.mxu0 0.0
        %3879 = vmatpush1.xpose.msra.mxu0 0.0
        %3880 = vmatprep.subr.mxu0 0.0
        %3881 = vmatpush1.xpose.msra.mxu0 0.0
        %3882 = vmatprep.subr.mxu0 0.0
        %3883 = vmatpush1.xpose.msra.mxu0 0.0
        %3884 = vmatprep.mubr.f32.mxu0 0.0
        %3885 = vmatmul.mubr.f32.gmra.mrb[0].mxu0 %v3814
        %v3886 = vpop.f32.mrb[0].mxu0
        %v3887 = vadd.f32 0.0, %v3886
        %v3888 = vpop.f32.mrb[0].mxu0
        %3889 = vmatprep.mubr.f32.mxu0 0.0
        %3890 = vmatmul.mubr.f32.gmra.mrb[0].mxu0 %v3816
        %v3891 = vpop.f32.mrb[0].mxu0
        %v3892 = vadd.f32 0.0, %v3891
        %v3893 = vpop.f32.mrb[0].mxu0
        %3894 = vdwg.mxu0
        %3895 = vrot.lane.b32.xlu0 %v1971, 112
        %v3896 = vpop.permute.xlu0 %3895
        %3897 = vrot.lane.b32.xlu0 %v1976, 112
        %v3898 = vpop.permute.xlu0 %3897
        %3899 = vrot.lane.b32.xlu0 %v2068, 112
        %v3900 = vpop.permute.xlu0 %3899
        %v3901 = vsel %vm2161, %v3896, 0
        %v3903 = vsel %vm2161, %v3898, 0
        %v3905 = vsel %vm2161, %v3900, 0
        %3907 = vmatprep.subr.mxu0 0.0
        %3908 = vmatpush1.xpose.msra.mxu0 %v3905
        %3909 = vmatprep.subr.mxu0 0.0
        %3910 = vmatpush1.xpose.msra.mxu0 0.0
        %3911 = vmatprep.subr.mxu0 0.0
        %3912 = vmatpush1.xpose.msra.mxu0 0.0
        %3913 = vmatprep.subr.mxu0 0.0
        %3914 = vmatpush1.xpose.msra.mxu0 0.0
        %3915 = vmatprep.subr.mxu0 0.0
        %3916 = vmatpush1.xpose.msra.mxu0 0.0
        %3917 = vmatprep.subr.mxu0 0.0
        %3918 = vmatpush1.xpose.msra.mxu0 0.0
        %3919 = vmatprep.subr.mxu0 0.0
        %3920 = vmatpush1.xpose.msra.mxu0 0.0
        %3921 = vmatprep.subr.mxu0 0.0
        %3922 = vmatpush1.xpose.msra.mxu0 0.0
        %3923 = vmatprep.subr.mxu0 0.0
        %3924 = vmatpush1.xpose.msra.mxu0 0.0
        %3925 = vmatprep.subr.mxu0 0.0
        %3926 = vmatpush1.xpose.msra.mxu0 0.0
        %3927 = vmatprep.subr.mxu0 0.0
        %3928 = vmatpush1.xpose.msra.mxu0 0.0
        %3929 = vmatprep.subr.mxu0 0.0
        %3930 = vmatpush1.xpose.msra.mxu0 0.0
        %3931 = vmatprep.subr.mxu0 0.0
        %3932 = vmatpush1.xpose.msra.mxu0 0.0
        %3933 = vmatprep.subr.mxu0 0.0
        %3934 = vmatpush1.xpose.msra.mxu0 0.0
        %3935 = vmatprep.subr.mxu0 0.0
        %3936 = vmatpush1.xpose.msra.mxu0 0.0
        %3937 = vmatprep.subr.mxu0 0.0
        %3938 = vmatpush1.xpose.msra.mxu0 0.0
        %3939 = vmatprep.subr.mxu0 0.0
        %3940 = vmatpush1.xpose.msra.mxu0 0.0
        %3941 = vmatprep.subr.mxu0 0.0
        %3942 = vmatpush1.xpose.msra.mxu0 0.0
        %3943 = vmatprep.subr.mxu0 0.0
        %3944 = vmatpush1.xpose.msra.mxu0 0.0
        %3945 = vmatprep.subr.mxu0 0.0
        %3946 = vmatpush1.xpose.msra.mxu0 0.0
        %3947 = vmatprep.subr.mxu0 0.0
        %3948 = vmatpush1.xpose.msra.mxu0 0.0
        %3949 = vmatprep.subr.mxu0 0.0
        %3950 = vmatpush1.xpose.msra.mxu0 0.0
        %3951 = vmatprep.subr.mxu0 0.0
        %3952 = vmatpush1.xpose.msra.mxu0 0.0
        %3953 = vmatprep.subr.mxu0 0.0
        %3954 = vmatpush1.xpose.msra.mxu0 0.0
        %3955 = vmatprep.subr.mxu0 0.0
        %3956 = vmatpush1.xpose.msra.mxu0 0.0
        %3957 = vmatprep.subr.mxu0 0.0
        %3958 = vmatpush1.xpose.msra.mxu0 0.0
        %3959 = vmatprep.subr.mxu0 0.0
        %3960 = vmatpush1.xpose.msra.mxu0 0.0
        %3961 = vmatprep.subr.mxu0 0.0
        %3962 = vmatpush1.xpose.msra.mxu0 0.0
        %3963 = vmatprep.subr.mxu0 0.0
        %3964 = vmatpush1.xpose.msra.mxu0 0.0
        %3965 = vmatprep.subr.mxu0 0.0
        %3966 = vmatpush1.xpose.msra.mxu0 0.0
        %3967 = vmatprep.subr.mxu0 0.0
        %3968 = vmatpush1.xpose.msra.mxu0 0.0
        %3969 = vmatprep.subr.mxu0 0.0
        %3970 = vmatpush1.xpose.msra.mxu0 0.0
        %3971 = vmatprep.mubr.f32.mxu0 0.0
        %3972 = vmatmul.mubr.f32.gmra.mrb[0].mxu0 %v3901
        %v3973 = vpop.f32.mrb[0].mxu0
        %v3974 = vadd.f32 0.0, %v3973
        %v3975 = vpop.f32.mrb[0].mxu0
        %3976 = vmatprep.mubr.f32.mxu0 0.0
        %3977 = vmatmul.mubr.f32.gmra.mrb[0].mxu0 %v3903
        %v3978 = vpop.f32.mrb[0].mxu0
        %v3979 = vadd.f32 0.0, %v3978
        %v3980 = vpop.f32.mrb[0].mxu0
        %3981 = vdwg.mxu0
        %v3982 = vmul.f32 %v3887, 0.5
        %v3983 = vmul.f32 %v3892, 0.5
        %v3984 = vmul.f32 %v3974, 0.5
        %v3985 = vmul.f32 %v3979, 0.5
        %v3986 = vadd.f32 %v3982, %v2339
        %v3987 = vadd.f32 %v3983, %v2339
        %v3988 = vadd.f32 %v3984, %v2343
        %v3989 = vadd.f32 %v3985, %v2343
        %v3990 = vsel %vm2350, %v3986, -inf
        %3991 = vmax.xlane.f32.xlu0 %v3990
        %v3992 = vpop.xlane.xlu0 %3991
        %v3993 = vsel %vm2350, %v3987, -inf
        %3994 = vmax.xlane.f32.xlu0 %v3993
        %v3995 = vpop.xlane.xlu0 %3994
        %v3996 = vsel %vm2350, %v3988, -inf
        %3997 = vmax.xlane.f32.xlu0 %v3996
        %v3998 = vpop.xlane.xlu0 %3997
        %v3999 = vsel %vm2350, %v3989, -inf
        %4000 = vmax.xlane.f32.xlu0 %v3999
        %v4001 = vpop.xlane.xlu0 %4000
        %v4002 = vsub.f32 %v3986, %v3992
        %v4003 = vsub.f32 %v3987, %v3995
        %v4004 = vsub.f32 %v3988, %v3998
        %v4005 = vsub.f32 %v3989, %v4001
        %v4006 = vmul.f32 %v4002, 1.442695
        %v4007 = vpow.pop %v4006
        %v4008 = vmul.f32 %v4003, 1.442695
        %v4009 = vpow.pop %v4008
        %v4010 = vmul.f32 %v4004, 1.442695
        %v4011 = vpow.pop %v4010
        %v4012 = vmul.f32 %v4005, 1.442695
        %v4013 = vpow.pop %v4012
        %v4014 = vsel %vm2350, %v4007, 0.0
        %4015 = vadd.xlane.f32.xlu0 %v4014
        %v4016 = vpop.xlane.xlu0 %4015
        %v4017 = vsel %vm2350, %v4009, 0.0
        %4018 = vadd.xlane.f32.xlu0 %v4017
        %v4019 = vpop.xlane.xlu0 %4018
        %v4020 = vsel %vm2350, %v4011, 0.0
        %4021 = vadd.xlane.f32.xlu0 %v4020
        %v4022 = vpop.xlane.xlu0 %4021
        %v4023 = vsel %vm2350, %v4013, 0.0
        %4024 = vadd.xlane.f32.xlu0 %v4023
        %v4025 = vpop.xlane.xlu0 %4024
        %v4026 = vrcp.pop %v4016
        %v4027 = vrcp.pop %v4019
        %v4028 = vrcp.pop %v4022
        %v4029 = vrcp.pop %v4025
        %v4030 = vmul.f32 %v4007, %v4026
        %v4031 = vmul.f32 %v4009, %v4027
        %v4032 = vmul.f32 %v4011, %v4028
        %v4033 = vmul.f32 %v4013, %v4029
        %4034 = vrot.lane.b32.xlu0 %v2149, 112
        %v4035 = vpop.permute.xlu0 %4034
        %v4038 = vsel %vm2350, %v4030, 0
        %v4041 = vsel %vm2350, %v4031, 0
        %4043 = vmatprep.subr.mxu0 0.0
        %4044 = vmatpush1.msra.mxu0 %v4035
        %4045 = vmatprep.subr.mxu0 0.0
        %4046 = vmatpush1.msra.mxu0 0.0
        %4047 = vmatprep.subr.mxu0 0.0
        %4048 = vmatpush1.msra.mxu0 0.0
        %4049 = vmatprep.subr.mxu0 0.0
        %4050 = vmatpush1.msra.mxu0 0.0
        %4051 = vmatprep.subr.mxu0 0.0
        %4052 = vmatpush1.msra.mxu0 0.0
        %4053 = vmatprep.subr.mxu0 0.0
        %4054 = vmatpush1.msra.mxu0 0.0
        %4055 = vmatprep.subr.mxu0 0.0
        %4056 = vmatpush1.msra.mxu0 0.0
        %4057 = vmatprep.subr.mxu0 0.0
        %4058 = vmatpush1.msra.mxu0 0.0
        %4059 = vmatprep.subr.mxu0 0.0
        %4060 = vmatpush1.msra.mxu0 0.0
        %4061 = vmatprep.subr.mxu0 0.0
        %4062 = vmatpush1.msra.mxu0 0.0
        %4063 = vmatprep.subr.mxu0 0.0
        %4064 = vmatpush1.msra.mxu0 0.0
        %4065 = vmatprep.subr.mxu0 0.0
        %4066 = vmatpush1.msra.mxu0 0.0
        %4067 = vmatprep.subr.mxu0 0.0
        %4068 = vmatpush1.msra.mxu0 0.0
        %4069 = vmatprep.subr.mxu0 0.0
        %4070 = vmatpush1.msra.mxu0 0.0
        %4071 = vmatprep.subr.mxu0 0.0
        %4072 = vmatpush1.msra.mxu0 0.0
        %4073 = vmatprep.subr.mxu0 0.0
        %4074 = vmatpush1.msra.mxu0 0.0
        %4075 = vmatprep.subr.mxu0 0.0
        %4076 = vmatpush1.msra.mxu0 0.0
        %4077 = vmatprep.subr.mxu0 0.0
        %4078 = vmatpush1.msra.mxu0 0.0
        %4079 = vmatprep.subr.mxu0 0.0
        %4080 = vmatpush1.msra.mxu0 0.0
        %4081 = vmatprep.subr.mxu0 0.0
        %4082 = vmatpush1.msra.mxu0 0.0
        %4083 = vmatprep.subr.mxu0 0.0
        %4084 = vmatpush1.msra.mxu0 0.0
        %4085 = vmatprep.subr.mxu0 0.0
        %4086 = vmatpush1.msra.mxu0 0.0
        %4087 = vmatprep.subr.mxu0 0.0
        %4088 = vmatpush1.msra.mxu0 0.0
        %4089 = vmatprep.subr.mxu0 0.0
        %4090 = vmatpush1.msra.mxu0 0.0
        %4091 = vmatprep.subr.mxu0 0.0
        %4092 = vmatpush1.msra.mxu0 0.0
        %4093 = vmatprep.subr.mxu0 0.0
        %4094 = vmatpush1.msra.mxu0 0.0
        %4095 = vmatprep.subr.mxu0 0.0
        %4096 = vmatpush1.msra.mxu0 0.0
        %4097 = vmatprep.subr.mxu0 0.0
        %4098 = vmatpush1.msra.mxu0 0.0
        %4099 = vmatprep.subr.mxu0 0.0
        %4100 = vmatpush1.msra.mxu0 0.0
        %4101 = vmatprep.subr.mxu0 0.0
        %4102 = vmatpush1.msra.mxu0 0.0
        %4103 = vmatprep.subr.mxu0 0.0
        %4104 = vmatpush1.msra.mxu0 0.0
        %4105 = vmatprep.subr.mxu0 0.0
        %4106 = vmatpush1.msra.mxu0 0.0
        %4107 = vmatprep.mubr.f32.mxu0 0.0
        %4108 = vmatmul.mubr.f32.gmra.mrb[0].mxu0 %v4038
        %v4109 = vpop.f32.mrb[0].mxu0
        %v4110 = vadd.f32 0.0, %v4109
        %v4111 = vpop.f32.mrb[0].mxu0
        %4112 = vmatprep.mubr.f32.mxu0 0.0
        %4113 = vmatmul.mubr.f32.gmra.mrb[0].mxu0 %v4041
        %v4114 = vpop.f32.mrb[0].mxu0
        %v4115 = vadd.f32 0.0, %v4114
        %v4116 = vpop.f32.mrb[0].mxu0
        %4117 = vdwg.mxu0
        %4118 = vrot.lane.b32.xlu0 %v2154, 112
        %v4119 = vpop.permute.xlu0 %4118
        %v4122 = vsel %vm2350, %v4032, 0
        %v4125 = vsel %vm2350, %v4033, 0
        %4127 = vmatprep.subr.mxu0 0.0
        %4128 = vmatpush1.msra.mxu0 %v4119
        %4129 = vmatprep.subr.mxu0 0.0
        %4130 = vmatpush1.msra.mxu0 0.0
        %4131 = vmatprep.subr.mxu0 0.0
        %4132 = vmatpush1.msra.mxu0 0.0
        %4133 = vmatprep.subr.mxu0 0.0
        %4134 = vmatpush1.msra.mxu0 0.0
        %4135 = vmatprep.subr.mxu0 0.0
        %4136 = vmatpush1.msra.mxu0 0.0
        %4137 = vmatprep.subr.mxu0 0.0
        %4138 = vmatpush1.msra.mxu0 0.0
        %4139 = vmatprep.subr.mxu0 0.0
        %4140 = vmatpush1.msra.mxu0 0.0
        %4141 = vmatprep.subr.mxu0 0.0
        %4142 = vmatpush1.msra.mxu0 0.0
        %4143 = vmatprep.subr.mxu0 0.0
        %4144 = vmatpush1.msra.mxu0 0.0
        %4145 = vmatprep.subr.mxu0 0.0
        %4146 = vmatpush1.msra.mxu0 0.0
        %4147 = vmatprep.subr.mxu0 0.0
        %4148 = vmatpush1.msra.mxu0 0.0
        %4149 = vmatprep.subr.mxu0 0.0
        %4150 = vmatpush1.msra.mxu0 0.0
        %4151 = vmatprep.subr.mxu0 0.0
        %4152 = vmatpush1.msra.mxu0 0.0
        %4153 = vmatprep.subr.mxu0 0.0
        %4154 = vmatpush1.msra.mxu0 0.0
        %4155 = vmatprep.subr.mxu0 0.0
        %4156 = vmatpush1.msra.mxu0 0.0
        %4157 = vmatprep.subr.mxu0 0.0
        %4158 = vmatpush1.msra.mxu0 0.0
        %4159 = vmatprep.subr.mxu0 0.0
        %4160 = vmatpush1.msra.mxu0 0.0
        %4161 = vmatprep.subr.mxu0 0.0
        %4162 = vmatpush1.msra.mxu0 0.0
        %4163 = vmatprep.subr.mxu0 0.0
        %4164 = vmatpush1.msra.mxu0 0.0
        %4165 = vmatprep.subr.mxu0 0.0
        %4166 = vmatpush1.msra.mxu0 0.0
        %4167 = vmatprep.subr.mxu0 0.0
        %4168 = vmatpush1.msra.mxu0 0.0
        %4169 = vmatprep.subr.mxu0 0.0
        %4170 = vmatpush1.msra.mxu0 0.0
        %4171 = vmatprep.subr.mxu0 0.0
        %4172 = vmatpush1.msra.mxu0 0.0
        %4173 = vmatprep.subr.mxu0 0.0
        %4174 = vmatpush1.msra.mxu0 0.0
        %4175 = vmatprep.subr.mxu0 0.0
        %4176 = vmatpush1.msra.mxu0 0.0
        %4177 = vmatprep.subr.mxu0 0.0
        %4178 = vmatpush1.msra.mxu0 0.0
        %4179 = vmatprep.subr.mxu0 0.0
        %4180 = vmatpush1.msra.mxu0 0.0
        %4181 = vmatprep.subr.mxu0 0.0
        %4182 = vmatpush1.msra.mxu0 0.0
        %4183 = vmatprep.subr.mxu0 0.0
        %4184 = vmatpush1.msra.mxu0 0.0
        %4185 = vmatprep.subr.mxu0 0.0
        %4186 = vmatpush1.msra.mxu0 0.0
        %4187 = vmatprep.subr.mxu0 0.0
        %4188 = vmatpush1.msra.mxu0 0.0
        %4189 = vmatprep.subr.mxu0 0.0
        %4190 = vmatpush1.msra.mxu0 0.0
        %4191 = vmatprep.mubr.f32.mxu0 0.0
        %4192 = vmatmul.mubr.f32.gmra.mrb[0].mxu0 %v4122
        %v4193 = vpop.f32.mrb[0].mxu0
        %v4194 = vadd.f32 0.0, %v4193
        %v4195 = vpop.f32.mrb[0].mxu0
        %4196 = vmatprep.mubr.f32.mxu0 0.0
        %4197 = vmatmul.mubr.f32.gmra.mrb[0].mxu0 %v4125
        %v4198 = vpop.f32.mrb[0].mxu0
        %v4199 = vadd.f32 0.0, %v4198
        %v4200 = vpop.f32.mrb[0].mxu0
        %4201 = vdwg.mxu0
        %4206 = vrot.lane.b32.xlu0 %v4110, 16
        %v4207 = vpop.permute.xlu0 %4206
        %4208 = vrot.lane.b32.xlu0 %v4115, 16
        %v4209 = vpop.permute.xlu0 %4208
        %4210 = vrot.lane.b32.xlu0 %v4194, 16
        %v4211 = vpop.permute.xlu0 %4210
        %4212 = vrot.lane.b32.xlu0 %v4199, 16
        %v4213 = vpop.permute.xlu0 %4212
        %vm4218 = vcmask 162944
        %4219 = vst.msk [vmem:[#allocation3] sm:$0xff] %vm4218, %v4207
        %4220 = vst.msk [vmem:[#allocation3 + $0x8] sm:$0xff] %vm4218, %v4209
        %4221 = vst.msk [vmem:[#allocation3 + $0x10] sm:$0xff] %vm4218, %v4211
        %4222 = vst.msk [vmem:[#allocation3 + $0x18] sm:$0xff] %vm4218, %v4213
        %4223 = vrot.lane.b32.xlu0 %v1961, 108
        %v4224 = vpop.permute.xlu0 %4223
        %4225 = vrot.lane.b32.xlu0 %v1966, 108
        %v4226 = vpop.permute.xlu0 %4225
        %4227 = vrot.lane.b32.xlu0 %v2063, 108
        %v4228 = vpop.permute.xlu0 %4227
        %v4229 = vsel %vm2161, %v4224, 0
        %v4231 = vsel %vm2161, %v4226, 0
        %v4233 = vsel %vm2161, %v4228, 0
        %4235 = vmatprep.subr.mxu0 0.0
        %4236 = vmatpush1.xpose.msra.mxu0 %v4233
        %4237 = vmatprep.subr.mxu0 0.0
        %4238 = vmatpush1.xpose.msra.mxu0 0.0
        %4239 = vmatprep.subr.mxu0 0.0
        %4240 = vmatpush1.xpose.msra.mxu0 0.0
        %4241 = vmatprep.subr.mxu0 0.0
        %4242 = vmatpush1.xpose.msra.mxu0 0.0
        %4243 = vmatprep.subr.mxu0 0.0
        %4244 = vmatpush1.xpose.msra.mxu0 0.0
        %4245 = vmatprep.subr.mxu0 0.0
        %4246 = vmatpush1.xpose.msra.mxu0 0.0
        %4247 = vmatprep.subr.mxu0 0.0
        %4248 = vmatpush1.xpose.msra.mxu0 0.0
        %4249 = vmatprep.subr.mxu0 0.0
        %4250 = vmatpush1.xpose.msra.mxu0 0.0
        %4251 = vmatprep.subr.mxu0 0.0
        %4252 = vmatpush1.xpose.msra.mxu0 0.0
        %4253 = vmatprep.subr.mxu0 0.0
        %4254 = vmatpush1.xpose.msra.mxu0 0.0
        %4255 = vmatprep.subr.mxu0 0.0
        %4256 = vmatpush1.xpose.msra.mxu0 0.0
        %4257 = vmatprep.subr.mxu0 0.0
        %4258 = vmatpush1.xpose.msra.mxu0 0.0
        %4259 = vmatprep.subr.mxu0 0.0
        %4260 = vmatpush1.xpose.msra.mxu0 0.0
        %4261 = vmatprep.subr.mxu0 0.0
        %4262 = vmatpush1.xpose.msra.mxu0 0.0
        %4263 = vmatprep.subr.mxu0 0.0
        %4264 = vmatpush1.xpose.msra.mxu0 0.0
        %4265 = vmatprep.subr.mxu0 0.0
        %4266 = vmatpush1.xpose.msra.mxu0 0.0
        %4267 = vmatprep.subr.mxu0 0.0
        %4268 = vmatpush1.xpose.msra.mxu0 0.0
        %4269 = vmatprep.subr.mxu0 0.0
        %4270 = vmatpush1.xpose.msra.mxu0 0.0
        %4271 = vmatprep.subr.mxu0 0.0
        %4272 = vmatpush1.xpose.msra.mxu0 0.0
        %4273 = vmatprep.subr.mxu0 0.0
        %4274 = vmatpush1.xpose.msra.mxu0 0.0
        %4275 = vmatprep.subr.mxu0 0.0
        %4276 = vmatpush1.xpose.msra.mxu0 0.0
        %4277 = vmatprep.subr.mxu0 0.0
        %4278 = vmatpush1.xpose.msra.mxu0 0.0
        %4279 = vmatprep.subr.mxu0 0.0
        %4280 = vmatpush1.xpose.msra.mxu0 0.0
        %4281 = vmatprep.subr.mxu0 0.0
        %4282 = vmatpush1.xpose.msra.mxu0 0.0
        %4283 = vmatprep.subr.mxu0 0.0
        %4284 = vmatpush1.xpose.msra.mxu0 0.0
        %4285 = vmatprep.subr.mxu0 0.0
        %4286 = vmatpush1.xpose.msra.mxu0 0.0
        %4287 = vmatprep.subr.mxu0 0.0
        %4288 = vmatpush1.xpose.msra.mxu0 0.0
        %4289 = vmatprep.subr.mxu0 0.0
        %4290 = vmatpush1.xpose.msra.mxu0 0.0
        %4291 = vmatprep.subr.mxu0 0.0
        %4292 = vmatpush1.xpose.msra.mxu0 0.0
        %4293 = vmatprep.subr.mxu0 0.0
        %4294 = vmatpush1.xpose.msra.mxu0 0.0
        %4295 = vmatprep.subr.mxu0 0.0
        %4296 = vmatpush1.xpose.msra.mxu0 0.0
        %4297 = vmatprep.subr.mxu0 0.0
        %4298 = vmatpush1.xpose.msra.mxu0 0.0
        %4299 = vmatprep.mubr.f32.mxu0 0.0
        %4300 = vmatmul.mubr.f32.gmra.mrb[0].mxu0 %v4229
        %v4301 = vpop.f32.mrb[0].mxu0
        %v4302 = vadd.f32 0.0, %v4301
        %v4303 = vpop.f32.mrb[0].mxu0
        %4304 = vmatprep.mubr.f32.mxu0 0.0
        %4305 = vmatmul.mubr.f32.gmra.mrb[0].mxu0 %v4231
        %v4306 = vpop.f32.mrb[0].mxu0
        %v4307 = vadd.f32 0.0, %v4306
        %v4308 = vpop.f32.mrb[0].mxu0
        %4309 = vdwg.mxu0
        %4310 = vrot.lane.b32.xlu0 %v1971, 108
        %v4311 = vpop.permute.xlu0 %4310
        %4312 = vrot.lane.b32.xlu0 %v1976, 108
        %v4313 = vpop.permute.xlu0 %4312
        %4314 = vrot.lane.b32.xlu0 %v2068, 108
        %v4315 = vpop.permute.xlu0 %4314
        %v4316 = vsel %vm2161, %v4311, 0
        %v4318 = vsel %vm2161, %v4313, 0
        %v4320 = vsel %vm2161, %v4315, 0
        %4322 = vmatprep.subr.mxu0 0.0
        %4323 = vmatpush1.xpose.msra.mxu0 %v4320
        %4324 = vmatprep.subr.mxu0 0.0
        %4325 = vmatpush1.xpose.msra.mxu0 0.0
        %4326 = vmatprep.subr.mxu0 0.0
        %4327 = vmatpush1.xpose.msra.mxu0 0.0
        %4328 = vmatprep.subr.mxu0 0.0
        %4329 = vmatpush1.xpose.msra.mxu0 0.0
        %4330 = vmatprep.subr.mxu0 0.0
        %4331 = vmatpush1.xpose.msra.mxu0 0.0
        %4332 = vmatprep.subr.mxu0 0.0
        %4333 = vmatpush1.xpose.msra.mxu0 0.0
        %4334 = vmatprep.subr.mxu0 0.0
        %4335 = vmatpush1.xpose.msra.mxu0 0.0
        %4336 = vmatprep.subr.mxu0 0.0
        %4337 = vmatpush1.xpose.msra.mxu0 0.0
        %4338 = vmatprep.subr.mxu0 0.0
        %4339 = vmatpush1.xpose.msra.mxu0 0.0
        %4340 = vmatprep.subr.mxu0 0.0
        %4341 = vmatpush1.xpose.msra.mxu0 0.0
        %4342 = vmatprep.subr.mxu0 0.0
        %4343 = vmatpush1.xpose.msra.mxu0 0.0
        %4344 = vmatprep.subr.mxu0 0.0
        %4345 = vmatpush1.xpose.msra.mxu0 0.0
        %4346 = vmatprep.subr.mxu0 0.0
        %4347 = vmatpush1.xpose.msra.mxu0 0.0
        %4348 = vmatprep.subr.mxu0 0.0
        %4349 = vmatpush1.xpose.msra.mxu0 0.0
        %4350 = vmatprep.subr.mxu0 0.0
        %4351 = vmatpush1.xpose.msra.mxu0 0.0
        %4352 = vmatprep.subr.mxu0 0.0
        %4353 = vmatpush1.xpose.msra.mxu0 0.0
        %4354 = vmatprep.subr.mxu0 0.0
        %4355 = vmatpush1.xpose.msra.mxu0 0.0
        %4356 = vmatprep.subr.mxu0 0.0
        %4357 = vmatpush1.xpose.msra.mxu0 0.0
        %4358 = vmatprep.subr.mxu0 0.0
        %4359 = vmatpush1.xpose.msra.mxu0 0.0
        %4360 = vmatprep.subr.mxu0 0.0
        %4361 = vmatpush1.xpose.msra.mxu0 0.0
        %4362 = vmatprep.subr.mxu0 0.0
        %4363 = vmatpush1.xpose.msra.mxu0 0.0
        %4364 = vmatprep.subr.mxu0 0.0
        %4365 = vmatpush1.xpose.msra.mxu0 0.0
        %4366 = vmatprep.subr.mxu0 0.0
        %4367 = vmatpush1.xpose.msra.mxu0 0.0
        %4368 = vmatprep.subr.mxu0 0.0
        %4369 = vmatpush1.xpose.msra.mxu0 0.0
        %4370 = vmatprep.subr.mxu0 0.0
        %4371 = vmatpush1.xpose.msra.mxu0 0.0
        %4372 = vmatprep.subr.mxu0 0.0
        %4373 = vmatpush1.xpose.msra.mxu0 0.0
        %4374 = vmatprep.subr.mxu0 0.0
        %4375 = vmatpush1.xpose.msra.mxu0 0.0
        %4376 = vmatprep.subr.mxu0 0.0
        %4377 = vmatpush1.xpose.msra.mxu0 0.0
        %4378 = vmatprep.subr.mxu0 0.0
        %4379 = vmatpush1.xpose.msra.mxu0 0.0
        %4380 = vmatprep.subr.mxu0 0.0
        %4381 = vmatpush1.xpose.msra.mxu0 0.0
        %4382 = vmatprep.subr.mxu0 0.0
        %4383 = vmatpush1.xpose.msra.mxu0 0.0
        %4384 = vmatprep.subr.mxu0 0.0
        %4385 = vmatpush1.xpose.msra.mxu0 0.0
        %4386 = vmatprep.mubr.f32.mxu0 0.0
        %4387 = vmatmul.mubr.f32.gmra.mrb[0].mxu0 %v4316
        %v4388 = vpop.f32.mrb[0].mxu0
        %v4389 = vadd.f32 0.0, %v4388
        %v4390 = vpop.f32.mrb[0].mxu0
        %4391 = vmatprep.mubr.f32.mxu0 0.0
        %4392 = vmatmul.mubr.f32.gmra.mrb[0].mxu0 %v4318
        %v4393 = vpop.f32.mrb[0].mxu0
        %v4394 = vadd.f32 0.0, %v4393
        %v4395 = vpop.f32.mrb[0].mxu0
        %4396 = vdwg.mxu0
        %v4397 = vmul.f32 %v4302, 0.5
        %v4398 = vmul.f32 %v4307, 0.5
        %v4399 = vmul.f32 %v4389, 0.5
        %v4400 = vmul.f32 %v4394, 0.5
        %v4401 = vadd.f32 %v4397, %v2339
        %v4402 = vadd.f32 %v4398, %v2339
        %v4403 = vadd.f32 %v4399, %v2343
        %v4404 = vadd.f32 %v4400, %v2343
        %v4405 = vsel %vm2350, %v4401, -inf
        %4406 = vmax.xlane.f32.xlu0 %v4405
        %v4407 = vpop.xlane.xlu0 %4406
        %v4408 = vsel %vm2350, %v4402, -inf
        %4409 = vmax.xlane.f32.xlu0 %v4408
        %v4410 = vpop.xlane.xlu0 %4409
        %v4411 = vsel %vm2350, %v4403, -inf
        %4412 = vmax.xlane.f32.xlu0 %v4411
        %v4413 = vpop.xlane.xlu0 %4412
        %v4414 = vsel %vm2350, %v4404, -inf
        %4415 = vmax.xlane.f32.xlu0 %v4414
        %v4416 = vpop.xlane.xlu0 %4415
        %v4417 = vsub.f32 %v4401, %v4407
        %v4418 = vsub.f32 %v4402, %v4410
        %v4419 = vsub.f32 %v4403, %v4413
        %v4420 = vsub.f32 %v4404, %v4416
        %v4421 = vmul.f32 %v4417, 1.442695
        %v4422 = vpow.pop %v4421
        %v4423 = vmul.f32 %v4418, 1.442695
        %v4424 = vpow.pop %v4423
        %v4425 = vmul.f32 %v4419, 1.442695
        %v4426 = vpow.pop %v4425
        %v4427 = vmul.f32 %v4420, 1.442695
        %v4428 = vpow.pop %v4427
        %v4429 = vsel %vm2350, %v4422, 0.0
        %4430 = vadd.xlane.f32.xlu0 %v4429
        %v4431 = vpop.xlane.xlu0 %4430
        %v4432 = vsel %vm2350, %v4424, 0.0
        %4433 = vadd.xlane.f32.xlu0 %v4432
        %v4434 = vpop.xlane.xlu0 %4433
        %v4435 = vsel %vm2350, %v4426, 0.0
        %4436 = vadd.xlane.f32.xlu0 %v4435
        %v4437 = vpop.xlane.xlu0 %4436
        %v4438 = vsel %vm2350, %v4428, 0.0
        %4439 = vadd.xlane.f32.xlu0 %v4438
        %v4440 = vpop.xlane.xlu0 %4439
        %v4441 = vrcp.pop %v4431
        %v4442 = vrcp.pop %v4434
        %v4443 = vrcp.pop %v4437
        %v4444 = vrcp.pop %v4440
        %v4445 = vmul.f32 %v4422, %v4441
        %v4446 = vmul.f32 %v4424, %v4442
        %v4447 = vmul.f32 %v4426, %v4443
        %v4448 = vmul.f32 %v4428, %v4444
        %4449 = vrot.lane.b32.xlu0 %v2149, 108
        %v4450 = vpop.permute.xlu0 %4449
        %v4453 = vsel %vm2350, %v4445, 0
        %v4456 = vsel %vm2350, %v4446, 0
        %4458 = vmatprep.subr.mxu0 0.0
        %4459 = vmatpush1.msra.mxu0 %v4450
        %4460 = vmatprep.subr.mxu0 0.0
        %4461 = vmatpush1.msra.mxu0 0.0
        %4462 = vmatprep.subr.mxu0 0.0
        %4463 = vmatpush1.msra.mxu0 0.0
        %4464 = vmatprep.subr.mxu0 0.0
        %4465 = vmatpush1.msra.mxu0 0.0
        %4466 = vmatprep.subr.mxu0 0.0
        %4467 = vmatpush1.msra.mxu0 0.0
        %4468 = vmatprep.subr.mxu0 0.0
        %4469 = vmatpush1.msra.mxu0 0.0
        %4470 = vmatprep.subr.mxu0 0.0
        %4471 = vmatpush1.msra.mxu0 0.0
        %4472 = vmatprep.subr.mxu0 0.0
        %4473 = vmatpush1.msra.mxu0 0.0
        %4474 = vmatprep.subr.mxu0 0.0
        %4475 = vmatpush1.msra.mxu0 0.0
        %4476 = vmatprep.subr.mxu0 0.0
        %4477 = vmatpush1.msra.mxu0 0.0
        %4478 = vmatprep.subr.mxu0 0.0
        %4479 = vmatpush1.msra.mxu0 0.0
        %4480 = vmatprep.subr.mxu0 0.0
        %4481 = vmatpush1.msra.mxu0 0.0
        %4482 = vmatprep.subr.mxu0 0.0
        %4483 = vmatpush1.msra.mxu0 0.0
        %4484 = vmatprep.subr.mxu0 0.0
        %4485 = vmatpush1.msra.mxu0 0.0
        %4486 = vmatprep.subr.mxu0 0.0
        %4487 = vmatpush1.msra.mxu0 0.0
        %4488 = vmatprep.subr.mxu0 0.0
        %4489 = vmatpush1.msra.mxu0 0.0
        %4490 = vmatprep.subr.mxu0 0.0
        %4491 = vmatpush1.msra.mxu0 0.0
        %4492 = vmatprep.subr.mxu0 0.0
        %4493 = vmatpush1.msra.mxu0 0.0
        %4494 = vmatprep.subr.mxu0 0.0
        %4495 = vmatpush1.msra.mxu0 0.0
        %4496 = vmatprep.subr.mxu0 0.0
        %4497 = vmatpush1.msra.mxu0 0.0
        %4498 = vmatprep.subr.mxu0 0.0
        %4499 = vmatpush1.msra.mxu0 0.0
        %4500 = vmatprep.subr.mxu0 0.0
        %4501 = vmatpush1.msra.mxu0 0.0
        %4502 = vmatprep.subr.mxu0 0.0
        %4503 = vmatpush1.msra.mxu0 0.0
        %4504 = vmatprep.subr.mxu0 0.0
        %4505 = vmatpush1.msra.mxu0 0.0
        %4506 = vmatprep.subr.mxu0 0.0
        %4507 = vmatpush1.msra.mxu0 0.0
        %4508 = vmatprep.subr.mxu0 0.0
        %4509 = vmatpush1.msra.mxu0 0.0
        %4510 = vmatprep.subr.mxu0 0.0
        %4511 = vmatpush1.msra.mxu0 0.0
        %4512 = vmatprep.subr.mxu0 0.0
        %4513 = vmatpush1.msra.mxu0 0.0
        %4514 = vmatprep.subr.mxu0 0.0
        %4515 = vmatpush1.msra.mxu0 0.0
        %4516 = vmatprep.subr.mxu0 0.0
        %4517 = vmatpush1.msra.mxu0 0.0
        %4518 = vmatprep.subr.mxu0 0.0
        %4519 = vmatpush1.msra.mxu0 0.0
        %4520 = vmatprep.subr.mxu0 0.0
        %4521 = vmatpush1.msra.mxu0 0.0
        %4522 = vmatprep.mubr.f32.mxu0 0.0
        %4523 = vmatmul.mubr.f32.gmra.mrb[0].mxu0 %v4453
        %v4524 = vpop.f32.mrb[0].mxu0
        %v4525 = vadd.f32 0.0, %v4524
        %v4526 = vpop.f32.mrb[0].mxu0
        %4527 = vmatprep.mubr.f32.mxu0 0.0
        %4528 = vmatmul.mubr.f32.gmra.mrb[0].mxu0 %v4456
        %v4529 = vpop.f32.mrb[0].mxu0
        %v4530 = vadd.f32 0.0, %v4529
        %v4531 = vpop.f32.mrb[0].mxu0
        %4532 = vdwg.mxu0
        %4533 = vrot.lane.b32.xlu0 %v2154, 108
        %v4534 = vpop.permute.xlu0 %4533
        %v4537 = vsel %vm2350, %v4447, 0
        %v4540 = vsel %vm2350, %v4448, 0
        %4542 = vmatprep.subr.mxu0 0.0
        %4543 = vmatpush1.msra.mxu0 %v4534
        %4544 = vmatprep.subr.mxu0 0.0
        %4545 = vmatpush1.msra.mxu0 0.0
        %4546 = vmatprep.subr.mxu0 0.0
        %4547 = vmatpush1.msra.mxu0 0.0
        %4548 = vmatprep.subr.mxu0 0.0
        %4549 = vmatpush1.msra.mxu0 0.0
        %4550 = vmatprep.subr.mxu0 0.0
        %4551 = vmatpush1.msra.mxu0 0.0
        %4552 = vmatprep.subr.mxu0 0.0
        %4553 = vmatpush1.msra.mxu0 0.0
        %4554 = vmatprep.subr.mxu0 0.0
        %4555 = vmatpush1.msra.mxu0 0.0
        %4556 = vmatprep.subr.mxu0 0.0
        %4557 = vmatpush1.msra.mxu0 0.0
        %4558 = vmatprep.subr.mxu0 0.0
        %4559 = vmatpush1.msra.mxu0 0.0
        %4560 = vmatprep.subr.mxu0 0.0
        %4561 = vmatpush1.msra.mxu0 0.0
        %4562 = vmatprep.subr.mxu0 0.0
        %4563 = vmatpush1.msra.mxu0 0.0
        %4564 = vmatprep.subr.mxu0 0.0
        %4565 = vmatpush1.msra.mxu0 0.0
        %4566 = vmatprep.subr.mxu0 0.0
        %4567 = vmatpush1.msra.mxu0 0.0
        %4568 = vmatprep.subr.mxu0 0.0
        %4569 = vmatpush1.msra.mxu0 0.0
        %4570 = vmatprep.subr.mxu0 0.0
        %4571 = vmatpush1.msra.mxu0 0.0
        %4572 = vmatprep.subr.mxu0 0.0
        %4573 = vmatpush1.msra.mxu0 0.0
        %4574 = vmatprep.subr.mxu0 0.0
        %4575 = vmatpush1.msra.mxu0 0.0
        %4576 = vmatprep.subr.mxu0 0.0
        %4577 = vmatpush1.msra.mxu0 0.0
        %4578 = vmatprep.subr.mxu0 0.0
        %4579 = vmatpush1.msra.mxu0 0.0
        %4580 = vmatprep.subr.mxu0 0.0
        %4581 = vmatpush1.msra.mxu0 0.0
        %4582 = vmatprep.subr.mxu0 0.0
        %4583 = vmatpush1.msra.mxu0 0.0
        %4584 = vmatprep.subr.mxu0 0.0
        %4585 = vmatpush1.msra.mxu0 0.0
        %4586 = vmatprep.subr.mxu0 0.0
        %4587 = vmatpush1.msra.mxu0 0.0
        %4588 = vmatprep.subr.mxu0 0.0
        %4589 = vmatpush1.msra.mxu0 0.0
        %4590 = vmatprep.subr.mxu0 0.0
        %4591 = vmatpush1.msra.mxu0 0.0
        %4592 = vmatprep.subr.mxu0 0.0
        %4593 = vmatpush1.msra.mxu0 0.0
        %4594 = vmatprep.subr.mxu0 0.0
        %4595 = vmatpush1.msra.mxu0 0.0
        %4596 = vmatprep.subr.mxu0 0.0
        %4597 = vmatpush1.msra.mxu0 0.0
        %4598 = vmatprep.subr.mxu0 0.0
        %4599 = vmatpush1.msra.mxu0 0.0
        %4600 = vmatprep.subr.mxu0 0.0
        %4601 = vmatpush1.msra.mxu0 0.0
        %4602 = vmatprep.subr.mxu0 0.0
        %4603 = vmatpush1.msra.mxu0 0.0
        %4604 = vmatprep.subr.mxu0 0.0
        %4605 = vmatpush1.msra.mxu0 0.0
        %4606 = vmatprep.mubr.f32.mxu0 0.0
        %4607 = vmatmul.mubr.f32.gmra.mrb[0].mxu0 %v4537
        %v4608 = vpop.f32.mrb[0].mxu0
        %v4609 = vadd.f32 0.0, %v4608
        %v4610 = vpop.f32.mrb[0].mxu0
        %4611 = vmatprep.mubr.f32.mxu0 0.0
        %4612 = vmatmul.mubr.f32.gmra.mrb[0].mxu0 %v4540
        %v4613 = vpop.f32.mrb[0].mxu0
        %v4614 = vadd.f32 0.0, %v4613
        %v4615 = vpop.f32.mrb[0].mxu0
        %4616 = vdwg.mxu0
        %4621 = vrot.lane.b32.xlu0 %v4525, 20
        %v4622 = vpop.permute.xlu0 %4621
        %4623 = vrot.lane.b32.xlu0 %v4530, 20
        %v4624 = vpop.permute.xlu0 %4623
        %4625 = vrot.lane.b32.xlu0 %v4609, 20
        %v4626 = vpop.permute.xlu0 %4625
        %4627 = vrot.lane.b32.xlu0 %v4614, 20
        %v4628 = vpop.permute.xlu0 %4627
        %vm4633 = vcmask 195744
        %4634 = vst.msk [vmem:[#allocation3] sm:$0xff] %vm4633, %v4622
        %4635 = vst.msk [vmem:[#allocation3 + $0x8] sm:$0xff] %vm4633, %v4624
        %4636 = vst.msk [vmem:[#allocation3 + $0x10] sm:$0xff] %vm4633, %v4626
        %4637 = vst.msk [vmem:[#allocation3 + $0x18] sm:$0xff] %vm4633, %v4628
        %4638 = vrot.lane.b32.xlu0 %v1961, 104
        %v4639 = vpop.permute.xlu0 %4638
        %4640 = vrot.lane.b32.xlu0 %v1966, 104
        %v4641 = vpop.permute.xlu0 %4640
        %4642 = vrot.lane.b32.xlu0 %v2063, 104
        %v4643 = vpop.permute.xlu0 %4642
        %v4644 = vsel %vm2161, %v4639, 0
        %v4646 = vsel %vm2161, %v4641, 0
        %v4648 = vsel %vm2161, %v4643, 0
        %4650 = vmatprep.subr.mxu0 0.0
        %4651 = vmatpush1.xpose.msra.mxu0 %v4648
        %4652 = vmatprep.subr.mxu0 0.0
        %4653 = vmatpush1.xpose.msra.mxu0 0.0
        %4654 = vmatprep.subr.mxu0 0.0
        %4655 = vmatpush1.xpose.msra.mxu0 0.0
        %4656 = vmatprep.subr.mxu0 0.0
        %4657 = vmatpush1.xpose.msra.mxu0 0.0
        %4658 = vmatprep.subr.mxu0 0.0
        %4659 = vmatpush1.xpose.msra.mxu0 0.0
        %4660 = vmatprep.subr.mxu0 0.0
        %4661 = vmatpush1.xpose.msra.mxu0 0.0
        %4662 = vmatprep.subr.mxu0 0.0
        %4663 = vmatpush1.xpose.msra.mxu0 0.0
        %4664 = vmatprep.subr.mxu0 0.0
        %4665 = vmatpush1.xpose.msra.mxu0 0.0
        %4666 = vmatprep.subr.mxu0 0.0
        %4667 = vmatpush1.xpose.msra.mxu0 0.0
        %4668 = vmatprep.subr.mxu0 0.0
        %4669 = vmatpush1.xpose.msra.mxu0 0.0
        %4670 = vmatprep.subr.mxu0 0.0
        %4671 = vmatpush1.xpose.msra.mxu0 0.0
        %4672 = vmatprep.subr.mxu0 0.0
        %4673 = vmatpush1.xpose.msra.mxu0 0.0
        %4674 = vmatprep.subr.mxu0 0.0
        %4675 = vmatpush1.xpose.msra.mxu0 0.0
        %4676 = vmatprep.subr.mxu0 0.0
        %4677 = vmatpush1.xpose.msra.mxu0 0.0
        %4678 = vmatprep.subr.mxu0 0.0
        %4679 = vmatpush1.xpose.msra.mxu0 0.0
        %4680 = vmatprep.subr.mxu0 0.0
        %4681 = vmatpush1.xpose.msra.mxu0 0.0
        %4682 = vmatprep.subr.mxu0 0.0
        %4683 = vmatpush1.xpose.msra.mxu0 0.0
        %4684 = vmatprep.subr.mxu0 0.0
        %4685 = vmatpush1.xpose.msra.mxu0 0.0
        %4686 = vmatprep.subr.mxu0 0.0
        %4687 = vmatpush1.xpose.msra.mxu0 0.0
        %4688 = vmatprep.subr.mxu0 0.0
        %4689 = vmatpush1.xpose.msra.mxu0 0.0
        %4690 = vmatprep.subr.mxu0 0.0
        %4691 = vmatpush1.xpose.msra.mxu0 0.0
        %4692 = vmatprep.subr.mxu0 0.0
        %4693 = vmatpush1.xpose.msra.mxu0 0.0
        %4694 = vmatprep.subr.mxu0 0.0
        %4695 = vmatpush1.xpose.msra.mxu0 0.0
        %4696 = vmatprep.subr.mxu0 0.0
        %4697 = vmatpush1.xpose.msra.mxu0 0.0
        %4698 = vmatprep.subr.mxu0 0.0
        %4699 = vmatpush1.xpose.msra.mxu0 0.0
        %4700 = vmatprep.subr.mxu0 0.0
        %4701 = vmatpush1.xpose.msra.mxu0 0.0
        %4702 = vmatprep.subr.mxu0 0.0
        %4703 = vmatpush1.xpose.msra.mxu0 0.0
        %4704 = vmatprep.subr.mxu0 0.0
        %4705 = vmatpush1.xpose.msra.mxu0 0.0
        %4706 = vmatprep.subr.mxu0 0.0
        %4707 = vmatpush1.xpose.msra.mxu0 0.0
        %4708 = vmatprep.subr.mxu0 0.0
        %4709 = vmatpush1.xpose.msra.mxu0 0.0
        %4710 = vmatprep.subr.mxu0 0.0
        %4711 = vmatpush1.xpose.msra.mxu0 0.0
        %4712 = vmatprep.subr.mxu0 0.0
        %4713 = vmatpush1.xpose.msra.mxu0 0.0
        %4714 = vmatprep.mubr.f32.mxu0 0.0
        %4715 = vmatmul.mubr.f32.gmra.mrb[0].mxu0 %v4644
        %v4716 = vpop.f32.mrb[0].mxu0
        %v4717 = vadd.f32 0.0, %v4716
        %v4718 = vpop.f32.mrb[0].mxu0
        %4719 = vmatprep.mubr.f32.mxu0 0.0
        %4720 = vmatmul.mubr.f32.gmra.mrb[0].mxu0 %v4646
        %v4721 = vpop.f32.mrb[0].mxu0
        %v4722 = vadd.f32 0.0, %v4721
        %v4723 = vpop.f32.mrb[0].mxu0
        %4724 = vdwg.mxu0
        %4725 = vrot.lane.b32.xlu0 %v1971, 104
        %v4726 = vpop.permute.xlu0 %4725
        %4727 = vrot.lane.b32.xlu0 %v1976, 104
        %v4728 = vpop.permute.xlu0 %4727
        %4729 = vrot.lane.b32.xlu0 %v2068, 104
        %v4730 = vpop.permute.xlu0 %4729
        %v4731 = vsel %vm2161, %v4726, 0
        %v4733 = vsel %vm2161, %v4728, 0
        %v4735 = vsel %vm2161, %v4730, 0
        %4737 = vmatprep.subr.mxu0 0.0
        %4738 = vmatpush1.xpose.msra.mxu0 %v4735
        %4739 = vmatprep.subr.mxu0 0.0
        %4740 = vmatpush1.xpose.msra.mxu0 0.0
        %4741 = vmatprep.subr.mxu0 0.0
        %4742 = vmatpush1.xpose.msra.mxu0 0.0
        %4743 = vmatprep.subr.mxu0 0.0
        %4744 = vmatpush1.xpose.msra.mxu0 0.0
        %4745 = vmatprep.subr.mxu0 0.0
        %4746 = vmatpush1.xpose.msra.mxu0 0.0
        %4747 = vmatprep.subr.mxu0 0.0
        %4748 = vmatpush1.xpose.msra.mxu0 0.0
        %4749 = vmatprep.subr.mxu0 0.0
        %4750 = vmatpush1.xpose.msra.mxu0 0.0
        %4751 = vmatprep.subr.mxu0 0.0
        %4752 = vmatpush1.xpose.msra.mxu0 0.0
        %4753 = vmatprep.subr.mxu0 0.0
        %4754 = vmatpush1.xpose.msra.mxu0 0.0
        %4755 = vmatprep.subr.mxu0 0.0
        %4756 = vmatpush1.xpose.msra.mxu0 0.0
        %4757 = vmatprep.subr.mxu0 0.0
        %4758 = vmatpush1.xpose.msra.mxu0 0.0
        %4759 = vmatprep.subr.mxu0 0.0
        %4760 = vmatpush1.xpose.msra.mxu0 0.0
        %4761 = vmatprep.subr.mxu0 0.0
        %4762 = vmatpush1.xpose.msra.mxu0 0.0
        %4763 = vmatprep.subr.mxu0 0.0
        %4764 = vmatpush1.xpose.msra.mxu0 0.0
        %4765 = vmatprep.subr.mxu0 0.0
        %4766 = vmatpush1.xpose.msra.mxu0 0.0
        %4767 = vmatprep.subr.mxu0 0.0
        %4768 = vmatpush1.xpose.msra.mxu0 0.0
        %4769 = vmatprep.subr.mxu0 0.0
        %4770 = vmatpush1.xpose.msra.mxu0 0.0
        %4771 = vmatprep.subr.mxu0 0.0
        %4772 = vmatpush1.xpose.msra.mxu0 0.0
        %4773 = vmatprep.subr.mxu0 0.0
        %4774 = vmatpush1.xpose.msra.mxu0 0.0
        %4775 = vmatprep.subr.mxu0 0.0
        %4776 = vmatpush1.xpose.msra.mxu0 0.0
        %4777 = vmatprep.subr.mxu0 0.0
        %4778 = vmatpush1.xpose.msra.mxu0 0.0
        %4779 = vmatprep.subr.mxu0 0.0
        %4780 = vmatpush1.xpose.msra.mxu0 0.0
        %4781 = vmatprep.subr.mxu0 0.0
        %4782 = vmatpush1.xpose.msra.mxu0 0.0
        %4783 = vmatprep.subr.mxu0 0.0
        %4784 = vmatpush1.xpose.msra.mxu0 0.0
        %4785 = vmatprep.subr.mxu0 0.0
        %4786 = vmatpush1.xpose.msra.mxu0 0.0
        %4787 = vmatprep.subr.mxu0 0.0
        %4788 = vmatpush1.xpose.msra.mxu0 0.0
        %4789 = vmatprep.subr.mxu0 0.0
        %4790 = vmatpush1.xpose.msra.mxu0 0.0
        %4791 = vmatprep.subr.mxu0 0.0
        %4792 = vmatpush1.xpose.msra.mxu0 0.0
        %4793 = vmatprep.subr.mxu0 0.0
        %4794 = vmatpush1.xpose.msra.mxu0 0.0
        %4795 = vmatprep.subr.mxu0 0.0
        %4796 = vmatpush1.xpose.msra.mxu0 0.0
        %4797 = vmatprep.subr.mxu0 0.0
        %4798 = vmatpush1.xpose.msra.mxu0 0.0
        %4799 = vmatprep.subr.mxu0 0.0
        %4800 = vmatpush1.xpose.msra.mxu0 0.0
        %4801 = vmatprep.mubr.f32.mxu0 0.0
        %4802 = vmatmul.mubr.f32.gmra.mrb[0].mxu0 %v4731
        %v4803 = vpop.f32.mrb[0].mxu0
        %v4804 = vadd.f32 0.0, %v4803
        %v4805 = vpop.f32.mrb[0].mxu0
        %4806 = vmatprep.mubr.f32.mxu0 0.0
        %4807 = vmatmul.mubr.f32.gmra.mrb[0].mxu0 %v4733
        %v4808 = vpop.f32.mrb[0].mxu0
        %v4809 = vadd.f32 0.0, %v4808
        %v4810 = vpop.f32.mrb[0].mxu0
        %4811 = vdwg.mxu0
        %v4812 = vmul.f32 %v4717, 0.5
        %v4813 = vmul.f32 %v4722, 0.5
        %v4814 = vmul.f32 %v4804, 0.5
        %v4815 = vmul.f32 %v4809, 0.5
        %v4816 = vadd.f32 %v4812, %v2339
        %v4817 = vadd.f32 %v4813, %v2339
        %v4818 = vadd.f32 %v4814, %v2343
        %v4819 = vadd.f32 %v4815, %v2343
        %v4820 = vsel %vm2350, %v4816, -inf
        %4821 = vmax.xlane.f32.xlu0 %v4820
        %v4822 = vpop.xlane.xlu0 %4821
        %v4823 = vsel %vm2350, %v4817, -inf
        %4824 = vmax.xlane.f32.xlu0 %v4823
        %v4825 = vpop.xlane.xlu0 %4824
        %v4826 = vsel %vm2350, %v4818, -inf
        %4827 = vmax.xlane.f32.xlu0 %v4826
        %v4828 = vpop.xlane.xlu0 %4827
        %v4829 = vsel %vm2350, %v4819, -inf
        %4830 = vmax.xlane.f32.xlu0 %v4829
        %v4831 = vpop.xlane.xlu0 %4830
        %v4832 = vsub.f32 %v4816, %v4822
        %v4833 = vsub.f32 %v4817, %v4825
        %v4834 = vsub.f32 %v4818, %v4828
        %v4835 = vsub.f32 %v4819, %v4831
        %v4836 = vmul.f32 %v4832, 1.442695
        %v4837 = vpow.pop %v4836
        %v4838 = vmul.f32 %v4833, 1.442695
        %v4839 = vpow.pop %v4838
        %v4840 = vmul.f32 %v4834, 1.442695
        %v4841 = vpow.pop %v4840
        %v4842 = vmul.f32 %v4835, 1.442695
        %v4843 = vpow.pop %v4842
        %v4844 = vsel %vm2350, %v4837, 0.0
        %4845 = vadd.xlane.f32.xlu0 %v4844
        %v4846 = vpop.xlane.xlu0 %4845
        %v4847 = vsel %vm2350, %v4839, 0.0
        %4848 = vadd.xlane.f32.xlu0 %v4847
        %v4849 = vpop.xlane.xlu0 %4848
        %v4850 = vsel %vm2350, %v4841, 0.0
        %4851 = vadd.xlane.f32.xlu0 %v4850
        %v4852 = vpop.xlane.xlu0 %4851
        %v4853 = vsel %vm2350, %v4843, 0.0
        %4854 = vadd.xlane.f32.xlu0 %v4853
        %v4855 = vpop.xlane.xlu0 %4854
        %v4856 = vrcp.pop %v4846
        %v4857 = vrcp.pop %v4849
        %v4858 = vrcp.pop %v4852
        %v4859 = vrcp.pop %v4855
        %v4860 = vmul.f32 %v4837, %v4856
        %v4861 = vmul.f32 %v4839, %v4857
        %v4862 = vmul.f32 %v4841, %v4858
        %v4863 = vmul.f32 %v4843, %v4859
        %4864 = vrot.lane.b32.xlu0 %v2149, 104
        %v4865 = vpop.permute.xlu0 %4864
        %v4868 = vsel %vm2350, %v4860, 0
        %v4871 = vsel %vm2350, %v4861, 0
        %4873 = vmatprep.subr.mxu0 0.0
        %4874 = vmatpush1.msra.mxu0 %v4865
        %4875 = vmatprep.subr.mxu0 0.0
        %4876 = vmatpush1.msra.mxu0 0.0
        %4877 = vmatprep.subr.mxu0 0.0
        %4878 = vmatpush1.msra.mxu0 0.0
        %4879 = vmatprep.subr.mxu0 0.0
        %4880 = vmatpush1.msra.mxu0 0.0
        %4881 = vmatprep.subr.mxu0 0.0
        %4882 = vmatpush1.msra.mxu0 0.0
        %4883 = vmatprep.subr.mxu0 0.0
        %4884 = vmatpush1.msra.mxu0 0.0
        %4885 = vmatprep.subr.mxu0 0.0
        %4886 = vmatpush1.msra.mxu0 0.0
        %4887 = vmatprep.subr.mxu0 0.0
        %4888 = vmatpush1.msra.mxu0 0.0
        %4889 = vmatprep.subr.mxu0 0.0
        %4890 = vmatpush1.msra.mxu0 0.0
        %4891 = vmatprep.subr.mxu0 0.0
        %4892 = vmatpush1.msra.mxu0 0.0
        %4893 = vmatprep.subr.mxu0 0.0
        %4894 = vmatpush1.msra.mxu0 0.0
        %4895 = vmatprep.subr.mxu0 0.0
        %4896 = vmatpush1.msra.mxu0 0.0
        %4897 = vmatprep.subr.mxu0 0.0
        %4898 = vmatpush1.msra.mxu0 0.0
        %4899 = vmatprep.subr.mxu0 0.0
        %4900 = vmatpush1.msra.mxu0 0.0
        %4901 = vmatprep.subr.mxu0 0.0
        %4902 = vmatpush1.msra.mxu0 0.0
        %4903 = vmatprep.subr.mxu0 0.0
        %4904 = vmatpush1.msra.mxu0 0.0
        %4905 = vmatprep.subr.mxu0 0.0
        %4906 = vmatpush1.msra.mxu0 0.0
        %4907 = vmatprep.subr.mxu0 0.0
        %4908 = vmatpush1.msra.mxu0 0.0
        %4909 = vmatprep.subr.mxu0 0.0
        %4910 = vmatpush1.msra.mxu0 0.0
        %4911 = vmatprep.subr.mxu0 0.0
        %4912 = vmatpush1.msra.mxu0 0.0
        %4913 = vmatprep.subr.mxu0 0.0
        %4914 = vmatpush1.msra.mxu0 0.0
        %4915 = vmatprep.subr.mxu0 0.0
        %4916 = vmatpush1.msra.mxu0 0.0
        %4917 = vmatprep.subr.mxu0 0.0
        %4918 = vmatpush1.msra.mxu0 0.0
        %4919 = vmatprep.subr.mxu0 0.0
        %4920 = vmatpush1.msra.mxu0 0.0
        %4921 = vmatprep.subr.mxu0 0.0
        %4922 = vmatpush1.msra.mxu0 0.0
        %4923 = vmatprep.subr.mxu0 0.0
        %4924 = vmatpush1.msra.mxu0 0.0
        %4925 = vmatprep.subr.mxu0 0.0
        %4926 = vmatpush1.msra.mxu0 0.0
        %4927 = vmatprep.subr.mxu0 0.0
        %4928 = vmatpush1.msra.mxu0 0.0
        %4929 = vmatprep.subr.mxu0 0.0
        %4930 = vmatpush1.msra.mxu0 0.0
        %4931 = vmatprep.subr.mxu0 0.0
        %4932 = vmatpush1.msra.mxu0 0.0
        %4933 = vmatprep.subr.mxu0 0.0
        %4934 = vmatpush1.msra.mxu0 0.0
        %4935 = vmatprep.subr.mxu0 0.0
        %4936 = vmatpush1.msra.mxu0 0.0
        %4937 = vmatprep.mubr.f32.mxu0 0.0
        %4938 = vmatmul.mubr.f32.gmra.mrb[0].mxu0 %v4868
        %v4939 = vpop.f32.mrb[0].mxu0
        %v4940 = vadd.f32 0.0, %v4939
        %v4941 = vpop.f32.mrb[0].mxu0
        %4942 = vmatprep.mubr.f32.mxu0 0.0
        %4943 = vmatmul.mubr.f32.gmra.mrb[0].mxu0 %v4871
        %v4944 = vpop.f32.mrb[0].mxu0
        %v4945 = vadd.f32 0.0, %v4944
        %v4946 = vpop.f32.mrb[0].mxu0
        %4947 = vdwg.mxu0
        %4948 = vrot.lane.b32.xlu0 %v2154, 104
        %v4949 = vpop.permute.xlu0 %4948
        %v4952 = vsel %vm2350, %v4862, 0
        %v4955 = vsel %vm2350, %v4863, 0
        %4957 = vmatprep.subr.mxu0 0.0
        %4958 = vmatpush1.msra.mxu0 %v4949
        %4959 = vmatprep.subr.mxu0 0.0
        %4960 = vmatpush1.msra.mxu0 0.0
        %4961 = vmatprep.subr.mxu0 0.0
        %4962 = vmatpush1.msra.mxu0 0.0
        %4963 = vmatprep.subr.mxu0 0.0
        %4964 = vmatpush1.msra.mxu0 0.0
        %4965 = vmatprep.subr.mxu0 0.0
        %4966 = vmatpush1.msra.mxu0 0.0
        %4967 = vmatprep.subr.mxu0 0.0
        %4968 = vmatpush1.msra.mxu0 0.0
        %4969 = vmatprep.subr.mxu0 0.0
        %4970 = vmatpush1.msra.mxu0 0.0
        %4971 = vmatprep.subr.mxu0 0.0
        %4972 = vmatpush1.msra.mxu0 0.0
        %4973 = vmatprep.subr.mxu0 0.0
        %4974 = vmatpush1.msra.mxu0 0.0
        %4975 = vmatprep.subr.mxu0 0.0
        %4976 = vmatpush1.msra.mxu0 0.0
        %4977 = vmatprep.subr.mxu0 0.0
        %4978 = vmatpush1.msra.mxu0 0.0
        %4979 = vmatprep.subr.mxu0 0.0
        %4980 = vmatpush1.msra.mxu0 0.0
        %4981 = vmatprep.subr.mxu0 0.0
        %4982 = vmatpush1.msra.mxu0 0.0
        %4983 = vmatprep.subr.mxu0 0.0
        %4984 = vmatpush1.msra.mxu0 0.0
        %4985 = vmatprep.subr.mxu0 0.0
        %4986 = vmatpush1.msra.mxu0 0.0
        %4987 = vmatprep.subr.mxu0 0.0
        %4988 = vmatpush1.msra.mxu0 0.0
        %4989 = vmatprep.subr.mxu0 0.0
        %4990 = vmatpush1.msra.mxu0 0.0
        %4991 = vmatprep.subr.mxu0 0.0
        %4992 = vmatpush1.msra.mxu0 0.0
        %4993 = vmatprep.subr.mxu0 0.0
        %4994 = vmatpush1.msra.mxu0 0.0
        %4995 = vmatprep.subr.mxu0 0.0
        %4996 = vmatpush1.msra.mxu0 0.0
        %4997 = vmatprep.subr.mxu0 0.0
        %4998 = vmatpush1.msra.mxu0 0.0
        %4999 = vmatprep.subr.mxu0 0.0
        %5000 = vmatpush1.msra.mxu0 0.0
        %5001 = vmatprep.subr.mxu0 0.0
        %5002 = vmatpush1.msra.mxu0 0.0
        %5003 = vmatprep.subr.mxu0 0.0
        %5004 = vmatpush1.msra.mxu0 0.0
        %5005 = vmatprep.subr.mxu0 0.0
        %5006 = vmatpush1.msra.mxu0 0.0
        %5007 = vmatprep.subr.mxu0 0.0
        %5008 = vmatpush1.msra.mxu0 0.0
        %5009 = vmatprep.subr.mxu0 0.0
        %5010 = vmatpush1.msra.mxu0 0.0
        %5011 = vmatprep.subr.mxu0 0.0
        %5012 = vmatpush1.msra.mxu0 0.0
        %5013 = vmatprep.subr.mxu0 0.0
        %5014 = vmatpush1.msra.mxu0 0.0
        %5015 = vmatprep.subr.mxu0 0.0
        %5016 = vmatpush1.msra.mxu0 0.0
        %5017 = vmatprep.subr.mxu0 0.0
        %5018 = vmatpush1.msra.mxu0 0.0
        %5019 = vmatprep.subr.mxu0 0.0
        %5020 = vmatpush1.msra.mxu0 0.0
        %5021 = vmatprep.mubr.f32.mxu0 0.0
        %5022 = vmatmul.mubr.f32.gmra.mrb[0].mxu0 %v4952
        %v5023 = vpop.f32.mrb[0].mxu0
        %v5024 = vadd.f32 0.0, %v5023
        %v5025 = vpop.f32.mrb[0].mxu0
        %5026 = vmatprep.mubr.f32.mxu0 0.0
        %5027 = vmatmul.mubr.f32.gmra.mrb[0].mxu0 %v4955
        %v5028 = vpop.f32.mrb[0].mxu0
        %v5029 = vadd.f32 0.0, %v5028
        %v5030 = vpop.f32.mrb[0].mxu0
        %5031 = vdwg.mxu0
        %5036 = vrot.lane.b32.xlu0 %v4940, 24
        %v5037 = vpop.permute.xlu0 %5036
        %5038 = vrot.lane.b32.xlu0 %v4945, 24
        %v5039 = vpop.permute.xlu0 %5038
        %5040 = vrot.lane.b32.xlu0 %v5024, 24
        %v5041 = vpop.permute.xlu0 %5040
        %5042 = vrot.lane.b32.xlu0 %v5029, 24
        %v5043 = vpop.permute.xlu0 %5042
        %vm5048 = vcmask 228544
        %5049 = vst.msk [vmem:[#allocation3] sm:$0xff] %vm5048, %v5037
        %5050 = vst.msk [vmem:[#allocation3 + $0x8] sm:$0xff] %vm5048, %v5039
        %5051 = vst.msk [vmem:[#allocation3 + $0x10] sm:$0xff] %vm5048, %v5041
        %5052 = vst.msk [vmem:[#allocation3 + $0x18] sm:$0xff] %vm5048, %v5043
        %5053 = vrot.lane.b32.xlu0 %v1961, 100
        %v5054 = vpop.permute.xlu0 %5053
        %5055 = vrot.lane.b32.xlu0 %v1966, 100
        %v5056 = vpop.permute.xlu0 %5055
        %5057 = vrot.lane.b32.xlu0 %v2063, 100
        %v5058 = vpop.permute.xlu0 %5057
        %v5059 = vsel %vm2161, %v5054, 0
        %v5061 = vsel %vm2161, %v5056, 0
        %v5063 = vsel %vm2161, %v5058, 0
        %5065 = vmatprep.subr.mxu0 0.0
        %5066 = vmatpush1.xpose.msra.mxu0 %v5063
        %5067 = vmatprep.subr.mxu0 0.0
        %5068 = vmatpush1.xpose.msra.mxu0 0.0
        %5069 = vmatprep.subr.mxu0 0.0
        %5070 = vmatpush1.xpose.msra.mxu0 0.0
        %5071 = vmatprep.subr.mxu0 0.0
        %5072 = vmatpush1.xpose.msra.mxu0 0.0
        %5073 = vmatprep.subr.mxu0 0.0
        %5074 = vmatpush1.xpose.msra.mxu0 0.0
        %5075 = vmatprep.subr.mxu0 0.0
        %5076 = vmatpush1.xpose.msra.mxu0 0.0
        %5077 = vmatprep.subr.mxu0 0.0
        %5078 = vmatpush1.xpose.msra.mxu0 0.0
        %5079 = vmatprep.subr.mxu0 0.0
        %5080 = vmatpush1.xpose.msra.mxu0 0.0
        %5081 = vmatprep.subr.mxu0 0.0
        %5082 = vmatpush1.xpose.msra.mxu0 0.0
        %5083 = vmatprep.subr.mxu0 0.0
        %5084 = vmatpush1.xpose.msra.mxu0 0.0
        %5085 = vmatprep.subr.mxu0 0.0
        %5086 = vmatpush1.xpose.msra.mxu0 0.0
        %5087 = vmatprep.subr.mxu0 0.0
        %5088 = vmatpush1.xpose.msra.mxu0 0.0
        %5089 = vmatprep.subr.mxu0 0.0
        %5090 = vmatpush1.xpose.msra.mxu0 0.0
        %5091 = vmatprep.subr.mxu0 0.0
        %5092 = vmatpush1.xpose.msra.mxu0 0.0
        %5093 = vmatprep.subr.mxu0 0.0
        %5094 = vmatpush1.xpose.msra.mxu0 0.0
        %5095 = vmatprep.subr.mxu0 0.0
        %5096 = vmatpush1.xpose.msra.mxu0 0.0
        %5097 = vmatprep.subr.mxu0 0.0
        %5098 = vmatpush1.xpose.msra.mxu0 0.0
        %5099 = vmatprep.subr.mxu0 0.0
        %5100 = vmatpush1.xpose.msra.mxu0 0.0
        %5101 = vmatprep.subr.mxu0 0.0
        %5102 = vmatpush1.xpose.msra.mxu0 0.0
        %5103 = vmatprep.subr.mxu0 0.0
        %5104 = vmatpush1.xpose.msra.mxu0 0.0
        %5105 = vmatprep.subr.mxu0 0.0
        %5106 = vmatpush1.xpose.msra.mxu0 0.0
        %5107 = vmatprep.subr.mxu0 0.0
        %5108 = vmatpush1.xpose.msra.mxu0 0.0
        %5109 = vmatprep.subr.mxu0 0.0
        %5110 = vmatpush1.xpose.msra.mxu0 0.0
        %5111 = vmatprep.subr.mxu0 0.0
        %5112 = vmatpush1.xpose.msra.mxu0 0.0
        %5113 = vmatprep.subr.mxu0 0.0
        %5114 = vmatpush1.xpose.msra.mxu0 0.0
        %5115 = vmatprep.subr.mxu0 0.0
        %5116 = vmatpush1.xpose.msra.mxu0 0.0
        %5117 = vmatprep.subr.mxu0 0.0
        %5118 = vmatpush1.xpose.msra.mxu0 0.0
        %5119 = vmatprep.subr.mxu0 0.0
        %5120 = vmatpush1.xpose.msra.mxu0 0.0
        %5121 = vmatprep.subr.mxu0 0.0
        %5122 = vmatpush1.xpose.msra.mxu0 0.0
        %5123 = vmatprep.subr.mxu0 0.0
        %5124 = vmatpush1.xpose.msra.mxu0 0.0
        %5125 = vmatprep.subr.mxu0 0.0
        %5126 = vmatpush1.xpose.msra.mxu0 0.0
        %5127 = vmatprep.subr.mxu0 0.0
        %5128 = vmatpush1.xpose.msra.mxu0 0.0
        %5129 = vmatprep.mubr.f32.mxu0 0.0
        %5130 = vmatmul.mubr.f32.gmra.mrb[0].mxu0 %v5059
        %v5131 = vpop.f32.mrb[0].mxu0
        %v5132 = vadd.f32 0.0, %v5131
        %v5133 = vpop.f32.mrb[0].mxu0
        %5134 = vmatprep.mubr.f32.mxu0 0.0
        %5135 = vmatmul.mubr.f32.gmra.mrb[0].mxu0 %v5061
        %v5136 = vpop.f32.mrb[0].mxu0
        %v5137 = vadd.f32 0.0, %v5136
        %v5138 = vpop.f32.mrb[0].mxu0
        %5139 = vdwg.mxu0
        %5140 = vrot.lane.b32.xlu0 %v1971, 100
        %v5141 = vpop.permute.xlu0 %5140
        %5142 = vrot.lane.b32.xlu0 %v1976, 100
        %v5143 = vpop.permute.xlu0 %5142
        %5144 = vrot.lane.b32.xlu0 %v2068, 100
        %v5145 = vpop.permute.xlu0 %5144
        %v5146 = vsel %vm2161, %v5141, 0
        %v5148 = vsel %vm2161, %v5143, 0
        %v5150 = vsel %vm2161, %v5145, 0
        %5152 = vmatprep.subr.mxu0 0.0
        %5153 = vmatpush1.xpose.msra.mxu0 %v5150
        %5154 = vmatprep.subr.mxu0 0.0
        %5155 = vmatpush1.xpose.msra.mxu0 0.0
        %5156 = vmatprep.subr.mxu0 0.0
        %5157 = vmatpush1.xpose.msra.mxu0 0.0
        %5158 = vmatprep.subr.mxu0 0.0
        %5159 = vmatpush1.xpose.msra.mxu0 0.0
        %5160 = vmatprep.subr.mxu0 0.0
        %5161 = vmatpush1.xpose.msra.mxu0 0.0
        %5162 = vmatprep.subr.mxu0 0.0
        %5163 = vmatpush1.xpose.msra.mxu0 0.0
        %5164 = vmatprep.subr.mxu0 0.0
        %5165 = vmatpush1.xpose.msra.mxu0 0.0
        %5166 = vmatprep.subr.mxu0 0.0
        %5167 = vmatpush1.xpose.msra.mxu0 0.0
        %5168 = vmatprep.subr.mxu0 0.0
        %5169 = vmatpush1.xpose.msra.mxu0 0.0
        %5170 = vmatprep.subr.mxu0 0.0
        %5171 = vmatpush1.xpose.msra.mxu0 0.0
        %5172 = vmatprep.subr.mxu0 0.0
        %5173 = vmatpush1.xpose.msra.mxu0 0.0
        %5174 = vmatprep.subr.mxu0 0.0
        %5175 = vmatpush1.xpose.msra.mxu0 0.0
        %5176 = vmatprep.subr.mxu0 0.0
        %5177 = vmatpush1.xpose.msra.mxu0 0.0
        %5178 = vmatprep.subr.mxu0 0.0
        %5179 = vmatpush1.xpose.msra.mxu0 0.0
        %5180 = vmatprep.subr.mxu0 0.0
        %5181 = vmatpush1.xpose.msra.mxu0 0.0
        %5182 = vmatprep.subr.mxu0 0.0
        %5183 = vmatpush1.xpose.msra.mxu0 0.0
        %5184 = vmatprep.subr.mxu0 0.0
        %5185 = vmatpush1.xpose.msra.mxu0 0.0
        %5186 = vmatprep.subr.mxu0 0.0
        %5187 = vmatpush1.xpose.msra.mxu0 0.0
        %5188 = vmatprep.subr.mxu0 0.0
        %5189 = vmatpush1.xpose.msra.mxu0 0.0
        %5190 = vmatprep.subr.mxu0 0.0
        %5191 = vmatpush1.xpose.msra.mxu0 0.0
        %5192 = vmatprep.subr.mxu0 0.0
        %5193 = vmatpush1.xpose.msra.mxu0 0.0
        %5194 = vmatprep.subr.mxu0 0.0
        %5195 = vmatpush1.xpose.msra.mxu0 0.0
        %5196 = vmatprep.subr.mxu0 0.0
        %5197 = vmatpush1.xpose.msra.mxu0 0.0
        %5198 = vmatprep.subr.mxu0 0.0
        %5199 = vmatpush1.xpose.msra.mxu0 0.0
        %5200 = vmatprep.subr.mxu0 0.0
        %5201 = vmatpush1.xpose.msra.mxu0 0.0
        %5202 = vmatprep.subr.mxu0 0.0
        %5203 = vmatpush1.xpose.msra.mxu0 0.0
        %5204 = vmatprep.subr.mxu0 0.0
        %5205 = vmatpush1.xpose.msra.mxu0 0.0
        %5206 = vmatprep.subr.mxu0 0.0
        %5207 = vmatpush1.xpose.msra.mxu0 0.0
        %5208 = vmatprep.subr.mxu0 0.0
        %5209 = vmatpush1.xpose.msra.mxu0 0.0
        %5210 = vmatprep.subr.mxu0 0.0
        %5211 = vmatpush1.xpose.msra.mxu0 0.0
        %5212 = vmatprep.subr.mxu0 0.0
        %5213 = vmatpush1.xpose.msra.mxu0 0.0
        %5214 = vmatprep.subr.mxu0 0.0
        %5215 = vmatpush1.xpose.msra.mxu0 0.0
        %5216 = vmatprep.mubr.f32.mxu0 0.0
        %5217 = vmatmul.mubr.f32.gmra.mrb[0].mxu0 %v5146
        %v5218 = vpop.f32.mrb[0].mxu0
        %v5219 = vadd.f32 0.0, %v5218
        %v5220 = vpop.f32.mrb[0].mxu0
        %5221 = vmatprep.mubr.f32.mxu0 0.0
        %5222 = vmatmul.mubr.f32.gmra.mrb[0].mxu0 %v5148
        %v5223 = vpop.f32.mrb[0].mxu0
        %v5224 = vadd.f32 0.0, %v5223
        %v5225 = vpop.f32.mrb[0].mxu0
        %5226 = vdwg.mxu0
        %v5227 = vmul.f32 %v5132, 0.5
        %v5228 = vmul.f32 %v5137, 0.5
        %v5229 = vmul.f32 %v5219, 0.5
        %v5230 = vmul.f32 %v5224, 0.5
        %v5231 = vadd.f32 %v5227, %v2339
        %v5232 = vadd.f32 %v5228, %v2339
        %v5233 = vadd.f32 %v5229, %v2343
        %v5234 = vadd.f32 %v5230, %v2343
        %v5235 = vsel %vm2350, %v5231, -inf
        %5236 = vmax.xlane.f32.xlu0 %v5235
        %v5237 = vpop.xlane.xlu0 %5236
        %v5238 = vsel %vm2350, %v5232, -inf
        %5239 = vmax.xlane.f32.xlu0 %v5238
        %v5240 = vpop.xlane.xlu0 %5239
        %v5241 = vsel %vm2350, %v5233, -inf
        %5242 = vmax.xlane.f32.xlu0 %v5241
        %v5243 = vpop.xlane.xlu0 %5242
        %v5244 = vsel %vm2350, %v5234, -inf
        %5245 = vmax.xlane.f32.xlu0 %v5244
        %v5246 = vpop.xlane.xlu0 %5245
        %v5247 = vsub.f32 %v5231, %v5237
        %v5248 = vsub.f32 %v5232, %v5240
        %v5249 = vsub.f32 %v5233, %v5243
        %v5250 = vsub.f32 %v5234, %v5246
        %v5251 = vmul.f32 %v5247, 1.442695
        %v5252 = vpow.pop %v5251
        %v5253 = vmul.f32 %v5248, 1.442695
        %v5254 = vpow.pop %v5253
        %v5255 = vmul.f32 %v5249, 1.442695
        %v5256 = vpow.pop %v5255
        %v5257 = vmul.f32 %v5250, 1.442695
        %v5258 = vpow.pop %v5257
        %v5259 = vsel %vm2350, %v5252, 0.0
        %5260 = vadd.xlane.f32.xlu0 %v5259
        %v5261 = vpop.xlane.xlu0 %5260
        %v5262 = vsel %vm2350, %v5254, 0.0
        %5263 = vadd.xlane.f32.xlu0 %v5262
        %v5264 = vpop.xlane.xlu0 %5263
        %v5265 = vsel %vm2350, %v5256, 0.0
        %5266 = vadd.xlane.f32.xlu0 %v5265
        %v5267 = vpop.xlane.xlu0 %5266
        %v5268 = vsel %vm2350, %v5258, 0.0
        %5269 = vadd.xlane.f32.xlu0 %v5268
        %v5270 = vpop.xlane.xlu0 %5269
        %v5271 = vrcp.pop %v5261
        %v5272 = vrcp.pop %v5264
        %v5273 = vrcp.pop %v5267
        %v5274 = vrcp.pop %v5270
        %v5275 = vmul.f32 %v5252, %v5271
        %v5276 = vmul.f32 %v5254, %v5272
        %v5277 = vmul.f32 %v5256, %v5273
        %v5278 = vmul.f32 %v5258, %v5274
        %5279 = vrot.lane.b32.xlu0 %v2149, 100
        %v5280 = vpop.permute.xlu0 %5279
        %v5283 = vsel %vm2350, %v5275, 0
        %v5286 = vsel %vm2350, %v5276, 0
        %5288 = vmatprep.subr.mxu0 0.0
        %5289 = vmatpush1.msra.mxu0 %v5280
        %5290 = vmatprep.subr.mxu0 0.0
        %5291 = vmatpush1.msra.mxu0 0.0
        %5292 = vmatprep.subr.mxu0 0.0
        %5293 = vmatpush1.msra.mxu0 0.0
        %5294 = vmatprep.subr.mxu0 0.0
        %5295 = vmatpush1.msra.mxu0 0.0
        %5296 = vmatprep.subr.mxu0 0.0
        %5297 = vmatpush1.msra.mxu0 0.0
        %5298 = vmatprep.subr.mxu0 0.0
        %5299 = vmatpush1.msra.mxu0 0.0
        %5300 = vmatprep.subr.mxu0 0.0
        %5301 = vmatpush1.msra.mxu0 0.0
        %5302 = vmatprep.subr.mxu0 0.0
        %5303 = vmatpush1.msra.mxu0 0.0
        %5304 = vmatprep.subr.mxu0 0.0
        %5305 = vmatpush1.msra.mxu0 0.0
        %5306 = vmatprep.subr.mxu0 0.0
        %5307 = vmatpush1.msra.mxu0 0.0
        %5308 = vmatprep.subr.mxu0 0.0
        %5309 = vmatpush1.msra.mxu0 0.0
        %5310 = vmatprep.subr.mxu0 0.0
        %5311 = vmatpush1.msra.mxu0 0.0
        %5312 = vmatprep.subr.mxu0 0.0
        %5313 = vmatpush1.msra.mxu0 0.0
        %5314 = vmatprep.subr.mxu0 0.0
        %5315 = vmatpush1.msra.mxu0 0.0
        %5316 = vmatprep.subr.mxu0 0.0
        %5317 = vmatpush1.msra.mxu0 0.0
        %5318 = vmatprep.subr.mxu0 0.0
        %5319 = vmatpush1.msra.mxu0 0.0
        %5320 = vmatprep.subr.mxu0 0.0
        %5321 = vmatpush1.msra.mxu0 0.0
        %5322 = vmatprep.subr.mxu0 0.0
        %5323 = vmatpush1.msra.mxu0 0.0
        %5324 = vmatprep.subr.mxu0 0.0
        %5325 = vmatpush1.msra.mxu0 0.0
        %5326 = vmatprep.subr.mxu0 0.0
        %5327 = vmatpush1.msra.mxu0 0.0
        %5328 = vmatprep.subr.mxu0 0.0
        %5329 = vmatpush1.msra.mxu0 0.0
        %5330 = vmatprep.subr.mxu0 0.0
        %5331 = vmatpush1.msra.mxu0 0.0
        %5332 = vmatprep.subr.mxu0 0.0
        %5333 = vmatpush1.msra.mxu0 0.0
        %5334 = vmatprep.subr.mxu0 0.0
        %5335 = vmatpush1.msra.mxu0 0.0
        %5336 = vmatprep.subr.mxu0 0.0
        %5337 = vmatpush1.msra.mxu0 0.0
        %5338 = vmatprep.subr.mxu0 0.0
        %5339 = vmatpush1.msra.mxu0 0.0
        %5340 = vmatprep.subr.mxu0 0.0
        %5341 = vmatpush1.msra.mxu0 0.0
        %5342 = vmatprep.subr.mxu0 0.0
        %5343 = vmatpush1.msra.mxu0 0.0
        %5344 = vmatprep.subr.mxu0 0.0
        %5345 = vmatpush1.msra.mxu0 0.0
        %5346 = vmatprep.subr.mxu0 0.0
        %5347 = vmatpush1.msra.mxu0 0.0
        %5348 = vmatprep.subr.mxu0 0.0
        %5349 = vmatpush1.msra.mxu0 0.0
        %5350 = vmatprep.subr.mxu0 0.0
        %5351 = vmatpush1.msra.mxu0 0.0
        %5352 = vmatprep.mubr.f32.mxu0 0.0
        %5353 = vmatmul.mubr.f32.gmra.mrb[0].mxu0 %v5283
        %v5354 = vpop.f32.mrb[0].mxu0
        %v5355 = vadd.f32 0.0, %v5354
        %v5356 = vpop.f32.mrb[0].mxu0
        %5357 = vmatprep.mubr.f32.mxu0 0.0
        %5358 = vmatmul.mubr.f32.gmra.mrb[0].mxu0 %v5286
        %v5359 = vpop.f32.mrb[0].mxu0
        %v5360 = vadd.f32 0.0, %v5359
        %v5361 = vpop.f32.mrb[0].mxu0
        %5362 = vdwg.mxu0
        %5363 = vrot.lane.b32.xlu0 %v2154, 100
        %v5364 = vpop.permute.xlu0 %5363
        %v5367 = vsel %vm2350, %v5277, 0
        %v5370 = vsel %vm2350, %v5278, 0
        %5372 = vmatprep.subr.mxu0 0.0
        %5373 = vmatpush1.msra.mxu0 %v5364
        %5374 = vmatprep.subr.mxu0 0.0
        %5375 = vmatpush1.msra.mxu0 0.0
        %5376 = vmatprep.subr.mxu0 0.0
        %5377 = vmatpush1.msra.mxu0 0.0
        %5378 = vmatprep.subr.mxu0 0.0
        %5379 = vmatpush1.msra.mxu0 0.0
        %5380 = vmatprep.subr.mxu0 0.0
        %5381 = vmatpush1.msra.mxu0 0.0
        %5382 = vmatprep.subr.mxu0 0.0
        %5383 = vmatpush1.msra.mxu0 0.0
        %5384 = vmatprep.subr.mxu0 0.0
        %5385 = vmatpush1.msra.mxu0 0.0
        %5386 = vmatprep.subr.mxu0 0.0
        %5387 = vmatpush1.msra.mxu0 0.0
        %5388 = vmatprep.subr.mxu0 0.0
        %5389 = vmatpush1.msra.mxu0 0.0
        %5390 = vmatprep.subr.mxu0 0.0
        %5391 = vmatpush1.msra.mxu0 0.0
        %5392 = vmatprep.subr.mxu0 0.0
        %5393 = vmatpush1.msra.mxu0 0.0
        %5394 = vmatprep.subr.mxu0 0.0
        %5395 = vmatpush1.msra.mxu0 0.0
        %5396 = vmatprep.subr.mxu0 0.0
        %5397 = vmatpush1.msra.mxu0 0.0
        %5398 = vmatprep.subr.mxu0 0.0
        %5399 = vmatpush1.msra.mxu0 0.0
        %5400 = vmatprep.subr.mxu0 0.0
        %5401 = vmatpush1.msra.mxu0 0.0
        %5402 = vmatprep.subr.mxu0 0.0
        %5403 = vmatpush1.msra.mxu0 0.0
        %5404 = vmatprep.subr.mxu0 0.0
        %5405 = vmatpush1.msra.mxu0 0.0
        %5406 = vmatprep.subr.mxu0 0.0
        %5407 = vmatpush1.msra.mxu0 0.0
        %5408 = vmatprep.subr.mxu0 0.0
        %5409 = vmatpush1.msra.mxu0 0.0
        %5410 = vmatprep.subr.mxu0 0.0
        %5411 = vmatpush1.msra.mxu0 0.0
        %5412 = vmatprep.subr.mxu0 0.0
        %5413 = vmatpush1.msra.mxu0 0.0
        %5414 = vmatprep.subr.mxu0 0.0
        %5415 = vmatpush1.msra.mxu0 0.0
        %5416 = vmatprep.subr.mxu0 0.0
        %5417 = vmatpush1.msra.mxu0 0.0
        %5418 = vmatprep.subr.mxu0 0.0
        %5419 = vmatpush1.msra.mxu0 0.0
        %5420 = vmatprep.subr.mxu0 0.0
        %5421 = vmatpush1.msra.mxu0 0.0
        %5422 = vmatprep.subr.mxu0 0.0
        %5423 = vmatpush1.msra.mxu0 0.0
        %5424 = vmatprep.subr.mxu0 0.0
        %5425 = vmatpush1.msra.mxu0 0.0
        %5426 = vmatprep.subr.mxu0 0.0
        %5427 = vmatpush1.msra.mxu0 0.0
        %5428 = vmatprep.subr.mxu0 0.0
        %5429 = vmatpush1.msra.mxu0 0.0
        %5430 = vmatprep.subr.mxu0 0.0
        %5431 = vmatpush1.msra.mxu0 0.0
        %5432 = vmatprep.subr.mxu0 0.0
        %5433 = vmatpush1.msra.mxu0 0.0
        %5434 = vmatprep.subr.mxu0 0.0
        %5435 = vmatpush1.msra.mxu0 0.0
        %5436 = vmatprep.mubr.f32.mxu0 0.0
        %5437 = vmatmul.mubr.f32.gmra.mrb[0].mxu0 %v5367
        %v5438 = vpop.f32.mrb[0].mxu0
        %v5439 = vadd.f32 0.0, %v5438
        %v5440 = vpop.f32.mrb[0].mxu0
        %5441 = vmatprep.mubr.f32.mxu0 0.0
        %5442 = vmatmul.mubr.f32.gmra.mrb[0].mxu0 %v5370
        %v5443 = vpop.f32.mrb[0].mxu0
        %v5444 = vadd.f32 0.0, %v5443
        %v5445 = vpop.f32.mrb[0].mxu0
        %5446 = vdwg.mxu0
        %5451 = vrot.lane.b32.xlu0 %v5355, 28
        %v5452 = vpop.permute.xlu0 %5451
        %5453 = vrot.lane.b32.xlu0 %v5360, 28
        %v5454 = vpop.permute.xlu0 %5453
        %5455 = vrot.lane.b32.xlu0 %v5439, 28
        %v5456 = vpop.permute.xlu0 %5455
        %5457 = vrot.lane.b32.xlu0 %v5444, 28
        %v5458 = vpop.permute.xlu0 %5457
        %vm5463 = vcmask 261344
        %5464 = vst.msk [vmem:[#allocation3] sm:$0xff] %vm5463, %v5452
        %5465 = vst.msk [vmem:[#allocation3 + $0x8] sm:$0xff] %vm5463, %v5454
        %5466 = vst.msk [vmem:[#allocation3 + $0x10] sm:$0xff] %vm5463, %v5456
        %5467 = vst.msk [vmem:[#allocation3 + $0x18] sm:$0xff] %vm5463, %v5458
        %v5468 = vld [vmem:[#allocation3] sm:$0xff]
        %v5469 = vld [vmem:[#allocation3 + $0x8] sm:$0xff]
        %v5470 = vld [vmem:[#allocation3 + $0x10] sm:$0xff]
        %v5471 = vld [vmem:[#allocation3 + $0x18] sm:$0xff]
        %v5472 = vld [vmem:[%s1015] sm:$0xff]
        %v5473 = vld [vmem:[%s1015 + $0x8] sm:$0xff]
        %v5474 = vld [vmem:[%s1015 + $0x10] sm:$0xff]
        %v5475 = vld [vmem:[%s1015 + $0x18] sm:$0xff]
        %v5476 = vld [vmem:[%s1249] sm:$0x1]
        %v5478 = vlaneseq
        %v5479 = vshrl.u32 %v5478, 7
        %v5480 = vsub.s32 0, %v5479
        %v5481 = vrot.slane %v5476, %v5480
        %v5484 = vsel %vm1303, %v5468, 0
        %v5487 = vsel %vm1303, %v5469, 0
        %v5490 = vsel %vm1303, %v5470, 0
        %v5493 = vsel %vm1303, %v5471, 0
        %5495 = vmatprep.subr.mxu0 0.0
        %5496 = vmatpush1.msra.mxu0 %v5472
        %5497 = vmatprep.subr.mxu0 0.0
        %5498 = vmatpush1.msra.mxu0 %v5473
        %5499 = vmatprep.subr.mxu0 0.0
        %5500 = vmatpush1.msra.mxu0 %v5474
        %5501 = vmatprep.subr.mxu0 0.0
        %5502 = vmatpush1.msra.mxu0 %v5475
        %5503 = vmatprep.subr.mxu0 0.0
        %5504 = vmatpush1.msra.mxu0 0.0
        %5505 = vmatprep.subr.mxu0 0.0
        %5506 = vmatpush1.msra.mxu0 0.0
        %5507 = vmatprep.subr.mxu0 0.0
        %5508 = vmatpush1.msra.mxu0 0.0
        %5509 = vmatprep.subr.mxu0 0.0
        %5510 = vmatpush1.msra.mxu0 0.0
        %5511 = vmatprep.subr.mxu0 0.0
        %5512 = vmatpush1.msra.mxu0 0.0
        %5513 = vmatprep.subr.mxu0 0.0
        %5514 = vmatpush1.msra.mxu0 0.0
        %5515 = vmatprep.subr.mxu0 0.0
        %5516 = vmatpush1.msra.mxu0 0.0
        %5517 = vmatprep.subr.mxu0 0.0
        %5518 = vmatpush1.msra.mxu0 0.0
        %5519 = vmatprep.subr.mxu0 0.0
        %5520 = vmatpush1.msra.mxu0 0.0
        %5521 = vmatprep.subr.mxu0 0.0
        %5522 = vmatpush1.msra.mxu0 0.0
        %5523 = vmatprep.subr.mxu0 0.0
        %5524 = vmatpush1.msra.mxu0 0.0
        %5525 = vmatprep.subr.mxu0 0.0
        %5526 = vmatpush1.msra.mxu0 0.0
        %5527 = vmatprep.subr.mxu0 0.0
        %5528 = vmatpush1.msra.mxu0 0.0
        %5529 = vmatprep.subr.mxu0 0.0
        %5530 = vmatpush1.msra.mxu0 0.0
        %5531 = vmatprep.subr.mxu0 0.0
        %5532 = vmatpush1.msra.mxu0 0.0
        %5533 = vmatprep.subr.mxu0 0.0
        %5534 = vmatpush1.msra.mxu0 0.0
        %5535 = vmatprep.subr.mxu0 0.0
        %5536 = vmatpush1.msra.mxu0 0.0
        %5537 = vmatprep.subr.mxu0 0.0
        %5538 = vmatpush1.msra.mxu0 0.0
        %5539 = vmatprep.subr.mxu0 0.0
        %5540 = vmatpush1.msra.mxu0 0.0
        %5541 = vmatprep.subr.mxu0 0.0
        %5542 = vmatpush1.msra.mxu0 0.0
        %5543 = vmatprep.subr.mxu0 0.0
        %5544 = vmatpush1.msra.mxu0 0.0
        %5545 = vmatprep.subr.mxu0 0.0
        %5546 = vmatpush1.msra.mxu0 0.0
        %5547 = vmatprep.subr.mxu0 0.0
        %5548 = vmatpush1.msra.mxu0 0.0
        %5549 = vmatprep.subr.mxu0 0.0
        %5550 = vmatpush1.msra.mxu0 0.0
        %5551 = vmatprep.subr.mxu0 0.0
        %5552 = vmatpush1.msra.mxu0 0.0
        %5553 = vmatprep.subr.mxu0 0.0
        %5554 = vmatpush1.msra.mxu0 0.0
        %5555 = vmatprep.subr.mxu0 0.0
        %5556 = vmatpush1.msra.mxu0 0.0
        %5557 = vmatprep.subr.mxu0 0.0
        %5558 = vmatpush1.msra.mxu0 0.0
        %5559 = vmatprep.mubr.f32.mxu0 0.0
        %5560 = vmatmul.mubr.f32.gmra.mrb[0].mxu0 %v5484
        %v5561 = vpop.f32.mrb[0].mxu0
        %v5562 = vadd.f32 %v5481, %v5561
        %v5563 = vpop.f32.mrb[0].mxu0
        %5564 = vmatprep.mubr.f32.mxu0 0.0
        %5565 = vmatmul.mubr.f32.gmra.mrb[0].mxu0 %v5487
        %v5566 = vpop.f32.mrb[0].mxu0
        %v5567 = vadd.f32 %v5481, %v5566
        %v5568 = vpop.f32.mrb[0].mxu0
        %5569 = vmatprep.mubr.f32.mxu0 0.0
        %5570 = vmatmul.mubr.f32.gmra.mrb[0].mxu0 %v5490
        %v5571 = vpop.f32.mrb[0].mxu0
        %v5572 = vadd.f32 %v5481, %v5571
        %v5573 = vpop.f32.mrb[0].mxu0
        %5574 = vmatprep.mubr.f32.mxu0 0.0
        %5575 = vmatmul.mubr.f32.gmra.mrb[0].mxu0 %v5493
        %v5576 = vpop.f32.mrb[0].mxu0
        %v5577 = vadd.f32 %v5481, %v5576
        %v5578 = vpop.f32.mrb[0].mxu0
        %5579 = vdwg.mxu0
        %v5580 = vadd.f32 %v5562, %v1793
        %v5581 = vadd.f32 %v5567, %v1794
        %v5582 = vadd.f32 %v5572, %v1795
        %v5583 = vadd.f32 %v5577, %v1796
        %v5584 = vld [vmem:[%s1252] sm:$0x1]
        %v5585 = vld [vmem:[%s1255] sm:$0x1]
        %v5586 = vsel %vm1303, %v5580, 0.0
        %5587 = vadd.xlane.f32.xlu0 %v5586
        %v5588 = vpop.xlane.xlu0 %5587
        %v5589 = vsel %vm1303, %v5581, 0.0
        %5590 = vadd.xlane.f32.xlu0 %v5589
        %v5591 = vpop.xlane.xlu0 %5590
        %v5592 = vsel %vm1303, %v5582, 0.0
        %5593 = vadd.xlane.f32.xlu0 %v5592
        %v5594 = vpop.xlane.xlu0 %5593
        %v5595 = vsel %vm1303, %v5583, 0.0
        %5596 = vadd.xlane.f32.xlu0 %v5595
        %v5597 = vpop.xlane.xlu0 %5596
        %v5598 = vmul.f32 %v5588, %v1316
        %v5599 = vmul.f32 %v5591, %v1316
        %v5600 = vmul.f32 %v5594, %v1316
        %v5601 = vmul.f32 %v5597, %v1316
        %v5602 = vsub.f32 %v5580, %v5598
        %v5603 = vsub.f32 %v5581, %v5599
        %v5604 = vsub.f32 %v5582, %v5600
        %v5605 = vsub.f32 %v5583, %v5601
        %v5606 = vmul.f32 %v5602, %v5602
        %v5607 = vmul.f32 %v5603, %v5603
        %v5608 = vmul.f32 %v5604, %v5604
        %v5609 = vmul.f32 %v5605, %v5605
        %v5610 = vsel %vm1303, %v5606, 0.0
        %5611 = vadd.xlane.f32.xlu0 %v5610
        %v5612 = vpop.xlane.xlu0 %5611
        %v5613 = vsel %vm1303, %v5607, 0.0
        %5614 = vadd.xlane.f32.xlu0 %v5613
        %v5615 = vpop.xlane.xlu0 %5614
        %v5616 = vsel %vm1303, %v5608, 0.0
        %5617 = vadd.xlane.f32.xlu0 %v5616
        %v5618 = vpop.xlane.xlu0 %5617
        %v5619 = vsel %vm1303, %v5609, 0.0
        %5620 = vadd.xlane.f32.xlu0 %v5619
        %v5621 = vpop.xlane.xlu0 %5620
        %v5622 = vmul.f32 %v5612, %v1316
        %v5623 = vmul.f32 %v5615, %v1316
        %v5624 = vmul.f32 %v5618, %v1316
        %v5625 = vmul.f32 %v5621, %v1316
        %v5626 = vadd.f32 %v5622, 1e-05
        %v5627 = vadd.f32 %v5623, 1e-05
        %v5628 = vadd.f32 %v5624, 1e-05
        %v5629 = vadd.f32 %v5625, 1e-05
        %v5630 = vrsqrt.pop %v5626
        %v5631 = vrsqrt.pop %v5627
        %v5632 = vrsqrt.pop %v5628
        %v5633 = vrsqrt.pop %v5629
        %v5634 = vmul.f32 %v5602, %v5630
        %v5635 = vmul.f32 %v5603, %v5631
        %v5636 = vmul.f32 %v5604, %v5632
        %v5637 = vmul.f32 %v5605, %v5633
        %v5639 = vlaneseq
        %v5640 = vshrl.u32 %v5639, 7
        %v5641 = vsub.s32 0, %v5640
        %v5642 = vrot.slane %v5584, %v5641
        %v5644 = vmul.f32 %v5634, %v5642
        %v5645 = vmul.f32 %v5635, %v5642
        %v5646 = vmul.f32 %v5636, %v5642
        %v5647 = vmul.f32 %v5637, %v5642
        %v5649 = vlaneseq
        %v5650 = vshrl.u32 %v5649, 7
        %v5651 = vsub.s32 0, %v5650
        %v5652 = vrot.slane %v5585, %v5651
        %v5654 = vadd.f32 %v5644, %v5652
        %v5655 = vadd.f32 %v5645, %v5652
        %v5656 = vadd.f32 %v5646, %v5652
        %v5657 = vadd.f32 %v5647, %v5652
        %v5658 = vld [vmem:[%s1024] sm:$0xff]
        %v5659 = vld [vmem:[%s1024 + $0x8] sm:$0xff]
        %v5660 = vld [vmem:[%s1024 + $0x10] sm:$0xff]
        %v5661 = vld [vmem:[%s1024 + $0x18] sm:$0xff]
        %v5662 = vld [vmem:[%s1258] sm:$0x1]
        %v5664 = vlaneseq
        %v5665 = vshrl.u32 %v5664, 7
        %v5666 = vsub.s32 0, %v5665
        %v5667 = vrot.slane %v5662, %v5666
        %v5670 = vsel %vm1303, %v5654, 0
        %v5673 = vsel %vm1303, %v5655, 0
        %v5676 = vsel %vm1303, %v5656, 0
        %v5679 = vsel %vm1303, %v5657, 0
        %5681 = vmatprep.subr.mxu0 0.0
        %5682 = vmatpush1.msra.mxu0 %v5658
        %5683 = vmatprep.subr.mxu0 0.0
        %5684 = vmatpush1.msra.mxu0 %v5659
        %5685 = vmatprep.subr.mxu0 0.0
        %5686 = vmatpush1.msra.mxu0 %v5660
        %5687 = vmatprep.subr.mxu0 0.0
        %5688 = vmatpush1.msra.mxu0 %v5661
        %5689 = vmatprep.subr.mxu0 0.0
        %5690 = vmatpush1.msra.mxu0 0.0
        %5691 = vmatprep.subr.mxu0 0.0
        %5692 = vmatpush1.msra.mxu0 0.0
        %5693 = vmatprep.subr.mxu0 0.0
        %5694 = vmatpush1.msra.mxu0 0.0
        %5695 = vmatprep.subr.mxu0 0.0
        %5696 = vmatpush1.msra.mxu0 0.0
        %5697 = vmatprep.subr.mxu0 0.0
        %5698 = vmatpush1.msra.mxu0 0.0
        %5699 = vmatprep.subr.mxu0 0.0
        %5700 = vmatpush1.msra.mxu0 0.0
        %5701 = vmatprep.subr.mxu0 0.0
        %5702 = vmatpush1.msra.mxu0 0.0
        %5703 = vmatprep.subr.mxu0 0.0
        %5704 = vmatpush1.msra.mxu0 0.0
        %5705 = vmatprep.subr.mxu0 0.0
        %5706 = vmatpush1.msra.mxu0 0.0
        %5707 = vmatprep.subr.mxu0 0.0
        %5708 = vmatpush1.msra.mxu0 0.0
        %5709 = vmatprep.subr.mxu0 0.0
        %5710 = vmatpush1.msra.mxu0 0.0
        %5711 = vmatprep.subr.mxu0 0.0
        %5712 = vmatpush1.msra.mxu0 0.0
        %5713 = vmatprep.subr.mxu0 0.0
        %5714 = vmatpush1.msra.mxu0 0.0
        %5715 = vmatprep.subr.mxu0 0.0
        %5716 = vmatpush1.msra.mxu0 0.0
        %5717 = vmatprep.subr.mxu0 0.0
        %5718 = vmatpush1.msra.mxu0 0.0
        %5719 = vmatprep.subr.mxu0 0.0
        %5720 = vmatpush1.msra.mxu0 0.0
        %5721 = vmatprep.subr.mxu0 0.0
        %5722 = vmatpush1.msra.mxu0 0.0
        %5723 = vmatprep.subr.mxu0 0.0
        %5724 = vmatpush1.msra.mxu0 0.0
        %5725 = vmatprep.subr.mxu0 0.0
        %5726 = vmatpush1.msra.mxu0 0.0
        %5727 = vmatprep.subr.mxu0 0.0
        %5728 = vmatpush1.msra.mxu0 0.0
        %5729 = vmatprep.subr.mxu0 0.0
        %5730 = vmatpush1.msra.mxu0 0.0
        %5731 = vmatprep.subr.mxu0 0.0
        %5732 = vmatpush1.msra.mxu0 0.0
        %5733 = vmatprep.subr.mxu0 0.0
        %5734 = vmatpush1.msra.mxu0 0.0
        %5735 = vmatprep.subr.mxu0 0.0
        %5736 = vmatpush1.msra.mxu0 0.0
        %5737 = vmatprep.subr.mxu0 0.0
        %5738 = vmatpush1.msra.mxu0 0.0
        %5739 = vmatprep.subr.mxu0 0.0
        %5740 = vmatpush1.msra.mxu0 0.0
        %5741 = vmatprep.subr.mxu0 0.0
        %5742 = vmatpush1.msra.mxu0 0.0
        %5743 = vmatprep.subr.mxu0 0.0
        %5744 = vmatpush1.msra.mxu0 0.0
        %5745 = vmatprep.mubr.f32.mxu0 0.0
        %5746 = vmatmul.mubr.f32.gmra.mrb[0].mxu0 %v5670
        %v5747 = vpop.f32.mrb[0].mxu0
        %v5748 = vadd.f32 %v5667, %v5747
        %v5749 = vpop.f32.mrb[0].mxu0
        %5750 = vmatprep.mubr.f32.mxu0 0.0
        %5751 = vmatmul.mubr.f32.gmra.mrb[0].mxu0 %v5673
        %v5752 = vpop.f32.mrb[0].mxu0
        %v5753 = vadd.f32 %v5667, %v5752
        %v5754 = vpop.f32.mrb[0].mxu0
        %5755 = vmatprep.mubr.f32.mxu0 0.0
        %5756 = vmatmul.mubr.f32.gmra.mrb[0].mxu0 %v5676
        %v5757 = vpop.f32.mrb[0].mxu0
        %v5758 = vadd.f32 %v5667, %v5757
        %v5759 = vpop.f32.mrb[0].mxu0
        %5760 = vmatprep.mubr.f32.mxu0 0.0
        %5761 = vmatmul.mubr.f32.gmra.mrb[0].mxu0 %v5679
        %v5762 = vpop.f32.mrb[0].mxu0
        %v5763 = vadd.f32 %v5667, %v5762
        %v5764 = vpop.f32.mrb[0].mxu0
        %5765 = vdwg.mxu0
        %v5766 = vmax.f32 %v5748, 0.0
        %v5767 = vmax.f32 %v5753, 0.0
        %v5768 = vmax.f32 %v5758, 0.0
        %v5769 = vmax.f32 %v5763, 0.0
        %v5770 = vld [vmem:[%s1263] sm:$0xff]
        %v5771 = vld [vmem:[%s1263 + $0x8] sm:$0xff]
        %v5772 = vld [vmem:[%s1263 + $0x10] sm:$0xff]
        %v5773 = vld [vmem:[%s1263 + $0x18] sm:$0xff]
        %v5774 = vld [vmem:[%s1263 + $0x20] sm:$0xff]
        %v5775 = vld [vmem:[%s1263 + $0x28] sm:$0xff]
        %v5776 = vld [vmem:[%s1263 + $0x30] sm:$0xff]
        %v5777 = vld [vmem:[%s1263 + $0x38] sm:$0xff]
        %v5778 = vld [vmem:[%s1263 + $0x40] sm:$0xff]
        %v5779 = vld [vmem:[%s1263 + $0x48] sm:$0xff]
        %v5780 = vld [vmem:[%s1263 + $0x50] sm:$0xff]
        %v5781 = vld [vmem:[%s1263 + $0x58] sm:$0xff]
        %v5782 = vld [vmem:[%s1263 + $0x60] sm:$0xff]
        %v5783 = vld [vmem:[%s1263 + $0x68] sm:$0xff]
        %v5784 = vld [vmem:[%s1263 + $0x70] sm:$0xff]
        %v5785 = vld [vmem:[%s1263 + $0x78] sm:$0xff]
        %v5786 = vld [vmem:[%s1266] sm:$0x1]
        %v5788 = vlaneseq
        %v5789 = vshrl.u32 %v5788, 7
        %v5790 = vsub.s32 0, %v5789
        %v5791 = vrot.slane %v5786, %v5790
        %5793 = vmatprep.subr.mxu0 0.0
        %5794 = vmatpush1.msra.mxu0 %v5770
        %5795 = vmatprep.subr.mxu0 0.0
        %5796 = vmatpush1.msra.mxu0 %v5771
        %5797 = vmatprep.subr.mxu0 0.0
        %5798 = vmatpush1.msra.mxu0 %v5772
        %5799 = vmatprep.subr.mxu0 0.0
        %5800 = vmatpush1.msra.mxu0 %v5773
        %5801 = vmatprep.subr.mxu0 0.0
        %5802 = vmatpush1.msra.mxu0 %v5774
        %5803 = vmatprep.subr.mxu0 0.0
        %5804 = vmatpush1.msra.mxu0 %v5775
        %5805 = vmatprep.subr.mxu0 0.0
        %5806 = vmatpush1.msra.mxu0 %v5776
        %5807 = vmatprep.subr.mxu0 0.0
        %5808 = vmatpush1.msra.mxu0 %v5777
        %5809 = vmatprep.subr.mxu0 0.0
        %5810 = vmatpush1.msra.mxu0 %v5778
        %5811 = vmatprep.subr.mxu0 0.0
        %5812 = vmatpush1.msra.mxu0 %v5779
        %5813 = vmatprep.subr.mxu0 0.0
        %5814 = vmatpush1.msra.mxu0 %v5780
        %5815 = vmatprep.subr.mxu0 0.0
        %5816 = vmatpush1.msra.mxu0 %v5781
        %5817 = vmatprep.subr.mxu0 0.0
        %5818 = vmatpush1.msra.mxu0 %v5782
        %5819 = vmatprep.subr.mxu0 0.0
        %5820 = vmatpush1.msra.mxu0 %v5783
        %5821 = vmatprep.subr.mxu0 0.0
        %5822 = vmatpush1.msra.mxu0 %v5784
        %5823 = vmatprep.subr.mxu0 0.0
        %5824 = vmatpush1.msra.mxu0 %v5785
        %5825 = vmatprep.subr.mxu0 0.0
        %5826 = vmatpush1.msra.mxu0 0.0
        %5827 = vmatprep.subr.mxu0 0.0
        %5828 = vmatpush1.msra.mxu0 0.0
        %5829 = vmatprep.subr.mxu0 0.0
        %5830 = vmatpush1.msra.mxu0 0.0
        %5831 = vmatprep.subr.mxu0 0.0
        %5832 = vmatpush1.msra.mxu0 0.0
        %5833 = vmatprep.subr.mxu0 0.0
        %5834 = vmatpush1.msra.mxu0 0.0
        %5835 = vmatprep.subr.mxu0 0.0
        %5836 = vmatpush1.msra.mxu0 0.0
        %5837 = vmatprep.subr.mxu0 0.0
        %5838 = vmatpush1.msra.mxu0 0.0
        %5839 = vmatprep.subr.mxu0 0.0
        %5840 = vmatpush1.msra.mxu0 0.0
        %5841 = vmatprep.subr.mxu0 0.0
        %5842 = vmatpush1.msra.mxu0 0.0
        %5843 = vmatprep.subr.mxu0 0.0
        %5844 = vmatpush1.msra.mxu0 0.0
        %5845 = vmatprep.subr.mxu0 0.0
        %5846 = vmatpush1.msra.mxu0 0.0
        %5847 = vmatprep.subr.mxu0 0.0
        %5848 = vmatpush1.msra.mxu0 0.0
        %5849 = vmatprep.subr.mxu0 0.0
        %5850 = vmatpush1.msra.mxu0 0.0
        %5851 = vmatprep.subr.mxu0 0.0
        %5852 = vmatpush1.msra.mxu0 0.0
        %5853 = vmatprep.subr.mxu0 0.0
        %5854 = vmatpush1.msra.mxu0 0.0
        %5855 = vmatprep.subr.mxu0 0.0
        %5856 = vmatpush1.msra.mxu0 0.0
        %5857 = vmatprep.mubr.f32.mxu0 0.0
        %5858 = vmatmul.mubr.f32.gmra.mrb[0].mxu0 %v5766
        %v5859 = vpop.f32.mrb[0].mxu0
        %v5860 = vadd.f32 %v5791, %v5859
        %v5861 = vpop.f32.mrb[0].mxu0
        %5862 = vmatprep.mubr.f32.mxu0 0.0
        %5863 = vmatmul.mubr.f32.gmra.mrb[0].mxu0 %v5767
        %v5864 = vpop.f32.mrb[0].mxu0
        %v5865 = vadd.f32 %v5791, %v5864
        %v5866 = vpop.f32.mrb[0].mxu0
        %5867 = vmatprep.mubr.f32.mxu0 0.0
        %5868 = vmatmul.mubr.f32.gmra.mrb[0].mxu0 %v5768
        %v5869 = vpop.f32.mrb[0].mxu0
        %v5870 = vadd.f32 %v5791, %v5869
        %v5871 = vpop.f32.mrb[0].mxu0
        %5872 = vmatprep.mubr.f32.mxu0 0.0
        %5873 = vmatmul.mubr.f32.gmra.mrb[0].mxu0 %v5769
        %v5874 = vpop.f32.mrb[0].mxu0
        %v5875 = vadd.f32 %v5791, %v5874
        %v5876 = vpop.f32.mrb[0].mxu0
        %5877 = vdwg.mxu0
        %v5878 = vadd.f32 %v5860, %v5580
        %v5879 = vadd.f32 %v5865, %v5581
        %v5880 = vadd.f32 %v5870, %v5582
        %v5881 = vadd.f32 %v5875, %v5583
        %v5882 = vmul.f32 %v1772, %v5878
        %v5883 = vmul.f32 %v1777, %v5879
        %v5884 = vmul.f32 %v1782, %v5880
        %v5885 = vmul.f32 %v1787, %v5881
        %v5886 = vadd.f32 %v1281, %v5882
        %v5887 = vadd.f32 %v1282, %v5883
        %v5888 = vadd.f32 %v1283, %v5884
        %v5889 = vadd.f32 %v1284, %v5885
        %5890 = vst.msk [vmem:[#allocation2] sm:$0xff] %vm1303, %v5886
        %5891 = vst.msk [vmem:[#allocation2 + $0x8] sm:$0xff] %vm1303, %v5887
        %5892 = vst.msk [vmem:[#allocation2 + $0x10] sm:$0xff] %vm1303, %v5888
        %5893 = vst.msk [vmem:[#allocation2 + $0x18] sm:$0xff] %vm1303, %v5889
        %p5894 = scmp.eq.s32.totalorder %s45, 2
        // Predicated region
        $region145: #{tpu_custom_call.1} parent=123 // pred_check
          %p5895 = pneg %p5894
        $region146: #{tpu_custom_call.1} parent=123 // pred_check_branch
          %5897 = sbr.rel (%p5895) target = $region148
        $region147: #{tpu_custom_call.1} parent=123 // pred_region
          %5898 = vst.msk [vmem:[#allocation11] sm:$0xff] %vm1303, %v5886
          %5899 = vst.msk [vmem:[#allocation11 + $0x8] sm:$0xff] %vm1303, %v5887
          %5900 = vst.msk [vmem:[#allocation11 + $0x10] sm:$0xff] %vm1303, %v5888
          %5901 = vst.msk [vmem:[#allocation11 + $0x18] sm:$0xff] %vm1303, %v5889
        $region148: #{tpu_custom_call.1} parent=123 // pred_fallthru
          _
        // Predicated region
        $region149: #{tpu_custom_call.1} parent=123 // pred_check
          %p5902 = pneg %p746
        $region150: #{tpu_custom_call.1} parent=123 // pred_check_branch
          %5904 = sbr.rel (%p5902) target = $region152
        $region151: #{tpu_custom_call.1} parent=123 // pred_region
          %s5905 = smul.u32 4, %s44
          %s5907 = ssub.s32 512, 512
          %5908 = vsyncadd [#allocation6], %s5907
          %s5909 = smul.addr %s5905, 128
          %s5910 = scalar_lea.hbm %s26, %s5909
          %s5911 = sshll.u32 [#allocation11], 4
          %s5912 = int_to_ptr.vmem [resolvable:$true] %s5911
          %5917 = dma.vmem_to_hbm [thread:$0]  %s5912, 512, %s5910, [#allocation6], 128, 128, 8
        $region152: #{tpu_custom_call.1} parent=123 // pred_fallthru
          _
        // Predicated region
        $region153: #{tpu_custom_call.1} parent=123 // pred_check
          %p5918 = pneg %p746
        $region154: #{tpu_custom_call.1} parent=123 // pred_check_branch
          %5920 = sbr.rel (%p5918) target = $region156
        $region155: #{tpu_custom_call.1} parent=123 // pred_region
          %5921 = dma.done [#allocation6], 512
        $region156: #{tpu_custom_call.1} parent=123 // pred_fallthru
          _
      $region124: #{tpu_custom_call.1} parent=5 // pred_fallthru
        _
      %p5922 = scmp.le.s32.totalorder 2, %s35
      // Predicated region
      $region157: #{tpu_custom_call.1} parent=5 // pred_check
        %p5923 = pneg %p5922
      $region158: #{tpu_custom_call.1} parent=5 // pred_check_branch
        %5925 = sbr.rel (%p5923) target = $region160
      $region159: #{tpu_custom_call.1} parent=5 // pred_region
        %s5926 = ssub.s32 %s35, 2
      $region160: #{tpu_custom_call.1} parent=5 // pred_fallthru
        _
    $region6: #{tpu_custom_call.1} parent=1 // loop_footer
      %s39 = sadd.s32 1, %s35
    $region7: #{tpu_custom_call.1} parent=1 // loop_footer_branch
      %34 = sbr.rel target = $region3
    $region8: #{tpu_custom_call.1} parent=1 // loop_exit
      _
    %5927 = vsyncpa [#allocation5], 1
    %s5928 = scalar_lea.sflag [#allocation5], 1
    %5929 = vsyncpa %s5928, 1
    %5930 = vsyncpa [#allocation8], 1
    %5931 = vsyncpa [#allocation6], 1
    %s5932 = scalar_lea.sflag [#allocation6], 1
    %5933 = vsyncpa %s5932, 1

</llo_original>
